<compile_context>
chip_gen: v7x
topology: tpu7x:2x2x1
jax: 0.10.0
libtpu: 0.0.40
codegen_flags: <defaults>
</compile_context>

<pallas_src>
import functools

import jax
import jax.numpy as jnp
from jax.experimental import pallas as pl
from jax.experimental.pallas import tpu as pltpu

H = 200          # GRU / projected feature size (image_ln output)
E = 512          # image embedding dim (== hidden_size in the PyTorch module)
T = 25           # source image sequence length (hard-coded in the module)
LN_EPS = 1e-12   # eps of both LayerNorms in the module


def _round_up(x, m):
    return (x + m - 1) // m * m


def _layernorm(x, gamma, beta, eps=LN_EPS):
    """PyTorch-style LayerNorm over the last dim (biased variance), f32 math."""
    mean = jnp.mean(x, axis=-1, keepdims=True)
    var = jnp.mean(jnp.square(x - mean), axis=-1, keepdims=True)
    return (x - mean) * jax.lax.rsqrt(var + eps) * gamma + beta


def narm_kernel(src_ref, tgt_ref,
                w_img_ref, b_img_ref,
                w_ih_r_ref, w_ih_z_ref, w_ih_n_ref,
                b_ir_ref, b_iz_ref, b_in_ref,
                w_hh_r_ref, w_hh_z_ref, w_hh_n_ref, b_hn_ref,
                g_ct1_ref, g_ctg_ref, b_ct1_ref, b_ctg_ref,
                g_ti_ref, b_ti_ref,
                bmat_a_ref, bmat_b_ref,
                scores_ref,
                gi_r_ref, gi_z_ref, gi_n_ref,
                *, tile_b):
    f32 = jnp.float32
    bf16 = jnp.bfloat16
    bT = tile_b

    # ---- source images: relu(image_ln(img_embedding(x))) -------------------
    w_img = w_img_ref[...]                                   # (512, 200) bf16
    b_img = b_img_ref[...]                                   # (1, 200)   f32
    src = src_ref[...].reshape(T * bT, E)                    # bf16, time-major rows
    src200 = jnp.maximum(
        jnp.dot(src, w_img, preferred_element_type=f32) + b_img, 0.0)   # (T*bT, 200)

    # ---- per-gate input projections, one big MXU pass each, staged to VMEM --
    src200_b = src200.astype(bf16)
    gi_r_ref[...] = (jnp.dot(src200_b, w_ih_r_ref[...], preferred_element_type=f32)
                     + b_ir_ref[...]).reshape(T, bT, H)
    gi_z_ref[...] = (jnp.dot(src200_b, w_ih_z_ref[...], preferred_element_type=f32)
                     + b_iz_ref[...]).reshape(T, bT, H)
    gi_n_ref[...] = (jnp.dot(src200_b, w_ih_n_ref[...], preferred_element_type=f32)
                     + b_in_ref[...]).reshape(T, bT, H)

    # ---- GRU recurrence over the 25 timesteps --------------------------------
    w_hh_r = w_hh_r_ref[...]                                 # (200, 200) bf16
    w_hh_z = w_hh_z_ref[...]
    w_hh_n = w_hh_n_ref[...]
    b_hn = jnp.broadcast_to(b_hn_ref[...], (bT, H))          # hoisted broadcast

    def gru_step(t, carry):
        h, hsum = carry
        hb = h.astype(bf16)
        gh_r = jnp.dot(hb, w_hh_r, preferred_element_type=f32)
        gh_z = jnp.dot(hb, w_hh_z, preferred_element_type=f32)
        gh_n = jnp.dot(hb, w_hh_n, preferred_element_type=f32) + b_hn
        r = jax.nn.sigmoid(gi_r_ref[t] + gh_r)               # b_hh_r folded into gi_r
        z = jax.nn.sigmoid(gi_z_ref[t] + gh_z)               # b_hh_z folded into gi_z
        n = jnp.tanh(gi_n_ref[t] + r * gh_n)
        h_new = (1.0 - z) * n + z * h
        return h_new, hsum + h_new

    h0 = jnp.zeros((bT, H), f32)
    h, hsum = jax.lax.fori_loop(0, T, gru_step, (h0, h0), unroll=True)

    # alpha = softmax over a size-1 axis == 1 exactly, so the attention sum is
    # just the sum of all 25 GRU outputs.
    c_t_1 = hsum                                             # (bT, 200)
    c_t_g = h                                                # (bT, 200), last hidden

    # layer_norm_ct over the virtual concat [c_t_1, c_t_g] without concatenating
    mean = (jnp.sum(c_t_1, axis=-1, keepdims=True)
            + jnp.sum(c_t_g, axis=-1, keepdims=True)) * (1.0 / (2 * H))
    d1 = c_t_1 - mean
    dg = c_t_g - mean
    var = (jnp.sum(d1 * d1, axis=-1, keepdims=True)
           + jnp.sum(dg * dg, axis=-1, keepdims=True)) * (1.0 / (2 * H))
    inv = jax.lax.rsqrt(var + LN_EPS)
    ct1_n = d1 * inv * g_ct1_ref[...] + b_ct1_ref[...]       # (bT, 200)
    ctg_n = dg * inv * g_ctg_ref[...] + b_ctg_ref[...]       # (bT, 200)

    # ---- target images: relu(image_ln(emb)) -> layer_norm_ti -----------------
    tgt = tgt_ref[...].reshape(2 * bT, E)                    # image-major rows
    tgt200 = jnp.maximum(
        jnp.dot(tgt, w_img, preferred_element_type=f32) + b_img, 0.0)
    tgt_out = _layernorm(tgt200, g_ti_ref[...], b_ti_ref[...])          # (2*bT, 200)

    # ---- bilinear scoring (1/sqrt(200)/20 pre-folded into bmat halves) -------
    tgt_b = tgt_out.astype(bf16)
    ma = jnp.dot(tgt_b, bmat_a_ref[...], preferred_element_type=f32)    # (2*bT, 200)
    mb = jnp.dot(tgt_b, bmat_b_ref[...], preferred_element_type=f32)
    s0 = jnp.sum(ma[0:bT] * ct1_n + mb[0:bT] * ctg_n, axis=-1, keepdims=True)
    s1 = jnp.sum(ma[bT:2 * bT] * ct1_n + mb[bT:2 * bT] * ctg_n,
                 axis=-1, keepdims=True)
    scores_ref[...] = jnp.tanh(jnp.concatenate([s0, s1], axis=-1))      # (bT, 2)


def init_params(key, n_images=16):
    """Deterministic, in-script parameter init in PyTorch layout."""
    ks = jax.random.split(key, 8)
    p = {}
    p["img_embedding"] = jax.random.normal(ks[0], (n_images, E), jnp.float32) * 0.5
    p["image_ln.weight"] = jax.random.normal(ks[1], (H, E), jnp.float32) * 0.05
    p["image_ln.bias"] = jax.random.normal(ks[2], (H,), jnp.float32) * 0.05
    p["gru.weight_ih"] = jax.random.normal(ks[3], (3 * H, H), jnp.float32) * 0.05
    p["gru.bias_ih"] = jax.random.normal(ks[4], (3 * H,), jnp.float32) * 0.05
    p["gru.weight_hh"] = jax.random.normal(ks[5], (3 * H, H), jnp.float32) * 0.05
    p["gru.bias_hh"] = jax.random.normal(ks[6], (3 * H,), jnp.float32) * 0.05
    p["layer_norm_ct.weight"] = jnp.ones((2 * H,), jnp.float32)
    p["layer_norm_ct.bias"] = jnp.zeros((2 * H,), jnp.float32)
    p["layer_norm_ti.weight"] = jnp.ones((H,), jnp.float32)
    p["layer_norm_ti.bias"] = jnp.zeros((H,), jnp.float32)
    p["B"] = jax.random.normal(ks[7], (H, 2 * H), jnp.float32) * 0.05
    return p


_KERNEL_PARAM_ORDER = (
    "w_img", "b_img",
    "w_ih_r", "w_ih_z", "w_ih_n", "b_ir", "b_iz", "b_in",
    "w_hh_r", "w_hh_z", "w_hh_n", "b_hn",
    "g_ct1", "g_ctg", "b_ct1", "b_ctg", "g_ti", "b_ti",
    "bmat_a", "bmat_b",
)


def prepare_params(p):
    """PyTorch layout -> kernel layout (gate-aligned, bias-folded, bf16 MXU)."""
    bf16 = jnp.bfloat16
    w_ih, b_ih = p["gru.weight_ih"], p["gru.bias_ih"]
    w_hh, b_hh = p["gru.weight_hh"], p["gru.bias_hh"]
    scale = 1.0 / (float(H) ** 0.5 * 20.0)          # 1/sqrt(200)/20 folded into B
    k = {
        "w_img":  p["image_ln.weight"].T.astype(bf16),            # (512, 200)
        "b_img":  p["image_ln.bias"].reshape(1, H),
        "w_ih_r": w_ih[0:H].T.astype(bf16),
        "w_ih_z": w_ih[H:2 * H].T.astype(bf16),
        "w_ih_n": w_ih[2 * H:3 * H].T.astype(bf16),
        "b_ir":   (b_ih[0:H] + b_hh[0:H]).reshape(1, H),          # b_hh_r folded
        "b_iz":   (b_ih[H:2 * H] + b_hh[H:2 * H]).reshape(1, H),  # b_hh_z folded
        "b_in":   b_ih[2 * H:3 * H].reshape(1, H),
        "w_hh_r": w_hh[0:H].T.astype(bf16),
        "w_hh_z": w_hh[H:2 * H].T.astype(bf16),
        "w_hh_n": w_hh[2 * H:3 * H].T.astype(bf16),
        "b_hn":   b_hh[2 * H:3 * H].reshape(1, H),
        "g_ct1":  p["layer_norm_ct.weight"][0:H].reshape(1, H),
        "g_ctg":  p["layer_norm_ct.weight"][H:2 * H].reshape(1, H),
        "b_ct1":  p["layer_norm_ct.bias"][0:H].reshape(1, H),
        "b_ctg":  p["layer_norm_ct.bias"][H:2 * H].reshape(1, H),
        "g_ti":   p["layer_norm_ti.weight"].reshape(1, H),
        "b_ti":   p["layer_norm_ti.bias"].reshape(1, H),
        "bmat_a": (p["B"][:, 0:H] * scale).astype(bf16),          # (200, 200)
        "bmat_b": (p["B"][:, H:2 * H] * scale).astype(bf16),      # (200, 200)
    }
    return k


def narm_forward(params, source_query, source_image, source_image_feature,
                 source_image_cnt, target_query, target_image, target_score):
    """Mirrors NARM.forward; returns (score_0, score_1), each (B, 1)."""
    del source_image_feature, source_image_cnt, target_query, target_score  # unused (as in PyTorch)
    batch = source_query.shape[0]
    kp = prepare_params(params)

    tile_b = min(128, _round_up(batch, 8))        # sublane-aligned batch tile
    b_pad = _round_up(batch, tile_b)
    pad = b_pad - batch
    n_tiles = b_pad // tile_b

    emb = params["img_embedding"]
    src = jnp.transpose(emb[source_image], (1, 0, 2))             # (25, B, 512) time-major
    src = jnp.pad(src, ((0, 0), (0, pad), (0, 0))).astype(jnp.bfloat16)
    tgt = jnp.transpose(emb[target_image], (1, 0, 2))             # (2, B, 512) image-major
    tgt = jnp.pad(tgt, ((0, 0), (0, pad), (0, 0))).astype(jnp.bfloat16)

    weights = [kp[name] for name in _KERNEL_PARAM_ORDER]

    grid_spec = pltpu.PrefetchScalarGridSpec(
        num_scalar_prefetch=0,
        grid=(n_tiles,),
        in_specs=[pl.BlockSpec((T, tile_b, E), lambda i: (0, i, 0)),
                  pl.BlockSpec((2, tile_b, E), lambda i: (0, i, 0))]
                 + [pl.BlockSpec(w.shape, lambda i: (0, 0)) for w in weights],
        out_specs=pl.BlockSpec((tile_b, 2), lambda i: (i, 0)),
        scratch_shapes=[pltpu.VMEM((T, tile_b, H), jnp.float32) for _ in range(3)],
    )

    scores = pl.pallas_call(
        functools.partial(narm_kernel, tile_b=tile_b),
        out_shape=jax.ShapeDtypeStruct((b_pad, 2), jnp.float32),
        grid_spec=grid_spec,
        compiler_params=pltpu.CompilerParams(
            dimension_semantics=("parallel",),           # megacore on v7x
            vmem_limit_bytes=48 * 1024 * 1024),          # fits v7x 64 MiB ceiling
    )(src, tgt, *weights)

    scores = scores[:batch]                              # trim padded rows
    return scores[:, 0:1], scores[:, 1:2]


if __name__ == "__main__":
    key = jax.random.PRNGKey(0)
    k_par, k_src, k_tgt = jax.random.split(key, 3)

    batch = 2
    n_images = 16
    params = init_params(k_par, n_images=n_images)

    # Inputs (integer id tensors, as fed to the embedding layers in PyTorch).
    source_query = jnp.zeros((batch, 10), jnp.int32)                   # only shape[0] is used
    source_image = jax.random.randint(k_src, (batch, T), 0, n_images)  # (2, 25)
    target_image = jax.random.randint(k_tgt, (batch, 2), 0, n_images)  # (2, 2)
    # Unused-by-forward inputs (kept for signature parity).
    source_image_feature = jnp.zeros((batch, T, E), jnp.float32)
    source_image_cnt = jnp.full((batch,), T, jnp.int32)
    target_query = jnp.zeros((batch, 10), jnp.int32)
    target_score = jnp.zeros((batch, 2), jnp.float32)

    score0, score1 = narm_forward(params, source_query, source_image,
                                  source_image_feature, source_image_cnt,
                                  target_query, target_image, target_score)
    jax.block_until_ready((score0, score1))
    assert score0.shape == (batch, 1) and score1.shape == (batch, 1)
    assert bool(jnp.all(jnp.isfinite(score0))) and bool(jnp.all(jnp.isfinite(score1)))
    print("KERNEL_OK")
</pallas_src>

<mosaic_0001>
module attributes {stable_mosaic.version = 11 : i64} {
  func.func @narm_kernel(%arg0: i32, %arg1: memref<25x8x512xbf16, #tpu.memory_space<vmem>>, %arg2: memref<2x8x512xbf16, #tpu.memory_space<vmem>>, %arg3: memref<512x200xbf16, #tpu.memory_space<vmem>>, %arg4: memref<1x200xf32, #tpu.memory_space<vmem>>, %arg5: memref<200x200xbf16, #tpu.memory_space<vmem>>, %arg6: memref<200x200xbf16, #tpu.memory_space<vmem>>, %arg7: memref<200x200xbf16, #tpu.memory_space<vmem>>, %arg8: memref<1x200xf32, #tpu.memory_space<vmem>>, %arg9: memref<1x200xf32, #tpu.memory_space<vmem>>, %arg10: memref<1x200xf32, #tpu.memory_space<vmem>>, %arg11: memref<200x200xbf16, #tpu.memory_space<vmem>>, %arg12: memref<200x200xbf16, #tpu.memory_space<vmem>>, %arg13: memref<200x200xbf16, #tpu.memory_space<vmem>>, %arg14: memref<1x200xf32, #tpu.memory_space<vmem>>, %arg15: memref<1x200xf32, #tpu.memory_space<vmem>>, %arg16: memref<1x200xf32, #tpu.memory_space<vmem>>, %arg17: memref<1x200xf32, #tpu.memory_space<vmem>>, %arg18: memref<1x200xf32, #tpu.memory_space<vmem>>, %arg19: memref<1x200xf32, #tpu.memory_space<vmem>>, %arg20: memref<1x200xf32, #tpu.memory_space<vmem>>, %arg21: memref<200x200xbf16, #tpu.memory_space<vmem>>, %arg22: memref<200x200xbf16, #tpu.memory_space<vmem>>, %arg23: memref<8x2xf32, #tpu.memory_space<vmem>>, %arg24: memref<25x8x200xf32, #tpu.memory_space<vmem>>, %arg25: memref<25x8x200xf32, #tpu.memory_space<vmem>>, %arg26: memref<25x8x200xf32, #tpu.memory_space<vmem>>) attributes {dimension_semantics = [#tpu.dimension_semantics<parallel>], iteration_bounds = array<i64: 1>, scalar_prefetch = 0 : i64, scratch_operands = 3 : i64, tpu.core_type = #tpu.core_type<tc>, window_params = [{transform_indices = @transform_0, window_bounds = array<i64: 25, 8, 512>}, {transform_indices = @transform_1, window_bounds = array<i64: 2, 8, 512>}, {pipeline_mode = #tpu.pipeline_mode<synchronous>, transform_indices = @transform_2, window_bounds = array<i64: 512, 200>}, {pipeline_mode = #tpu.pipeline_mode<synchronous>, transform_indices = @transform_3, window_bounds = array<i64: 1, 200>}, {pipeline_mode = #tpu.pipeline_mode<synchronous>, transform_indices = @transform_4, window_bounds = array<i64: 200, 200>}, {pipeline_mode = #tpu.pipeline_mode<synchronous>, transform_indices = @transform_5, window_bounds = array<i64: 200, 200>}, {pipeline_mode = #tpu.pipeline_mode<synchronous>, transform_indices = @transform_6, window_bounds = array<i64: 200, 200>}, {pipeline_mode = #tpu.pipeline_mode<synchronous>, transform_indices = @transform_7, window_bounds = array<i64: 1, 200>}, {pipeline_mode = #tpu.pipeline_mode<synchronous>, transform_indices = @transform_8, window_bounds = array<i64: 1, 200>}, {pipeline_mode = #tpu.pipeline_mode<synchronous>, transform_indices = @transform_9, window_bounds = array<i64: 1, 200>}, {pipeline_mode = #tpu.pipeline_mode<synchronous>, transform_indices = @transform_10, window_bounds = array<i64: 200, 200>}, {pipeline_mode = #tpu.pipeline_mode<synchronous>, transform_indices = @transform_11, window_bounds = array<i64: 200, 200>}, {pipeline_mode = #tpu.pipeline_mode<synchronous>, transform_indices = @transform_12, window_bounds = array<i64: 200, 200>}, {pipeline_mode = #tpu.pipeline_mode<synchronous>, transform_indices = @transform_13, window_bounds = array<i64: 1, 200>}, {pipeline_mode = #tpu.pipeline_mode<synchronous>, transform_indices = @transform_14, window_bounds = array<i64: 1, 200>}, {pipeline_mode = #tpu.pipeline_mode<synchronous>, transform_indices = @transform_15, window_bounds = array<i64: 1, 200>}, {pipeline_mode = #tpu.pipeline_mode<synchronous>, transform_indices = @transform_16, window_bounds = array<i64: 1, 200>}, {pipeline_mode = #tpu.pipeline_mode<synchronous>, transform_indices = @transform_17, window_bounds = array<i64: 1, 200>}, {pipeline_mode = #tpu.pipeline_mode<synchronous>, transform_indices = @transform_18, window_bounds = array<i64: 1, 200>}, {pipeline_mode = #tpu.pipeline_mode<synchronous>, transform_indices = @transform_19, window_bounds = array<i64: 1, 200>}, {pipeline_mode = #tpu.pipeline_mode<synchronous>, transform_indices = @transform_20, window_bounds = array<i64: 200, 200>}, {pipeline_mode = #tpu.pipeline_mode<synchronous>, transform_indices = @transform_21, window_bounds = array<i64: 200, 200>}, {transform_indices = @transform_22, window_bounds = array<i64: 8, 2>}]} {
    %c0 = arith.constant 0 : index
    %c0_0 = arith.constant 0 : index
    %0 = vector.load %arg3[%c0, %c0_0] : memref<512x200xbf16, #tpu.memory_space<vmem>>, vector<512x200xbf16>
    %c0_1 = arith.constant 0 : index
    %c0_2 = arith.constant 0 : index
    %1 = vector.load %arg4[%c0_1, %c0_2] : memref<1x200xf32, #tpu.memory_space<vmem>>, vector<1x200xf32>
    %c0_3 = arith.constant 0 : index
    %c0_4 = arith.constant 0 : index
    %c0_5 = arith.constant 0 : index
    %2 = vector.load %arg1[%c0_3, %c0_4, %c0_5] : memref<25x8x512xbf16, #tpu.memory_space<vmem>>, vector<25x8x512xbf16>
    %3 = vector.shape_cast %2 : vector<25x8x512xbf16> to vector<200x512xbf16>
    %cst = arith.constant dense<0.000000e+00> : vector<200x200xf32>
    %4 = tpu.matmul %3, %0, %cst {dimension_numbers = #tpu.dot_dimension_numbers<[1], [0], [0], [1], [0, 0, 1, 1], [], []>} : vector<200x512xbf16>, vector<512x200xbf16>, vector<200x200xf32> -> vector<200x200xf32>
    %5 = vector.broadcast %1 : vector<1x200xf32> to vector<200x200xf32>
    %6 = arith.addf %4, %5 : vector<200x200xf32>
    %cst_6 = arith.constant 0.000000e+00 : f32
    %7 = vector.broadcast %cst_6 : f32 to vector<200x200xf32>
    %8 = arith.maximumf %6, %7 : vector<200x200xf32>
    %9 = arith.truncf %8 : vector<200x200xf32> to vector<200x200xbf16>
    %c0_7 = arith.constant 0 : index
    %c0_8 = arith.constant 0 : index
    %10 = vector.load %arg5[%c0_7, %c0_8] : memref<200x200xbf16, #tpu.memory_space<vmem>>, vector<200x200xbf16>
    %cst_9 = arith.constant dense<0.000000e+00> : vector<200x200xf32>
    %11 = tpu.matmul %9, %10, %cst_9 {dimension_numbers = #tpu.dot_dimension_numbers<[1], [0], [0], [1], [0, 0, 1, 1], [], []>} : vector<200x200xbf16>, vector<200x200xbf16>, vector<200x200xf32> -> vector<200x200xf32>
    %c0_10 = arith.constant 0 : index
    %c0_11 = arith.constant 0 : index
    %12 = vector.load %arg8[%c0_10, %c0_11] : memref<1x200xf32, #tpu.memory_space<vmem>>, vector<1x200xf32>
    %13 = vector.broadcast %12 : vector<1x200xf32> to vector<200x200xf32>
    %14 = arith.addf %11, %13 : vector<200x200xf32>
    %15 = vector.shape_cast %14 : vector<200x200xf32> to vector<25x8x200xf32>
    %c0_12 = arith.constant 0 : index
    %c0_13 = arith.constant 0 : index
    %c0_14 = arith.constant 0 : index
    %16 = vector.load %arg24[%c0_12, %c0_13, %c0_14] : memref<25x8x200xf32, #tpu.memory_space<vmem>>, vector<25x8x200xf32>
    tpu.vector_store %arg24[%c0_12, %c0_13, %c0_14], %15 {strides = array<i32>} : memref<25x8x200xf32, #tpu.memory_space<vmem>>, vector<25x8x200xf32>,
    %c0_15 = arith.constant 0 : index
    %c0_16 = arith.constant 0 : index
    %17 = vector.load %arg6[%c0_15, %c0_16] : memref<200x200xbf16, #tpu.memory_space<vmem>>, vector<200x200xbf16>
    %cst_17 = arith.constant dense<0.000000e+00> : vector<200x200xf32>
    %18 = tpu.matmul %9, %17, %cst_17 {dimension_numbers = #tpu.dot_dimension_numbers<[1], [0], [0], [1], [0, 0, 1, 1], [], []>} : vector<200x200xbf16>, vector<200x200xbf16>, vector<200x200xf32> -> vector<200x200xf32>
    %c0_18 = arith.constant 0 : index
    %c0_19 = arith.constant 0 : index
    %19 = vector.load %arg9[%c0_18, %c0_19] : memref<1x200xf32, #tpu.memory_space<vmem>>, vector<1x200xf32>
    %20 = vector.broadcast %19 : vector<1x200xf32> to vector<200x200xf32>
    %21 = arith.addf %18, %20 : vector<200x200xf32>
    %22 = vector.shape_cast %21 : vector<200x200xf32> to vector<25x8x200xf32>
    %c0_20 = arith.constant 0 : index
    %c0_21 = arith.constant 0 : index
    %c0_22 = arith.constant 0 : index
    %23 = vector.load %arg25[%c0_20, %c0_21, %c0_22] : memref<25x8x200xf32, #tpu.memory_space<vmem>>, vector<25x8x200xf32>
    tpu.vector_store %arg25[%c0_20, %c0_21, %c0_22], %22 {strides = array<i32>} : memref<25x8x200xf32, #tpu.memory_space<vmem>>, vector<25x8x200xf32>,
    %c0_23 = arith.constant 0 : index
    %c0_24 = arith.constant 0 : index
    %24 = vector.load %arg7[%c0_23, %c0_24] : memref<200x200xbf16, #tpu.memory_space<vmem>>, vector<200x200xbf16>
    %cst_25 = arith.constant dense<0.000000e+00> : vector<200x200xf32>
    %25 = tpu.matmul %9, %24, %cst_25 {dimension_numbers = #tpu.dot_dimension_numbers<[1], [0], [0], [1], [0, 0, 1, 1], [], []>} : vector<200x200xbf16>, vector<200x200xbf16>, vector<200x200xf32> -> vector<200x200xf32>
    %c0_26 = arith.constant 0 : index
    %c0_27 = arith.constant 0 : index
    %26 = vector.load %arg10[%c0_26, %c0_27] : memref<1x200xf32, #tpu.memory_space<vmem>>, vector<1x200xf32>
    %27 = vector.broadcast %26 : vector<1x200xf32> to vector<200x200xf32>
    %28 = arith.addf %25, %27 : vector<200x200xf32>
    %29 = vector.shape_cast %28 : vector<200x200xf32> to vector<25x8x200xf32>
    %c0_28 = arith.constant 0 : index
    %c0_29 = arith.constant 0 : index
    %c0_30 = arith.constant 0 : index
    %30 = vector.load %arg26[%c0_28, %c0_29, %c0_30] : memref<25x8x200xf32, #tpu.memory_space<vmem>>, vector<25x8x200xf32>
    tpu.vector_store %arg26[%c0_28, %c0_29, %c0_30], %29 {strides = array<i32>} : memref<25x8x200xf32, #tpu.memory_space<vmem>>, vector<25x8x200xf32>,
    %c0_31 = arith.constant 0 : index
    %c0_32 = arith.constant 0 : index
    %31 = vector.load %arg11[%c0_31, %c0_32] : memref<200x200xbf16, #tpu.memory_space<vmem>>, vector<200x200xbf16>
    %c0_33 = arith.constant 0 : index
    %c0_34 = arith.constant 0 : index
    %32 = vector.load %arg12[%c0_33, %c0_34] : memref<200x200xbf16, #tpu.memory_space<vmem>>, vector<200x200xbf16>
    %c0_35 = arith.constant 0 : index
    %c0_36 = arith.constant 0 : index
    %33 = vector.load %arg13[%c0_35, %c0_36] : memref<200x200xbf16, #tpu.memory_space<vmem>>, vector<200x200xbf16>
    %c0_37 = arith.constant 0 : index
    %c0_38 = arith.constant 0 : index
    %34 = vector.load %arg14[%c0_37, %c0_38] : memref<1x200xf32, #tpu.memory_space<vmem>>, vector<1x200xf32>
    %35 = vector.shape_cast %34 : vector<1x200xf32> to vector<1x200xf32>
    %36 = vector.broadcast %35 : vector<1x200xf32> to vector<8x200xf32>
    %cst_39 = arith.constant 0.000000e+00 : f32
    %37 = vector.broadcast %cst_39 : f32 to vector<8x200xf32>
    %c0_i32 = arith.constant 0 : i32
    %38 = arith.truncf %37 : vector<8x200xf32> to vector<8x200xbf16>
    %cst_40 = arith.constant dense<0.000000e+00> : vector<8x200xf32>
    %39 = tpu.matmul %38, %31, %cst_40 {dimension_numbers = #tpu.dot_dimension_numbers<[1], [0], [0], [1], [0, 0, 1, 1], [], []>} : vector<8x200xbf16>, vector<200x200xbf16>, vector<8x200xf32> -> vector<8x200xf32>
    %cst_41 = arith.constant dense<0.000000e+00> : vector<8x200xf32>
    %40 = tpu.matmul %38, %32, %cst_41 {dimension_numbers = #tpu.dot_dimension_numbers<[1], [0], [0], [1], [0, 0, 1, 1], [], []>} : vector<8x200xbf16>, vector<200x200xbf16>, vector<8x200xf32> -> vector<8x200xf32>
    %cst_42 = arith.constant dense<0.000000e+00> : vector<8x200xf32>
    %41 = tpu.matmul %38, %33, %cst_42 {dimension_numbers = #tpu.dot_dimension_numbers<[1], [0], [0], [1], [0, 0, 1, 1], [], []>} : vector<8x200xbf16>, vector<200x200xbf16>, vector<8x200xf32> -> vector<8x200xf32>
    %42 = arith.addf %41, %36 : vector<8x200xf32>
    %43 = arith.index_cast %c0_i32 : i32 to index
    %c0_43 = arith.constant 0 : index
    %c0_44 = arith.constant 0 : index
    %44 = vector.load %arg24[%43, %c0_43, %c0_44] : memref<25x8x200xf32, #tpu.memory_space<vmem>>, vector<1x8x200xf32>
    %45 = vector.shape_cast %44 : vector<1x8x200xf32> to vector<8x200xf32>
    %46 = arith.addf %45, %39 : vector<8x200xf32>
    %47 = arith.negf %46 : vector<8x200xf32>
    %48 = math.exp %47 : vector<8x200xf32>
    %cst_45 = arith.constant 1.000000e+00 : f32
    %49 = vector.broadcast %cst_45 : f32 to vector<8x200xf32>
    %50 = arith.addf %49, %48 : vector<8x200xf32>
    %51 = arith.divf %49, %50 : vector<8x200xf32>
    %52 = arith.index_cast %c0_i32 : i32 to index
    %c0_46 = arith.constant 0 : index
    %c0_47 = arith.constant 0 : index
    %53 = vector.load %arg25[%52, %c0_46, %c0_47] : memref<25x8x200xf32, #tpu.memory_space<vmem>>, vector<1x8x200xf32>
    %54 = vector.shape_cast %53 : vector<1x8x200xf32> to vector<8x200xf32>
    %55 = arith.addf %54, %40 : vector<8x200xf32>
    %56 = arith.negf %55 : vector<8x200xf32>
    %57 = math.exp %56 : vector<8x200xf32>
    %cst_48 = arith.constant 1.000000e+00 : f32
    %58 = vector.broadcast %cst_48 : f32 to vector<8x200xf32>
    %59 = arith.addf %58, %57 : vector<8x200xf32>
    %60 = arith.divf %58, %59 : vector<8x200xf32>
    %61 = arith.index_cast %c0_i32 : i32 to index
    %c0_49 = arith.constant 0 : index
    %c0_50 = arith.constant 0 : index
    %62 = vector.load %arg26[%61, %c0_49, %c0_50] : memref<25x8x200xf32, #tpu.memory_space<vmem>>, vector<1x8x200xf32>
    %63 = vector.shape_cast %62 : vector<1x8x200xf32> to vector<8x200xf32>
    %64 = arith.mulf %51, %42 : vector<8x200xf32>
    %65 = arith.addf %63, %64 : vector<8x200xf32>
    %66 = math.tanh %65 : vector<8x200xf32>
    %cst_51 = arith.constant 1.000000e+00 : f32
    %67 = vector.broadcast %cst_51 : f32 to vector<8x200xf32>
    %68 = arith.subf %67, %60 : vector<8x200xf32>
    %69 = arith.mulf %68, %66 : vector<8x200xf32>
    %70 = arith.mulf %60, %37 : vector<8x200xf32>
    %71 = arith.addf %69, %70 : vector<8x200xf32>
    %72 = arith.addf %37, %71 : vector<8x200xf32>
    %c1_i32 = arith.constant 1 : i32
    %73 = arith.truncf %71 : vector<8x200xf32> to vector<8x200xbf16>
    %cst_52 = arith.constant dense<0.000000e+00> : vector<8x200xf32>
    %74 = tpu.matmul %73, %31, %cst_52 {dimension_numbers = #tpu.dot_dimension_numbers<[1], [0], [0], [1], [0, 0, 1, 1], [], []>} : vector<8x200xbf16>, vector<200x200xbf16>, vector<8x200xf32> -> vector<8x200xf32>
    %cst_53 = arith.constant dense<0.000000e+00> : vector<8x200xf32>
    %75 = tpu.matmul %73, %32, %cst_53 {dimension_numbers = #tpu.dot_dimension_numbers<[1], [0], [0], [1], [0, 0, 1, 1], [], []>} : vector<8x200xbf16>, vector<200x200xbf16>, vector<8x200xf32> -> vector<8x200xf32>
    %cst_54 = arith.constant dense<0.000000e+00> : vector<8x200xf32>
    %76 = tpu.matmul %73, %33, %cst_54 {dimension_numbers = #tpu.dot_dimension_numbers<[1], [0], [0], [1], [0, 0, 1, 1], [], []>} : vector<8x200xbf16>, vector<200x200xbf16>, vector<8x200xf32> -> vector<8x200xf32>
    %77 = arith.addf %76, %36 : vector<8x200xf32>
    %78 = arith.index_cast %c1_i32 : i32 to index
    %c0_55 = arith.constant 0 : index
    %c0_56 = arith.constant 0 : index
    %79 = vector.load %arg24[%78, %c0_55, %c0_56] : memref<25x8x200xf32, #tpu.memory_space<vmem>>, vector<1x8x200xf32>
    %80 = vector.shape_cast %79 : vector<1x8x200xf32> to vector<8x200xf32>
    %81 = arith.addf %80, %74 : vector<8x200xf32>
    %82 = arith.negf %81 : vector<8x200xf32>
    %83 = math.exp %82 : vector<8x200xf32>
    %cst_57 = arith.constant 1.000000e+00 : f32
    %84 = vector.broadcast %cst_57 : f32 to vector<8x200xf32>
    %85 = arith.addf %84, %83 : vector<8x200xf32>
    %86 = arith.divf %84, %85 : vector<8x200xf32>
    %87 = arith.index_cast %c1_i32 : i32 to index
    %c0_58 = arith.constant 0 : index
    %c0_59 = arith.constant 0 : index
    %88 = vector.load %arg25[%87, %c0_58, %c0_59] : memref<25x8x200xf32, #tpu.memory_space<vmem>>, vector<1x8x200xf32>
    %89 = vector.shape_cast %88 : vector<1x8x200xf32> to vector<8x200xf32>
    %90 = arith.addf %89, %75 : vector<8x200xf32>
    %91 = arith.negf %90 : vector<8x200xf32>
    %92 = math.exp %91 : vector<8x200xf32>
    %cst_60 = arith.constant 1.000000e+00 : f32
    %93 = vector.broadcast %cst_60 : f32 to vector<8x200xf32>
    %94 = arith.addf %93, %92 : vector<8x200xf32>
    %95 = arith.divf %93, %94 : vector<8x200xf32>
    %96 = arith.index_cast %c1_i32 : i32 to index
    %c0_61 = arith.constant 0 : index
    %c0_62 = arith.constant 0 : index
    %97 = vector.load %arg26[%96, %c0_61, %c0_62] : memref<25x8x200xf32, #tpu.memory_space<vmem>>, vector<1x8x200xf32>
    %98 = vector.shape_cast %97 : vector<1x8x200xf32> to vector<8x200xf32>
    %99 = arith.mulf %86, %77 : vector<8x200xf32>
    %100 = arith.addf %98, %99 : vector<8x200xf32>
    %101 = math.tanh %100 : vector<8x200xf32>
    %cst_63 = arith.constant 1.000000e+00 : f32
    %102 = vector.broadcast %cst_63 : f32 to vector<8x200xf32>
    %103 = arith.subf %102, %95 : vector<8x200xf32>
    %104 = arith.mulf %103, %101 : vector<8x200xf32>
    %105 = arith.mulf %95, %71 : vector<8x200xf32>
    %106 = arith.addf %104, %105 : vector<8x200xf32>
    %107 = arith.addf %72, %106 : vector<8x200xf32>
    %c2_i32 = arith.constant 2 : i32
    %108 = arith.truncf %106 : vector<8x200xf32> to vector<8x200xbf16>
    %cst_64 = arith.constant dense<0.000000e+00> : vector<8x200xf32>
    %109 = tpu.matmul %108, %31, %cst_64 {dimension_numbers = #tpu.dot_dimension_numbers<[1], [0], [0], [1], [0, 0, 1, 1], [], []>} : vector<8x200xbf16>, vector<200x200xbf16>, vector<8x200xf32> -> vector<8x200xf32>
    %cst_65 = arith.constant dense<0.000000e+00> : vector<8x200xf32>
    %110 = tpu.matmul %108, %32, %cst_65 {dimension_numbers = #tpu.dot_dimension_numbers<[1], [0], [0], [1], [0, 0, 1, 1], [], []>} : vector<8x200xbf16>, vector<200x200xbf16>, vector<8x200xf32> -> vector<8x200xf32>
    %cst_66 = arith.constant dense<0.000000e+00> : vector<8x200xf32>
    %111 = tpu.matmul %108, %33, %cst_66 {dimension_numbers = #tpu.dot_dimension_numbers<[1], [0], [0], [1], [0, 0, 1, 1], [], []>} : vector<8x200xbf16>, vector<200x200xbf16>, vector<8x200xf32> -> vector<8x200xf32>
    %112 = arith.addf %111, %36 : vector<8x200xf32>
    %113 = arith.index_cast %c2_i32 : i32 to index
    %c0_67 = arith.constant 0 : index
    %c0_68 = arith.constant 0 : index
    %114 = vector.load %arg24[%113, %c0_67, %c0_68] : memref<25x8x200xf32, #tpu.memory_space<vmem>>, vector<1x8x200xf32>
    %115 = vector.shape_cast %114 : vector<1x8x200xf32> to vector<8x200xf32>
    %116 = arith.addf %115, %109 : vector<8x200xf32>
    %117 = arith.negf %116 : vector<8x200xf32>
    %118 = math.exp %117 : vector<8x200xf32>
    %cst_69 = arith.constant 1.000000e+00 : f32
    %119 = vector.broadcast %cst_69 : f32 to vector<8x200xf32>
    %120 = arith.addf %119, %118 : vector<8x200xf32>
    %121 = arith.divf %119, %120 : vector<8x200xf32>
    %122 = arith.index_cast %c2_i32 : i32 to index
    %c0_70 = arith.constant 0 : index
    %c0_71 = arith.constant 0 : index
    %123 = vector.load %arg25[%122, %c0_70, %c0_71] : memref<25x8x200xf32, #tpu.memory_space<vmem>>, vector<1x8x200xf32>
    %124 = vector.shape_cast %123 : vector<1x8x200xf32> to vector<8x200xf32>
    %125 = arith.addf %124, %110 : vector<8x200xf32>
    %126 = arith.negf %125 : vector<8x200xf32>
    %127 = math.exp %126 : vector<8x200xf32>
    %cst_72 = arith.constant 1.000000e+00 : f32
    %128 = vector.broadcast %cst_72 : f32 to vector<8x200xf32>
    %129 = arith.addf %128, %127 : vector<8x200xf32>
    %130 = arith.divf %128, %129 : vector<8x200xf32>
    %131 = arith.index_cast %c2_i32 : i32 to index
    %c0_73 = arith.constant 0 : index
    %c0_74 = arith.constant 0 : index
    %132 = vector.load %arg26[%131, %c0_73, %c0_74] : memref<25x8x200xf32, #tpu.memory_space<vmem>>, vector<1x8x200xf32>
    %133 = vector.shape_cast %132 : vector<1x8x200xf32> to vector<8x200xf32>
    %134 = arith.mulf %121, %112 : vector<8x200xf32>
    %135 = arith.addf %133, %134 : vector<8x200xf32>
    %136 = math.tanh %135 : vector<8x200xf32>
    %cst_75 = arith.constant 1.000000e+00 : f32
    %137 = vector.broadcast %cst_75 : f32 to vector<8x200xf32>
    %138 = arith.subf %137, %130 : vector<8x200xf32>
    %139 = arith.mulf %138, %136 : vector<8x200xf32>
    %140 = arith.mulf %130, %106 : vector<8x200xf32>
    %141 = arith.addf %139, %140 : vector<8x200xf32>
    %142 = arith.addf %107, %141 : vector<8x200xf32>
    %c3_i32 = arith.constant 3 : i32
    %143 = arith.truncf %141 : vector<8x200xf32> to vector<8x200xbf16>
    %cst_76 = arith.constant dense<0.000000e+00> : vector<8x200xf32>
    %144 = tpu.matmul %143, %31, %cst_76 {dimension_numbers = #tpu.dot_dimension_numbers<[1], [0], [0], [1], [0, 0, 1, 1], [], []>} : vector<8x200xbf16>, vector<200x200xbf16>, vector<8x200xf32> -> vector<8x200xf32>
    %cst_77 = arith.constant dense<0.000000e+00> : vector<8x200xf32>
    %145 = tpu.matmul %143, %32, %cst_77 {dimension_numbers = #tpu.dot_dimension_numbers<[1], [0], [0], [1], [0, 0, 1, 1], [], []>} : vector<8x200xbf16>, vector<200x200xbf16>, vector<8x200xf32> -> vector<8x200xf32>
    %cst_78 = arith.constant dense<0.000000e+00> : vector<8x200xf32>
    %146 = tpu.matmul %143, %33, %cst_78 {dimension_numbers = #tpu.dot_dimension_numbers<[1], [0], [0], [1], [0, 0, 1, 1], [], []>} : vector<8x200xbf16>, vector<200x200xbf16>, vector<8x200xf32> -> vector<8x200xf32>
    %147 = arith.addf %146, %36 : vector<8x200xf32>
    %148 = arith.index_cast %c3_i32 : i32 to index
    %c0_79 = arith.constant 0 : index
    %c0_80 = arith.constant 0 : index
    %149 = vector.load %arg24[%148, %c0_79, %c0_80] : memref<25x8x200xf32, #tpu.memory_space<vmem>>, vector<1x8x200xf32>
    %150 = vector.shape_cast %149 : vector<1x8x200xf32> to vector<8x200xf32>
    %151 = arith.addf %150, %144 : vector<8x200xf32>
    %152 = arith.negf %151 : vector<8x200xf32>
    %153 = math.exp %152 : vector<8x200xf32>
    %cst_81 = arith.constant 1.000000e+00 : f32
    %154 = vector.broadcast %cst_81 : f32 to vector<8x200xf32>
    %155 = arith.addf %154, %153 : vector<8x200xf32>
    %156 = arith.divf %154, %155 : vector<8x200xf32>
    %157 = arith.index_cast %c3_i32 : i32 to index
    %c0_82 = arith.constant 0 : index
    %c0_83 = arith.constant 0 : index
    %158 = vector.load %arg25[%157, %c0_82, %c0_83] : memref<25x8x200xf32, #tpu.memory_space<vmem>>, vector<1x8x200xf32>
    %159 = vector.shape_cast %158 : vector<1x8x200xf32> to vector<8x200xf32>
    %160 = arith.addf %159, %145 : vector<8x200xf32>
    %161 = arith.negf %160 : vector<8x200xf32>
    %162 = math.exp %161 : vector<8x200xf32>
    %cst_84 = arith.constant 1.000000e+00 : f32
    %163 = vector.broadcast %cst_84 : f32 to vector<8x200xf32>
    %164 = arith.addf %163, %162 : vector<8x200xf32>
    %165 = arith.divf %163, %164 : vector<8x200xf32>
    %166 = arith.index_cast %c3_i32 : i32 to index
    %c0_85 = arith.constant 0 : index
    %c0_86 = arith.constant 0 : index
    %167 = vector.load %arg26[%166, %c0_85, %c0_86] : memref<25x8x200xf32, #tpu.memory_space<vmem>>, vector<1x8x200xf32>
    %168 = vector.shape_cast %167 : vector<1x8x200xf32> to vector<8x200xf32>
    %169 = arith.mulf %156, %147 : vector<8x200xf32>
    %170 = arith.addf %168, %169 : vector<8x200xf32>
    %171 = math.tanh %170 : vector<8x200xf32>
    %cst_87 = arith.constant 1.000000e+00 : f32
    %172 = vector.broadcast %cst_87 : f32 to vector<8x200xf32>
    %173 = arith.subf %172, %165 : vector<8x200xf32>
    %174 = arith.mulf %173, %171 : vector<8x200xf32>
    %175 = arith.mulf %165, %141 : vector<8x200xf32>
    %176 = arith.addf %174, %175 : vector<8x200xf32>
    %177 = arith.addf %142, %176 : vector<8x200xf32>
    %c4_i32 = arith.constant 4 : i32
    %178 = arith.truncf %176 : vector<8x200xf32> to vector<8x200xbf16>
    %cst_88 = arith.constant dense<0.000000e+00> : vector<8x200xf32>
    %179 = tpu.matmul %178, %31, %cst_88 {dimension_numbers = #tpu.dot_dimension_numbers<[1], [0], [0], [1], [0, 0, 1, 1], [], []>} : vector<8x200xbf16>, vector<200x200xbf16>, vector<8x200xf32> -> vector<8x200xf32>
    %cst_89 = arith.constant dense<0.000000e+00> : vector<8x200xf32>
    %180 = tpu.matmul %178, %32, %cst_89 {dimension_numbers = #tpu.dot_dimension_numbers<[1], [0], [0], [1], [0, 0, 1, 1], [], []>} : vector<8x200xbf16>, vector<200x200xbf16>, vector<8x200xf32> -> vector<8x200xf32>
    %cst_90 = arith.constant dense<0.000000e+00> : vector<8x200xf32>
    %181 = tpu.matmul %178, %33, %cst_90 {dimension_numbers = #tpu.dot_dimension_numbers<[1], [0], [0], [1], [0, 0, 1, 1], [], []>} : vector<8x200xbf16>, vector<200x200xbf16>, vector<8x200xf32> -> vector<8x200xf32>
    %182 = arith.addf %181, %36 : vector<8x200xf32>
    %183 = arith.index_cast %c4_i32 : i32 to index
    %c0_91 = arith.constant 0 : index
    %c0_92 = arith.constant 0 : index
    %184 = vector.load %arg24[%183, %c0_91, %c0_92] : memref<25x8x200xf32, #tpu.memory_space<vmem>>, vector<1x8x200xf32>
    %185 = vector.shape_cast %184 : vector<1x8x200xf32> to vector<8x200xf32>
    %186 = arith.addf %185, %179 : vector<8x200xf32>
    %187 = arith.negf %186 : vector<8x200xf32>
    %188 = math.exp %187 : vector<8x200xf32>
    %cst_93 = arith.constant 1.000000e+00 : f32
    %189 = vector.broadcast %cst_93 : f32 to vector<8x200xf32>
    %190 = arith.addf %189, %188 : vector<8x200xf32>
    %191 = arith.divf %189, %190 : vector<8x200xf32>
    %192 = arith.index_cast %c4_i32 : i32 to index
    %c0_94 = arith.constant 0 : index
    %c0_95 = arith.constant 0 : index
    %193 = vector.load %arg25[%192, %c0_94, %c0_95] : memref<25x8x200xf32, #tpu.memory_space<vmem>>, vector<1x8x200xf32>
    %194 = vector.shape_cast %193 : vector<1x8x200xf32> to vector<8x200xf32>
    %195 = arith.addf %194, %180 : vector<8x200xf32>
    %196 = arith.negf %195 : vector<8x200xf32>
    %197 = math.exp %196 : vector<8x200xf32>
    %cst_96 = arith.constant 1.000000e+00 : f32
    %198 = vector.broadcast %cst_96 : f32 to vector<8x200xf32>
    %199 = arith.addf %198, %197 : vector<8x200xf32>
    %200 = arith.divf %198, %199 : vector<8x200xf32>
    %201 = arith.index_cast %c4_i32 : i32 to index
    %c0_97 = arith.constant 0 : index
    %c0_98 = arith.constant 0 : index
    %202 = vector.load %arg26[%201, %c0_97, %c0_98] : memref<25x8x200xf32, #tpu.memory_space<vmem>>, vector<1x8x200xf32>
    %203 = vector.shape_cast %202 : vector<1x8x200xf32> to vector<8x200xf32>
    %204 = arith.mulf %191, %182 : vector<8x200xf32>
    %205 = arith.addf %203, %204 : vector<8x200xf32>
    %206 = math.tanh %205 : vector<8x200xf32>
    %cst_99 = arith.constant 1.000000e+00 : f32
    %207 = vector.broadcast %cst_99 : f32 to vector<8x200xf32>
    %208 = arith.subf %207, %200 : vector<8x200xf32>
    %209 = arith.mulf %208, %206 : vector<8x200xf32>
    %210 = arith.mulf %200, %176 : vector<8x200xf32>
    %211 = arith.addf %209, %210 : vector<8x200xf32>
    %212 = arith.addf %177, %211 : vector<8x200xf32>
    %c5_i32 = arith.constant 5 : i32
    %213 = arith.truncf %211 : vector<8x200xf32> to vector<8x200xbf16>
    %cst_100 = arith.constant dense<0.000000e+00> : vector<8x200xf32>
    %214 = tpu.matmul %213, %31, %cst_100 {dimension_numbers = #tpu.dot_dimension_numbers<[1], [0], [0], [1], [0, 0, 1, 1], [], []>} : vector<8x200xbf16>, vector<200x200xbf16>, vector<8x200xf32> -> vector<8x200xf32>
    %cst_101 = arith.constant dense<0.000000e+00> : vector<8x200xf32>
    %215 = tpu.matmul %213, %32, %cst_101 {dimension_numbers = #tpu.dot_dimension_numbers<[1], [0], [0], [1], [0, 0, 1, 1], [], []>} : vector<8x200xbf16>, vector<200x200xbf16>, vector<8x200xf32> -> vector<8x200xf32>
    %cst_102 = arith.constant dense<0.000000e+00> : vector<8x200xf32>
    %216 = tpu.matmul %213, %33, %cst_102 {dimension_numbers = #tpu.dot_dimension_numbers<[1], [0], [0], [1], [0, 0, 1, 1], [], []>} : vector<8x200xbf16>, vector<200x200xbf16>, vector<8x200xf32> -> vector<8x200xf32>
    %217 = arith.addf %216, %36 : vector<8x200xf32>
    %218 = arith.index_cast %c5_i32 : i32 to index
    %c0_103 = arith.constant 0 : index
    %c0_104 = arith.constant 0 : index
    %219 = vector.load %arg24[%218, %c0_103, %c0_104] : memref<25x8x200xf32, #tpu.memory_space<vmem>>, vector<1x8x200xf32>
    %220 = vector.shape_cast %219 : vector<1x8x200xf32> to vector<8x200xf32>
    %221 = arith.addf %220, %214 : vector<8x200xf32>
    %222 = arith.negf %221 : vector<8x200xf32>
    %223 = math.exp %222 : vector<8x200xf32>
    %cst_105 = arith.constant 1.000000e+00 : f32
    %224 = vector.broadcast %cst_105 : f32 to vector<8x200xf32>
    %225 = arith.addf %224, %223 : vector<8x200xf32>
    %226 = arith.divf %224, %225 : vector<8x200xf32>
    %227 = arith.index_cast %c5_i32 : i32 to index
    %c0_106 = arith.constant 0 : index
    %c0_107 = arith.constant 0 : index
    %228 = vector.load %arg25[%227, %c0_106, %c0_107] : memref<25x8x200xf32, #tpu.memory_space<vmem>>, vector<1x8x200xf32>
    %229 = vector.shape_cast %228 : vector<1x8x200xf32> to vector<8x200xf32>
    %230 = arith.addf %229, %215 : vector<8x200xf32>
    %231 = arith.negf %230 : vector<8x200xf32>
    %232 = math.exp %231 : vector<8x200xf32>
    %cst_108 = arith.constant 1.000000e+00 : f32
    %233 = vector.broadcast %cst_108 : f32 to vector<8x200xf32>
    %234 = arith.addf %233, %232 : vector<8x200xf32>
    %235 = arith.divf %233, %234 : vector<8x200xf32>
    %236 = arith.index_cast %c5_i32 : i32 to index
    %c0_109 = arith.constant 0 : index
    %c0_110 = arith.constant 0 : index
    %237 = vector.load %arg26[%236, %c0_109, %c0_110] : memref<25x8x200xf32, #tpu.memory_space<vmem>>, vector<1x8x200xf32>
    %238 = vector.shape_cast %237 : vector<1x8x200xf32> to vector<8x200xf32>
    %239 = arith.mulf %226, %217 : vector<8x200xf32>
    %240 = arith.addf %238, %239 : vector<8x200xf32>
    %241 = math.tanh %240 : vector<8x200xf32>
    %cst_111 = arith.constant 1.000000e+00 : f32
    %242 = vector.broadcast %cst_111 : f32 to vector<8x200xf32>
    %243 = arith.subf %242, %235 : vector<8x200xf32>
    %244 = arith.mulf %243, %241 : vector<8x200xf32>
    %245 = arith.mulf %235, %211 : vector<8x200xf32>
    %246 = arith.addf %244, %245 : vector<8x200xf32>
    %247 = arith.addf %212, %246 : vector<8x200xf32>
    %c6_i32 = arith.constant 6 : i32
    %248 = arith.truncf %246 : vector<8x200xf32> to vector<8x200xbf16>
    %cst_112 = arith.constant dense<0.000000e+00> : vector<8x200xf32>
    %249 = tpu.matmul %248, %31, %cst_112 {dimension_numbers = #tpu.dot_dimension_numbers<[1], [0], [0], [1], [0, 0, 1, 1], [], []>} : vector<8x200xbf16>, vector<200x200xbf16>, vector<8x200xf32> -> vector<8x200xf32>
    %cst_113 = arith.constant dense<0.000000e+00> : vector<8x200xf32>
    %250 = tpu.matmul %248, %32, %cst_113 {dimension_numbers = #tpu.dot_dimension_numbers<[1], [0], [0], [1], [0, 0, 1, 1], [], []>} : vector<8x200xbf16>, vector<200x200xbf16>, vector<8x200xf32> -> vector<8x200xf32>
    %cst_114 = arith.constant dense<0.000000e+00> : vector<8x200xf32>
    %251 = tpu.matmul %248, %33, %cst_114 {dimension_numbers = #tpu.dot_dimension_numbers<[1], [0], [0], [1], [0, 0, 1, 1], [], []>} : vector<8x200xbf16>, vector<200x200xbf16>, vector<8x200xf32> -> vector<8x200xf32>
    %252 = arith.addf %251, %36 : vector<8x200xf32>
    %253 = arith.index_cast %c6_i32 : i32 to index
    %c0_115 = arith.constant 0 : index
    %c0_116 = arith.constant 0 : index
    %254 = vector.load %arg24[%253, %c0_115, %c0_116] : memref<25x8x200xf32, #tpu.memory_space<vmem>>, vector<1x8x200xf32>
    %255 = vector.shape_cast %254 : vector<1x8x200xf32> to vector<8x200xf32>
    %256 = arith.addf %255, %249 : vector<8x200xf32>
    %257 = arith.negf %256 : vector<8x200xf32>
    %258 = math.exp %257 : vector<8x200xf32>
    %cst_117 = arith.constant 1.000000e+00 : f32
    %259 = vector.broadcast %cst_117 : f32 to vector<8x200xf32>
    %260 = arith.addf %259, %258 : vector<8x200xf32>
    %261 = arith.divf %259, %260 : vector<8x200xf32>
    %262 = arith.index_cast %c6_i32 : i32 to index
    %c0_118 = arith.constant 0 : index
    %c0_119 = arith.constant 0 : index
    %263 = vector.load %arg25[%262, %c0_118, %c0_119] : memref<25x8x200xf32, #tpu.memory_space<vmem>>, vector<1x8x200xf32>
    %264 = vector.shape_cast %263 : vector<1x8x200xf32> to vector<8x200xf32>
    %265 = arith.addf %264, %250 : vector<8x200xf32>
    %266 = arith.negf %265 : vector<8x200xf32>
    %267 = math.exp %266 : vector<8x200xf32>
    %cst_120 = arith.constant 1.000000e+00 : f32
    %268 = vector.broadcast %cst_120 : f32 to vector<8x200xf32>
    %269 = arith.addf %268, %267 : vector<8x200xf32>
    %270 = arith.divf %268, %269 : vector<8x200xf32>
    %271 = arith.index_cast %c6_i32 : i32 to index
    %c0_121 = arith.constant 0 : index
    %c0_122 = arith.constant 0 : index
    %272 = vector.load %arg26[%271, %c0_121, %c0_122] : memref<25x8x200xf32, #tpu.memory_space<vmem>>, vector<1x8x200xf32>
    %273 = vector.shape_cast %272 : vector<1x8x200xf32> to vector<8x200xf32>
    %274 = arith.mulf %261, %252 : vector<8x200xf32>
    %275 = arith.addf %273, %274 : vector<8x200xf32>
    %276 = math.tanh %275 : vector<8x200xf32>
    %cst_123 = arith.constant 1.000000e+00 : f32
    %277 = vector.broadcast %cst_123 : f32 to vector<8x200xf32>
    %278 = arith.subf %277, %270 : vector<8x200xf32>
    %279 = arith.mulf %278, %276 : vector<8x200xf32>
    %280 = arith.mulf %270, %246 : vector<8x200xf32>
    %281 = arith.addf %279, %280 : vector<8x200xf32>
    %282 = arith.addf %247, %281 : vector<8x200xf32>
    %c7_i32 = arith.constant 7 : i32
    %283 = arith.truncf %281 : vector<8x200xf32> to vector<8x200xbf16>
    %cst_124 = arith.constant dense<0.000000e+00> : vector<8x200xf32>
    %284 = tpu.matmul %283, %31, %cst_124 {dimension_numbers = #tpu.dot_dimension_numbers<[1], [0], [0], [1], [0, 0, 1, 1], [], []>} : vector<8x200xbf16>, vector<200x200xbf16>, vector<8x200xf32> -> vector<8x200xf32>
    %cst_125 = arith.constant dense<0.000000e+00> : vector<8x200xf32>
    %285 = tpu.matmul %283, %32, %cst_125 {dimension_numbers = #tpu.dot_dimension_numbers<[1], [0], [0], [1], [0, 0, 1, 1], [], []>} : vector<8x200xbf16>, vector<200x200xbf16>, vector<8x200xf32> -> vector<8x200xf32>
    %cst_126 = arith.constant dense<0.000000e+00> : vector<8x200xf32>
    %286 = tpu.matmul %283, %33, %cst_126 {dimension_numbers = #tpu.dot_dimension_numbers<[1], [0], [0], [1], [0, 0, 1, 1], [], []>} : vector<8x200xbf16>, vector<200x200xbf16>, vector<8x200xf32> -> vector<8x200xf32>
    %287 = arith.addf %286, %36 : vector<8x200xf32>
    %288 = arith.index_cast %c7_i32 : i32 to index
    %c0_127 = arith.constant 0 : index
    %c0_128 = arith.constant 0 : index
    %289 = vector.load %arg24[%288, %c0_127, %c0_128] : memref<25x8x200xf32, #tpu.memory_space<vmem>>, vector<1x8x200xf32>
    %290 = vector.shape_cast %289 : vector<1x8x200xf32> to vector<8x200xf32>
    %291 = arith.addf %290, %284 : vector<8x200xf32>
    %292 = arith.negf %291 : vector<8x200xf32>
    %293 = math.exp %292 : vector<8x200xf32>
    %cst_129 = arith.constant 1.000000e+00 : f32
    %294 = vector.broadcast %cst_129 : f32 to vector<8x200xf32>
    %295 = arith.addf %294, %293 : vector<8x200xf32>
    %296 = arith.divf %294, %295 : vector<8x200xf32>
    %297 = arith.index_cast %c7_i32 : i32 to index
    %c0_130 = arith.constant 0 : index
    %c0_131 = arith.constant 0 : index
    %298 = vector.load %arg25[%297, %c0_130, %c0_131] : memref<25x8x200xf32, #tpu.memory_space<vmem>>, vector<1x8x200xf32>
    %299 = vector.shape_cast %298 : vector<1x8x200xf32> to vector<8x200xf32>
    %300 = arith.addf %299, %285 : vector<8x200xf32>
    %301 = arith.negf %300 : vector<8x200xf32>
    %302 = math.exp %301 : vector<8x200xf32>
    %cst_132 = arith.constant 1.000000e+00 : f32
    %303 = vector.broadcast %cst_132 : f32 to vector<8x200xf32>
    %304 = arith.addf %303, %302 : vector<8x200xf32>
    %305 = arith.divf %303, %304 : vector<8x200xf32>
    %306 = arith.index_cast %c7_i32 : i32 to index
    %c0_133 = arith.constant 0 : index
    %c0_134 = arith.constant 0 : index
    %307 = vector.load %arg26[%306, %c0_133, %c0_134] : memref<25x8x200xf32, #tpu.memory_space<vmem>>, vector<1x8x200xf32>
    %308 = vector.shape_cast %307 : vector<1x8x200xf32> to vector<8x200xf32>
    %309 = arith.mulf %296, %287 : vector<8x200xf32>
    %310 = arith.addf %308, %309 : vector<8x200xf32>
    %311 = math.tanh %310 : vector<8x200xf32>
    %cst_135 = arith.constant 1.000000e+00 : f32
    %312 = vector.broadcast %cst_135 : f32 to vector<8x200xf32>
    %313 = arith.subf %312, %305 : vector<8x200xf32>
    %314 = arith.mulf %313, %311 : vector<8x200xf32>
    %315 = arith.mulf %305, %281 : vector<8x200xf32>
    %316 = arith.addf %314, %315 : vector<8x200xf32>
    %317 = arith.addf %282, %316 : vector<8x200xf32>
    %c8_i32 = arith.constant 8 : i32
    %318 = arith.truncf %316 : vector<8x200xf32> to vector<8x200xbf16>
    %cst_136 = arith.constant dense<0.000000e+00> : vector<8x200xf32>
    %319 = tpu.matmul %318, %31, %cst_136 {dimension_numbers = #tpu.dot_dimension_numbers<[1], [0], [0], [1], [0, 0, 1, 1], [], []>} : vector<8x200xbf16>, vector<200x200xbf16>, vector<8x200xf32> -> vector<8x200xf32>
    %cst_137 = arith.constant dense<0.000000e+00> : vector<8x200xf32>
    %320 = tpu.matmul %318, %32, %cst_137 {dimension_numbers = #tpu.dot_dimension_numbers<[1], [0], [0], [1], [0, 0, 1, 1], [], []>} : vector<8x200xbf16>, vector<200x200xbf16>, vector<8x200xf32> -> vector<8x200xf32>
    %cst_138 = arith.constant dense<0.000000e+00> : vector<8x200xf32>
    %321 = tpu.matmul %318, %33, %cst_138 {dimension_numbers = #tpu.dot_dimension_numbers<[1], [0], [0], [1], [0, 0, 1, 1], [], []>} : vector<8x200xbf16>, vector<200x200xbf16>, vector<8x200xf32> -> vector<8x200xf32>
    %322 = arith.addf %321, %36 : vector<8x200xf32>
    %323 = arith.index_cast %c8_i32 : i32 to index
    %c0_139 = arith.constant 0 : index
    %c0_140 = arith.constant 0 : index
    %324 = vector.load %arg24[%323, %c0_139, %c0_140] : memref<25x8x200xf32, #tpu.memory_space<vmem>>, vector<1x8x200xf32>
    %325 = vector.shape_cast %324 : vector<1x8x200xf32> to vector<8x200xf32>
    %326 = arith.addf %325, %319 : vector<8x200xf32>
    %327 = arith.negf %326 : vector<8x200xf32>
    %328 = math.exp %327 : vector<8x200xf32>
    %cst_141 = arith.constant 1.000000e+00 : f32
    %329 = vector.broadcast %cst_141 : f32 to vector<8x200xf32>
    %330 = arith.addf %329, %328 : vector<8x200xf32>
    %331 = arith.divf %329, %330 : vector<8x200xf32>
    %332 = arith.index_cast %c8_i32 : i32 to index
    %c0_142 = arith.constant 0 : index
    %c0_143 = arith.constant 0 : index
    %333 = vector.load %arg25[%332, %c0_142, %c0_143] : memref<25x8x200xf32, #tpu.memory_space<vmem>>, vector<1x8x200xf32>
    %334 = vector.shape_cast %333 : vector<1x8x200xf32> to vector<8x200xf32>
    %335 = arith.addf %334, %320 : vector<8x200xf32>
    %336 = arith.negf %335 : vector<8x200xf32>
    %337 = math.exp %336 : vector<8x200xf32>
    %cst_144 = arith.constant 1.000000e+00 : f32
    %338 = vector.broadcast %cst_144 : f32 to vector<8x200xf32>
    %339 = arith.addf %338, %337 : vector<8x200xf32>
    %340 = arith.divf %338, %339 : vector<8x200xf32>
    %341 = arith.index_cast %c8_i32 : i32 to index
    %c0_145 = arith.constant 0 : index
    %c0_146 = arith.constant 0 : index
    %342 = vector.load %arg26[%341, %c0_145, %c0_146] : memref<25x8x200xf32, #tpu.memory_space<vmem>>, vector<1x8x200xf32>
    %343 = vector.shape_cast %342 : vector<1x8x200xf32> to vector<8x200xf32>
    %344 = arith.mulf %331, %322 : vector<8x200xf32>
    %345 = arith.addf %343, %344 : vector<8x200xf32>
    %346 = math.tanh %345 : vector<8x200xf32>
    %cst_147 = arith.constant 1.000000e+00 : f32
    %347 = vector.broadcast %cst_147 : f32 to vector<8x200xf32>
    %348 = arith.subf %347, %340 : vector<8x200xf32>
    %349 = arith.mulf %348, %346 : vector<8x200xf32>
    %350 = arith.mulf %340, %316 : vector<8x200xf32>
    %351 = arith.addf %349, %350 : vector<8x200xf32>
    %352 = arith.addf %317, %351 : vector<8x200xf32>
    %c9_i32 = arith.constant 9 : i32
    %353 = arith.truncf %351 : vector<8x200xf32> to vector<8x200xbf16>
    %cst_148 = arith.constant dense<0.000000e+00> : vector<8x200xf32>
    %354 = tpu.matmul %353, %31, %cst_148 {dimension_numbers = #tpu.dot_dimension_numbers<[1], [0], [0], [1], [0, 0, 1, 1], [], []>} : vector<8x200xbf16>, vector<200x200xbf16>, vector<8x200xf32> -> vector<8x200xf32>
    %cst_149 = arith.constant dense<0.000000e+00> : vector<8x200xf32>
    %355 = tpu.matmul %353, %32, %cst_149 {dimension_numbers = #tpu.dot_dimension_numbers<[1], [0], [0], [1], [0, 0, 1, 1], [], []>} : vector<8x200xbf16>, vector<200x200xbf16>, vector<8x200xf32> -> vector<8x200xf32>
    %cst_150 = arith.constant dense<0.000000e+00> : vector<8x200xf32>
    %356 = tpu.matmul %353, %33, %cst_150 {dimension_numbers = #tpu.dot_dimension_numbers<[1], [0], [0], [1], [0, 0, 1, 1], [], []>} : vector<8x200xbf16>, vector<200x200xbf16>, vector<8x200xf32> -> vector<8x200xf32>
    %357 = arith.addf %356, %36 : vector<8x200xf32>
    %358 = arith.index_cast %c9_i32 : i32 to index
    %c0_151 = arith.constant 0 : index
    %c0_152 = arith.constant 0 : index
    %359 = vector.load %arg24[%358, %c0_151, %c0_152] : memref<25x8x200xf32, #tpu.memory_space<vmem>>, vector<1x8x200xf32>
    %360 = vector.shape_cast %359 : vector<1x8x200xf32> to vector<8x200xf32>
    %361 = arith.addf %360, %354 : vector<8x200xf32>
    %362 = arith.negf %361 : vector<8x200xf32>
    %363 = math.exp %362 : vector<8x200xf32>
    %cst_153 = arith.constant 1.000000e+00 : f32
    %364 = vector.broadcast %cst_153 : f32 to vector<8x200xf32>
    %365 = arith.addf %364, %363 : vector<8x200xf32>
    %366 = arith.divf %364, %365 : vector<8x200xf32>
    %367 = arith.index_cast %c9_i32 : i32 to index
    %c0_154 = arith.constant 0 : index
    %c0_155 = arith.constant 0 : index
    %368 = vector.load %arg25[%367, %c0_154, %c0_155] : memref<25x8x200xf32, #tpu.memory_space<vmem>>, vector<1x8x200xf32>
    %369 = vector.shape_cast %368 : vector<1x8x200xf32> to vector<8x200xf32>
    %370 = arith.addf %369, %355 : vector<8x200xf32>
    %371 = arith.negf %370 : vector<8x200xf32>
    %372 = math.exp %371 : vector<8x200xf32>
    %cst_156 = arith.constant 1.000000e+00 : f32
    %373 = vector.broadcast %cst_156 : f32 to vector<8x200xf32>
    %374 = arith.addf %373, %372 : vector<8x200xf32>
    %375 = arith.divf %373, %374 : vector<8x200xf32>
    %376 = arith.index_cast %c9_i32 : i32 to index
    %c0_157 = arith.constant 0 : index
    %c0_158 = arith.constant 0 : index
    %377 = vector.load %arg26[%376, %c0_157, %c0_158] : memref<25x8x200xf32, #tpu.memory_space<vmem>>, vector<1x8x200xf32>
    %378 = vector.shape_cast %377 : vector<1x8x200xf32> to vector<8x200xf32>
    %379 = arith.mulf %366, %357 : vector<8x200xf32>
    %380 = arith.addf %378, %379 : vector<8x200xf32>
    %381 = math.tanh %380 : vector<8x200xf32>
    %cst_159 = arith.constant 1.000000e+00 : f32
    %382 = vector.broadcast %cst_159 : f32 to vector<8x200xf32>
    %383 = arith.subf %382, %375 : vector<8x200xf32>
    %384 = arith.mulf %383, %381 : vector<8x200xf32>
    %385 = arith.mulf %375, %351 : vector<8x200xf32>
    %386 = arith.addf %384, %385 : vector<8x200xf32>
    %387 = arith.addf %352, %386 : vector<8x200xf32>
    %c10_i32 = arith.constant 10 : i32
    %388 = arith.truncf %386 : vector<8x200xf32> to vector<8x200xbf16>
    %cst_160 = arith.constant dense<0.000000e+00> : vector<8x200xf32>
    %389 = tpu.matmul %388, %31, %cst_160 {dimension_numbers = #tpu.dot_dimension_numbers<[1], [0], [0], [1], [0, 0, 1, 1], [], []>} : vector<8x200xbf16>, vector<200x200xbf16>, vector<8x200xf32> -> vector<8x200xf32>
    %cst_161 = arith.constant dense<0.000000e+00> : vector<8x200xf32>
    %390 = tpu.matmul %388, %32, %cst_161 {dimension_numbers = #tpu.dot_dimension_numbers<[1], [0], [0], [1], [0, 0, 1, 1], [], []>} : vector<8x200xbf16>, vector<200x200xbf16>, vector<8x200xf32> -> vector<8x200xf32>
    %cst_162 = arith.constant dense<0.000000e+00> : vector<8x200xf32>
    %391 = tpu.matmul %388, %33, %cst_162 {dimension_numbers = #tpu.dot_dimension_numbers<[1], [0], [0], [1], [0, 0, 1, 1], [], []>} : vector<8x200xbf16>, vector<200x200xbf16>, vector<8x200xf32> -> vector<8x200xf32>
    %392 = arith.addf %391, %36 : vector<8x200xf32>
    %393 = arith.index_cast %c10_i32 : i32 to index
    %c0_163 = arith.constant 0 : index
    %c0_164 = arith.constant 0 : index
    %394 = vector.load %arg24[%393, %c0_163, %c0_164] : memref<25x8x200xf32, #tpu.memory_space<vmem>>, vector<1x8x200xf32>
    %395 = vector.shape_cast %394 : vector<1x8x200xf32> to vector<8x200xf32>
    %396 = arith.addf %395, %389 : vector<8x200xf32>
    %397 = arith.negf %396 : vector<8x200xf32>
    %398 = math.exp %397 : vector<8x200xf32>
    %cst_165 = arith.constant 1.000000e+00 : f32
    %399 = vector.broadcast %cst_165 : f32 to vector<8x200xf32>
    %400 = arith.addf %399, %398 : vector<8x200xf32>
    %401 = arith.divf %399, %400 : vector<8x200xf32>
    %402 = arith.index_cast %c10_i32 : i32 to index
    %c0_166 = arith.constant 0 : index
    %c0_167 = arith.constant 0 : index
    %403 = vector.load %arg25[%402, %c0_166, %c0_167] : memref<25x8x200xf32, #tpu.memory_space<vmem>>, vector<1x8x200xf32>
    %404 = vector.shape_cast %403 : vector<1x8x200xf32> to vector<8x200xf32>
    %405 = arith.addf %404, %390 : vector<8x200xf32>
    %406 = arith.negf %405 : vector<8x200xf32>
    %407 = math.exp %406 : vector<8x200xf32>
    %cst_168 = arith.constant 1.000000e+00 : f32
    %408 = vector.broadcast %cst_168 : f32 to vector<8x200xf32>
    %409 = arith.addf %408, %407 : vector<8x200xf32>
    %410 = arith.divf %408, %409 : vector<8x200xf32>
    %411 = arith.index_cast %c10_i32 : i32 to index
    %c0_169 = arith.constant 0 : index
    %c0_170 = arith.constant 0 : index
    %412 = vector.load %arg26[%411, %c0_169, %c0_170] : memref<25x8x200xf32, #tpu.memory_space<vmem>>, vector<1x8x200xf32>
    %413 = vector.shape_cast %412 : vector<1x8x200xf32> to vector<8x200xf32>
    %414 = arith.mulf %401, %392 : vector<8x200xf32>
    %415 = arith.addf %413, %414 : vector<8x200xf32>
    %416 = math.tanh %415 : vector<8x200xf32>
    %cst_171 = arith.constant 1.000000e+00 : f32
    %417 = vector.broadcast %cst_171 : f32 to vector<8x200xf32>
    %418 = arith.subf %417, %410 : vector<8x200xf32>
    %419 = arith.mulf %418, %416 : vector<8x200xf32>
    %420 = arith.mulf %410, %386 : vector<8x200xf32>
    %421 = arith.addf %419, %420 : vector<8x200xf32>
    %422 = arith.addf %387, %421 : vector<8x200xf32>
    %c11_i32 = arith.constant 11 : i32
    %423 = arith.truncf %421 : vector<8x200xf32> to vector<8x200xbf16>
    %cst_172 = arith.constant dense<0.000000e+00> : vector<8x200xf32>
    %424 = tpu.matmul %423, %31, %cst_172 {dimension_numbers = #tpu.dot_dimension_numbers<[1], [0], [0], [1], [0, 0, 1, 1], [], []>} : vector<8x200xbf16>, vector<200x200xbf16>, vector<8x200xf32> -> vector<8x200xf32>
    %cst_173 = arith.constant dense<0.000000e+00> : vector<8x200xf32>
    %425 = tpu.matmul %423, %32, %cst_173 {dimension_numbers = #tpu.dot_dimension_numbers<[1], [0], [0], [1], [0, 0, 1, 1], [], []>} : vector<8x200xbf16>, vector<200x200xbf16>, vector<8x200xf32> -> vector<8x200xf32>
    %cst_174 = arith.constant dense<0.000000e+00> : vector<8x200xf32>
    %426 = tpu.matmul %423, %33, %cst_174 {dimension_numbers = #tpu.dot_dimension_numbers<[1], [0], [0], [1], [0, 0, 1, 1], [], []>} : vector<8x200xbf16>, vector<200x200xbf16>, vector<8x200xf32> -> vector<8x200xf32>
    %427 = arith.addf %426, %36 : vector<8x200xf32>
    %428 = arith.index_cast %c11_i32 : i32 to index
    %c0_175 = arith.constant 0 : index
    %c0_176 = arith.constant 0 : index
    %429 = vector.load %arg24[%428, %c0_175, %c0_176] : memref<25x8x200xf32, #tpu.memory_space<vmem>>, vector<1x8x200xf32>
    %430 = vector.shape_cast %429 : vector<1x8x200xf32> to vector<8x200xf32>
    %431 = arith.addf %430, %424 : vector<8x200xf32>
    %432 = arith.negf %431 : vector<8x200xf32>
    %433 = math.exp %432 : vector<8x200xf32>
    %cst_177 = arith.constant 1.000000e+00 : f32
    %434 = vector.broadcast %cst_177 : f32 to vector<8x200xf32>
    %435 = arith.addf %434, %433 : vector<8x200xf32>
    %436 = arith.divf %434, %435 : vector<8x200xf32>
    %437 = arith.index_cast %c11_i32 : i32 to index
    %c0_178 = arith.constant 0 : index
    %c0_179 = arith.constant 0 : index
    %438 = vector.load %arg25[%437, %c0_178, %c0_179] : memref<25x8x200xf32, #tpu.memory_space<vmem>>, vector<1x8x200xf32>
    %439 = vector.shape_cast %438 : vector<1x8x200xf32> to vector<8x200xf32>
    %440 = arith.addf %439, %425 : vector<8x200xf32>
    %441 = arith.negf %440 : vector<8x200xf32>
    %442 = math.exp %441 : vector<8x200xf32>
    %cst_180 = arith.constant 1.000000e+00 : f32
    %443 = vector.broadcast %cst_180 : f32 to vector<8x200xf32>
    %444 = arith.addf %443, %442 : vector<8x200xf32>
    %445 = arith.divf %443, %444 : vector<8x200xf32>
    %446 = arith.index_cast %c11_i32 : i32 to index
    %c0_181 = arith.constant 0 : index
    %c0_182 = arith.constant 0 : index
    %447 = vector.load %arg26[%446, %c0_181, %c0_182] : memref<25x8x200xf32, #tpu.memory_space<vmem>>, vector<1x8x200xf32>
    %448 = vector.shape_cast %447 : vector<1x8x200xf32> to vector<8x200xf32>
    %449 = arith.mulf %436, %427 : vector<8x200xf32>
    %450 = arith.addf %448, %449 : vector<8x200xf32>
    %451 = math.tanh %450 : vector<8x200xf32>
    %cst_183 = arith.constant 1.000000e+00 : f32
    %452 = vector.broadcast %cst_183 : f32 to vector<8x200xf32>
    %453 = arith.subf %452, %445 : vector<8x200xf32>
    %454 = arith.mulf %453, %451 : vector<8x200xf32>
    %455 = arith.mulf %445, %421 : vector<8x200xf32>
    %456 = arith.addf %454, %455 : vector<8x200xf32>
    %457 = arith.addf %422, %456 : vector<8x200xf32>
    %c12_i32 = arith.constant 12 : i32
    %458 = arith.truncf %456 : vector<8x200xf32> to vector<8x200xbf16>
    %cst_184 = arith.constant dense<0.000000e+00> : vector<8x200xf32>
    %459 = tpu.matmul %458, %31, %cst_184 {dimension_numbers = #tpu.dot_dimension_numbers<[1], [0], [0], [1], [0, 0, 1, 1], [], []>} : vector<8x200xbf16>, vector<200x200xbf16>, vector<8x200xf32> -> vector<8x200xf32>
    %cst_185 = arith.constant dense<0.000000e+00> : vector<8x200xf32>
    %460 = tpu.matmul %458, %32, %cst_185 {dimension_numbers = #tpu.dot_dimension_numbers<[1], [0], [0], [1], [0, 0, 1, 1], [], []>} : vector<8x200xbf16>, vector<200x200xbf16>, vector<8x200xf32> -> vector<8x200xf32>
    %cst_186 = arith.constant dense<0.000000e+00> : vector<8x200xf32>
    %461 = tpu.matmul %458, %33, %cst_186 {dimension_numbers = #tpu.dot_dimension_numbers<[1], [0], [0], [1], [0, 0, 1, 1], [], []>} : vector<8x200xbf16>, vector<200x200xbf16>, vector<8x200xf32> -> vector<8x200xf32>
    %462 = arith.addf %461, %36 : vector<8x200xf32>
    %463 = arith.index_cast %c12_i32 : i32 to index
    %c0_187 = arith.constant 0 : index
    %c0_188 = arith.constant 0 : index
    %464 = vector.load %arg24[%463, %c0_187, %c0_188] : memref<25x8x200xf32, #tpu.memory_space<vmem>>, vector<1x8x200xf32>
    %465 = vector.shape_cast %464 : vector<1x8x200xf32> to vector<8x200xf32>
    %466 = arith.addf %465, %459 : vector<8x200xf32>
    %467 = arith.negf %466 : vector<8x200xf32>
    %468 = math.exp %467 : vector<8x200xf32>
    %cst_189 = arith.constant 1.000000e+00 : f32
    %469 = vector.broadcast %cst_189 : f32 to vector<8x200xf32>
    %470 = arith.addf %469, %468 : vector<8x200xf32>
    %471 = arith.divf %469, %470 : vector<8x200xf32>
    %472 = arith.index_cast %c12_i32 : i32 to index
    %c0_190 = arith.constant 0 : index
    %c0_191 = arith.constant 0 : index
    %473 = vector.load %arg25[%472, %c0_190, %c0_191] : memref<25x8x200xf32, #tpu.memory_space<vmem>>, vector<1x8x200xf32>
    %474 = vector.shape_cast %473 : vector<1x8x200xf32> to vector<8x200xf32>
    %475 = arith.addf %474, %460 : vector<8x200xf32>
    %476 = arith.negf %475 : vector<8x200xf32>
    %477 = math.exp %476 : vector<8x200xf32>
    %cst_192 = arith.constant 1.000000e+00 : f32
    %478 = vector.broadcast %cst_192 : f32 to vector<8x200xf32>
    %479 = arith.addf %478, %477 : vector<8x200xf32>
    %480 = arith.divf %478, %479 : vector<8x200xf32>
    %481 = arith.index_cast %c12_i32 : i32 to index
    %c0_193 = arith.constant 0 : index
    %c0_194 = arith.constant 0 : index
    %482 = vector.load %arg26[%481, %c0_193, %c0_194] : memref<25x8x200xf32, #tpu.memory_space<vmem>>, vector<1x8x200xf32>
    %483 = vector.shape_cast %482 : vector<1x8x200xf32> to vector<8x200xf32>
    %484 = arith.mulf %471, %462 : vector<8x200xf32>
    %485 = arith.addf %483, %484 : vector<8x200xf32>
    %486 = math.tanh %485 : vector<8x200xf32>
    %cst_195 = arith.constant 1.000000e+00 : f32
    %487 = vector.broadcast %cst_195 : f32 to vector<8x200xf32>
    %488 = arith.subf %487, %480 : vector<8x200xf32>
    %489 = arith.mulf %488, %486 : vector<8x200xf32>
    %490 = arith.mulf %480, %456 : vector<8x200xf32>
    %491 = arith.addf %489, %490 : vector<8x200xf32>
    %492 = arith.addf %457, %491 : vector<8x200xf32>
    %c13_i32 = arith.constant 13 : i32
    %493 = arith.truncf %491 : vector<8x200xf32> to vector<8x200xbf16>
    %cst_196 = arith.constant dense<0.000000e+00> : vector<8x200xf32>
    %494 = tpu.matmul %493, %31, %cst_196 {dimension_numbers = #tpu.dot_dimension_numbers<[1], [0], [0], [1], [0, 0, 1, 1], [], []>} : vector<8x200xbf16>, vector<200x200xbf16>, vector<8x200xf32> -> vector<8x200xf32>
    %cst_197 = arith.constant dense<0.000000e+00> : vector<8x200xf32>
    %495 = tpu.matmul %493, %32, %cst_197 {dimension_numbers = #tpu.dot_dimension_numbers<[1], [0], [0], [1], [0, 0, 1, 1], [], []>} : vector<8x200xbf16>, vector<200x200xbf16>, vector<8x200xf32> -> vector<8x200xf32>
    %cst_198 = arith.constant dense<0.000000e+00> : vector<8x200xf32>
    %496 = tpu.matmul %493, %33, %cst_198 {dimension_numbers = #tpu.dot_dimension_numbers<[1], [0], [0], [1], [0, 0, 1, 1], [], []>} : vector<8x200xbf16>, vector<200x200xbf16>, vector<8x200xf32> -> vector<8x200xf32>
    %497 = arith.addf %496, %36 : vector<8x200xf32>
    %498 = arith.index_cast %c13_i32 : i32 to index
    %c0_199 = arith.constant 0 : index
    %c0_200 = arith.constant 0 : index
    %499 = vector.load %arg24[%498, %c0_199, %c0_200] : memref<25x8x200xf32, #tpu.memory_space<vmem>>, vector<1x8x200xf32>
    %500 = vector.shape_cast %499 : vector<1x8x200xf32> to vector<8x200xf32>
    %501 = arith.addf %500, %494 : vector<8x200xf32>
    %502 = arith.negf %501 : vector<8x200xf32>
    %503 = math.exp %502 : vector<8x200xf32>
    %cst_201 = arith.constant 1.000000e+00 : f32
    %504 = vector.broadcast %cst_201 : f32 to vector<8x200xf32>
    %505 = arith.addf %504, %503 : vector<8x200xf32>
    %506 = arith.divf %504, %505 : vector<8x200xf32>
    %507 = arith.index_cast %c13_i32 : i32 to index
    %c0_202 = arith.constant 0 : index
    %c0_203 = arith.constant 0 : index
    %508 = vector.load %arg25[%507, %c0_202, %c0_203] : memref<25x8x200xf32, #tpu.memory_space<vmem>>, vector<1x8x200xf32>
    %509 = vector.shape_cast %508 : vector<1x8x200xf32> to vector<8x200xf32>
    %510 = arith.addf %509, %495 : vector<8x200xf32>
    %511 = arith.negf %510 : vector<8x200xf32>
    %512 = math.exp %511 : vector<8x200xf32>
    %cst_204 = arith.constant 1.000000e+00 : f32
    %513 = vector.broadcast %cst_204 : f32 to vector<8x200xf32>
    %514 = arith.addf %513, %512 : vector<8x200xf32>
    %515 = arith.divf %513, %514 : vector<8x200xf32>
    %516 = arith.index_cast %c13_i32 : i32 to index
    %c0_205 = arith.constant 0 : index
    %c0_206 = arith.constant 0 : index
    %517 = vector.load %arg26[%516, %c0_205, %c0_206] : memref<25x8x200xf32, #tpu.memory_space<vmem>>, vector<1x8x200xf32>
    %518 = vector.shape_cast %517 : vector<1x8x200xf32> to vector<8x200xf32>
    %519 = arith.mulf %506, %497 : vector<8x200xf32>
    %520 = arith.addf %518, %519 : vector<8x200xf32>
    %521 = math.tanh %520 : vector<8x200xf32>
    %cst_207 = arith.constant 1.000000e+00 : f32
    %522 = vector.broadcast %cst_207 : f32 to vector<8x200xf32>
    %523 = arith.subf %522, %515 : vector<8x200xf32>
    %524 = arith.mulf %523, %521 : vector<8x200xf32>
    %525 = arith.mulf %515, %491 : vector<8x200xf32>
    %526 = arith.addf %524, %525 : vector<8x200xf32>
    %527 = arith.addf %492, %526 : vector<8x200xf32>
    %c14_i32 = arith.constant 14 : i32
    %528 = arith.truncf %526 : vector<8x200xf32> to vector<8x200xbf16>
    %cst_208 = arith.constant dense<0.000000e+00> : vector<8x200xf32>
    %529 = tpu.matmul %528, %31, %cst_208 {dimension_numbers = #tpu.dot_dimension_numbers<[1], [0], [0], [1], [0, 0, 1, 1], [], []>} : vector<8x200xbf16>, vector<200x200xbf16>, vector<8x200xf32> -> vector<8x200xf32>
    %cst_209 = arith.constant dense<0.000000e+00> : vector<8x200xf32>
    %530 = tpu.matmul %528, %32, %cst_209 {dimension_numbers = #tpu.dot_dimension_numbers<[1], [0], [0], [1], [0, 0, 1, 1], [], []>} : vector<8x200xbf16>, vector<200x200xbf16>, vector<8x200xf32> -> vector<8x200xf32>
    %cst_210 = arith.constant dense<0.000000e+00> : vector<8x200xf32>
    %531 = tpu.matmul %528, %33, %cst_210 {dimension_numbers = #tpu.dot_dimension_numbers<[1], [0], [0], [1], [0, 0, 1, 1], [], []>} : vector<8x200xbf16>, vector<200x200xbf16>, vector<8x200xf32> -> vector<8x200xf32>
    %532 = arith.addf %531, %36 : vector<8x200xf32>
    %533 = arith.index_cast %c14_i32 : i32 to index
    %c0_211 = arith.constant 0 : index
    %c0_212 = arith.constant 0 : index
    %534 = vector.load %arg24[%533, %c0_211, %c0_212] : memref<25x8x200xf32, #tpu.memory_space<vmem>>, vector<1x8x200xf32>
    %535 = vector.shape_cast %534 : vector<1x8x200xf32> to vector<8x200xf32>
    %536 = arith.addf %535, %529 : vector<8x200xf32>
    %537 = arith.negf %536 : vector<8x200xf32>
    %538 = math.exp %537 : vector<8x200xf32>
    %cst_213 = arith.constant 1.000000e+00 : f32
    %539 = vector.broadcast %cst_213 : f32 to vector<8x200xf32>
    %540 = arith.addf %539, %538 : vector<8x200xf32>
    %541 = arith.divf %539, %540 : vector<8x200xf32>
    %542 = arith.index_cast %c14_i32 : i32 to index
    %c0_214 = arith.constant 0 : index
    %c0_215 = arith.constant 0 : index
    %543 = vector.load %arg25[%542, %c0_214, %c0_215] : memref<25x8x200xf32, #tpu.memory_space<vmem>>, vector<1x8x200xf32>
    %544 = vector.shape_cast %543 : vector<1x8x200xf32> to vector<8x200xf32>
    %545 = arith.addf %544, %530 : vector<8x200xf32>
    %546 = arith.negf %545 : vector<8x200xf32>
    %547 = math.exp %546 : vector<8x200xf32>
    %cst_216 = arith.constant 1.000000e+00 : f32
    %548 = vector.broadcast %cst_216 : f32 to vector<8x200xf32>
    %549 = arith.addf %548, %547 : vector<8x200xf32>
    %550 = arith.divf %548, %549 : vector<8x200xf32>
    %551 = arith.index_cast %c14_i32 : i32 to index
    %c0_217 = arith.constant 0 : index
    %c0_218 = arith.constant 0 : index
    %552 = vector.load %arg26[%551, %c0_217, %c0_218] : memref<25x8x200xf32, #tpu.memory_space<vmem>>, vector<1x8x200xf32>
    %553 = vector.shape_cast %552 : vector<1x8x200xf32> to vector<8x200xf32>
    %554 = arith.mulf %541, %532 : vector<8x200xf32>
    %555 = arith.addf %553, %554 : vector<8x200xf32>
    %556 = math.tanh %555 : vector<8x200xf32>
    %cst_219 = arith.constant 1.000000e+00 : f32
    %557 = vector.broadcast %cst_219 : f32 to vector<8x200xf32>
    %558 = arith.subf %557, %550 : vector<8x200xf32>
    %559 = arith.mulf %558, %556 : vector<8x200xf32>
    %560 = arith.mulf %550, %526 : vector<8x200xf32>
    %561 = arith.addf %559, %560 : vector<8x200xf32>
    %562 = arith.addf %527, %561 : vector<8x200xf32>
    %c15_i32 = arith.constant 15 : i32
    %563 = arith.truncf %561 : vector<8x200xf32> to vector<8x200xbf16>
    %cst_220 = arith.constant dense<0.000000e+00> : vector<8x200xf32>
    %564 = tpu.matmul %563, %31, %cst_220 {dimension_numbers = #tpu.dot_dimension_numbers<[1], [0], [0], [1], [0, 0, 1, 1], [], []>} : vector<8x200xbf16>, vector<200x200xbf16>, vector<8x200xf32> -> vector<8x200xf32>
    %cst_221 = arith.constant dense<0.000000e+00> : vector<8x200xf32>
    %565 = tpu.matmul %563, %32, %cst_221 {dimension_numbers = #tpu.dot_dimension_numbers<[1], [0], [0], [1], [0, 0, 1, 1], [], []>} : vector<8x200xbf16>, vector<200x200xbf16>, vector<8x200xf32> -> vector<8x200xf32>
    %cst_222 = arith.constant dense<0.000000e+00> : vector<8x200xf32>
    %566 = tpu.matmul %563, %33, %cst_222 {dimension_numbers = #tpu.dot_dimension_numbers<[1], [0], [0], [1], [0, 0, 1, 1], [], []>} : vector<8x200xbf16>, vector<200x200xbf16>, vector<8x200xf32> -> vector<8x200xf32>
    %567 = arith.addf %566, %36 : vector<8x200xf32>
    %568 = arith.index_cast %c15_i32 : i32 to index
    %c0_223 = arith.constant 0 : index
    %c0_224 = arith.constant 0 : index
    %569 = vector.load %arg24[%568, %c0_223, %c0_224] : memref<25x8x200xf32, #tpu.memory_space<vmem>>, vector<1x8x200xf32>
    %570 = vector.shape_cast %569 : vector<1x8x200xf32> to vector<8x200xf32>
    %571 = arith.addf %570, %564 : vector<8x200xf32>
    %572 = arith.negf %571 : vector<8x200xf32>
    %573 = math.exp %572 : vector<8x200xf32>
    %cst_225 = arith.constant 1.000000e+00 : f32
    %574 = vector.broadcast %cst_225 : f32 to vector<8x200xf32>
    %575 = arith.addf %574, %573 : vector<8x200xf32>
    %576 = arith.divf %574, %575 : vector<8x200xf32>
    %577 = arith.index_cast %c15_i32 : i32 to index
    %c0_226 = arith.constant 0 : index
    %c0_227 = arith.constant 0 : index
    %578 = vector.load %arg25[%577, %c0_226, %c0_227] : memref<25x8x200xf32, #tpu.memory_space<vmem>>, vector<1x8x200xf32>
    %579 = vector.shape_cast %578 : vector<1x8x200xf32> to vector<8x200xf32>
    %580 = arith.addf %579, %565 : vector<8x200xf32>
    %581 = arith.negf %580 : vector<8x200xf32>
    %582 = math.exp %581 : vector<8x200xf32>
    %cst_228 = arith.constant 1.000000e+00 : f32
    %583 = vector.broadcast %cst_228 : f32 to vector<8x200xf32>
    %584 = arith.addf %583, %582 : vector<8x200xf32>
    %585 = arith.divf %583, %584 : vector<8x200xf32>
    %586 = arith.index_cast %c15_i32 : i32 to index
    %c0_229 = arith.constant 0 : index
    %c0_230 = arith.constant 0 : index
    %587 = vector.load %arg26[%586, %c0_229, %c0_230] : memref<25x8x200xf32, #tpu.memory_space<vmem>>, vector<1x8x200xf32>
    %588 = vector.shape_cast %587 : vector<1x8x200xf32> to vector<8x200xf32>
    %589 = arith.mulf %576, %567 : vector<8x200xf32>
    %590 = arith.addf %588, %589 : vector<8x200xf32>
    %591 = math.tanh %590 : vector<8x200xf32>
    %cst_231 = arith.constant 1.000000e+00 : f32
    %592 = vector.broadcast %cst_231 : f32 to vector<8x200xf32>
    %593 = arith.subf %592, %585 : vector<8x200xf32>
    %594 = arith.mulf %593, %591 : vector<8x200xf32>
    %595 = arith.mulf %585, %561 : vector<8x200xf32>
    %596 = arith.addf %594, %595 : vector<8x200xf32>
    %597 = arith.addf %562, %596 : vector<8x200xf32>
    %c16_i32 = arith.constant 16 : i32
    %598 = arith.truncf %596 : vector<8x200xf32> to vector<8x200xbf16>
    %cst_232 = arith.constant dense<0.000000e+00> : vector<8x200xf32>
    %599 = tpu.matmul %598, %31, %cst_232 {dimension_numbers = #tpu.dot_dimension_numbers<[1], [0], [0], [1], [0, 0, 1, 1], [], []>} : vector<8x200xbf16>, vector<200x200xbf16>, vector<8x200xf32> -> vector<8x200xf32>
    %cst_233 = arith.constant dense<0.000000e+00> : vector<8x200xf32>
    %600 = tpu.matmul %598, %32, %cst_233 {dimension_numbers = #tpu.dot_dimension_numbers<[1], [0], [0], [1], [0, 0, 1, 1], [], []>} : vector<8x200xbf16>, vector<200x200xbf16>, vector<8x200xf32> -> vector<8x200xf32>
    %cst_234 = arith.constant dense<0.000000e+00> : vector<8x200xf32>
    %601 = tpu.matmul %598, %33, %cst_234 {dimension_numbers = #tpu.dot_dimension_numbers<[1], [0], [0], [1], [0, 0, 1, 1], [], []>} : vector<8x200xbf16>, vector<200x200xbf16>, vector<8x200xf32> -> vector<8x200xf32>
    %602 = arith.addf %601, %36 : vector<8x200xf32>
    %603 = arith.index_cast %c16_i32 : i32 to index
    %c0_235 = arith.constant 0 : index
    %c0_236 = arith.constant 0 : index
    %604 = vector.load %arg24[%603, %c0_235, %c0_236] : memref<25x8x200xf32, #tpu.memory_space<vmem>>, vector<1x8x200xf32>
    %605 = vector.shape_cast %604 : vector<1x8x200xf32> to vector<8x200xf32>
    %606 = arith.addf %605, %599 : vector<8x200xf32>
    %607 = arith.negf %606 : vector<8x200xf32>
    %608 = math.exp %607 : vector<8x200xf32>
    %cst_237 = arith.constant 1.000000e+00 : f32
    %609 = vector.broadcast %cst_237 : f32 to vector<8x200xf32>
    %610 = arith.addf %609, %608 : vector<8x200xf32>
    %611 = arith.divf %609, %610 : vector<8x200xf32>
    %612 = arith.index_cast %c16_i32 : i32 to index
    %c0_238 = arith.constant 0 : index
    %c0_239 = arith.constant 0 : index
    %613 = vector.load %arg25[%612, %c0_238, %c0_239] : memref<25x8x200xf32, #tpu.memory_space<vmem>>, vector<1x8x200xf32>
    %614 = vector.shape_cast %613 : vector<1x8x200xf32> to vector<8x200xf32>
    %615 = arith.addf %614, %600 : vector<8x200xf32>
    %616 = arith.negf %615 : vector<8x200xf32>
    %617 = math.exp %616 : vector<8x200xf32>
    %cst_240 = arith.constant 1.000000e+00 : f32
    %618 = vector.broadcast %cst_240 : f32 to vector<8x200xf32>
    %619 = arith.addf %618, %617 : vector<8x200xf32>
    %620 = arith.divf %618, %619 : vector<8x200xf32>
    %621 = arith.index_cast %c16_i32 : i32 to index
    %c0_241 = arith.constant 0 : index
    %c0_242 = arith.constant 0 : index
    %622 = vector.load %arg26[%621, %c0_241, %c0_242] : memref<25x8x200xf32, #tpu.memory_space<vmem>>, vector<1x8x200xf32>
    %623 = vector.shape_cast %622 : vector<1x8x200xf32> to vector<8x200xf32>
    %624 = arith.mulf %611, %602 : vector<8x200xf32>
    %625 = arith.addf %623, %624 : vector<8x200xf32>
    %626 = math.tanh %625 : vector<8x200xf32>
    %cst_243 = arith.constant 1.000000e+00 : f32
    %627 = vector.broadcast %cst_243 : f32 to vector<8x200xf32>
    %628 = arith.subf %627, %620 : vector<8x200xf32>
    %629 = arith.mulf %628, %626 : vector<8x200xf32>
    %630 = arith.mulf %620, %596 : vector<8x200xf32>
    %631 = arith.addf %629, %630 : vector<8x200xf32>
    %632 = arith.addf %597, %631 : vector<8x200xf32>
    %c17_i32 = arith.constant 17 : i32
    %633 = arith.truncf %631 : vector<8x200xf32> to vector<8x200xbf16>
    %cst_244 = arith.constant dense<0.000000e+00> : vector<8x200xf32>
    %634 = tpu.matmul %633, %31, %cst_244 {dimension_numbers = #tpu.dot_dimension_numbers<[1], [0], [0], [1], [0, 0, 1, 1], [], []>} : vector<8x200xbf16>, vector<200x200xbf16>, vector<8x200xf32> -> vector<8x200xf32>
    %cst_245 = arith.constant dense<0.000000e+00> : vector<8x200xf32>
    %635 = tpu.matmul %633, %32, %cst_245 {dimension_numbers = #tpu.dot_dimension_numbers<[1], [0], [0], [1], [0, 0, 1, 1], [], []>} : vector<8x200xbf16>, vector<200x200xbf16>, vector<8x200xf32> -> vector<8x200xf32>
    %cst_246 = arith.constant dense<0.000000e+00> : vector<8x200xf32>
    %636 = tpu.matmul %633, %33, %cst_246 {dimension_numbers = #tpu.dot_dimension_numbers<[1], [0], [0], [1], [0, 0, 1, 1], [], []>} : vector<8x200xbf16>, vector<200x200xbf16>, vector<8x200xf32> -> vector<8x200xf32>
    %637 = arith.addf %636, %36 : vector<8x200xf32>
    %638 = arith.index_cast %c17_i32 : i32 to index
    %c0_247 = arith.constant 0 : index
    %c0_248 = arith.constant 0 : index
    %639 = vector.load %arg24[%638, %c0_247, %c0_248] : memref<25x8x200xf32, #tpu.memory_space<vmem>>, vector<1x8x200xf32>
    %640 = vector.shape_cast %639 : vector<1x8x200xf32> to vector<8x200xf32>
    %641 = arith.addf %640, %634 : vector<8x200xf32>
    %642 = arith.negf %641 : vector<8x200xf32>
    %643 = math.exp %642 : vector<8x200xf32>
    %cst_249 = arith.constant 1.000000e+00 : f32
    %644 = vector.broadcast %cst_249 : f32 to vector<8x200xf32>
    %645 = arith.addf %644, %643 : vector<8x200xf32>
    %646 = arith.divf %644, %645 : vector<8x200xf32>
    %647 = arith.index_cast %c17_i32 : i32 to index
    %c0_250 = arith.constant 0 : index
    %c0_251 = arith.constant 0 : index
    %648 = vector.load %arg25[%647, %c0_250, %c0_251] : memref<25x8x200xf32, #tpu.memory_space<vmem>>, vector<1x8x200xf32>
    %649 = vector.shape_cast %648 : vector<1x8x200xf32> to vector<8x200xf32>
    %650 = arith.addf %649, %635 : vector<8x200xf32>
    %651 = arith.negf %650 : vector<8x200xf32>
    %652 = math.exp %651 : vector<8x200xf32>
    %cst_252 = arith.constant 1.000000e+00 : f32
    %653 = vector.broadcast %cst_252 : f32 to vector<8x200xf32>
    %654 = arith.addf %653, %652 : vector<8x200xf32>
    %655 = arith.divf %653, %654 : vector<8x200xf32>
    %656 = arith.index_cast %c17_i32 : i32 to index
    %c0_253 = arith.constant 0 : index
    %c0_254 = arith.constant 0 : index
    %657 = vector.load %arg26[%656, %c0_253, %c0_254] : memref<25x8x200xf32, #tpu.memory_space<vmem>>, vector<1x8x200xf32>
    %658 = vector.shape_cast %657 : vector<1x8x200xf32> to vector<8x200xf32>
    %659 = arith.mulf %646, %637 : vector<8x200xf32>
    %660 = arith.addf %658, %659 : vector<8x200xf32>
    %661 = math.tanh %660 : vector<8x200xf32>
    %cst_255 = arith.constant 1.000000e+00 : f32
    %662 = vector.broadcast %cst_255 : f32 to vector<8x200xf32>
    %663 = arith.subf %662, %655 : vector<8x200xf32>
    %664 = arith.mulf %663, %661 : vector<8x200xf32>
    %665 = arith.mulf %655, %631 : vector<8x200xf32>
    %666 = arith.addf %664, %665 : vector<8x200xf32>
    %667 = arith.addf %632, %666 : vector<8x200xf32>
    %c18_i32 = arith.constant 18 : i32
    %668 = arith.truncf %666 : vector<8x200xf32> to vector<8x200xbf16>
    %cst_256 = arith.constant dense<0.000000e+00> : vector<8x200xf32>
    %669 = tpu.matmul %668, %31, %cst_256 {dimension_numbers = #tpu.dot_dimension_numbers<[1], [0], [0], [1], [0, 0, 1, 1], [], []>} : vector<8x200xbf16>, vector<200x200xbf16>, vector<8x200xf32> -> vector<8x200xf32>
    %cst_257 = arith.constant dense<0.000000e+00> : vector<8x200xf32>
    %670 = tpu.matmul %668, %32, %cst_257 {dimension_numbers = #tpu.dot_dimension_numbers<[1], [0], [0], [1], [0, 0, 1, 1], [], []>} : vector<8x200xbf16>, vector<200x200xbf16>, vector<8x200xf32> -> vector<8x200xf32>
    %cst_258 = arith.constant dense<0.000000e+00> : vector<8x200xf32>
    %671 = tpu.matmul %668, %33, %cst_258 {dimension_numbers = #tpu.dot_dimension_numbers<[1], [0], [0], [1], [0, 0, 1, 1], [], []>} : vector<8x200xbf16>, vector<200x200xbf16>, vector<8x200xf32> -> vector<8x200xf32>
    %672 = arith.addf %671, %36 : vector<8x200xf32>
    %673 = arith.index_cast %c18_i32 : i32 to index
    %c0_259 = arith.constant 0 : index
    %c0_260 = arith.constant 0 : index
    %674 = vector.load %arg24[%673, %c0_259, %c0_260] : memref<25x8x200xf32, #tpu.memory_space<vmem>>, vector<1x8x200xf32>
    %675 = vector.shape_cast %674 : vector<1x8x200xf32> to vector<8x200xf32>
    %676 = arith.addf %675, %669 : vector<8x200xf32>
    %677 = arith.negf %676 : vector<8x200xf32>
    %678 = math.exp %677 : vector<8x200xf32>
    %cst_261 = arith.constant 1.000000e+00 : f32
    %679 = vector.broadcast %cst_261 : f32 to vector<8x200xf32>
    %680 = arith.addf %679, %678 : vector<8x200xf32>
    %681 = arith.divf %679, %680 : vector<8x200xf32>
    %682 = arith.index_cast %c18_i32 : i32 to index
    %c0_262 = arith.constant 0 : index
    %c0_263 = arith.constant 0 : index
    %683 = vector.load %arg25[%682, %c0_262, %c0_263] : memref<25x8x200xf32, #tpu.memory_space<vmem>>, vector<1x8x200xf32>
    %684 = vector.shape_cast %683 : vector<1x8x200xf32> to vector<8x200xf32>
    %685 = arith.addf %684, %670 : vector<8x200xf32>
    %686 = arith.negf %685 : vector<8x200xf32>
    %687 = math.exp %686 : vector<8x200xf32>
    %cst_264 = arith.constant 1.000000e+00 : f32
    %688 = vector.broadcast %cst_264 : f32 to vector<8x200xf32>
    %689 = arith.addf %688, %687 : vector<8x200xf32>
    %690 = arith.divf %688, %689 : vector<8x200xf32>
    %691 = arith.index_cast %c18_i32 : i32 to index
    %c0_265 = arith.constant 0 : index
    %c0_266 = arith.constant 0 : index
    %692 = vector.load %arg26[%691, %c0_265, %c0_266] : memref<25x8x200xf32, #tpu.memory_space<vmem>>, vector<1x8x200xf32>
    %693 = vector.shape_cast %692 : vector<1x8x200xf32> to vector<8x200xf32>
    %694 = arith.mulf %681, %672 : vector<8x200xf32>
    %695 = arith.addf %693, %694 : vector<8x200xf32>
    %696 = math.tanh %695 : vector<8x200xf32>
    %cst_267 = arith.constant 1.000000e+00 : f32
    %697 = vector.broadcast %cst_267 : f32 to vector<8x200xf32>
    %698 = arith.subf %697, %690 : vector<8x200xf32>
    %699 = arith.mulf %698, %696 : vector<8x200xf32>
    %700 = arith.mulf %690, %666 : vector<8x200xf32>
    %701 = arith.addf %699, %700 : vector<8x200xf32>
    %702 = arith.addf %667, %701 : vector<8x200xf32>
    %c19_i32 = arith.constant 19 : i32
    %703 = arith.truncf %701 : vector<8x200xf32> to vector<8x200xbf16>
    %cst_268 = arith.constant dense<0.000000e+00> : vector<8x200xf32>
    %704 = tpu.matmul %703, %31, %cst_268 {dimension_numbers = #tpu.dot_dimension_numbers<[1], [0], [0], [1], [0, 0, 1, 1], [], []>} : vector<8x200xbf16>, vector<200x200xbf16>, vector<8x200xf32> -> vector<8x200xf32>
    %cst_269 = arith.constant dense<0.000000e+00> : vector<8x200xf32>
    %705 = tpu.matmul %703, %32, %cst_269 {dimension_numbers = #tpu.dot_dimension_numbers<[1], [0], [0], [1], [0, 0, 1, 1], [], []>} : vector<8x200xbf16>, vector<200x200xbf16>, vector<8x200xf32> -> vector<8x200xf32>
    %cst_270 = arith.constant dense<0.000000e+00> : vector<8x200xf32>
    %706 = tpu.matmul %703, %33, %cst_270 {dimension_numbers = #tpu.dot_dimension_numbers<[1], [0], [0], [1], [0, 0, 1, 1], [], []>} : vector<8x200xbf16>, vector<200x200xbf16>, vector<8x200xf32> -> vector<8x200xf32>
    %707 = arith.addf %706, %36 : vector<8x200xf32>
    %708 = arith.index_cast %c19_i32 : i32 to index
    %c0_271 = arith.constant 0 : index
    %c0_272 = arith.constant 0 : index
    %709 = vector.load %arg24[%708, %c0_271, %c0_272] : memref<25x8x200xf32, #tpu.memory_space<vmem>>, vector<1x8x200xf32>
    %710 = vector.shape_cast %709 : vector<1x8x200xf32> to vector<8x200xf32>
    %711 = arith.addf %710, %704 : vector<8x200xf32>
    %712 = arith.negf %711 : vector<8x200xf32>
    %713 = math.exp %712 : vector<8x200xf32>
    %cst_273 = arith.constant 1.000000e+00 : f32
    %714 = vector.broadcast %cst_273 : f32 to vector<8x200xf32>
    %715 = arith.addf %714, %713 : vector<8x200xf32>
    %716 = arith.divf %714, %715 : vector<8x200xf32>
    %717 = arith.index_cast %c19_i32 : i32 to index
    %c0_274 = arith.constant 0 : index
    %c0_275 = arith.constant 0 : index
    %718 = vector.load %arg25[%717, %c0_274, %c0_275] : memref<25x8x200xf32, #tpu.memory_space<vmem>>, vector<1x8x200xf32>
    %719 = vector.shape_cast %718 : vector<1x8x200xf32> to vector<8x200xf32>
    %720 = arith.addf %719, %705 : vector<8x200xf32>
    %721 = arith.negf %720 : vector<8x200xf32>
    %722 = math.exp %721 : vector<8x200xf32>
    %cst_276 = arith.constant 1.000000e+00 : f32
    %723 = vector.broadcast %cst_276 : f32 to vector<8x200xf32>
    %724 = arith.addf %723, %722 : vector<8x200xf32>
    %725 = arith.divf %723, %724 : vector<8x200xf32>
    %726 = arith.index_cast %c19_i32 : i32 to index
    %c0_277 = arith.constant 0 : index
    %c0_278 = arith.constant 0 : index
    %727 = vector.load %arg26[%726, %c0_277, %c0_278] : memref<25x8x200xf32, #tpu.memory_space<vmem>>, vector<1x8x200xf32>
    %728 = vector.shape_cast %727 : vector<1x8x200xf32> to vector<8x200xf32>
    %729 = arith.mulf %716, %707 : vector<8x200xf32>
    %730 = arith.addf %728, %729 : vector<8x200xf32>
    %731 = math.tanh %730 : vector<8x200xf32>
    %cst_279 = arith.constant 1.000000e+00 : f32
    %732 = vector.broadcast %cst_279 : f32 to vector<8x200xf32>
    %733 = arith.subf %732, %725 : vector<8x200xf32>
    %734 = arith.mulf %733, %731 : vector<8x200xf32>
    %735 = arith.mulf %725, %701 : vector<8x200xf32>
    %736 = arith.addf %734, %735 : vector<8x200xf32>
    %737 = arith.addf %702, %736 : vector<8x200xf32>
    %c20_i32 = arith.constant 20 : i32
    %738 = arith.truncf %736 : vector<8x200xf32> to vector<8x200xbf16>
    %cst_280 = arith.constant dense<0.000000e+00> : vector<8x200xf32>
    %739 = tpu.matmul %738, %31, %cst_280 {dimension_numbers = #tpu.dot_dimension_numbers<[1], [0], [0], [1], [0, 0, 1, 1], [], []>} : vector<8x200xbf16>, vector<200x200xbf16>, vector<8x200xf32> -> vector<8x200xf32>
    %cst_281 = arith.constant dense<0.000000e+00> : vector<8x200xf32>
    %740 = tpu.matmul %738, %32, %cst_281 {dimension_numbers = #tpu.dot_dimension_numbers<[1], [0], [0], [1], [0, 0, 1, 1], [], []>} : vector<8x200xbf16>, vector<200x200xbf16>, vector<8x200xf32> -> vector<8x200xf32>
    %cst_282 = arith.constant dense<0.000000e+00> : vector<8x200xf32>
    %741 = tpu.matmul %738, %33, %cst_282 {dimension_numbers = #tpu.dot_dimension_numbers<[1], [0], [0], [1], [0, 0, 1, 1], [], []>} : vector<8x200xbf16>, vector<200x200xbf16>, vector<8x200xf32> -> vector<8x200xf32>
    %742 = arith.addf %741, %36 : vector<8x200xf32>
    %743 = arith.index_cast %c20_i32 : i32 to index
    %c0_283 = arith.constant 0 : index
    %c0_284 = arith.constant 0 : index
    %744 = vector.load %arg24[%743, %c0_283, %c0_284] : memref<25x8x200xf32, #tpu.memory_space<vmem>>, vector<1x8x200xf32>
    %745 = vector.shape_cast %744 : vector<1x8x200xf32> to vector<8x200xf32>
    %746 = arith.addf %745, %739 : vector<8x200xf32>
    %747 = arith.negf %746 : vector<8x200xf32>
    %748 = math.exp %747 : vector<8x200xf32>
    %cst_285 = arith.constant 1.000000e+00 : f32
    %749 = vector.broadcast %cst_285 : f32 to vector<8x200xf32>
    %750 = arith.addf %749, %748 : vector<8x200xf32>
    %751 = arith.divf %749, %750 : vector<8x200xf32>
    %752 = arith.index_cast %c20_i32 : i32 to index
    %c0_286 = arith.constant 0 : index
    %c0_287 = arith.constant 0 : index
    %753 = vector.load %arg25[%752, %c0_286, %c0_287] : memref<25x8x200xf32, #tpu.memory_space<vmem>>, vector<1x8x200xf32>
    %754 = vector.shape_cast %753 : vector<1x8x200xf32> to vector<8x200xf32>
    %755 = arith.addf %754, %740 : vector<8x200xf32>
    %756 = arith.negf %755 : vector<8x200xf32>
    %757 = math.exp %756 : vector<8x200xf32>
    %cst_288 = arith.constant 1.000000e+00 : f32
    %758 = vector.broadcast %cst_288 : f32 to vector<8x200xf32>
    %759 = arith.addf %758, %757 : vector<8x200xf32>
    %760 = arith.divf %758, %759 : vector<8x200xf32>
    %761 = arith.index_cast %c20_i32 : i32 to index
    %c0_289 = arith.constant 0 : index
    %c0_290 = arith.constant 0 : index
    %762 = vector.load %arg26[%761, %c0_289, %c0_290] : memref<25x8x200xf32, #tpu.memory_space<vmem>>, vector<1x8x200xf32>
    %763 = vector.shape_cast %762 : vector<1x8x200xf32> to vector<8x200xf32>
    %764 = arith.mulf %751, %742 : vector<8x200xf32>
    %765 = arith.addf %763, %764 : vector<8x200xf32>
    %766 = math.tanh %765 : vector<8x200xf32>
    %cst_291 = arith.constant 1.000000e+00 : f32
    %767 = vector.broadcast %cst_291 : f32 to vector<8x200xf32>
    %768 = arith.subf %767, %760 : vector<8x200xf32>
    %769 = arith.mulf %768, %766 : vector<8x200xf32>
    %770 = arith.mulf %760, %736 : vector<8x200xf32>
    %771 = arith.addf %769, %770 : vector<8x200xf32>
    %772 = arith.addf %737, %771 : vector<8x200xf32>
    %c21_i32 = arith.constant 21 : i32
    %773 = arith.truncf %771 : vector<8x200xf32> to vector<8x200xbf16>
    %cst_292 = arith.constant dense<0.000000e+00> : vector<8x200xf32>
    %774 = tpu.matmul %773, %31, %cst_292 {dimension_numbers = #tpu.dot_dimension_numbers<[1], [0], [0], [1], [0, 0, 1, 1], [], []>} : vector<8x200xbf16>, vector<200x200xbf16>, vector<8x200xf32> -> vector<8x200xf32>
    %cst_293 = arith.constant dense<0.000000e+00> : vector<8x200xf32>
    %775 = tpu.matmul %773, %32, %cst_293 {dimension_numbers = #tpu.dot_dimension_numbers<[1], [0], [0], [1], [0, 0, 1, 1], [], []>} : vector<8x200xbf16>, vector<200x200xbf16>, vector<8x200xf32> -> vector<8x200xf32>
    %cst_294 = arith.constant dense<0.000000e+00> : vector<8x200xf32>
    %776 = tpu.matmul %773, %33, %cst_294 {dimension_numbers = #tpu.dot_dimension_numbers<[1], [0], [0], [1], [0, 0, 1, 1], [], []>} : vector<8x200xbf16>, vector<200x200xbf16>, vector<8x200xf32> -> vector<8x200xf32>
    %777 = arith.addf %776, %36 : vector<8x200xf32>
    %778 = arith.index_cast %c21_i32 : i32 to index
    %c0_295 = arith.constant 0 : index
    %c0_296 = arith.constant 0 : index
    %779 = vector.load %arg24[%778, %c0_295, %c0_296] : memref<25x8x200xf32, #tpu.memory_space<vmem>>, vector<1x8x200xf32>
    %780 = vector.shape_cast %779 : vector<1x8x200xf32> to vector<8x200xf32>
    %781 = arith.addf %780, %774 : vector<8x200xf32>
    %782 = arith.negf %781 : vector<8x200xf32>
    %783 = math.exp %782 : vector<8x200xf32>
    %cst_297 = arith.constant 1.000000e+00 : f32
    %784 = vector.broadcast %cst_297 : f32 to vector<8x200xf32>
    %785 = arith.addf %784, %783 : vector<8x200xf32>
    %786 = arith.divf %784, %785 : vector<8x200xf32>
    %787 = arith.index_cast %c21_i32 : i32 to index
    %c0_298 = arith.constant 0 : index
    %c0_299 = arith.constant 0 : index
    %788 = vector.load %arg25[%787, %c0_298, %c0_299] : memref<25x8x200xf32, #tpu.memory_space<vmem>>, vector<1x8x200xf32>
    %789 = vector.shape_cast %788 : vector<1x8x200xf32> to vector<8x200xf32>
    %790 = arith.addf %789, %775 : vector<8x200xf32>
    %791 = arith.negf %790 : vector<8x200xf32>
    %792 = math.exp %791 : vector<8x200xf32>
    %cst_300 = arith.constant 1.000000e+00 : f32
    %793 = vector.broadcast %cst_300 : f32 to vector<8x200xf32>
    %794 = arith.addf %793, %792 : vector<8x200xf32>
    %795 = arith.divf %793, %794 : vector<8x200xf32>
    %796 = arith.index_cast %c21_i32 : i32 to index
    %c0_301 = arith.constant 0 : index
    %c0_302 = arith.constant 0 : index
    %797 = vector.load %arg26[%796, %c0_301, %c0_302] : memref<25x8x200xf32, #tpu.memory_space<vmem>>, vector<1x8x200xf32>
    %798 = vector.shape_cast %797 : vector<1x8x200xf32> to vector<8x200xf32>
    %799 = arith.mulf %786, %777 : vector<8x200xf32>
    %800 = arith.addf %798, %799 : vector<8x200xf32>
    %801 = math.tanh %800 : vector<8x200xf32>
    %cst_303 = arith.constant 1.000000e+00 : f32
    %802 = vector.broadcast %cst_303 : f32 to vector<8x200xf32>
    %803 = arith.subf %802, %795 : vector<8x200xf32>
    %804 = arith.mulf %803, %801 : vector<8x200xf32>
    %805 = arith.mulf %795, %771 : vector<8x200xf32>
    %806 = arith.addf %804, %805 : vector<8x200xf32>
    %807 = arith.addf %772, %806 : vector<8x200xf32>
    %c22_i32 = arith.constant 22 : i32
    %808 = arith.truncf %806 : vector<8x200xf32> to vector<8x200xbf16>
    %cst_304 = arith.constant dense<0.000000e+00> : vector<8x200xf32>
    %809 = tpu.matmul %808, %31, %cst_304 {dimension_numbers = #tpu.dot_dimension_numbers<[1], [0], [0], [1], [0, 0, 1, 1], [], []>} : vector<8x200xbf16>, vector<200x200xbf16>, vector<8x200xf32> -> vector<8x200xf32>
    %cst_305 = arith.constant dense<0.000000e+00> : vector<8x200xf32>
    %810 = tpu.matmul %808, %32, %cst_305 {dimension_numbers = #tpu.dot_dimension_numbers<[1], [0], [0], [1], [0, 0, 1, 1], [], []>} : vector<8x200xbf16>, vector<200x200xbf16>, vector<8x200xf32> -> vector<8x200xf32>
    %cst_306 = arith.constant dense<0.000000e+00> : vector<8x200xf32>
    %811 = tpu.matmul %808, %33, %cst_306 {dimension_numbers = #tpu.dot_dimension_numbers<[1], [0], [0], [1], [0, 0, 1, 1], [], []>} : vector<8x200xbf16>, vector<200x200xbf16>, vector<8x200xf32> -> vector<8x200xf32>
    %812 = arith.addf %811, %36 : vector<8x200xf32>
    %813 = arith.index_cast %c22_i32 : i32 to index
    %c0_307 = arith.constant 0 : index
    %c0_308 = arith.constant 0 : index
    %814 = vector.load %arg24[%813, %c0_307, %c0_308] : memref<25x8x200xf32, #tpu.memory_space<vmem>>, vector<1x8x200xf32>
    %815 = vector.shape_cast %814 : vector<1x8x200xf32> to vector<8x200xf32>
    %816 = arith.addf %815, %809 : vector<8x200xf32>
    %817 = arith.negf %816 : vector<8x200xf32>
    %818 = math.exp %817 : vector<8x200xf32>
    %cst_309 = arith.constant 1.000000e+00 : f32
    %819 = vector.broadcast %cst_309 : f32 to vector<8x200xf32>
    %820 = arith.addf %819, %818 : vector<8x200xf32>
    %821 = arith.divf %819, %820 : vector<8x200xf32>
    %822 = arith.index_cast %c22_i32 : i32 to index
    %c0_310 = arith.constant 0 : index
    %c0_311 = arith.constant 0 : index
    %823 = vector.load %arg25[%822, %c0_310, %c0_311] : memref<25x8x200xf32, #tpu.memory_space<vmem>>, vector<1x8x200xf32>
    %824 = vector.shape_cast %823 : vector<1x8x200xf32> to vector<8x200xf32>
    %825 = arith.addf %824, %810 : vector<8x200xf32>
    %826 = arith.negf %825 : vector<8x200xf32>
    %827 = math.exp %826 : vector<8x200xf32>
    %cst_312 = arith.constant 1.000000e+00 : f32
    %828 = vector.broadcast %cst_312 : f32 to vector<8x200xf32>
    %829 = arith.addf %828, %827 : vector<8x200xf32>
    %830 = arith.divf %828, %829 : vector<8x200xf32>
    %831 = arith.index_cast %c22_i32 : i32 to index
    %c0_313 = arith.constant 0 : index
    %c0_314 = arith.constant 0 : index
    %832 = vector.load %arg26[%831, %c0_313, %c0_314] : memref<25x8x200xf32, #tpu.memory_space<vmem>>, vector<1x8x200xf32>
    %833 = vector.shape_cast %832 : vector<1x8x200xf32> to vector<8x200xf32>
    %834 = arith.mulf %821, %812 : vector<8x200xf32>
    %835 = arith.addf %833, %834 : vector<8x200xf32>
    %836 = math.tanh %835 : vector<8x200xf32>
    %cst_315 = arith.constant 1.000000e+00 : f32
    %837 = vector.broadcast %cst_315 : f32 to vector<8x200xf32>
    %838 = arith.subf %837, %830 : vector<8x200xf32>
    %839 = arith.mulf %838, %836 : vector<8x200xf32>
    %840 = arith.mulf %830, %806 : vector<8x200xf32>
    %841 = arith.addf %839, %840 : vector<8x200xf32>
    %842 = arith.addf %807, %841 : vector<8x200xf32>
    %c23_i32 = arith.constant 23 : i32
    %843 = arith.truncf %841 : vector<8x200xf32> to vector<8x200xbf16>
    %cst_316 = arith.constant dense<0.000000e+00> : vector<8x200xf32>
    %844 = tpu.matmul %843, %31, %cst_316 {dimension_numbers = #tpu.dot_dimension_numbers<[1], [0], [0], [1], [0, 0, 1, 1], [], []>} : vector<8x200xbf16>, vector<200x200xbf16>, vector<8x200xf32> -> vector<8x200xf32>
    %cst_317 = arith.constant dense<0.000000e+00> : vector<8x200xf32>
    %845 = tpu.matmul %843, %32, %cst_317 {dimension_numbers = #tpu.dot_dimension_numbers<[1], [0], [0], [1], [0, 0, 1, 1], [], []>} : vector<8x200xbf16>, vector<200x200xbf16>, vector<8x200xf32> -> vector<8x200xf32>
    %cst_318 = arith.constant dense<0.000000e+00> : vector<8x200xf32>
    %846 = tpu.matmul %843, %33, %cst_318 {dimension_numbers = #tpu.dot_dimension_numbers<[1], [0], [0], [1], [0, 0, 1, 1], [], []>} : vector<8x200xbf16>, vector<200x200xbf16>, vector<8x200xf32> -> vector<8x200xf32>
    %847 = arith.addf %846, %36 : vector<8x200xf32>
    %848 = arith.index_cast %c23_i32 : i32 to index
    %c0_319 = arith.constant 0 : index
    %c0_320 = arith.constant 0 : index
    %849 = vector.load %arg24[%848, %c0_319, %c0_320] : memref<25x8x200xf32, #tpu.memory_space<vmem>>, vector<1x8x200xf32>
    %850 = vector.shape_cast %849 : vector<1x8x200xf32> to vector<8x200xf32>
    %851 = arith.addf %850, %844 : vector<8x200xf32>
    %852 = arith.negf %851 : vector<8x200xf32>
    %853 = math.exp %852 : vector<8x200xf32>
    %cst_321 = arith.constant 1.000000e+00 : f32
    %854 = vector.broadcast %cst_321 : f32 to vector<8x200xf32>
    %855 = arith.addf %854, %853 : vector<8x200xf32>
    %856 = arith.divf %854, %855 : vector<8x200xf32>
    %857 = arith.index_cast %c23_i32 : i32 to index
    %c0_322 = arith.constant 0 : index
    %c0_323 = arith.constant 0 : index
    %858 = vector.load %arg25[%857, %c0_322, %c0_323] : memref<25x8x200xf32, #tpu.memory_space<vmem>>, vector<1x8x200xf32>
    %859 = vector.shape_cast %858 : vector<1x8x200xf32> to vector<8x200xf32>
    %860 = arith.addf %859, %845 : vector<8x200xf32>
    %861 = arith.negf %860 : vector<8x200xf32>
    %862 = math.exp %861 : vector<8x200xf32>
    %cst_324 = arith.constant 1.000000e+00 : f32
    %863 = vector.broadcast %cst_324 : f32 to vector<8x200xf32>
    %864 = arith.addf %863, %862 : vector<8x200xf32>
    %865 = arith.divf %863, %864 : vector<8x200xf32>
    %866 = arith.index_cast %c23_i32 : i32 to index
    %c0_325 = arith.constant 0 : index
    %c0_326 = arith.constant 0 : index
    %867 = vector.load %arg26[%866, %c0_325, %c0_326] : memref<25x8x200xf32, #tpu.memory_space<vmem>>, vector<1x8x200xf32>
    %868 = vector.shape_cast %867 : vector<1x8x200xf32> to vector<8x200xf32>
    %869 = arith.mulf %856, %847 : vector<8x200xf32>
    %870 = arith.addf %868, %869 : vector<8x200xf32>
    %871 = math.tanh %870 : vector<8x200xf32>
    %cst_327 = arith.constant 1.000000e+00 : f32
    %872 = vector.broadcast %cst_327 : f32 to vector<8x200xf32>
    %873 = arith.subf %872, %865 : vector<8x200xf32>
    %874 = arith.mulf %873, %871 : vector<8x200xf32>
    %875 = arith.mulf %865, %841 : vector<8x200xf32>
    %876 = arith.addf %874, %875 : vector<8x200xf32>
    %877 = arith.addf %842, %876 : vector<8x200xf32>
    %c24_i32 = arith.constant 24 : i32
    %878 = arith.truncf %876 : vector<8x200xf32> to vector<8x200xbf16>
    %cst_328 = arith.constant dense<0.000000e+00> : vector<8x200xf32>
    %879 = tpu.matmul %878, %31, %cst_328 {dimension_numbers = #tpu.dot_dimension_numbers<[1], [0], [0], [1], [0, 0, 1, 1], [], []>} : vector<8x200xbf16>, vector<200x200xbf16>, vector<8x200xf32> -> vector<8x200xf32>
    %cst_329 = arith.constant dense<0.000000e+00> : vector<8x200xf32>
    %880 = tpu.matmul %878, %32, %cst_329 {dimension_numbers = #tpu.dot_dimension_numbers<[1], [0], [0], [1], [0, 0, 1, 1], [], []>} : vector<8x200xbf16>, vector<200x200xbf16>, vector<8x200xf32> -> vector<8x200xf32>
    %cst_330 = arith.constant dense<0.000000e+00> : vector<8x200xf32>
    %881 = tpu.matmul %878, %33, %cst_330 {dimension_numbers = #tpu.dot_dimension_numbers<[1], [0], [0], [1], [0, 0, 1, 1], [], []>} : vector<8x200xbf16>, vector<200x200xbf16>, vector<8x200xf32> -> vector<8x200xf32>
    %882 = arith.addf %881, %36 : vector<8x200xf32>
    %883 = arith.index_cast %c24_i32 : i32 to index
    %c0_331 = arith.constant 0 : index
    %c0_332 = arith.constant 0 : index
    %884 = vector.load %arg24[%883, %c0_331, %c0_332] : memref<25x8x200xf32, #tpu.memory_space<vmem>>, vector<1x8x200xf32>
    %885 = vector.shape_cast %884 : vector<1x8x200xf32> to vector<8x200xf32>
    %886 = arith.addf %885, %879 : vector<8x200xf32>
    %887 = arith.negf %886 : vector<8x200xf32>
    %888 = math.exp %887 : vector<8x200xf32>
    %cst_333 = arith.constant 1.000000e+00 : f32
    %889 = vector.broadcast %cst_333 : f32 to vector<8x200xf32>
    %890 = arith.addf %889, %888 : vector<8x200xf32>
    %891 = arith.divf %889, %890 : vector<8x200xf32>
    %892 = arith.index_cast %c24_i32 : i32 to index
    %c0_334 = arith.constant 0 : index
    %c0_335 = arith.constant 0 : index
    %893 = vector.load %arg25[%892, %c0_334, %c0_335] : memref<25x8x200xf32, #tpu.memory_space<vmem>>, vector<1x8x200xf32>
    %894 = vector.shape_cast %893 : vector<1x8x200xf32> to vector<8x200xf32>
    %895 = arith.addf %894, %880 : vector<8x200xf32>
    %896 = arith.negf %895 : vector<8x200xf32>
    %897 = math.exp %896 : vector<8x200xf32>
    %cst_336 = arith.constant 1.000000e+00 : f32
    %898 = vector.broadcast %cst_336 : f32 to vector<8x200xf32>
    %899 = arith.addf %898, %897 : vector<8x200xf32>
    %900 = arith.divf %898, %899 : vector<8x200xf32>
    %901 = arith.index_cast %c24_i32 : i32 to index
    %c0_337 = arith.constant 0 : index
    %c0_338 = arith.constant 0 : index
    %902 = vector.load %arg26[%901, %c0_337, %c0_338] : memref<25x8x200xf32, #tpu.memory_space<vmem>>, vector<1x8x200xf32>
    %903 = vector.shape_cast %902 : vector<1x8x200xf32> to vector<8x200xf32>
    %904 = arith.mulf %891, %882 : vector<8x200xf32>
    %905 = arith.addf %903, %904 : vector<8x200xf32>
    %906 = math.tanh %905 : vector<8x200xf32>
    %cst_339 = arith.constant 1.000000e+00 : f32
    %907 = vector.broadcast %cst_339 : f32 to vector<8x200xf32>
    %908 = arith.subf %907, %900 : vector<8x200xf32>
    %909 = arith.mulf %908, %906 : vector<8x200xf32>
    %910 = arith.mulf %900, %876 : vector<8x200xf32>
    %911 = arith.addf %909, %910 : vector<8x200xf32>
    %912 = arith.addf %877, %911 : vector<8x200xf32>
    %c25_i32 = arith.constant 25 : i32
    %cst_340 = arith.constant dense<0.000000e+00> : vector<8xf32>
    %913 = vector.multi_reduction <add>, %912, %cst_340 [1] : vector<8x200xf32> to vector<8xf32>
    %914 = vector.shape_cast %913 : vector<8xf32> to vector<8x1xf32>
    %cst_341 = arith.constant dense<0.000000e+00> : vector<8xf32>
    %915 = vector.multi_reduction <add>, %911, %cst_341 [1] : vector<8x200xf32> to vector<8xf32>
    %916 = vector.shape_cast %915 : vector<8xf32> to vector<8x1xf32>
    %917 = arith.addf %914, %916 : vector<8x1xf32>
    %cst_342 = arith.constant 2.500000e-03 : f32
    %918 = vector.broadcast %cst_342 : f32 to vector<8x1xf32>
    %919 = arith.mulf %917, %918 : vector<8x1xf32>
    %920 = vector.broadcast %919 : vector<8x1xf32> to vector<8x200xf32>
    %921 = arith.subf %912, %920 : vector<8x200xf32>
    %922 = vector.broadcast %919 : vector<8x1xf32> to vector<8x200xf32>
    %923 = arith.subf %911, %922 : vector<8x200xf32>
    %924 = arith.mulf %921, %921 : vector<8x200xf32>
    %cst_343 = arith.constant dense<0.000000e+00> : vector<8xf32>
    %925 = vector.multi_reduction <add>, %924, %cst_343 [1] : vector<8x200xf32> to vector<8xf32>
    %926 = vector.shape_cast %925 : vector<8xf32> to vector<8x1xf32>
    %927 = arith.mulf %923, %923 : vector<8x200xf32>
    %cst_344 = arith.constant dense<0.000000e+00> : vector<8xf32>
    %928 = vector.multi_reduction <add>, %927, %cst_344 [1] : vector<8x200xf32> to vector<8xf32>
    %929 = vector.shape_cast %928 : vector<8xf32> to vector<8x1xf32>
    %930 = arith.addf %926, %929 : vector<8x1xf32>
    %cst_345 = arith.constant 2.500000e-03 : f32
    %931 = vector.broadcast %cst_345 : f32 to vector<8x1xf32>
    %932 = arith.mulf %930, %931 : vector<8x1xf32>
    %cst_346 = arith.constant 9.99999996E-13 : f32
    %933 = vector.broadcast %cst_346 : f32 to vector<8x1xf32>
    %934 = arith.addf %932, %933 : vector<8x1xf32>
    %935 = math.rsqrt %934 : vector<8x1xf32>
    %936 = vector.broadcast %935 : vector<8x1xf32> to vector<8x200xf32>
    %937 = arith.mulf %921, %936 : vector<8x200xf32>
    %c0_347 = arith.constant 0 : index
    %c0_348 = arith.constant 0 : index
    %938 = vector.load %arg15[%c0_347, %c0_348] : memref<1x200xf32, #tpu.memory_space<vmem>>, vector<1x200xf32>
    %939 = vector.broadcast %938 : vector<1x200xf32> to vector<8x200xf32>
    %940 = arith.mulf %937, %939 : vector<8x200xf32>
    %c0_349 = arith.constant 0 : index
    %c0_350 = arith.constant 0 : index
    %941 = vector.load %arg17[%c0_349, %c0_350] : memref<1x200xf32, #tpu.memory_space<vmem>>, vector<1x200xf32>
    %942 = vector.broadcast %941 : vector<1x200xf32> to vector<8x200xf32>
    %943 = arith.addf %940, %942 : vector<8x200xf32>
    %944 = vector.broadcast %935 : vector<8x1xf32> to vector<8x200xf32>
    %945 = arith.mulf %923, %944 : vector<8x200xf32>
    %c0_351 = arith.constant 0 : index
    %c0_352 = arith.constant 0 : index
    %946 = vector.load %arg16[%c0_351, %c0_352] : memref<1x200xf32, #tpu.memory_space<vmem>>, vector<1x200xf32>
    %947 = vector.broadcast %946 : vector<1x200xf32> to vector<8x200xf32>
    %948 = arith.mulf %945, %947 : vector<8x200xf32>
    %c0_353 = arith.constant 0 : index
    %c0_354 = arith.constant 0 : index
    %949 = vector.load %arg18[%c0_353, %c0_354] : memref<1x200xf32, #tpu.memory_space<vmem>>, vector<1x200xf32>
    %950 = vector.broadcast %949 : vector<1x200xf32> to vector<8x200xf32>
    %951 = arith.addf %948, %950 : vector<8x200xf32>
    %c0_355 = arith.constant 0 : index
    %c0_356 = arith.constant 0 : index
    %c0_357 = arith.constant 0 : index
    %952 = vector.load %arg2[%c0_355, %c0_356, %c0_357] : memref<2x8x512xbf16, #tpu.memory_space<vmem>>, vector<2x8x512xbf16>
    %953 = vector.shape_cast %952 : vector<2x8x512xbf16> to vector<16x512xbf16>
    %cst_358 = arith.constant dense<0.000000e+00> : vector<16x200xf32>
    %954 = tpu.matmul %953, %0, %cst_358 {dimension_numbers = #tpu.dot_dimension_numbers<[1], [0], [0], [1], [0, 0, 1, 1], [], []>} : vector<16x512xbf16>, vector<512x200xbf16>, vector<16x200xf32> -> vector<16x200xf32>
    %955 = vector.broadcast %1 : vector<1x200xf32> to vector<16x200xf32>
    %956 = arith.addf %954, %955 : vector<16x200xf32>
    %cst_359 = arith.constant 0.000000e+00 : f32
    %957 = vector.broadcast %cst_359 : f32 to vector<16x200xf32>
    %958 = arith.maximumf %956, %957 : vector<16x200xf32>
    %c0_360 = arith.constant 0 : index
    %c0_361 = arith.constant 0 : index
    %959 = vector.load %arg19[%c0_360, %c0_361] : memref<1x200xf32, #tpu.memory_space<vmem>>, vector<1x200xf32>
    %c0_362 = arith.constant 0 : index
    %c0_363 = arith.constant 0 : index
    %960 = vector.load %arg20[%c0_362, %c0_363] : memref<1x200xf32, #tpu.memory_space<vmem>>, vector<1x200xf32>
    %cst_364 = arith.constant dense<0.000000e+00> : vector<16xf32>
    %961 = vector.multi_reduction <add>, %958, %cst_364 [1] : vector<16x200xf32> to vector<16xf32>
    %962 = vector.shape_cast %961 : vector<16xf32> to vector<16x1xf32>
    %cst_365 = arith.constant 2.000000e+02 : f32
    %963 = vector.broadcast %cst_365 : f32 to vector<16x1xf32>
    %964 = arith.divf %962, %963 : vector<16x1xf32>
    %965 = vector.broadcast %964 : vector<16x1xf32> to vector<16x200xf32>
    %966 = arith.subf %958, %965 : vector<16x200xf32>
    %967 = arith.mulf %966, %966 : vector<16x200xf32>
    %cst_366 = arith.constant dense<0.000000e+00> : vector<16xf32>
    %968 = vector.multi_reduction <add>, %967, %cst_366 [1] : vector<16x200xf32> to vector<16xf32>
    %969 = vector.shape_cast %968 : vector<16xf32> to vector<16x1xf32>
    %cst_367 = arith.constant 2.000000e+02 : f32
    %970 = vector.broadcast %cst_367 : f32 to vector<16x1xf32>
    %971 = arith.divf %969, %970 : vector<16x1xf32>
    %972 = vector.broadcast %964 : vector<16x1xf32> to vector<16x200xf32>
    %973 = arith.subf %958, %972 : vector<16x200xf32>
    %cst_368 = arith.constant 9.99999996E-13 : f32
    %974 = vector.broadcast %cst_368 : f32 to vector<16x1xf32>
    %975 = arith.addf %971, %974 : vector<16x1xf32>
    %976 = math.rsqrt %975 : vector<16x1xf32>
    %977 = vector.broadcast %976 : vector<16x1xf32> to vector<16x200xf32>
    %978 = arith.mulf %973, %977 : vector<16x200xf32>
    %979 = vector.broadcast %959 : vector<1x200xf32> to vector<16x200xf32>
    %980 = arith.mulf %978, %979 : vector<16x200xf32>
    %981 = vector.broadcast %960 : vector<1x200xf32> to vector<16x200xf32>
    %982 = arith.addf %980, %981 : vector<16x200xf32>
    %983 = arith.truncf %982 : vector<16x200xf32> to vector<16x200xbf16>
    %c0_369 = arith.constant 0 : index
    %c0_370 = arith.constant 0 : index
    %984 = vector.load %arg21[%c0_369, %c0_370] : memref<200x200xbf16, #tpu.memory_space<vmem>>, vector<200x200xbf16>
    %cst_371 = arith.constant dense<0.000000e+00> : vector<16x200xf32>
    %985 = tpu.matmul %983, %984, %cst_371 {dimension_numbers = #tpu.dot_dimension_numbers<[1], [0], [0], [1], [0, 0, 1, 1], [], []>} : vector<16x200xbf16>, vector<200x200xbf16>, vector<16x200xf32> -> vector<16x200xf32>
    %c0_372 = arith.constant 0 : index
    %c0_373 = arith.constant 0 : index
    %986 = vector.load %arg22[%c0_372, %c0_373] : memref<200x200xbf16, #tpu.memory_space<vmem>>, vector<200x200xbf16>
    %cst_374 = arith.constant dense<0.000000e+00> : vector<16x200xf32>
    %987 = tpu.matmul %983, %986, %cst_374 {dimension_numbers = #tpu.dot_dimension_numbers<[1], [0], [0], [1], [0, 0, 1, 1], [], []>} : vector<16x200xbf16>, vector<200x200xbf16>, vector<16x200xf32> -> vector<16x200xf32>
    %988 = vector.extract_strided_slice %985 {offsets = [0, 0], sizes = [8, 200], strides = [1, 1]} : vector<16x200xf32> to vector<8x200xf32>
    %989 = arith.mulf %988, %943 : vector<8x200xf32>
    %990 = vector.extract_strided_slice %987 {offsets = [0, 0], sizes = [8, 200], strides = [1, 1]} : vector<16x200xf32> to vector<8x200xf32>
    %991 = arith.mulf %990, %951 : vector<8x200xf32>
    %992 = arith.addf %989, %991 : vector<8x200xf32>
    %cst_375 = arith.constant dense<0.000000e+00> : vector<8xf32>
    %993 = vector.multi_reduction <add>, %992, %cst_375 [1] : vector<8x200xf32> to vector<8xf32>
    %994 = vector.shape_cast %993 : vector<8xf32> to vector<8x1xf32>
    %995 = vector.extract_strided_slice %985 {offsets = [8, 0], sizes = [8, 200], strides = [1, 1]} : vector<16x200xf32> to vector<8x200xf32>
    %996 = arith.mulf %995, %943 : vector<8x200xf32>
    %997 = vector.extract_strided_slice %987 {offsets = [8, 0], sizes = [8, 200], strides = [1, 1]} : vector<16x200xf32> to vector<8x200xf32>
    %998 = arith.mulf %997, %951 : vector<8x200xf32>
    %999 = arith.addf %996, %998 : vector<8x200xf32>
    %cst_376 = arith.constant dense<0.000000e+00> : vector<8xf32>
    %1000 = vector.multi_reduction <add>, %999, %cst_376 [1] : vector<8x200xf32> to vector<8xf32>
    %1001 = vector.shape_cast %1000 : vector<8xf32> to vector<8x1xf32>
    %1002 = tpu.concatenate %994, %1001 in 1 : vector<8x1xf32>, vector<8x1xf32> -> vector<8x2xf32>
    %1003 = math.tanh %1002 : vector<8x2xf32>
    %c0_377 = arith.constant 0 : index
    %c0_378 = arith.constant 0 : index
    %1004 = vector.load %arg23[%c0_377, %c0_378] : memref<8x2xf32, #tpu.memory_space<vmem>>, vector<8x2xf32>
    tpu.vector_store %arg23[%c0_377, %c0_378], %1003 {strides = array<i32>} : memref<8x2xf32, #tpu.memory_space<vmem>>, vector<8x2xf32>,
    return
  }
  func.func @transform_0(%arg0: i32) -> (i32, i32, i32) {
    %c0_i32 = arith.constant 0 : i32
    %c0_i32_0 = arith.constant 0 : i32
    %c0_i32_1 = arith.constant 0 : i32
    return %c0_i32, %arg0, %c0_i32_0 : i32, i32, i32
  }
  func.func @transform_1(%arg0: i32) -> (i32, i32, i32) {
    %c0_i32 = arith.constant 0 : i32
    %c0_i32_0 = arith.constant 0 : i32
    %c0_i32_1 = arith.constant 0 : i32
    return %c0_i32, %arg0, %c0_i32_0 : i32, i32, i32
  }
  func.func @transform_2(%arg0: i32) -> (i32, i32) {
    %c0_i32 = arith.constant 0 : i32
    %c0_i32_0 = arith.constant 0 : i32
    %c0_i32_1 = arith.constant 0 : i32
    return %c0_i32, %c0_i32_0 : i32, i32
  }
  func.func @transform_3(%arg0: i32) -> (i32, i32) {
    %c0_i32 = arith.constant 0 : i32
    %c0_i32_0 = arith.constant 0 : i32
    %c0_i32_1 = arith.constant 0 : i32
    return %c0_i32, %c0_i32_0 : i32, i32
  }
  func.func @transform_4(%arg0: i32) -> (i32, i32) {
    %c0_i32 = arith.constant 0 : i32
    %c0_i32_0 = arith.constant 0 : i32
    %c0_i32_1 = arith.constant 0 : i32
    return %c0_i32, %c0_i32_0 : i32, i32
  }
  func.func @transform_5(%arg0: i32) -> (i32, i32) {
    %c0_i32 = arith.constant 0 : i32
    %c0_i32_0 = arith.constant 0 : i32
    %c0_i32_1 = arith.constant 0 : i32
    return %c0_i32, %c0_i32_0 : i32, i32
  }
  func.func @transform_6(%arg0: i32) -> (i32, i32) {
    %c0_i32 = arith.constant 0 : i32
    %c0_i32_0 = arith.constant 0 : i32
    %c0_i32_1 = arith.constant 0 : i32
    return %c0_i32, %c0_i32_0 : i32, i32
  }
  func.func @transform_7(%arg0: i32) -> (i32, i32) {
    %c0_i32 = arith.constant 0 : i32
    %c0_i32_0 = arith.constant 0 : i32
    %c0_i32_1 = arith.constant 0 : i32
    return %c0_i32, %c0_i32_0 : i32, i32
  }
  func.func @transform_8(%arg0: i32) -> (i32, i32) {
    %c0_i32 = arith.constant 0 : i32
    %c0_i32_0 = arith.constant 0 : i32
    %c0_i32_1 = arith.constant 0 : i32
    return %c0_i32, %c0_i32_0 : i32, i32
  }
  func.func @transform_9(%arg0: i32) -> (i32, i32) {
    %c0_i32 = arith.constant 0 : i32
    %c0_i32_0 = arith.constant 0 : i32
    %c0_i32_1 = arith.constant 0 : i32
    return %c0_i32, %c0_i32_0 : i32, i32
  }
  func.func @transform_10(%arg0: i32) -> (i32, i32) {
    %c0_i32 = arith.constant 0 : i32
    %c0_i32_0 = arith.constant 0 : i32
    %c0_i32_1 = arith.constant 0 : i32
    return %c0_i32, %c0_i32_0 : i32, i32
  }
  func.func @transform_11(%arg0: i32) -> (i32, i32) {
    %c0_i32 = arith.constant 0 : i32
    %c0_i32_0 = arith.constant 0 : i32
    %c0_i32_1 = arith.constant 0 : i32
    return %c0_i32, %c0_i32_0 : i32, i32
  }
  func.func @transform_12(%arg0: i32) -> (i32, i32) {
    %c0_i32 = arith.constant 0 : i32
    %c0_i32_0 = arith.constant 0 : i32
    %c0_i32_1 = arith.constant 0 : i32
    return %c0_i32, %c0_i32_0 : i32, i32
  }
  func.func @transform_13(%arg0: i32) -> (i32, i32) {
    %c0_i32 = arith.constant 0 : i32
    %c0_i32_0 = arith.constant 0 : i32
    %c0_i32_1 = arith.constant 0 : i32
    return %c0_i32, %c0_i32_0 : i32, i32
  }
  func.func @transform_14(%arg0: i32) -> (i32, i32) {
    %c0_i32 = arith.constant 0 : i32
    %c0_i32_0 = arith.constant 0 : i32
    %c0_i32_1 = arith.constant 0 : i32
    return %c0_i32, %c0_i32_0 : i32, i32
  }
  func.func @transform_15(%arg0: i32) -> (i32, i32) {
    %c0_i32 = arith.constant 0 : i32
    %c0_i32_0 = arith.constant 0 : i32
    %c0_i32_1 = arith.constant 0 : i32
    return %c0_i32, %c0_i32_0 : i32, i32
  }
  func.func @transform_16(%arg0: i32) -> (i32, i32) {
    %c0_i32 = arith.constant 0 : i32
    %c0_i32_0 = arith.constant 0 : i32
    %c0_i32_1 = arith.constant 0 : i32
    return %c0_i32, %c0_i32_0 : i32, i32
  }
  func.func @transform_17(%arg0: i32) -> (i32, i32) {
    %c0_i32 = arith.constant 0 : i32
    %c0_i32_0 = arith.constant 0 : i32
    %c0_i32_1 = arith.constant 0 : i32
    return %c0_i32, %c0_i32_0 : i32, i32
  }
  func.func @transform_18(%arg0: i32) -> (i32, i32) {
    %c0_i32 = arith.constant 0 : i32
    %c0_i32_0 = arith.constant 0 : i32
    %c0_i32_1 = arith.constant 0 : i32
    return %c0_i32, %c0_i32_0 : i32, i32
  }
  func.func @transform_19(%arg0: i32) -> (i32, i32) {
    %c0_i32 = arith.constant 0 : i32
    %c0_i32_0 = arith.constant 0 : i32
    %c0_i32_1 = arith.constant 0 : i32
    return %c0_i32, %c0_i32_0 : i32, i32
  }
  func.func @transform_20(%arg0: i32) -> (i32, i32) {
    %c0_i32 = arith.constant 0 : i32
    %c0_i32_0 = arith.constant 0 : i32
    %c0_i32_1 = arith.constant 0 : i32
    return %c0_i32, %c0_i32_0 : i32, i32
  }
  func.func @transform_21(%arg0: i32) -> (i32, i32) {
    %c0_i32 = arith.constant 0 : i32
    %c0_i32_0 = arith.constant 0 : i32
    %c0_i32_1 = arith.constant 0 : i32
    return %c0_i32, %c0_i32_0 : i32, i32
  }
  func.func @transform_22(%arg0: i32) -> (i32, i32) {
    %c0_i32 = arith.constant 0 : i32
    %c0_i32_0 = arith.constant 0 : i32
    return %arg0, %c0_i32 : i32, i32
  }
}

</mosaic_0001>

<llo_original>
// kernel: tpu_custom_call.1
$region0: #{tpu_custom_call.1}
  #allocation0 [shape = 'u32[]', space=smem, size = 0x4, offset = 0x4, fixed_abs, tag = 'smem constant byte address 0x4 - core index']
  #allocation1 [shape = 'u32[144,128]{1,0:T(1,128)}', space=vmem, size = 0x12000, scoped, tag = 'internal scratch']
  #allocation2 [shape = 'f32[25,8,200]{2,1,0:T(8,128)}', space=vmem, size = 0x32000, scoped, tag = 'scratch operand']
  #allocation3 [shape = 'f32[25,8,200]{2,1,0:T(8,128)}', space=vmem, size = 0x32000, scoped, tag = 'scratch operand']
  #allocation4 [shape = 'f32[25,8,200]{2,1,0:T(8,128)}', space=vmem, size = 0x32000, scoped, tag = 'scratch operand']
  %s0 = inlined_call_operand.vmem [shape: bf16[25,8,512], index: 0, kind: input, shape index: {}]
  %s1 = inlined_call_operand.vmem [shape: bf16[2,8,512], index: 1, kind: input, shape index: {}]
  %s2 = inlined_call_operand.vmem [shape: bf16[512,200], index: 2, kind: input, shape index: {}]
  %s3 = inlined_call_operand.vmem [shape: f32[1,200], index: 3, kind: input, shape index: {}]
  %s4 = inlined_call_operand.vmem [shape: bf16[200,200], index: 4, kind: input, shape index: {}]
  %s5 = inlined_call_operand.vmem [shape: bf16[200,200], index: 5, kind: input, shape index: {}]
  %s6 = inlined_call_operand.hbm [shape: bf16[200,200], index: 6, kind: input, shape index: {}]
  %s7 = inlined_call_operand.vmem [shape: f32[1,200], index: 7, kind: input, shape index: {}]
  %s8 = inlined_call_operand.vmem [shape: f32[1,200], index: 8, kind: input, shape index: {}]
  %s9 = inlined_call_operand.vmem [shape: f32[1,200], index: 9, kind: input, shape index: {}]
  %s10 = inlined_call_operand.hbm [shape: bf16[200,200], index: 10, kind: input, shape index: {}]
  %s11 = inlined_call_operand.hbm [shape: bf16[200,200], index: 11, kind: input, shape index: {}]
  %s12 = inlined_call_operand.hbm [shape: bf16[200,200], index: 12, kind: input, shape index: {}]
  %s13 = inlined_call_operand.vmem [shape: f32[1,200], index: 13, kind: input, shape index: {}]
  %s14 = inlined_call_operand.vmem [shape: f32[1,200], index: 14, kind: input, shape index: {}]
  %s15 = inlined_call_operand.vmem [shape: f32[1,200], index: 15, kind: input, shape index: {}]
  %s16 = inlined_call_operand.vmem [shape: f32[1,200], index: 16, kind: input, shape index: {}]
  %s17 = inlined_call_operand.vmem [shape: f32[1,200], index: 17, kind: input, shape index: {}]
  %s18 = inlined_call_operand.vmem [shape: f32[1,200], index: 18, kind: input, shape index: {}]
  %s19 = inlined_call_operand.vmem [shape: f32[1,200], index: 19, kind: input, shape index: {}]
  %s20 = inlined_call_operand.hbm [shape: bf16[200,200], index: 20, kind: input, shape index: {}]
  %s21 = inlined_call_operand.hbm [shape: bf16[200,200], index: 21, kind: input, shape index: {}]
  %s22 = inlined_call_operand.vmem [shape: f32[8,2], index: 22, kind: output, shape index: {}]
  %s23 = sld [smem:[#allocation0]]
  $region122: #{tpu_custom_call.1} parent=0
    _
  %s25 = ssub.s32 1, %s23
  %s26 = scalar_select 0, %s25, %s23
  $region1: #{tpu_custom_call.1} parent=0
    #allocation5 [shape = 'u8[102400]{0}', space=vmem, size = 0x19000, scoped, tag = 'input window, operand 6, single buffered']
    #allocation6 [shape = 's32[1]{0}', space=sflag, size = 0x4, scoped, tag = 'scoped memory for tpu_custom_call.1']
    #allocation7 [shape = 'u8[102400]{0}', space=vmem, size = 0x19000, scoped, tag = 'input window, operand 10, single buffered']
    #allocation8 [shape = 's32[1]{0}', space=sflag, size = 0x4, scoped, tag = 'scoped memory for tpu_custom_call.1']
    #allocation9 [shape = 'u8[102400]{0}', space=vmem, size = 0x19000, scoped, tag = 'input window, operand 11, single buffered']
    #allocation10 [shape = 'u8[102400]{0}', space=vmem, size = 0x19000, scoped, tag = 'input window, operand 12, single buffered']
    #allocation11 [shape = 's32[1]{0}', space=sflag, size = 0x4, scoped, tag = 'scoped memory for tpu_custom_call.1']
    #allocation12 [shape = 'u8[102400]{0}', space=vmem, size = 0x19000, scoped, tag = 'input window, operand 20, single buffered']
    #allocation13 [shape = 'u8[102400]{0}', space=vmem, size = 0x19000, scoped, tag = 'input window, operand 21, single buffered']
    #allocation14 [shape = 's32[1]{0}', space=sflag, size = 0x4, scoped, tag = 'scoped memory for tpu_custom_call.1']
    %27 = vsyncpa [#allocation6], 0
    %28 = vsyncpa [#allocation8], 0
    %29 = vsyncpa [#allocation11], 0
    %30 = vsyncpa [#allocation14], 0
    // Predicated region
    $region2: #{tpu_custom_call.1} parent=1 // pred_check
      _
    $region3: #{tpu_custom_call.1} parent=1 // pred_check_branch
      %32 = sbr.rel (0) target = $region5
    $region4: #{tpu_custom_call.1} parent=1 // pred_region
      _
    $region5: #{tpu_custom_call.1} parent=1 // pred_fallthru
      _
    // Predicated region
    $region6: #{tpu_custom_call.1} parent=1 // pred_check
      _
    $region7: #{tpu_custom_call.1} parent=1 // pred_check_branch
      %34 = sbr.rel (0) target = $region9
    $region8: #{tpu_custom_call.1} parent=1 // pred_region
      _
    $region9: #{tpu_custom_call.1} parent=1 // pred_fallthru
      _
    // Predicated region
    $region10: #{tpu_custom_call.1} parent=1 // pred_check
      _
    $region11: #{tpu_custom_call.1} parent=1 // pred_check_branch
      %36 = sbr.rel (0) target = $region13
    $region12: #{tpu_custom_call.1} parent=1 // pred_region
      _
    $region13: #{tpu_custom_call.1} parent=1 // pred_fallthru
      _
    // Predicated region
    $region14: #{tpu_custom_call.1} parent=1 // pred_check
      _
    $region15: #{tpu_custom_call.1} parent=1 // pred_check_branch
      %38 = sbr.rel (0) target = $region17
    $region16: #{tpu_custom_call.1} parent=1 // pred_region
      _
    $region17: #{tpu_custom_call.1} parent=1 // pred_fallthru
      _
    // Predicated region
    $region18: #{tpu_custom_call.1} parent=1 // pred_check
      _
    $region19: #{tpu_custom_call.1} parent=1 // pred_check_branch
      %40 = sbr.rel (0) target = $region21
    $region20: #{tpu_custom_call.1} parent=1 // pred_region
      _
    $region21: #{tpu_custom_call.1} parent=1 // pred_fallthru
      _
    // Predicated region
    $region22: #{tpu_custom_call.1} parent=1 // pred_check
      _
    $region23: #{tpu_custom_call.1} parent=1 // pred_check_branch
      %42 = sbr.rel (0) target = $region25
    $region24: #{tpu_custom_call.1} parent=1 // pred_region
      _
    $region25: #{tpu_custom_call.1} parent=1 // pred_fallthru
      _
    // Predicated region
    $region26: #{tpu_custom_call.1} parent=1 // pred_check
      _
    $region27: #{tpu_custom_call.1} parent=1 // pred_check_branch
      %44 = sbr.rel (0) target = $region29
    $region28: #{tpu_custom_call.1} parent=1 // pred_region
      %s46 = ssub.s32 3200, 3200
      %47 = vsyncadd [#allocation6], %s46
      %s48 = sshll.u32 [#allocation5], 4
      %s49 = int_to_ptr.vmem [resolvable:$true] %s48
      %54 = dma.hbm_to_vmem [thread:$0]  %s6, 3200, %s49, [#allocation6], 128, 128, 8
    $region29: #{tpu_custom_call.1} parent=1 // pred_fallthru
      _
    // Predicated region
    $region30: #{tpu_custom_call.1} parent=1 // pred_check
      _
    $region31: #{tpu_custom_call.1} parent=1 // pred_check_branch
      %56 = sbr.rel (0) target = $region33
    $region32: #{tpu_custom_call.1} parent=1 // pred_region
      _
    $region33: #{tpu_custom_call.1} parent=1 // pred_fallthru
      _
    // Predicated region
    $region34: #{tpu_custom_call.1} parent=1 // pred_check
      _
    $region35: #{tpu_custom_call.1} parent=1 // pred_check_branch
      %58 = sbr.rel (0) target = $region37
    $region36: #{tpu_custom_call.1} parent=1 // pred_region
      _
    $region37: #{tpu_custom_call.1} parent=1 // pred_fallthru
      _
    // Predicated region
    $region38: #{tpu_custom_call.1} parent=1 // pred_check
      _
    $region39: #{tpu_custom_call.1} parent=1 // pred_check_branch
      %60 = sbr.rel (0) target = $region41
    $region40: #{tpu_custom_call.1} parent=1 // pred_region
      _
    $region41: #{tpu_custom_call.1} parent=1 // pred_fallthru
      _
    // Predicated region
    $region42: #{tpu_custom_call.1} parent=1 // pred_check
      _
    $region43: #{tpu_custom_call.1} parent=1 // pred_check_branch
      %62 = sbr.rel (0) target = $region45
    $region44: #{tpu_custom_call.1} parent=1 // pred_region
      %s64 = ssub.s32 3200, 3200
      %65 = vsyncadd [#allocation8], %s64
      %s66 = sshll.u32 [#allocation7], 4
      %s67 = int_to_ptr.vmem [resolvable:$true] %s66
      %72 = dma.hbm_to_vmem [thread:$0]  %s10, 3200, %s67, [#allocation8], 128, 128, 8
    $region45: #{tpu_custom_call.1} parent=1 // pred_fallthru
      _
    // Predicated region
    $region46: #{tpu_custom_call.1} parent=1 // pred_check
      _
    $region47: #{tpu_custom_call.1} parent=1 // pred_check_branch
      %74 = sbr.rel (0) target = $region49
    $region48: #{tpu_custom_call.1} parent=1 // pred_region
      %s76 = ssub.s32 3200, 3200
      %77 = vsyncadd [#allocation8], %s76
      %s78 = sshll.u32 [#allocation9], 4
      %s79 = int_to_ptr.vmem [resolvable:$true] %s78
      %84 = dma.hbm_to_vmem [thread:$0]  %s11, 3200, %s79, [#allocation8], 128, 128, 8
    $region49: #{tpu_custom_call.1} parent=1 // pred_fallthru
      _
    // Predicated region
    $region50: #{tpu_custom_call.1} parent=1 // pred_check
      _
    $region51: #{tpu_custom_call.1} parent=1 // pred_check_branch
      %86 = sbr.rel (0) target = $region53
    $region52: #{tpu_custom_call.1} parent=1 // pred_region
      %s88 = ssub.s32 3200, 3200
      %89 = vsyncadd [#allocation11], %s88
      %s90 = sshll.u32 [#allocation10], 4
      %s91 = int_to_ptr.vmem [resolvable:$true] %s90
      %96 = dma.hbm_to_vmem [thread:$0]  %s12, 3200, %s91, [#allocation11], 128, 128, 8
    $region53: #{tpu_custom_call.1} parent=1 // pred_fallthru
      _
    // Predicated region
    $region54: #{tpu_custom_call.1} parent=1 // pred_check
      _
    $region55: #{tpu_custom_call.1} parent=1 // pred_check_branch
      %98 = sbr.rel (0) target = $region57
    $region56: #{tpu_custom_call.1} parent=1 // pred_region
      _
    $region57: #{tpu_custom_call.1} parent=1 // pred_fallthru
      _
    // Predicated region
    $region58: #{tpu_custom_call.1} parent=1 // pred_check
      _
    $region59: #{tpu_custom_call.1} parent=1 // pred_check_branch
      %100 = sbr.rel (0) target = $region61
    $region60: #{tpu_custom_call.1} parent=1 // pred_region
      _
    $region61: #{tpu_custom_call.1} parent=1 // pred_fallthru
      _
    // Predicated region
    $region62: #{tpu_custom_call.1} parent=1 // pred_check
      _
    $region63: #{tpu_custom_call.1} parent=1 // pred_check_branch
      %102 = sbr.rel (0) target = $region65
    $region64: #{tpu_custom_call.1} parent=1 // pred_region
      _
    $region65: #{tpu_custom_call.1} parent=1 // pred_fallthru
      _
    // Predicated region
    $region66: #{tpu_custom_call.1} parent=1 // pred_check
      _
    $region67: #{tpu_custom_call.1} parent=1 // pred_check_branch
      %104 = sbr.rel (0) target = $region69
    $region68: #{tpu_custom_call.1} parent=1 // pred_region
      _
    $region69: #{tpu_custom_call.1} parent=1 // pred_fallthru
      _
    // Predicated region
    $region70: #{tpu_custom_call.1} parent=1 // pred_check
      _
    $region71: #{tpu_custom_call.1} parent=1 // pred_check_branch
      %106 = sbr.rel (0) target = $region73
    $region72: #{tpu_custom_call.1} parent=1 // pred_region
      _
    $region73: #{tpu_custom_call.1} parent=1 // pred_fallthru
      _
    // Predicated region
    $region74: #{tpu_custom_call.1} parent=1 // pred_check
      _
    $region75: #{tpu_custom_call.1} parent=1 // pred_check_branch
      %108 = sbr.rel (0) target = $region77
    $region76: #{tpu_custom_call.1} parent=1 // pred_region
      _
    $region77: #{tpu_custom_call.1} parent=1 // pred_fallthru
      _
    // Predicated region
    $region78: #{tpu_custom_call.1} parent=1 // pred_check
      _
    $region79: #{tpu_custom_call.1} parent=1 // pred_check_branch
      %110 = sbr.rel (0) target = $region81
    $region80: #{tpu_custom_call.1} parent=1 // pred_region
      _
    $region81: #{tpu_custom_call.1} parent=1 // pred_fallthru
      _
    // Predicated region
    $region82: #{tpu_custom_call.1} parent=1 // pred_check
      _
    $region83: #{tpu_custom_call.1} parent=1 // pred_check_branch
      %112 = sbr.rel (0) target = $region85
    $region84: #{tpu_custom_call.1} parent=1 // pred_region
      %s114 = ssub.s32 3200, 3200
      %115 = vsyncadd [#allocation11], %s114
      %s116 = sshll.u32 [#allocation12], 4
      %s117 = int_to_ptr.vmem [resolvable:$true] %s116
      %122 = dma.hbm_to_vmem [thread:$0]  %s20, 3200, %s117, [#allocation11], 128, 128, 8
    $region85: #{tpu_custom_call.1} parent=1 // pred_fallthru
      _
    // Predicated region
    $region86: #{tpu_custom_call.1} parent=1 // pred_check
      _
    $region87: #{tpu_custom_call.1} parent=1 // pred_check_branch
      %124 = sbr.rel (0) target = $region89
    $region88: #{tpu_custom_call.1} parent=1 // pred_region
      %s126 = ssub.s32 3200, 3200
      %127 = vsyncadd [#allocation14], %s126
      %s128 = sshll.u32 [#allocation13], 4
      %s129 = int_to_ptr.vmem [resolvable:$true] %s128
      %134 = dma.hbm_to_vmem [thread:$0]  %s21, 3200, %s129, [#allocation14], 128, 128, 8
    $region89: #{tpu_custom_call.1} parent=1 // pred_fallthru
      _
    // Predicated region
    $region90: #{tpu_custom_call.1} parent=1 // pred_check
      _
    $region91: #{tpu_custom_call.1} parent=1 // pred_check_branch
      %136 = sbr.rel (0) target = $region93
    $region92: #{tpu_custom_call.1} parent=1 // pred_region
      %137 = dma.done [#allocation6], 3200
    $region93: #{tpu_custom_call.1} parent=1 // pred_fallthru
      _
    // Predicated region
    $region94: #{tpu_custom_call.1} parent=1 // pred_check
      _
    $region95: #{tpu_custom_call.1} parent=1 // pred_check_branch
      %139 = sbr.rel (0) target = $region97
    $region96: #{tpu_custom_call.1} parent=1 // pred_region
      %140 = dma.done [#allocation8], 3200
    $region97: #{tpu_custom_call.1} parent=1 // pred_fallthru
      _
    // Predicated region
    $region98: #{tpu_custom_call.1} parent=1 // pred_check
      _
    $region99: #{tpu_custom_call.1} parent=1 // pred_check_branch
      %142 = sbr.rel (0) target = $region101
    $region100: #{tpu_custom_call.1} parent=1 // pred_region
      %143 = dma.done [#allocation8], 3200
    $region101: #{tpu_custom_call.1} parent=1 // pred_fallthru
      _
    // Predicated region
    $region102: #{tpu_custom_call.1} parent=1 // pred_check
      _
    $region103: #{tpu_custom_call.1} parent=1 // pred_check_branch
      %145 = sbr.rel (0) target = $region105
    $region104: #{tpu_custom_call.1} parent=1 // pred_region
      %146 = dma.done [#allocation11], 3200
    $region105: #{tpu_custom_call.1} parent=1 // pred_fallthru
      _
    // Predicated region
    $region106: #{tpu_custom_call.1} parent=1 // pred_check
      _
    $region107: #{tpu_custom_call.1} parent=1 // pred_check_branch
      %148 = sbr.rel (0) target = $region109
    $region108: #{tpu_custom_call.1} parent=1 // pred_region
      %149 = dma.done [#allocation11], 3200
    $region109: #{tpu_custom_call.1} parent=1 // pred_fallthru
      _
    // Predicated region
    $region110: #{tpu_custom_call.1} parent=1 // pred_check
      _
    $region111: #{tpu_custom_call.1} parent=1 // pred_check_branch
      %151 = sbr.rel (0) target = $region113
    $region112: #{tpu_custom_call.1} parent=1 // pred_region
      %152 = dma.done [#allocation14], 3200
    $region113: #{tpu_custom_call.1} parent=1 // pred_fallthru
      _
    %v154 = vld [vmem:[%s2] sm:$0xff]
    %v155 = vld [vmem:[%s2 + $0x8] sm:$0xff]
    %v156 = vld [vmem:[%s2 + $0x10] sm:$0xff]
    %v157 = vld [vmem:[%s2 + $0x18] sm:$0xff]
    %v158 = vld [vmem:[%s2 + $0x20] sm:$0xff]
    %v159 = vld [vmem:[%s2 + $0x28] sm:$0xff]
    %v160 = vld [vmem:[%s2 + $0x30] sm:$0xff]
    %v161 = vld [vmem:[%s2 + $0x38] sm:$0xff]
    %v162 = vld [vmem:[%s2 + $0x40] sm:$0xff]
    %v163 = vld [vmem:[%s2 + $0x48] sm:$0xff]
    %v164 = vld [vmem:[%s2 + $0x50] sm:$0xff]
    %v165 = vld [vmem:[%s2 + $0x58] sm:$0xff]
    %v166 = vld [vmem:[%s2 + $0x60] sm:$0xff]
    %v167 = vld [vmem:[%s2 + $0x68] sm:$0xff]
    %v168 = vld [vmem:[%s2 + $0x70] sm:$0xff]
    %v169 = vld [vmem:[%s2 + $0x78] sm:$0xff]
    %v170 = vld [vmem:[%s2 + $0x80] sm:$0xff]
    %v171 = vld [vmem:[%s2 + $0x88] sm:$0xff]
    %v172 = vld [vmem:[%s2 + $0x90] sm:$0xff]
    %v173 = vld [vmem:[%s2 + $0x98] sm:$0xff]
    %v174 = vld [vmem:[%s2 + $0xa0] sm:$0xff]
    %v175 = vld [vmem:[%s2 + $0xa8] sm:$0xff]
    %v176 = vld [vmem:[%s2 + $0xb0] sm:$0xff]
    %v177 = vld [vmem:[%s2 + $0xb8] sm:$0xff]
    %v178 = vld [vmem:[%s2 + $0xc0] sm:$0xff]
    %v179 = vld [vmem:[%s2 + $0xc8] sm:$0xff]
    %v180 = vld [vmem:[%s2 + $0xd0] sm:$0xff]
    %v181 = vld [vmem:[%s2 + $0xd8] sm:$0xff]
    %v182 = vld [vmem:[%s2 + $0xe0] sm:$0xff]
    %v183 = vld [vmem:[%s2 + $0xe8] sm:$0xff]
    %v184 = vld [vmem:[%s2 + $0xf0] sm:$0xff]
    %v185 = vld [vmem:[%s2 + $0xf8] sm:$0xff]
    %v186 = vld [vmem:[%s2 + $0x100] sm:$0xff]
    %v187 = vld [vmem:[%s2 + $0x108] sm:$0xff]
    %v188 = vld [vmem:[%s2 + $0x110] sm:$0xff]
    %v189 = vld [vmem:[%s2 + $0x118] sm:$0xff]
    %v190 = vld [vmem:[%s2 + $0x120] sm:$0xff]
    %v191 = vld [vmem:[%s2 + $0x128] sm:$0xff]
    %v192 = vld [vmem:[%s2 + $0x130] sm:$0xff]
    %v193 = vld [vmem:[%s2 + $0x138] sm:$0xff]
    %v194 = vld [vmem:[%s2 + $0x140] sm:$0xff]
    %v195 = vld [vmem:[%s2 + $0x148] sm:$0xff]
    %v196 = vld [vmem:[%s2 + $0x150] sm:$0xff]
    %v197 = vld [vmem:[%s2 + $0x158] sm:$0xff]
    %v198 = vld [vmem:[%s2 + $0x160] sm:$0xff]
    %v199 = vld [vmem:[%s2 + $0x168] sm:$0xff]
    %v200 = vld [vmem:[%s2 + $0x170] sm:$0xff]
    %v201 = vld [vmem:[%s2 + $0x178] sm:$0xff]
    %v202 = vld [vmem:[%s2 + $0x180] sm:$0xff]
    %v203 = vld [vmem:[%s2 + $0x188] sm:$0xff]
    %v204 = vld [vmem:[%s2 + $0x190] sm:$0xff]
    %v205 = vld [vmem:[%s2 + $0x198] sm:$0xff]
    %v206 = vld [vmem:[%s2 + $0x1a0] sm:$0xff]
    %v207 = vld [vmem:[%s2 + $0x1a8] sm:$0xff]
    %v208 = vld [vmem:[%s2 + $0x1b0] sm:$0xff]
    %v209 = vld [vmem:[%s2 + $0x1b8] sm:$0xff]
    %v210 = vld [vmem:[%s2 + $0x1c0] sm:$0xff]
    %v211 = vld [vmem:[%s2 + $0x1c8] sm:$0xff]
    %v212 = vld [vmem:[%s2 + $0x1d0] sm:$0xff]
    %v213 = vld [vmem:[%s2 + $0x1d8] sm:$0xff]
    %v214 = vld [vmem:[%s2 + $0x1e0] sm:$0xff]
    %v215 = vld [vmem:[%s2 + $0x1e8] sm:$0xff]
    %v216 = vld [vmem:[%s2 + $0x1f0] sm:$0xff]
    %v217 = vld [vmem:[%s2 + $0x1f8] sm:$0xff]
    %v218 = vld [vmem:[%s3] sm:$0x3]
    %v219 = vld [vmem:[%s0] sm:$0xff]
    %v220 = vld [vmem:[%s0 + $0x8] sm:$0xff]
    %v221 = vld [vmem:[%s0 + $0x10] sm:$0xff]
    %v222 = vld [vmem:[%s0 + $0x18] sm:$0xff]
    %v223 = vld [vmem:[%s0 + $0x20] sm:$0xff]
    %v224 = vld [vmem:[%s0 + $0x28] sm:$0xff]
    %v225 = vld [vmem:[%s0 + $0x30] sm:$0xff]
    %v226 = vld [vmem:[%s0 + $0x38] sm:$0xff]
    %v227 = vld [vmem:[%s0 + $0x40] sm:$0xff]
    %v228 = vld [vmem:[%s0 + $0x48] sm:$0xff]
    %v229 = vld [vmem:[%s0 + $0x50] sm:$0xff]
    %v230 = vld [vmem:[%s0 + $0x58] sm:$0xff]
    %v231 = vld [vmem:[%s0 + $0x60] sm:$0xff]
    %v232 = vld [vmem:[%s0 + $0x68] sm:$0xff]
    %v233 = vld [vmem:[%s0 + $0x70] sm:$0xff]
    %v234 = vld [vmem:[%s0 + $0x78] sm:$0xff]
    %v235 = vld [vmem:[%s0 + $0x80] sm:$0xff]
    %v236 = vld [vmem:[%s0 + $0x88] sm:$0xff]
    %v237 = vld [vmem:[%s0 + $0x90] sm:$0xff]
    %v238 = vld [vmem:[%s0 + $0x98] sm:$0xff]
    %v239 = vld [vmem:[%s0 + $0xa0] sm:$0xff]
    %v240 = vld [vmem:[%s0 + $0xa8] sm:$0xff]
    %v241 = vld [vmem:[%s0 + $0xb0] sm:$0xff]
    %v242 = vld [vmem:[%s0 + $0xb8] sm:$0xff]
    %v243 = vld [vmem:[%s0 + $0xc0] sm:$0xff]
    %v244 = vld [vmem:[%s0 + $0xc8] sm:$0xff]
    %v245 = vld [vmem:[%s0 + $0xd0] sm:$0xff]
    %v246 = vld [vmem:[%s0 + $0xd8] sm:$0xff]
    %v247 = vld [vmem:[%s0 + $0xe0] sm:$0xff]
    %v248 = vld [vmem:[%s0 + $0xe8] sm:$0xff]
    %v249 = vld [vmem:[%s0 + $0xf0] sm:$0xff]
    %v250 = vld [vmem:[%s0 + $0xf8] sm:$0xff]
    %v251 = vld [vmem:[%s0 + $0x100] sm:$0xff]
    %v252 = vld [vmem:[%s0 + $0x108] sm:$0xff]
    %v253 = vld [vmem:[%s0 + $0x110] sm:$0xff]
    %v254 = vld [vmem:[%s0 + $0x118] sm:$0xff]
    %v255 = vld [vmem:[%s0 + $0x120] sm:$0xff]
    %v256 = vld [vmem:[%s0 + $0x128] sm:$0xff]
    %v257 = vld [vmem:[%s0 + $0x130] sm:$0xff]
    %v258 = vld [vmem:[%s0 + $0x138] sm:$0xff]
    %v259 = vld [vmem:[%s0 + $0x140] sm:$0xff]
    %v260 = vld [vmem:[%s0 + $0x148] sm:$0xff]
    %v261 = vld [vmem:[%s0 + $0x150] sm:$0xff]
    %v262 = vld [vmem:[%s0 + $0x158] sm:$0xff]
    %v263 = vld [vmem:[%s0 + $0x160] sm:$0xff]
    %v264 = vld [vmem:[%s0 + $0x168] sm:$0xff]
    %v265 = vld [vmem:[%s0 + $0x170] sm:$0xff]
    %v266 = vld [vmem:[%s0 + $0x178] sm:$0xff]
    %v267 = vld [vmem:[%s0 + $0x180] sm:$0xff]
    %v268 = vld [vmem:[%s0 + $0x188] sm:$0xff]
    %v270 = vlaneseq
    %v271 = vshrl.u32 %v270, 7
    %v272 = vsub.s32 0, %v271
    %v273 = vrot.slane %v218, %v272
    %v274 = vlaneseq
    %v275 = vshrl.u32 %v274, 7
    %v276 = vsub.s32 1, %v275
    %v277 = vrot.slane %v218, %v276
    %v330 = vunpack.c.l.b16 %v219
    %v331 = vunpack.c.h.b16 %v219
    %v332 = vunpack.c.l.b16 %v220
    %v333 = vunpack.c.h.b16 %v220
    %v334 = vunpack.c.l.b16 %v221
    %v335 = vunpack.c.h.b16 %v221
    %v336 = vunpack.c.l.b16 %v222
    %v337 = vunpack.c.h.b16 %v222
    %v338 = vunpack.c.l.b16 %v223
    %v339 = vunpack.c.h.b16 %v223
    %v340 = vunpack.c.l.b16 %v224
    %v341 = vunpack.c.h.b16 %v224
    %v342 = vunpack.c.l.b16 %v225
    %v343 = vunpack.c.h.b16 %v225
    %v344 = vunpack.c.l.b16 %v226
    %v345 = vunpack.c.h.b16 %v226
    %v346 = vunpack.c.l.b16 %v227
    %v347 = vunpack.c.h.b16 %v227
    %v348 = vunpack.c.l.b16 %v228
    %v349 = vunpack.c.h.b16 %v228
    %v350 = vunpack.c.l.b16 %v229
    %v351 = vunpack.c.h.b16 %v229
    %v352 = vunpack.c.l.b16 %v230
    %v353 = vunpack.c.h.b16 %v230
    %v354 = vunpack.c.l.b16 %v231
    %v355 = vunpack.c.h.b16 %v231
    %v356 = vunpack.c.l.b16 %v232
    %v357 = vunpack.c.h.b16 %v232
    %v358 = vunpack.c.l.b16 %v233
    %v359 = vunpack.c.h.b16 %v233
    %v360 = vunpack.c.l.b16 %v234
    %v361 = vunpack.c.h.b16 %v234
    %v362 = vunpack.c.l.b16 %v235
    %v363 = vunpack.c.h.b16 %v235
    %v364 = vunpack.c.l.b16 %v236
    %v365 = vunpack.c.h.b16 %v236
    %v366 = vunpack.c.l.b16 %v237
    %v367 = vunpack.c.h.b16 %v237
    %v368 = vunpack.c.l.b16 %v238
    %v369 = vunpack.c.h.b16 %v238
    %v370 = vunpack.c.l.b16 %v239
    %v371 = vunpack.c.h.b16 %v239
    %v372 = vunpack.c.l.b16 %v240
    %v373 = vunpack.c.h.b16 %v240
    %v374 = vunpack.c.l.b16 %v241
    %v375 = vunpack.c.h.b16 %v241
    %v376 = vunpack.c.l.b16 %v242
    %v377 = vunpack.c.h.b16 %v242
    %v378 = vunpack.c.l.b16 %v243
    %v379 = vunpack.c.h.b16 %v243
    %v380 = vunpack.c.l.b16 %v244
    %v381 = vunpack.c.h.b16 %v244
    %v382 = vunpack.c.l.b16 %v245
    %v383 = vunpack.c.h.b16 %v245
    %v384 = vunpack.c.l.b16 %v246
    %v385 = vunpack.c.h.b16 %v246
    %v386 = vunpack.c.l.b16 %v247
    %v387 = vunpack.c.h.b16 %v247
    %v388 = vunpack.c.l.b16 %v248
    %v389 = vunpack.c.h.b16 %v248
    %v390 = vunpack.c.l.b16 %v249
    %v391 = vunpack.c.h.b16 %v249
    %v392 = vunpack.c.l.b16 %v250
    %v393 = vunpack.c.h.b16 %v250
    %v394 = vunpack.c.l.b16 %v251
    %v395 = vunpack.c.h.b16 %v251
    %v396 = vunpack.c.l.b16 %v252
    %v397 = vunpack.c.h.b16 %v252
    %v398 = vunpack.c.l.b16 %v253
    %v399 = vunpack.c.h.b16 %v253
    %v400 = vunpack.c.l.b16 %v254
    %v401 = vunpack.c.h.b16 %v254
    %v402 = vunpack.c.l.b16 %v255
    %v403 = vunpack.c.h.b16 %v255
    %v404 = vunpack.c.l.b16 %v256
    %v405 = vunpack.c.h.b16 %v256
    %v406 = vunpack.c.l.b16 %v257
    %v407 = vunpack.c.h.b16 %v257
    %v408 = vunpack.c.l.b16 %v258
    %v409 = vunpack.c.h.b16 %v258
    %v410 = vunpack.c.l.b16 %v259
    %v411 = vunpack.c.h.b16 %v259
    %v412 = vunpack.c.l.b16 %v260
    %v413 = vunpack.c.h.b16 %v260
    %v414 = vunpack.c.l.b16 %v261
    %v415 = vunpack.c.h.b16 %v261
    %v416 = vunpack.c.l.b16 %v262
    %v417 = vunpack.c.h.b16 %v262
    %v418 = vunpack.c.l.b16 %v263
    %v419 = vunpack.c.h.b16 %v263
    %v420 = vunpack.c.l.b16 %v264
    %v421 = vunpack.c.h.b16 %v264
    %v422 = vunpack.c.l.b16 %v265
    %v423 = vunpack.c.h.b16 %v265
    %v424 = vunpack.c.l.b16 %v266
    %v425 = vunpack.c.h.b16 %v266
    %v426 = vunpack.c.l.b16 %v267
    %v427 = vunpack.c.h.b16 %v267
    %v428 = vunpack.c.l.b16 %v268
    %v429 = vunpack.c.h.b16 %v268
    %v430 = vpack.c.b16 %v334, %v330
    %v431 = vpack.c.b16 %v335, %v331
    %v432 = vpack.c.b16 %v336, %v332
    %v433 = vpack.c.b16 %v337, %v333
    %v434 = vpack.c.b16 %v342, %v338
    %v435 = vpack.c.b16 %v343, %v339
    %v436 = vpack.c.b16 %v344, %v340
    %v437 = vpack.c.b16 %v345, %v341
    %v438 = vpack.c.b16 %v350, %v346
    %v439 = vpack.c.b16 %v351, %v347
    %v440 = vpack.c.b16 %v352, %v348
    %v441 = vpack.c.b16 %v353, %v349
    %v442 = vpack.c.b16 %v358, %v354
    %v443 = vpack.c.b16 %v359, %v355
    %v444 = vpack.c.b16 %v360, %v356
    %v445 = vpack.c.b16 %v361, %v357
    %v446 = vpack.c.b16 %v366, %v362
    %v447 = vpack.c.b16 %v367, %v363
    %v448 = vpack.c.b16 %v368, %v364
    %v449 = vpack.c.b16 %v369, %v365
    %v450 = vpack.c.b16 %v374, %v370
    %v451 = vpack.c.b16 %v375, %v371
    %v452 = vpack.c.b16 %v376, %v372
    %v453 = vpack.c.b16 %v377, %v373
    %v454 = vpack.c.b16 %v382, %v378
    %v455 = vpack.c.b16 %v383, %v379
    %v456 = vpack.c.b16 %v384, %v380
    %v457 = vpack.c.b16 %v385, %v381
    %v458 = vpack.c.b16 %v390, %v386
    %v459 = vpack.c.b16 %v391, %v387
    %v460 = vpack.c.b16 %v392, %v388
    %v461 = vpack.c.b16 %v393, %v389
    %v462 = vpack.c.b16 %v398, %v394
    %v463 = vpack.c.b16 %v399, %v395
    %v464 = vpack.c.b16 %v400, %v396
    %v465 = vpack.c.b16 %v401, %v397
    %v466 = vpack.c.b16 %v406, %v402
    %v467 = vpack.c.b16 %v407, %v403
    %v468 = vpack.c.b16 %v408, %v404
    %v469 = vpack.c.b16 %v409, %v405
    %v470 = vpack.c.b16 %v414, %v410
    %v471 = vpack.c.b16 %v415, %v411
    %v472 = vpack.c.b16 %v416, %v412
    %v473 = vpack.c.b16 %v417, %v413
    %v474 = vpack.c.b16 %v422, %v418
    %v475 = vpack.c.b16 %v423, %v419
    %v476 = vpack.c.b16 %v424, %v420
    %v477 = vpack.c.b16 %v425, %v421
    %v478 = vpack.c.b16 %v426, %v426
    %v479 = vpack.c.b16 %v427, %v427
    %v480 = vpack.c.b16 %v428, %v428
    %v481 = vpack.c.b16 %v429, %v429
    %v598 = vunpack.c.l.b16 %v154
    %v599 = vunpack.c.h.b16 %v154
    %v600 = vunpack.c.l.b16 %v155
    %v601 = vunpack.c.h.b16 %v155
    %v602 = vunpack.c.l.b16 %v156
    %v603 = vunpack.c.h.b16 %v156
    %v604 = vunpack.c.l.b16 %v157
    %v605 = vunpack.c.h.b16 %v157
    %v606 = vunpack.c.l.b16 %v158
    %v607 = vunpack.c.h.b16 %v158
    %v608 = vunpack.c.l.b16 %v159
    %v609 = vunpack.c.h.b16 %v159
    %v610 = vunpack.c.l.b16 %v160
    %v611 = vunpack.c.h.b16 %v160
    %v612 = vunpack.c.l.b16 %v161
    %v613 = vunpack.c.h.b16 %v161
    %v614 = vunpack.c.l.b16 %v162
    %v615 = vunpack.c.h.b16 %v162
    %v616 = vunpack.c.l.b16 %v163
    %v617 = vunpack.c.h.b16 %v163
    %v618 = vunpack.c.l.b16 %v164
    %v619 = vunpack.c.h.b16 %v164
    %v620 = vunpack.c.l.b16 %v165
    %v621 = vunpack.c.h.b16 %v165
    %v622 = vunpack.c.l.b16 %v166
    %v623 = vunpack.c.h.b16 %v166
    %v624 = vunpack.c.l.b16 %v167
    %v625 = vunpack.c.h.b16 %v167
    %v626 = vunpack.c.l.b16 %v168
    %v627 = vunpack.c.h.b16 %v168
    %v628 = vunpack.c.l.b16 %v169
    %v629 = vunpack.c.h.b16 %v169
    %v630 = vunpack.c.l.b16 %v170
    %v631 = vunpack.c.h.b16 %v170
    %v632 = vunpack.c.l.b16 %v171
    %v633 = vunpack.c.h.b16 %v171
    %v634 = vunpack.c.l.b16 %v172
    %v635 = vunpack.c.h.b16 %v172
    %v636 = vunpack.c.l.b16 %v173
    %v637 = vunpack.c.h.b16 %v173
    %v638 = vunpack.c.l.b16 %v174
    %v639 = vunpack.c.h.b16 %v174
    %v640 = vunpack.c.l.b16 %v175
    %v641 = vunpack.c.h.b16 %v175
    %v642 = vunpack.c.l.b16 %v176
    %v643 = vunpack.c.h.b16 %v176
    %v644 = vunpack.c.l.b16 %v177
    %v645 = vunpack.c.h.b16 %v177
    %v646 = vunpack.c.l.b16 %v178
    %v647 = vunpack.c.h.b16 %v178
    %v648 = vunpack.c.l.b16 %v179
    %v649 = vunpack.c.h.b16 %v179
    %v650 = vunpack.c.l.b16 %v180
    %v651 = vunpack.c.h.b16 %v180
    %v652 = vunpack.c.l.b16 %v181
    %v653 = vunpack.c.h.b16 %v181
    %v654 = vunpack.c.l.b16 %v182
    %v655 = vunpack.c.h.b16 %v182
    %v656 = vunpack.c.l.b16 %v183
    %v657 = vunpack.c.h.b16 %v183
    %v658 = vunpack.c.l.b16 %v184
    %v659 = vunpack.c.h.b16 %v184
    %v660 = vunpack.c.l.b16 %v185
    %v661 = vunpack.c.h.b16 %v185
    %v662 = vunpack.c.l.b16 %v186
    %v663 = vunpack.c.h.b16 %v186
    %v664 = vunpack.c.l.b16 %v187
    %v665 = vunpack.c.h.b16 %v187
    %v666 = vunpack.c.l.b16 %v188
    %v667 = vunpack.c.h.b16 %v188
    %v668 = vunpack.c.l.b16 %v189
    %v669 = vunpack.c.h.b16 %v189
    %v670 = vunpack.c.l.b16 %v190
    %v671 = vunpack.c.h.b16 %v190
    %v672 = vunpack.c.l.b16 %v191
    %v673 = vunpack.c.h.b16 %v191
    %v674 = vunpack.c.l.b16 %v192
    %v675 = vunpack.c.h.b16 %v192
    %v676 = vunpack.c.l.b16 %v193
    %v677 = vunpack.c.h.b16 %v193
    %v678 = vunpack.c.l.b16 %v194
    %v679 = vunpack.c.h.b16 %v194
    %v680 = vunpack.c.l.b16 %v195
    %v681 = vunpack.c.h.b16 %v195
    %v682 = vunpack.c.l.b16 %v196
    %v683 = vunpack.c.h.b16 %v196
    %v684 = vunpack.c.l.b16 %v197
    %v685 = vunpack.c.h.b16 %v197
    %v686 = vunpack.c.l.b16 %v198
    %v687 = vunpack.c.h.b16 %v198
    %v688 = vunpack.c.l.b16 %v199
    %v689 = vunpack.c.h.b16 %v199
    %v690 = vunpack.c.l.b16 %v200
    %v691 = vunpack.c.h.b16 %v200
    %v692 = vunpack.c.l.b16 %v201
    %v693 = vunpack.c.h.b16 %v201
    %v694 = vunpack.c.l.b16 %v202
    %v695 = vunpack.c.h.b16 %v202
    %v696 = vunpack.c.l.b16 %v203
    %v697 = vunpack.c.h.b16 %v203
    %v698 = vunpack.c.l.b16 %v204
    %v699 = vunpack.c.h.b16 %v204
    %v700 = vunpack.c.l.b16 %v205
    %v701 = vunpack.c.h.b16 %v205
    %v702 = vunpack.c.l.b16 %v206
    %v703 = vunpack.c.h.b16 %v206
    %v704 = vunpack.c.l.b16 %v207
    %v705 = vunpack.c.h.b16 %v207
    %v706 = vunpack.c.l.b16 %v208
    %v707 = vunpack.c.h.b16 %v208
    %v708 = vunpack.c.l.b16 %v209
    %v709 = vunpack.c.h.b16 %v209
    %v710 = vunpack.c.l.b16 %v210
    %v711 = vunpack.c.h.b16 %v210
    %v712 = vunpack.c.l.b16 %v211
    %v713 = vunpack.c.h.b16 %v211
    %v714 = vunpack.c.l.b16 %v212
    %v715 = vunpack.c.h.b16 %v212
    %v716 = vunpack.c.l.b16 %v213
    %v717 = vunpack.c.h.b16 %v213
    %v718 = vunpack.c.l.b16 %v214
    %v719 = vunpack.c.h.b16 %v214
    %v720 = vunpack.c.l.b16 %v215
    %v721 = vunpack.c.h.b16 %v215
    %v722 = vunpack.c.l.b16 %v216
    %v723 = vunpack.c.h.b16 %v216
    %v724 = vunpack.c.l.b16 %v217
    %v725 = vunpack.c.h.b16 %v217
    %v726 = vpack.c.b16 %v600, %v598
    %v727 = vpack.c.b16 %v601, %v599
    %v728 = vpack.c.b16 %v604, %v602
    %v729 = vpack.c.b16 %v605, %v603
    %v730 = vpack.c.b16 %v608, %v606
    %v731 = vpack.c.b16 %v609, %v607
    %v732 = vpack.c.b16 %v612, %v610
    %v733 = vpack.c.b16 %v613, %v611
    %v734 = vpack.c.b16 %v616, %v614
    %v735 = vpack.c.b16 %v617, %v615
    %v736 = vpack.c.b16 %v620, %v618
    %v737 = vpack.c.b16 %v621, %v619
    %v738 = vpack.c.b16 %v624, %v622
    %v739 = vpack.c.b16 %v625, %v623
    %v740 = vpack.c.b16 %v628, %v626
    %v741 = vpack.c.b16 %v629, %v627
    %v742 = vpack.c.b16 %v632, %v630
    %v743 = vpack.c.b16 %v633, %v631
    %v744 = vpack.c.b16 %v636, %v634
    %v745 = vpack.c.b16 %v637, %v635
    %v746 = vpack.c.b16 %v640, %v638
    %v747 = vpack.c.b16 %v641, %v639
    %v748 = vpack.c.b16 %v644, %v642
    %v749 = vpack.c.b16 %v645, %v643
    %v750 = vpack.c.b16 %v648, %v646
    %v751 = vpack.c.b16 %v649, %v647
    %v752 = vpack.c.b16 %v652, %v650
    %v753 = vpack.c.b16 %v653, %v651
    %v754 = vpack.c.b16 %v656, %v654
    %v755 = vpack.c.b16 %v657, %v655
    %v756 = vpack.c.b16 %v660, %v658
    %v757 = vpack.c.b16 %v661, %v659
    %v758 = vpack.c.b16 %v664, %v662
    %v759 = vpack.c.b16 %v665, %v663
    %v760 = vpack.c.b16 %v668, %v666
    %v761 = vpack.c.b16 %v669, %v667
    %v762 = vpack.c.b16 %v672, %v670
    %v763 = vpack.c.b16 %v673, %v671
    %v764 = vpack.c.b16 %v676, %v674
    %v765 = vpack.c.b16 %v677, %v675
    %v766 = vpack.c.b16 %v680, %v678
    %v767 = vpack.c.b16 %v681, %v679
    %v768 = vpack.c.b16 %v684, %v682
    %v769 = vpack.c.b16 %v685, %v683
    %v770 = vpack.c.b16 %v688, %v686
    %v771 = vpack.c.b16 %v689, %v687
    %v772 = vpack.c.b16 %v692, %v690
    %v773 = vpack.c.b16 %v693, %v691
    %v774 = vpack.c.b16 %v696, %v694
    %v775 = vpack.c.b16 %v697, %v695
    %v776 = vpack.c.b16 %v700, %v698
    %v777 = vpack.c.b16 %v701, %v699
    %v778 = vpack.c.b16 %v704, %v702
    %v779 = vpack.c.b16 %v705, %v703
    %v780 = vpack.c.b16 %v708, %v706
    %v781 = vpack.c.b16 %v709, %v707
    %v782 = vpack.c.b16 %v712, %v710
    %v783 = vpack.c.b16 %v713, %v711
    %v784 = vpack.c.b16 %v716, %v714
    %v785 = vpack.c.b16 %v717, %v715
    %v786 = vpack.c.b16 %v720, %v718
    %v787 = vpack.c.b16 %v721, %v719
    %v788 = vpack.c.b16 %v724, %v722
    %v789 = vpack.c.b16 %v725, %v723
    %854 = vmatprep.subr.bf16.mxu0 %v727
    %855 = vmatpush1.bf16.msra.mxu0 %v726
    %856 = vmatprep.subr.bf16.mxu0 %v729
    %857 = vmatpush1.bf16.msra.mxu0 %v728
    %858 = vmatprep.subr.bf16.mxu0 %v731
    %859 = vmatpush1.bf16.msra.mxu0 %v730
    %860 = vmatprep.subr.bf16.mxu0 %v733
    %861 = vmatpush1.bf16.msra.mxu0 %v732
    %862 = vmatprep.subr.bf16.mxu0 %v735
    %863 = vmatpush1.bf16.msra.mxu0 %v734
    %864 = vmatprep.subr.bf16.mxu0 %v737
    %865 = vmatpush1.bf16.msra.mxu0 %v736
    %866 = vmatprep.subr.bf16.mxu0 %v739
    %867 = vmatpush1.bf16.msra.mxu0 %v738
    %868 = vmatprep.subr.bf16.mxu0 %v741
    %869 = vmatpush1.bf16.msra.mxu0 %v740
    %870 = vmatprep.subr.bf16.mxu0 %v743
    %871 = vmatpush1.bf16.msra.mxu0 %v742
    %872 = vmatprep.subr.bf16.mxu0 %v745
    %873 = vmatpush1.bf16.msra.mxu0 %v744
    %874 = vmatprep.subr.bf16.mxu0 %v747
    %875 = vmatpush1.bf16.msra.mxu0 %v746
    %876 = vmatprep.subr.bf16.mxu0 %v749
    %877 = vmatpush1.bf16.msra.mxu0 %v748
    %878 = vmatprep.subr.bf16.mxu0 %v751
    %879 = vmatpush1.bf16.msra.mxu0 %v750
    %880 = vmatprep.subr.bf16.mxu0 %v753
    %881 = vmatpush1.bf16.msra.mxu0 %v752
    %882 = vmatprep.subr.bf16.mxu0 %v755
    %883 = vmatpush1.bf16.msra.mxu0 %v754
    %884 = vmatprep.subr.bf16.mxu0 %v757
    %885 = vmatpush1.bf16.msra.mxu0 %v756
    %886 = vmatprep.mubr.bf16.mxu0 %v431
    %887 = vmatmul.mubr.bf16.gmra.mrb[0].mxu0 %v430
    %v888 = vpop.f32.mrb[0].mxu0
    %v889 = vadd.f32 %v273, %v888
    %v890 = vpop.f32.mrb[0].mxu0
    %v891 = vadd.f32 %v277, %v890
    %v892 = vpop.f32.mrb[0].mxu0
    %v893 = vadd.f32 %v273, %v892
    %v894 = vpop.f32.mrb[0].mxu0
    %v895 = vadd.f32 %v277, %v894
    %896 = vmatprep.mubr.bf16.mxu0 %v435
    %897 = vmatmul.mubr.bf16.gmra.mrb[0].mxu0 %v434
    %v898 = vpop.f32.mrb[0].mxu0
    %v899 = vadd.f32 %v273, %v898
    %v900 = vpop.f32.mrb[0].mxu0
    %v901 = vadd.f32 %v277, %v900
    %v902 = vpop.f32.mrb[0].mxu0
    %v903 = vadd.f32 %v273, %v902
    %v904 = vpop.f32.mrb[0].mxu0
    %v905 = vadd.f32 %v277, %v904
    %906 = vmatprep.mubr.bf16.mxu0 %v439
    %907 = vmatmul.mubr.bf16.gmra.mrb[0].mxu0 %v438
    %v908 = vpop.f32.mrb[0].mxu0
    %v909 = vadd.f32 %v273, %v908
    %v910 = vpop.f32.mrb[0].mxu0
    %v911 = vadd.f32 %v277, %v910
    %v912 = vpop.f32.mrb[0].mxu0
    %v913 = vadd.f32 %v273, %v912
    %v914 = vpop.f32.mrb[0].mxu0
    %v915 = vadd.f32 %v277, %v914
    %916 = vmatprep.mubr.bf16.mxu0 %v443
    %917 = vmatmul.mubr.bf16.gmra.mrb[0].mxu0 %v442
    %v918 = vpop.f32.mrb[0].mxu0
    %v919 = vadd.f32 %v273, %v918
    %v920 = vpop.f32.mrb[0].mxu0
    %v921 = vadd.f32 %v277, %v920
    %v922 = vpop.f32.mrb[0].mxu0
    %v923 = vadd.f32 %v273, %v922
    %v924 = vpop.f32.mrb[0].mxu0
    %v925 = vadd.f32 %v277, %v924
    %926 = vmatprep.mubr.bf16.mxu0 %v447
    %927 = vmatmul.mubr.bf16.gmra.mrb[0].mxu0 %v446
    %v928 = vpop.f32.mrb[0].mxu0
    %v929 = vadd.f32 %v273, %v928
    %v930 = vpop.f32.mrb[0].mxu0
    %v931 = vadd.f32 %v277, %v930
    %v932 = vpop.f32.mrb[0].mxu0
    %v933 = vadd.f32 %v273, %v932
    %v934 = vpop.f32.mrb[0].mxu0
    %v935 = vadd.f32 %v277, %v934
    %936 = vmatprep.mubr.bf16.mxu0 %v451
    %937 = vmatmul.mubr.bf16.gmra.mrb[0].mxu0 %v450
    %v938 = vpop.f32.mrb[0].mxu0
    %v939 = vadd.f32 %v273, %v938
    %v940 = vpop.f32.mrb[0].mxu0
    %v941 = vadd.f32 %v277, %v940
    %v942 = vpop.f32.mrb[0].mxu0
    %v943 = vadd.f32 %v273, %v942
    %v944 = vpop.f32.mrb[0].mxu0
    %v945 = vadd.f32 %v277, %v944
    %946 = vmatprep.mubr.bf16.mxu0 %v455
    %947 = vmatmul.mubr.bf16.gmra.mrb[0].mxu0 %v454
    %v948 = vpop.f32.mrb[0].mxu0
    %v949 = vadd.f32 %v273, %v948
    %v950 = vpop.f32.mrb[0].mxu0
    %v951 = vadd.f32 %v277, %v950
    %v952 = vpop.f32.mrb[0].mxu0
    %v953 = vadd.f32 %v273, %v952
    %v954 = vpop.f32.mrb[0].mxu0
    %v955 = vadd.f32 %v277, %v954
    %956 = vmatprep.mubr.bf16.mxu0 %v459
    %957 = vmatmul.mubr.bf16.gmra.mrb[0].mxu0 %v458
    %v958 = vpop.f32.mrb[0].mxu0
    %v959 = vadd.f32 %v273, %v958
    %v960 = vpop.f32.mrb[0].mxu0
    %v961 = vadd.f32 %v277, %v960
    %v962 = vpop.f32.mrb[0].mxu0
    %v963 = vadd.f32 %v273, %v962
    %v964 = vpop.f32.mrb[0].mxu0
    %v965 = vadd.f32 %v277, %v964
    %966 = vmatprep.mubr.bf16.mxu0 %v463
    %967 = vmatmul.mubr.bf16.gmra.mrb[0].mxu0 %v462
    %v968 = vpop.f32.mrb[0].mxu0
    %v969 = vadd.f32 %v273, %v968
    %v970 = vpop.f32.mrb[0].mxu0
    %v971 = vadd.f32 %v277, %v970
    %v972 = vpop.f32.mrb[0].mxu0
    %v973 = vadd.f32 %v273, %v972
    %v974 = vpop.f32.mrb[0].mxu0
    %v975 = vadd.f32 %v277, %v974
    %976 = vmatprep.mubr.bf16.mxu0 %v467
    %977 = vmatmul.mubr.bf16.gmra.mrb[0].mxu0 %v466
    %v978 = vpop.f32.mrb[0].mxu0
    %v979 = vadd.f32 %v273, %v978
    %v980 = vpop.f32.mrb[0].mxu0
    %v981 = vadd.f32 %v277, %v980
    %v982 = vpop.f32.mrb[0].mxu0
    %v983 = vadd.f32 %v273, %v982
    %v984 = vpop.f32.mrb[0].mxu0
    %v985 = vadd.f32 %v277, %v984
    %986 = vmatprep.mubr.bf16.mxu0 %v471
    %987 = vmatmul.mubr.bf16.gmra.mrb[0].mxu0 %v470
    %v988 = vpop.f32.mrb[0].mxu0
    %v989 = vadd.f32 %v273, %v988
    %v990 = vpop.f32.mrb[0].mxu0
    %v991 = vadd.f32 %v277, %v990
    %v992 = vpop.f32.mrb[0].mxu0
    %v993 = vadd.f32 %v273, %v992
    %v994 = vpop.f32.mrb[0].mxu0
    %v995 = vadd.f32 %v277, %v994
    %996 = vmatprep.mubr.bf16.mxu0 %v475
    %997 = vmatmul.mubr.bf16.gmra.mrb[0].mxu0 %v474
    %v998 = vpop.f32.mrb[0].mxu0
    %v999 = vadd.f32 %v273, %v998
    %v1000 = vpop.f32.mrb[0].mxu0
    %v1001 = vadd.f32 %v277, %v1000
    %v1002 = vpop.f32.mrb[0].mxu0
    %v1003 = vadd.f32 %v273, %v1002
    %v1004 = vpop.f32.mrb[0].mxu0
    %v1005 = vadd.f32 %v277, %v1004
    %1006 = vmatprep.mubr.bf16.mxu0 %v479
    %1007 = vmatmul.mubr.bf16.gmra.mrb[0].mxu0 %v478
    %v1008 = vpop.f32.mrb[0].mxu0
    %v1009 = vadd.f32 %v273, %v1008
    %v1010 = vpop.f32.mrb[0].mxu0
    %v1011 = vadd.f32 %v277, %v1010
    %v1012 = vpop.f32.mrb[0].mxu0
    %v1013 = vpop.f32.mrb[0].mxu0
    %1014 = vdwg.mxu0
    %1015 = vmatprep.subr.bf16.mxu0 %v759
    %1016 = vmatpush1.bf16.msra.mxu0 %v758
    %1017 = vmatprep.subr.bf16.mxu0 %v761
    %1018 = vmatpush1.bf16.msra.mxu0 %v760
    %1019 = vmatprep.subr.bf16.mxu0 %v763
    %1020 = vmatpush1.bf16.msra.mxu0 %v762
    %1021 = vmatprep.subr.bf16.mxu0 %v765
    %1022 = vmatpush1.bf16.msra.mxu0 %v764
    %1023 = vmatprep.subr.bf16.mxu0 %v767
    %1024 = vmatpush1.bf16.msra.mxu0 %v766
    %1025 = vmatprep.subr.bf16.mxu0 %v769
    %1026 = vmatpush1.bf16.msra.mxu0 %v768
    %1027 = vmatprep.subr.bf16.mxu0 %v771
    %1028 = vmatpush1.bf16.msra.mxu0 %v770
    %1029 = vmatprep.subr.bf16.mxu0 %v773
    %1030 = vmatpush1.bf16.msra.mxu0 %v772
    %1031 = vmatprep.subr.bf16.mxu0 %v775
    %1032 = vmatpush1.bf16.msra.mxu0 %v774
    %1033 = vmatprep.subr.bf16.mxu0 %v777
    %1034 = vmatpush1.bf16.msra.mxu0 %v776
    %1035 = vmatprep.subr.bf16.mxu0 %v779
    %1036 = vmatpush1.bf16.msra.mxu0 %v778
    %1037 = vmatprep.subr.bf16.mxu0 %v781
    %1038 = vmatpush1.bf16.msra.mxu0 %v780
    %1039 = vmatprep.subr.bf16.mxu0 %v783
    %1040 = vmatpush1.bf16.msra.mxu0 %v782
    %1041 = vmatprep.subr.bf16.mxu0 %v785
    %1042 = vmatpush1.bf16.msra.mxu0 %v784
    %1043 = vmatprep.subr.bf16.mxu0 %v787
    %1044 = vmatpush1.bf16.msra.mxu0 %v786
    %1045 = vmatprep.subr.bf16.mxu0 %v789
    %1046 = vmatpush1.bf16.msra.mxu0 %v788
    %1047 = vmatprep.mubr.bf16.mxu0 %v433
    %1048 = vmatmul.mubr.bf16.gmra.mrb[0].mxu0 %v432
    %v1049 = vpop.f32.mrb[0].mxu0
    %v1050 = vadd.f32 %v889, %v1049
    %v1051 = vpop.f32.mrb[0].mxu0
    %v1052 = vadd.f32 %v891, %v1051
    %v1053 = vpop.f32.mrb[0].mxu0
    %v1054 = vadd.f32 %v893, %v1053
    %v1055 = vpop.f32.mrb[0].mxu0
    %v1056 = vadd.f32 %v895, %v1055
    %1057 = vmatprep.mubr.bf16.mxu0 %v437
    %1058 = vmatmul.mubr.bf16.gmra.mrb[0].mxu0 %v436
    %v1059 = vpop.f32.mrb[0].mxu0
    %v1060 = vadd.f32 %v899, %v1059
    %v1061 = vpop.f32.mrb[0].mxu0
    %v1062 = vadd.f32 %v901, %v1061
    %v1063 = vpop.f32.mrb[0].mxu0
    %v1064 = vadd.f32 %v903, %v1063
    %v1065 = vpop.f32.mrb[0].mxu0
    %v1066 = vadd.f32 %v905, %v1065
    %1067 = vmatprep.mubr.bf16.mxu0 %v441
    %1068 = vmatmul.mubr.bf16.gmra.mrb[0].mxu0 %v440
    %v1069 = vpop.f32.mrb[0].mxu0
    %v1070 = vadd.f32 %v909, %v1069
    %v1071 = vpop.f32.mrb[0].mxu0
    %v1072 = vadd.f32 %v911, %v1071
    %v1073 = vpop.f32.mrb[0].mxu0
    %v1074 = vadd.f32 %v913, %v1073
    %v1075 = vpop.f32.mrb[0].mxu0
    %v1076 = vadd.f32 %v915, %v1075
    %1077 = vmatprep.mubr.bf16.mxu0 %v445
    %1078 = vmatmul.mubr.bf16.gmra.mrb[0].mxu0 %v444
    %v1079 = vpop.f32.mrb[0].mxu0
    %v1080 = vadd.f32 %v919, %v1079
    %v1081 = vpop.f32.mrb[0].mxu0
    %v1082 = vadd.f32 %v921, %v1081
    %v1083 = vpop.f32.mrb[0].mxu0
    %v1084 = vadd.f32 %v923, %v1083
    %v1085 = vpop.f32.mrb[0].mxu0
    %v1086 = vadd.f32 %v925, %v1085
    %1087 = vmatprep.mubr.bf16.mxu0 %v449
    %1088 = vmatmul.mubr.bf16.gmra.mrb[0].mxu0 %v448
    %v1089 = vpop.f32.mrb[0].mxu0
    %v1090 = vadd.f32 %v929, %v1089
    %v1091 = vpop.f32.mrb[0].mxu0
    %v1092 = vadd.f32 %v931, %v1091
    %v1093 = vpop.f32.mrb[0].mxu0
    %v1094 = vadd.f32 %v933, %v1093
    %v1095 = vpop.f32.mrb[0].mxu0
    %v1096 = vadd.f32 %v935, %v1095
    %1097 = vmatprep.mubr.bf16.mxu0 %v453
    %1098 = vmatmul.mubr.bf16.gmra.mrb[0].mxu0 %v452
    %v1099 = vpop.f32.mrb[0].mxu0
    %v1100 = vadd.f32 %v939, %v1099
    %v1101 = vpop.f32.mrb[0].mxu0
    %v1102 = vadd.f32 %v941, %v1101
    %v1103 = vpop.f32.mrb[0].mxu0
    %v1104 = vadd.f32 %v943, %v1103
    %v1105 = vpop.f32.mrb[0].mxu0
    %v1106 = vadd.f32 %v945, %v1105
    %1107 = vmatprep.mubr.bf16.mxu0 %v457
    %1108 = vmatmul.mubr.bf16.gmra.mrb[0].mxu0 %v456
    %v1109 = vpop.f32.mrb[0].mxu0
    %v1110 = vadd.f32 %v949, %v1109
    %v1111 = vpop.f32.mrb[0].mxu0
    %v1112 = vadd.f32 %v951, %v1111
    %v1113 = vpop.f32.mrb[0].mxu0
    %v1114 = vadd.f32 %v953, %v1113
    %v1115 = vpop.f32.mrb[0].mxu0
    %v1116 = vadd.f32 %v955, %v1115
    %1117 = vmatprep.mubr.bf16.mxu0 %v461
    %1118 = vmatmul.mubr.bf16.gmra.mrb[0].mxu0 %v460
    %v1119 = vpop.f32.mrb[0].mxu0
    %v1120 = vadd.f32 %v959, %v1119
    %v1121 = vpop.f32.mrb[0].mxu0
    %v1122 = vadd.f32 %v961, %v1121
    %v1123 = vpop.f32.mrb[0].mxu0
    %v1124 = vadd.f32 %v963, %v1123
    %v1125 = vpop.f32.mrb[0].mxu0
    %v1126 = vadd.f32 %v965, %v1125
    %1127 = vmatprep.mubr.bf16.mxu0 %v465
    %1128 = vmatmul.mubr.bf16.gmra.mrb[0].mxu0 %v464
    %v1129 = vpop.f32.mrb[0].mxu0
    %v1130 = vadd.f32 %v969, %v1129
    %v1131 = vpop.f32.mrb[0].mxu0
    %v1132 = vadd.f32 %v971, %v1131
    %v1133 = vpop.f32.mrb[0].mxu0
    %v1134 = vadd.f32 %v973, %v1133
    %v1135 = vpop.f32.mrb[0].mxu0
    %v1136 = vadd.f32 %v975, %v1135
    %1137 = vmatprep.mubr.bf16.mxu0 %v469
    %1138 = vmatmul.mubr.bf16.gmra.mrb[0].mxu0 %v468
    %v1139 = vpop.f32.mrb[0].mxu0
    %v1140 = vadd.f32 %v979, %v1139
    %v1141 = vpop.f32.mrb[0].mxu0
    %v1142 = vadd.f32 %v981, %v1141
    %v1143 = vpop.f32.mrb[0].mxu0
    %v1144 = vadd.f32 %v983, %v1143
    %v1145 = vpop.f32.mrb[0].mxu0
    %v1146 = vadd.f32 %v985, %v1145
    %1147 = vmatprep.mubr.bf16.mxu0 %v473
    %1148 = vmatmul.mubr.bf16.gmra.mrb[0].mxu0 %v472
    %v1149 = vpop.f32.mrb[0].mxu0
    %v1150 = vadd.f32 %v989, %v1149
    %v1151 = vpop.f32.mrb[0].mxu0
    %v1152 = vadd.f32 %v991, %v1151
    %v1153 = vpop.f32.mrb[0].mxu0
    %v1154 = vadd.f32 %v993, %v1153
    %v1155 = vpop.f32.mrb[0].mxu0
    %v1156 = vadd.f32 %v995, %v1155
    %1157 = vmatprep.mubr.bf16.mxu0 %v477
    %1158 = vmatmul.mubr.bf16.gmra.mrb[0].mxu0 %v476
    %v1159 = vpop.f32.mrb[0].mxu0
    %v1160 = vadd.f32 %v999, %v1159
    %v1161 = vpop.f32.mrb[0].mxu0
    %v1162 = vadd.f32 %v1001, %v1161
    %v1163 = vpop.f32.mrb[0].mxu0
    %v1164 = vadd.f32 %v1003, %v1163
    %v1165 = vpop.f32.mrb[0].mxu0
    %v1166 = vadd.f32 %v1005, %v1165
    %1167 = vmatprep.mubr.bf16.mxu0 %v481
    %1168 = vmatmul.mubr.bf16.gmra.mrb[0].mxu0 %v480
    %v1169 = vpop.f32.mrb[0].mxu0
    %v1170 = vadd.f32 %v1009, %v1169
    %v1171 = vpop.f32.mrb[0].mxu0
    %v1172 = vadd.f32 %v1011, %v1171
    %v1173 = vpop.f32.mrb[0].mxu0
    %v1174 = vpop.f32.mrb[0].mxu0
    %1175 = vdwg.mxu0
    %v1176 = vmax.f32 %v1050, 0.0
    %v1177 = vmax.f32 %v1052, 0.0
    %v1178 = vmax.f32 %v1054, 0.0
    %v1179 = vmax.f32 %v1056, 0.0
    %v1180 = vmax.f32 %v1060, 0.0
    %v1181 = vmax.f32 %v1062, 0.0
    %v1182 = vmax.f32 %v1064, 0.0
    %v1183 = vmax.f32 %v1066, 0.0
    %v1184 = vmax.f32 %v1070, 0.0
    %v1185 = vmax.f32 %v1072, 0.0
    %v1186 = vmax.f32 %v1074, 0.0
    %v1187 = vmax.f32 %v1076, 0.0
    %v1188 = vmax.f32 %v1080, 0.0
    %v1189 = vmax.f32 %v1082, 0.0
    %v1190 = vmax.f32 %v1084, 0.0
    %v1191 = vmax.f32 %v1086, 0.0
    %v1192 = vmax.f32 %v1090, 0.0
    %v1193 = vmax.f32 %v1092, 0.0
    %v1194 = vmax.f32 %v1094, 0.0
    %v1195 = vmax.f32 %v1096, 0.0
    %v1196 = vmax.f32 %v1100, 0.0
    %v1197 = vmax.f32 %v1102, 0.0
    %v1198 = vmax.f32 %v1104, 0.0
    %v1199 = vmax.f32 %v1106, 0.0
    %v1200 = vmax.f32 %v1110, 0.0
    %v1201 = vmax.f32 %v1112, 0.0
    %v1202 = vmax.f32 %v1114, 0.0
    %v1203 = vmax.f32 %v1116, 0.0
    %v1204 = vmax.f32 %v1120, 0.0
    %v1205 = vmax.f32 %v1122, 0.0
    %v1206 = vmax.f32 %v1124, 0.0
    %v1207 = vmax.f32 %v1126, 0.0
    %v1208 = vmax.f32 %v1130, 0.0
    %v1209 = vmax.f32 %v1132, 0.0
    %v1210 = vmax.f32 %v1134, 0.0
    %v1211 = vmax.f32 %v1136, 0.0
    %v1212 = vmax.f32 %v1140, 0.0
    %v1213 = vmax.f32 %v1142, 0.0
    %v1214 = vmax.f32 %v1144, 0.0
    %v1215 = vmax.f32 %v1146, 0.0
    %v1216 = vmax.f32 %v1150, 0.0
    %v1217 = vmax.f32 %v1152, 0.0
    %v1218 = vmax.f32 %v1154, 0.0
    %v1219 = vmax.f32 %v1156, 0.0
    %v1220 = vmax.f32 %v1160, 0.0
    %v1221 = vmax.f32 %v1162, 0.0
    %v1222 = vmax.f32 %v1164, 0.0
    %v1223 = vmax.f32 %v1166, 0.0
    %v1224 = vmax.f32 %v1170, 0.0
    %v1225 = vmax.f32 %v1172, 0.0
    %v1226 = vpack.c.bf16 %v1178, %v1176
    %v1227 = vpack.c.bf16 %v1179, %v1177
    %v1228 = vpack.c.bf16 %v1182, %v1180
    %v1229 = vpack.c.bf16 %v1183, %v1181
    %v1230 = vpack.c.bf16 %v1186, %v1184
    %v1231 = vpack.c.bf16 %v1187, %v1185
    %v1232 = vpack.c.bf16 %v1190, %v1188
    %v1233 = vpack.c.bf16 %v1191, %v1189
    %v1234 = vpack.c.bf16 %v1194, %v1192
    %v1235 = vpack.c.bf16 %v1195, %v1193
    %v1236 = vpack.c.bf16 %v1198, %v1196
    %v1237 = vpack.c.bf16 %v1199, %v1197
    %v1238 = vpack.c.bf16 %v1202, %v1200
    %v1239 = vpack.c.bf16 %v1203, %v1201
    %v1240 = vpack.c.bf16 %v1206, %v1204
    %v1241 = vpack.c.bf16 %v1207, %v1205
    %v1242 = vpack.c.bf16 %v1210, %v1208
    %v1243 = vpack.c.bf16 %v1211, %v1209
    %v1244 = vpack.c.bf16 %v1214, %v1212
    %v1245 = vpack.c.bf16 %v1215, %v1213
    %v1246 = vpack.c.bf16 %v1218, %v1216
    %v1247 = vpack.c.bf16 %v1219, %v1217
    %v1248 = vpack.c.bf16 %v1222, %v1220
    %v1249 = vpack.c.bf16 %v1223, %v1221
    %v1250 = vpack.c.bf16 %v1224, %v1224
    %v1251 = vpack.c.bf16 %v1225, %v1225
    %v1252 = vld [vmem:[%s4] sm:$0xff]
    %v1253 = vld [vmem:[%s4 + $0x8] sm:$0xff]
    %v1254 = vld [vmem:[%s4 + $0x10] sm:$0xff]
    %v1255 = vld [vmem:[%s4 + $0x18] sm:$0xff]
    %v1256 = vld [vmem:[%s4 + $0x20] sm:$0xff]
    %v1257 = vld [vmem:[%s4 + $0x28] sm:$0xff]
    %v1258 = vld [vmem:[%s4 + $0x30] sm:$0xff]
    %v1259 = vld [vmem:[%s4 + $0x38] sm:$0xff]
    %v1260 = vld [vmem:[%s4 + $0x40] sm:$0xff]
    %v1261 = vld [vmem:[%s4 + $0x48] sm:$0xff]
    %v1262 = vld [vmem:[%s4 + $0x50] sm:$0xff]
    %v1263 = vld [vmem:[%s4 + $0x58] sm:$0xff]
    %v1264 = vld [vmem:[%s4 + $0x60] sm:$0xff]
    %v1265 = vld [vmem:[%s4 + $0x68] sm:$0xff]
    %v1266 = vld [vmem:[%s4 + $0x70] sm:$0xff]
    %v1267 = vld [vmem:[%s4 + $0x78] sm:$0xff]
    %v1268 = vld [vmem:[%s4 + $0x80] sm:$0xff]
    %v1269 = vld [vmem:[%s4 + $0x88] sm:$0xff]
    %v1270 = vld [vmem:[%s4 + $0x90] sm:$0xff]
    %v1271 = vld [vmem:[%s4 + $0x98] sm:$0xff]
    %v1272 = vld [vmem:[%s4 + $0xa0] sm:$0xff]
    %v1273 = vld [vmem:[%s4 + $0xa8] sm:$0xff]
    %v1274 = vld [vmem:[%s4 + $0xb0] sm:$0xff]
    %v1275 = vld [vmem:[%s4 + $0xb8] sm:$0xff]
    %v1276 = vld [vmem:[%s4 + $0xc0] sm:$0xff]
    %v1277 = vld [vmem:[%s7] sm:$0x3]
    %v1279 = vlaneseq
    %v1280 = vshrl.u32 %v1279, 7
    %v1281 = vsub.s32 0, %v1280
    %v1282 = vrot.slane %v1277, %v1281
    %v1283 = vlaneseq
    %v1284 = vshrl.u32 %v1283, 7
    %v1285 = vsub.s32 1, %v1284
    %v1286 = vrot.slane %v1277, %v1285
    %v1314 = vunpack.c.l.b16 %v1252
    %v1315 = vunpack.c.h.b16 %v1252
    %v1316 = vunpack.c.l.b16 %v1253
    %v1317 = vunpack.c.h.b16 %v1253
    %v1318 = vunpack.c.l.b16 %v1254
    %v1319 = vunpack.c.h.b16 %v1254
    %v1320 = vunpack.c.l.b16 %v1255
    %v1321 = vunpack.c.h.b16 %v1255
    %v1322 = vunpack.c.l.b16 %v1256
    %v1323 = vunpack.c.h.b16 %v1256
    %v1324 = vunpack.c.l.b16 %v1257
    %v1325 = vunpack.c.h.b16 %v1257
    %v1326 = vunpack.c.l.b16 %v1258
    %v1327 = vunpack.c.h.b16 %v1258
    %v1328 = vunpack.c.l.b16 %v1259
    %v1329 = vunpack.c.h.b16 %v1259
    %v1330 = vunpack.c.l.b16 %v1260
    %v1331 = vunpack.c.h.b16 %v1260
    %v1332 = vunpack.c.l.b16 %v1261
    %v1333 = vunpack.c.h.b16 %v1261
    %v1334 = vunpack.c.l.b16 %v1262
    %v1335 = vunpack.c.h.b16 %v1262
    %v1336 = vunpack.c.l.b16 %v1263
    %v1337 = vunpack.c.h.b16 %v1263
    %v1338 = vunpack.c.l.b16 %v1264
    %v1339 = vunpack.c.h.b16 %v1264
    %v1340 = vunpack.c.l.b16 %v1265
    %v1341 = vunpack.c.h.b16 %v1265
    %v1342 = vunpack.c.l.b16 %v1266
    %v1343 = vunpack.c.h.b16 %v1266
    %v1344 = vunpack.c.l.b16 %v1267
    %v1345 = vunpack.c.h.b16 %v1267
    %v1346 = vunpack.c.l.b16 %v1268
    %v1347 = vunpack.c.h.b16 %v1268
    %v1348 = vunpack.c.l.b16 %v1269
    %v1349 = vunpack.c.h.b16 %v1269
    %v1350 = vunpack.c.l.b16 %v1270
    %v1351 = vunpack.c.h.b16 %v1270
    %v1352 = vunpack.c.l.b16 %v1271
    %v1353 = vunpack.c.h.b16 %v1271
    %v1354 = vunpack.c.l.b16 %v1272
    %v1355 = vunpack.c.h.b16 %v1272
    %v1356 = vunpack.c.l.b16 %v1273
    %v1357 = vunpack.c.h.b16 %v1273
    %v1358 = vunpack.c.l.b16 %v1274
    %v1359 = vunpack.c.h.b16 %v1274
    %v1360 = vunpack.c.l.b16 %v1275
    %v1361 = vunpack.c.h.b16 %v1275
    %v1362 = vunpack.c.l.b16 %v1276
    %v1363 = vunpack.c.h.b16 %v1276
    %v1364 = vpack.c.b16 %v1316, %v1314
    %v1365 = vpack.c.b16 %v1317, %v1315
    %v1366 = vpack.c.b16 %v1320, %v1318
    %v1367 = vpack.c.b16 %v1321, %v1319
    %v1368 = vpack.c.b16 %v1324, %v1322
    %v1369 = vpack.c.b16 %v1325, %v1323
    %v1370 = vpack.c.b16 %v1328, %v1326
    %v1371 = vpack.c.b16 %v1329, %v1327
    %v1372 = vpack.c.b16 %v1332, %v1330
    %v1373 = vpack.c.b16 %v1333, %v1331
    %v1374 = vpack.c.b16 %v1336, %v1334
    %v1375 = vpack.c.b16 %v1337, %v1335
    %v1376 = vpack.c.b16 %v1340, %v1338
    %v1377 = vpack.c.b16 %v1341, %v1339
    %v1378 = vpack.c.b16 %v1344, %v1342
    %v1379 = vpack.c.b16 %v1345, %v1343
    %v1380 = vpack.c.b16 %v1348, %v1346
    %v1381 = vpack.c.b16 %v1349, %v1347
    %v1382 = vpack.c.b16 %v1352, %v1350
    %v1383 = vpack.c.b16 %v1353, %v1351
    %v1384 = vpack.c.b16 %v1356, %v1354
    %v1385 = vpack.c.b16 %v1357, %v1355
    %v1386 = vpack.c.b16 %v1360, %v1358
    %v1387 = vpack.c.b16 %v1361, %v1359
    %v1388 = vpack.c.b16 %v1362, %v1362
    %v1389 = vpack.c.b16 %v1363, %v1363
    %vm1414 = vcmask 588800
    %v1416 = vsel %vm1414, %v1227, 0
    %v1419 = vsel %vm1414, %v1229, 0
    %v1422 = vsel %vm1414, %v1231, 0
    %v1425 = vsel %vm1414, %v1233, 0
    %v1428 = vsel %vm1414, %v1235, 0
    %v1431 = vsel %vm1414, %v1237, 0
    %v1434 = vsel %vm1414, %v1239, 0
    %v1437 = vsel %vm1414, %v1241, 0
    %v1440 = vsel %vm1414, %v1243, 0
    %v1443 = vsel %vm1414, %v1245, 0
    %v1446 = vsel %vm1414, %v1247, 0
    %v1449 = vsel %vm1414, %v1249, 0
    %v1452 = vsel %vm1414, %v1251, 0
    %vm1454 = vcmask 1043456
    %v1456 = vsel %vm1454, %v1388, 0
    %v1459 = vsel %vm1454, %v1389, 0
    %1461 = vmatprep.subr.bf16.mxu0 %v1365
    %1462 = vmatpush1.bf16.msra.mxu0 %v1364
    %1463 = vmatprep.subr.bf16.mxu0 %v1367
    %1464 = vmatpush1.bf16.msra.mxu0 %v1366
    %1465 = vmatprep.subr.bf16.mxu0 %v1369
    %1466 = vmatpush1.bf16.msra.mxu0 %v1368
    %1467 = vmatprep.subr.bf16.mxu0 %v1371
    %1468 = vmatpush1.bf16.msra.mxu0 %v1370
    %1469 = vmatprep.subr.bf16.mxu0 %v1373
    %1470 = vmatpush1.bf16.msra.mxu0 %v1372
    %1471 = vmatprep.subr.bf16.mxu0 %v1375
    %1472 = vmatpush1.bf16.msra.mxu0 %v1374
    %1473 = vmatprep.subr.bf16.mxu0 %v1377
    %1474 = vmatpush1.bf16.msra.mxu0 %v1376
    %1475 = vmatprep.subr.bf16.mxu0 %v1379
    %1476 = vmatpush1.bf16.msra.mxu0 %v1378
    %1477 = vmatprep.subr.bf16.mxu0 %v1381
    %1478 = vmatpush1.bf16.msra.mxu0 %v1380
    %1479 = vmatprep.subr.bf16.mxu0 %v1383
    %1480 = vmatpush1.bf16.msra.mxu0 %v1382
    %1481 = vmatprep.subr.bf16.mxu0 %v1385
    %1482 = vmatpush1.bf16.msra.mxu0 %v1384
    %1483 = vmatprep.subr.bf16.mxu0 %v1387
    %1484 = vmatpush1.bf16.msra.mxu0 %v1386
    %1485 = vmatprep.subr.bf16.mxu0 %v1459
    %1486 = vmatpush1.bf16.msra.mxu0 %v1456
    %1487 = vmatprep.subr.bf16.mxu0 0
    %1488 = vmatpush1.bf16.msra.mxu0 0
    %1489 = vmatprep.subr.bf16.mxu0 0
    %1490 = vmatpush1.bf16.msra.mxu0 0
    %1491 = vmatprep.subr.bf16.mxu0 0
    %1492 = vmatpush1.bf16.msra.mxu0 0
    %1493 = vmatprep.mubr.bf16.mxu0 %v1416
    %1494 = vmatmul.mubr.bf16.gmra.mrb[0].mxu0 %v1226
    %v1495 = vpop.f32.mrb[0].mxu0
    %v1496 = vadd.f32 %v1282, %v1495
    %v1497 = vpop.f32.mrb[0].mxu0
    %v1498 = vadd.f32 %v1286, %v1497
    %v1499 = vpop.f32.mrb[0].mxu0
    %v1500 = vadd.f32 %v1282, %v1499
    %v1501 = vpop.f32.mrb[0].mxu0
    %v1502 = vadd.f32 %v1286, %v1501
    %1503 = vmatprep.mubr.bf16.mxu0 %v1419
    %1504 = vmatmul.mubr.bf16.gmra.mrb[0].mxu0 %v1228
    %v1505 = vpop.f32.mrb[0].mxu0
    %v1506 = vadd.f32 %v1282, %v1505
    %v1507 = vpop.f32.mrb[0].mxu0
    %v1508 = vadd.f32 %v1286, %v1507
    %v1509 = vpop.f32.mrb[0].mxu0
    %v1510 = vadd.f32 %v1282, %v1509
    %v1511 = vpop.f32.mrb[0].mxu0
    %v1512 = vadd.f32 %v1286, %v1511
    %1513 = vmatprep.mubr.bf16.mxu0 %v1422
    %1514 = vmatmul.mubr.bf16.gmra.mrb[0].mxu0 %v1230
    %v1515 = vpop.f32.mrb[0].mxu0
    %v1516 = vadd.f32 %v1282, %v1515
    %v1517 = vpop.f32.mrb[0].mxu0
    %v1518 = vadd.f32 %v1286, %v1517
    %v1519 = vpop.f32.mrb[0].mxu0
    %v1520 = vadd.f32 %v1282, %v1519
    %v1521 = vpop.f32.mrb[0].mxu0
    %v1522 = vadd.f32 %v1286, %v1521
    %1523 = vmatprep.mubr.bf16.mxu0 %v1425
    %1524 = vmatmul.mubr.bf16.gmra.mrb[0].mxu0 %v1232
    %v1525 = vpop.f32.mrb[0].mxu0
    %v1526 = vadd.f32 %v1282, %v1525
    %v1527 = vpop.f32.mrb[0].mxu0
    %v1528 = vadd.f32 %v1286, %v1527
    %v1529 = vpop.f32.mrb[0].mxu0
    %v1530 = vadd.f32 %v1282, %v1529
    %v1531 = vpop.f32.mrb[0].mxu0
    %v1532 = vadd.f32 %v1286, %v1531
    %1533 = vmatprep.mubr.bf16.mxu0 %v1428
    %1534 = vmatmul.mubr.bf16.gmra.mrb[0].mxu0 %v1234
    %v1535 = vpop.f32.mrb[0].mxu0
    %v1536 = vadd.f32 %v1282, %v1535
    %v1537 = vpop.f32.mrb[0].mxu0
    %v1538 = vadd.f32 %v1286, %v1537
    %v1539 = vpop.f32.mrb[0].mxu0
    %v1540 = vadd.f32 %v1282, %v1539
    %v1541 = vpop.f32.mrb[0].mxu0
    %v1542 = vadd.f32 %v1286, %v1541
    %1543 = vmatprep.mubr.bf16.mxu0 %v1431
    %1544 = vmatmul.mubr.bf16.gmra.mrb[0].mxu0 %v1236
    %v1545 = vpop.f32.mrb[0].mxu0
    %v1546 = vadd.f32 %v1282, %v1545
    %v1547 = vpop.f32.mrb[0].mxu0
    %v1548 = vadd.f32 %v1286, %v1547
    %v1549 = vpop.f32.mrb[0].mxu0
    %v1550 = vadd.f32 %v1282, %v1549
    %v1551 = vpop.f32.mrb[0].mxu0
    %v1552 = vadd.f32 %v1286, %v1551
    %1553 = vmatprep.mubr.bf16.mxu0 %v1434
    %1554 = vmatmul.mubr.bf16.gmra.mrb[0].mxu0 %v1238
    %v1555 = vpop.f32.mrb[0].mxu0
    %v1556 = vadd.f32 %v1282, %v1555
    %v1557 = vpop.f32.mrb[0].mxu0
    %v1558 = vadd.f32 %v1286, %v1557
    %v1559 = vpop.f32.mrb[0].mxu0
    %v1560 = vadd.f32 %v1282, %v1559
    %v1561 = vpop.f32.mrb[0].mxu0
    %v1562 = vadd.f32 %v1286, %v1561
    %1563 = vmatprep.mubr.bf16.mxu0 %v1437
    %1564 = vmatmul.mubr.bf16.gmra.mrb[0].mxu0 %v1240
    %v1565 = vpop.f32.mrb[0].mxu0
    %v1566 = vadd.f32 %v1282, %v1565
    %v1567 = vpop.f32.mrb[0].mxu0
    %v1568 = vadd.f32 %v1286, %v1567
    %v1569 = vpop.f32.mrb[0].mxu0
    %v1570 = vadd.f32 %v1282, %v1569
    %v1571 = vpop.f32.mrb[0].mxu0
    %v1572 = vadd.f32 %v1286, %v1571
    %1573 = vmatprep.mubr.bf16.mxu0 %v1440
    %1574 = vmatmul.mubr.bf16.gmra.mrb[0].mxu0 %v1242
    %v1575 = vpop.f32.mrb[0].mxu0
    %v1576 = vadd.f32 %v1282, %v1575
    %v1577 = vpop.f32.mrb[0].mxu0
    %v1578 = vadd.f32 %v1286, %v1577
    %v1579 = vpop.f32.mrb[0].mxu0
    %v1580 = vadd.f32 %v1282, %v1579
    %v1581 = vpop.f32.mrb[0].mxu0
    %v1582 = vadd.f32 %v1286, %v1581
    %1583 = vmatprep.mubr.bf16.mxu0 %v1443
    %1584 = vmatmul.mubr.bf16.gmra.mrb[0].mxu0 %v1244
    %v1585 = vpop.f32.mrb[0].mxu0
    %v1586 = vadd.f32 %v1282, %v1585
    %v1587 = vpop.f32.mrb[0].mxu0
    %v1588 = vadd.f32 %v1286, %v1587
    %v1589 = vpop.f32.mrb[0].mxu0
    %v1590 = vadd.f32 %v1282, %v1589
    %v1591 = vpop.f32.mrb[0].mxu0
    %v1592 = vadd.f32 %v1286, %v1591
    %1593 = vmatprep.mubr.bf16.mxu0 %v1446
    %1594 = vmatmul.mubr.bf16.gmra.mrb[0].mxu0 %v1246
    %v1595 = vpop.f32.mrb[0].mxu0
    %v1596 = vadd.f32 %v1282, %v1595
    %v1597 = vpop.f32.mrb[0].mxu0
    %v1598 = vadd.f32 %v1286, %v1597
    %v1599 = vpop.f32.mrb[0].mxu0
    %v1600 = vadd.f32 %v1282, %v1599
    %v1601 = vpop.f32.mrb[0].mxu0
    %v1602 = vadd.f32 %v1286, %v1601
    %1603 = vmatprep.mubr.bf16.mxu0 %v1449
    %1604 = vmatmul.mubr.bf16.gmra.mrb[0].mxu0 %v1248
    %v1605 = vpop.f32.mrb[0].mxu0
    %v1606 = vadd.f32 %v1282, %v1605
    %v1607 = vpop.f32.mrb[0].mxu0
    %v1608 = vadd.f32 %v1286, %v1607
    %v1609 = vpop.f32.mrb[0].mxu0
    %v1610 = vadd.f32 %v1282, %v1609
    %v1611 = vpop.f32.mrb[0].mxu0
    %v1612 = vadd.f32 %v1286, %v1611
    %1613 = vmatprep.mubr.bf16.mxu0 %v1452
    %1614 = vmatmul.mubr.bf16.gmra.mrb[0].mxu0 %v1250
    %v1615 = vpop.f32.mrb[0].mxu0
    %v1616 = vadd.f32 %v1282, %v1615
    %v1617 = vpop.f32.mrb[0].mxu0
    %v1618 = vadd.f32 %v1286, %v1617
    %v1619 = vpop.f32.mrb[0].mxu0
    %v1620 = vpop.f32.mrb[0].mxu0
    %1621 = vdwg.mxu0
    %1622 = vst [vmem:[#allocation2] sm:$0xff] %v1496
    %1623 = vst.msk [vmem:[#allocation2 + $0x8] sm:$0xff] %vm1414, %v1498
    %1624 = vst [vmem:[#allocation2 + $0x10] sm:$0xff] %v1500
    %1625 = vst.msk [vmem:[#allocation2 + $0x18] sm:$0xff] %vm1414, %v1502
    %1626 = vst [vmem:[#allocation2 + $0x20] sm:$0xff] %v1506
    %1627 = vst.msk [vmem:[#allocation2 + $0x28] sm:$0xff] %vm1414, %v1508
    %1628 = vst [vmem:[#allocation2 + $0x30] sm:$0xff] %v1510
    %1629 = vst.msk [vmem:[#allocation2 + $0x38] sm:$0xff] %vm1414, %v1512
    %1630 = vst [vmem:[#allocation2 + $0x40] sm:$0xff] %v1516
    %1631 = vst.msk [vmem:[#allocation2 + $0x48] sm:$0xff] %vm1414, %v1518
    %1632 = vst [vmem:[#allocation2 + $0x50] sm:$0xff] %v1520
    %1633 = vst.msk [vmem:[#allocation2 + $0x58] sm:$0xff] %vm1414, %v1522
    %1634 = vst [vmem:[#allocation2 + $0x60] sm:$0xff] %v1526
    %1635 = vst.msk [vmem:[#allocation2 + $0x68] sm:$0xff] %vm1414, %v1528
    %1636 = vst [vmem:[#allocation2 + $0x70] sm:$0xff] %v1530
    %1637 = vst.msk [vmem:[#allocation2 + $0x78] sm:$0xff] %vm1414, %v1532
    %1638 = vst [vmem:[#allocation2 + $0x80] sm:$0xff] %v1536
    %1639 = vst.msk [vmem:[#allocation2 + $0x88] sm:$0xff] %vm1414, %v1538
    %1640 = vst [vmem:[#allocation2 + $0x90] sm:$0xff] %v1540
    %1641 = vst.msk [vmem:[#allocation2 + $0x98] sm:$0xff] %vm1414, %v1542
    %1642 = vst [vmem:[#allocation2 + $0xa0] sm:$0xff] %v1546
    %1643 = vst.msk [vmem:[#allocation2 + $0xa8] sm:$0xff] %vm1414, %v1548
    %1644 = vst [vmem:[#allocation2 + $0xb0] sm:$0xff] %v1550
    %1645 = vst.msk [vmem:[#allocation2 + $0xb8] sm:$0xff] %vm1414, %v1552
    %1646 = vst [vmem:[#allocation2 + $0xc0] sm:$0xff] %v1556
    %1647 = vst.msk [vmem:[#allocation2 + $0xc8] sm:$0xff] %vm1414, %v1558
    %1648 = vst [vmem:[#allocation2 + $0xd0] sm:$0xff] %v1560
    %1649 = vst.msk [vmem:[#allocation2 + $0xd8] sm:$0xff] %vm1414, %v1562
    %1650 = vst [vmem:[#allocation2 + $0xe0] sm:$0xff] %v1566
    %1651 = vst.msk [vmem:[#allocation2 + $0xe8] sm:$0xff] %vm1414, %v1568
    %1652 = vst [vmem:[#allocation2 + $0xf0] sm:$0xff] %v1570
    %1653 = vst.msk [vmem:[#allocation2 + $0xf8] sm:$0xff] %vm1414, %v1572
    %1654 = vst [vmem:[#allocation2 + $0x100] sm:$0xff] %v1576
    %1655 = vst.msk [vmem:[#allocation2 + $0x108] sm:$0xff] %vm1414, %v1578
    %1656 = vst [vmem:[#allocation2 + $0x110] sm:$0xff] %v1580
    %1657 = vst.msk [vmem:[#allocation2 + $0x118] sm:$0xff] %vm1414, %v1582
    %1658 = vst [vmem:[#allocation2 + $0x120] sm:$0xff] %v1586
    %1659 = vst.msk [vmem:[#allocation2 + $0x128] sm:$0xff] %vm1414, %v1588
    %1660 = vst [vmem:[#allocation2 + $0x130] sm:$0xff] %v1590
    %1661 = vst.msk [vmem:[#allocation2 + $0x138] sm:$0xff] %vm1414, %v1592
    %1662 = vst [vmem:[#allocation2 + $0x140] sm:$0xff] %v1596
    %1663 = vst.msk [vmem:[#allocation2 + $0x148] sm:$0xff] %vm1414, %v1598
    %1664 = vst [vmem:[#allocation2 + $0x150] sm:$0xff] %v1600
    %1665 = vst.msk [vmem:[#allocation2 + $0x158] sm:$0xff] %vm1414, %v1602
    %1666 = vst [vmem:[#allocation2 + $0x160] sm:$0xff] %v1606
    %1667 = vst.msk [vmem:[#allocation2 + $0x168] sm:$0xff] %vm1414, %v1608
    %1668 = vst [vmem:[#allocation2 + $0x170] sm:$0xff] %v1610
    %1669 = vst.msk [vmem:[#allocation2 + $0x178] sm:$0xff] %vm1414, %v1612
    %1670 = vst [vmem:[#allocation2 + $0x180] sm:$0xff] %v1616
    %1671 = vst.msk [vmem:[#allocation2 + $0x188] sm:$0xff] %vm1414, %v1618
    %v1672 = vld [vmem:[%s5] sm:$0xff]
    %v1673 = vld [vmem:[%s5 + $0x8] sm:$0xff]
    %v1674 = vld [vmem:[%s5 + $0x10] sm:$0xff]
    %v1675 = vld [vmem:[%s5 + $0x18] sm:$0xff]
    %v1676 = vld [vmem:[%s5 + $0x20] sm:$0xff]
    %v1677 = vld [vmem:[%s5 + $0x28] sm:$0xff]
    %v1678 = vld [vmem:[%s5 + $0x30] sm:$0xff]
    %v1679 = vld [vmem:[%s5 + $0x38] sm:$0xff]
    %v1680 = vld [vmem:[%s5 + $0x40] sm:$0xff]
    %v1681 = vld [vmem:[%s5 + $0x48] sm:$0xff]
    %v1682 = vld [vmem:[%s5 + $0x50] sm:$0xff]
    %v1683 = vld [vmem:[%s5 + $0x58] sm:$0xff]
    %v1684 = vld [vmem:[%s5 + $0x60] sm:$0xff]
    %v1685 = vld [vmem:[%s5 + $0x68] sm:$0xff]
    %v1686 = vld [vmem:[%s5 + $0x70] sm:$0xff]
    %v1687 = vld [vmem:[%s5 + $0x78] sm:$0xff]
    %v1688 = vld [vmem:[%s5 + $0x80] sm:$0xff]
    %v1689 = vld [vmem:[%s5 + $0x88] sm:$0xff]
    %v1690 = vld [vmem:[%s5 + $0x90] sm:$0xff]
    %v1691 = vld [vmem:[%s5 + $0x98] sm:$0xff]
    %v1692 = vld [vmem:[%s5 + $0xa0] sm:$0xff]
    %v1693 = vld [vmem:[%s5 + $0xa8] sm:$0xff]
    %v1694 = vld [vmem:[%s5 + $0xb0] sm:$0xff]
    %v1695 = vld [vmem:[%s5 + $0xb8] sm:$0xff]
    %v1696 = vld [vmem:[%s5 + $0xc0] sm:$0xff]
    %v1697 = vld [vmem:[%s8] sm:$0x3]
    %v1699 = vlaneseq
    %v1700 = vshrl.u32 %v1699, 7
    %v1701 = vsub.s32 0, %v1700
    %v1702 = vrot.slane %v1697, %v1701
    %v1703 = vlaneseq
    %v1704 = vshrl.u32 %v1703, 7
    %v1705 = vsub.s32 1, %v1704
    %v1706 = vrot.slane %v1697, %v1705
    %v1734 = vunpack.c.l.b16 %v1672
    %v1735 = vunpack.c.h.b16 %v1672
    %v1736 = vunpack.c.l.b16 %v1673
    %v1737 = vunpack.c.h.b16 %v1673
    %v1738 = vunpack.c.l.b16 %v1674
    %v1739 = vunpack.c.h.b16 %v1674
    %v1740 = vunpack.c.l.b16 %v1675
    %v1741 = vunpack.c.h.b16 %v1675
    %v1742 = vunpack.c.l.b16 %v1676
    %v1743 = vunpack.c.h.b16 %v1676
    %v1744 = vunpack.c.l.b16 %v1677
    %v1745 = vunpack.c.h.b16 %v1677
    %v1746 = vunpack.c.l.b16 %v1678
    %v1747 = vunpack.c.h.b16 %v1678
    %v1748 = vunpack.c.l.b16 %v1679
    %v1749 = vunpack.c.h.b16 %v1679
    %v1750 = vunpack.c.l.b16 %v1680
    %v1751 = vunpack.c.h.b16 %v1680
    %v1752 = vunpack.c.l.b16 %v1681
    %v1753 = vunpack.c.h.b16 %v1681
    %v1754 = vunpack.c.l.b16 %v1682
    %v1755 = vunpack.c.h.b16 %v1682
    %v1756 = vunpack.c.l.b16 %v1683
    %v1757 = vunpack.c.h.b16 %v1683
    %v1758 = vunpack.c.l.b16 %v1684
    %v1759 = vunpack.c.h.b16 %v1684
    %v1760 = vunpack.c.l.b16 %v1685
    %v1761 = vunpack.c.h.b16 %v1685
    %v1762 = vunpack.c.l.b16 %v1686
    %v1763 = vunpack.c.h.b16 %v1686
    %v1764 = vunpack.c.l.b16 %v1687
    %v1765 = vunpack.c.h.b16 %v1687
    %v1766 = vunpack.c.l.b16 %v1688
    %v1767 = vunpack.c.h.b16 %v1688
    %v1768 = vunpack.c.l.b16 %v1689
    %v1769 = vunpack.c.h.b16 %v1689
    %v1770 = vunpack.c.l.b16 %v1690
    %v1771 = vunpack.c.h.b16 %v1690
    %v1772 = vunpack.c.l.b16 %v1691
    %v1773 = vunpack.c.h.b16 %v1691
    %v1774 = vunpack.c.l.b16 %v1692
    %v1775 = vunpack.c.h.b16 %v1692
    %v1776 = vunpack.c.l.b16 %v1693
    %v1777 = vunpack.c.h.b16 %v1693
    %v1778 = vunpack.c.l.b16 %v1694
    %v1779 = vunpack.c.h.b16 %v1694
    %v1780 = vunpack.c.l.b16 %v1695
    %v1781 = vunpack.c.h.b16 %v1695
    %v1782 = vunpack.c.l.b16 %v1696
    %v1783 = vunpack.c.h.b16 %v1696
    %v1784 = vpack.c.b16 %v1736, %v1734
    %v1785 = vpack.c.b16 %v1737, %v1735
    %v1786 = vpack.c.b16 %v1740, %v1738
    %v1787 = vpack.c.b16 %v1741, %v1739
    %v1788 = vpack.c.b16 %v1744, %v1742
    %v1789 = vpack.c.b16 %v1745, %v1743
    %v1790 = vpack.c.b16 %v1748, %v1746
    %v1791 = vpack.c.b16 %v1749, %v1747
    %v1792 = vpack.c.b16 %v1752, %v1750
    %v1793 = vpack.c.b16 %v1753, %v1751
    %v1794 = vpack.c.b16 %v1756, %v1754
    %v1795 = vpack.c.b16 %v1757, %v1755
    %v1796 = vpack.c.b16 %v1760, %v1758
    %v1797 = vpack.c.b16 %v1761, %v1759
    %v1798 = vpack.c.b16 %v1764, %v1762
    %v1799 = vpack.c.b16 %v1765, %v1763
    %v1800 = vpack.c.b16 %v1768, %v1766
    %v1801 = vpack.c.b16 %v1769, %v1767
    %v1802 = vpack.c.b16 %v1772, %v1770
    %v1803 = vpack.c.b16 %v1773, %v1771
    %v1804 = vpack.c.b16 %v1776, %v1774
    %v1805 = vpack.c.b16 %v1777, %v1775
    %v1806 = vpack.c.b16 %v1780, %v1778
    %v1807 = vpack.c.b16 %v1781, %v1779
    %v1808 = vpack.c.b16 %v1782, %v1782
    %v1809 = vpack.c.b16 %v1783, %v1783
    %v1835 = vsel %vm1454, %v1808, 0
    %v1838 = vsel %vm1454, %v1809, 0
    %1840 = vmatprep.subr.bf16.mxu0 %v1785
    %1841 = vmatpush1.bf16.msra.mxu0 %v1784
    %1842 = vmatprep.subr.bf16.mxu0 %v1787
    %1843 = vmatpush1.bf16.msra.mxu0 %v1786
    %1844 = vmatprep.subr.bf16.mxu0 %v1789
    %1845 = vmatpush1.bf16.msra.mxu0 %v1788
    %1846 = vmatprep.subr.bf16.mxu0 %v1791
    %1847 = vmatpush1.bf16.msra.mxu0 %v1790
    %1848 = vmatprep.subr.bf16.mxu0 %v1793
    %1849 = vmatpush1.bf16.msra.mxu0 %v1792
    %1850 = vmatprep.subr.bf16.mxu0 %v1795
    %1851 = vmatpush1.bf16.msra.mxu0 %v1794
    %1852 = vmatprep.subr.bf16.mxu0 %v1797
    %1853 = vmatpush1.bf16.msra.mxu0 %v1796
    %1854 = vmatprep.subr.bf16.mxu0 %v1799
    %1855 = vmatpush1.bf16.msra.mxu0 %v1798
    %1856 = vmatprep.subr.bf16.mxu0 %v1801
    %1857 = vmatpush1.bf16.msra.mxu0 %v1800
    %1858 = vmatprep.subr.bf16.mxu0 %v1803
    %1859 = vmatpush1.bf16.msra.mxu0 %v1802
    %1860 = vmatprep.subr.bf16.mxu0 %v1805
    %1861 = vmatpush1.bf16.msra.mxu0 %v1804
    %1862 = vmatprep.subr.bf16.mxu0 %v1807
    %1863 = vmatpush1.bf16.msra.mxu0 %v1806
    %1864 = vmatprep.subr.bf16.mxu0 %v1838
    %1865 = vmatpush1.bf16.msra.mxu0 %v1835
    %1866 = vmatprep.subr.bf16.mxu0 0
    %1867 = vmatpush1.bf16.msra.mxu0 0
    %1868 = vmatprep.subr.bf16.mxu0 0
    %1869 = vmatpush1.bf16.msra.mxu0 0
    %1870 = vmatprep.subr.bf16.mxu0 0
    %1871 = vmatpush1.bf16.msra.mxu0 0
    %1872 = vmatprep.mubr.bf16.mxu0 %v1416
    %1873 = vmatmul.mubr.bf16.gmra.mrb[0].mxu0 %v1226
    %v1874 = vpop.f32.mrb[0].mxu0
    %v1875 = vadd.f32 %v1702, %v1874
    %v1876 = vpop.f32.mrb[0].mxu0
    %v1877 = vadd.f32 %v1706, %v1876
    %v1878 = vpop.f32.mrb[0].mxu0
    %v1879 = vadd.f32 %v1702, %v1878
    %v1880 = vpop.f32.mrb[0].mxu0
    %v1881 = vadd.f32 %v1706, %v1880
    %1882 = vmatprep.mubr.bf16.mxu0 %v1419
    %1883 = vmatmul.mubr.bf16.gmra.mrb[0].mxu0 %v1228
    %v1884 = vpop.f32.mrb[0].mxu0
    %v1885 = vadd.f32 %v1702, %v1884
    %v1886 = vpop.f32.mrb[0].mxu0
    %v1887 = vadd.f32 %v1706, %v1886
    %v1888 = vpop.f32.mrb[0].mxu0
    %v1889 = vadd.f32 %v1702, %v1888
    %v1890 = vpop.f32.mrb[0].mxu0
    %v1891 = vadd.f32 %v1706, %v1890
    %1892 = vmatprep.mubr.bf16.mxu0 %v1422
    %1893 = vmatmul.mubr.bf16.gmra.mrb[0].mxu0 %v1230
    %v1894 = vpop.f32.mrb[0].mxu0
    %v1895 = vadd.f32 %v1702, %v1894
    %v1896 = vpop.f32.mrb[0].mxu0
    %v1897 = vadd.f32 %v1706, %v1896
    %v1898 = vpop.f32.mrb[0].mxu0
    %v1899 = vadd.f32 %v1702, %v1898
    %v1900 = vpop.f32.mrb[0].mxu0
    %v1901 = vadd.f32 %v1706, %v1900
    %1902 = vmatprep.mubr.bf16.mxu0 %v1425
    %1903 = vmatmul.mubr.bf16.gmra.mrb[0].mxu0 %v1232
    %v1904 = vpop.f32.mrb[0].mxu0
    %v1905 = vadd.f32 %v1702, %v1904
    %v1906 = vpop.f32.mrb[0].mxu0
    %v1907 = vadd.f32 %v1706, %v1906
    %v1908 = vpop.f32.mrb[0].mxu0
    %v1909 = vadd.f32 %v1702, %v1908
    %v1910 = vpop.f32.mrb[0].mxu0
    %v1911 = vadd.f32 %v1706, %v1910
    %1912 = vmatprep.mubr.bf16.mxu0 %v1428
    %1913 = vmatmul.mubr.bf16.gmra.mrb[0].mxu0 %v1234
    %v1914 = vpop.f32.mrb[0].mxu0
    %v1915 = vadd.f32 %v1702, %v1914
    %v1916 = vpop.f32.mrb[0].mxu0
    %v1917 = vadd.f32 %v1706, %v1916
    %v1918 = vpop.f32.mrb[0].mxu0
    %v1919 = vadd.f32 %v1702, %v1918
    %v1920 = vpop.f32.mrb[0].mxu0
    %v1921 = vadd.f32 %v1706, %v1920
    %1922 = vmatprep.mubr.bf16.mxu0 %v1431
    %1923 = vmatmul.mubr.bf16.gmra.mrb[0].mxu0 %v1236
    %v1924 = vpop.f32.mrb[0].mxu0
    %v1925 = vadd.f32 %v1702, %v1924
    %v1926 = vpop.f32.mrb[0].mxu0
    %v1927 = vadd.f32 %v1706, %v1926
    %v1928 = vpop.f32.mrb[0].mxu0
    %v1929 = vadd.f32 %v1702, %v1928
    %v1930 = vpop.f32.mrb[0].mxu0
    %v1931 = vadd.f32 %v1706, %v1930
    %1932 = vmatprep.mubr.bf16.mxu0 %v1434
    %1933 = vmatmul.mubr.bf16.gmra.mrb[0].mxu0 %v1238
    %v1934 = vpop.f32.mrb[0].mxu0
    %v1935 = vadd.f32 %v1702, %v1934
    %v1936 = vpop.f32.mrb[0].mxu0
    %v1937 = vadd.f32 %v1706, %v1936
    %v1938 = vpop.f32.mrb[0].mxu0
    %v1939 = vadd.f32 %v1702, %v1938
    %v1940 = vpop.f32.mrb[0].mxu0
    %v1941 = vadd.f32 %v1706, %v1940
    %1942 = vmatprep.mubr.bf16.mxu0 %v1437
    %1943 = vmatmul.mubr.bf16.gmra.mrb[0].mxu0 %v1240
    %v1944 = vpop.f32.mrb[0].mxu0
    %v1945 = vadd.f32 %v1702, %v1944
    %v1946 = vpop.f32.mrb[0].mxu0
    %v1947 = vadd.f32 %v1706, %v1946
    %v1948 = vpop.f32.mrb[0].mxu0
    %v1949 = vadd.f32 %v1702, %v1948
    %v1950 = vpop.f32.mrb[0].mxu0
    %v1951 = vadd.f32 %v1706, %v1950
    %1952 = vmatprep.mubr.bf16.mxu0 %v1440
    %1953 = vmatmul.mubr.bf16.gmra.mrb[0].mxu0 %v1242
    %v1954 = vpop.f32.mrb[0].mxu0
    %v1955 = vadd.f32 %v1702, %v1954
    %v1956 = vpop.f32.mrb[0].mxu0
    %v1957 = vadd.f32 %v1706, %v1956
    %v1958 = vpop.f32.mrb[0].mxu0
    %v1959 = vadd.f32 %v1702, %v1958
    %v1960 = vpop.f32.mrb[0].mxu0
    %v1961 = vadd.f32 %v1706, %v1960
    %1962 = vmatprep.mubr.bf16.mxu0 %v1443
    %1963 = vmatmul.mubr.bf16.gmra.mrb[0].mxu0 %v1244
    %v1964 = vpop.f32.mrb[0].mxu0
    %v1965 = vadd.f32 %v1702, %v1964
    %v1966 = vpop.f32.mrb[0].mxu0
    %v1967 = vadd.f32 %v1706, %v1966
    %v1968 = vpop.f32.mrb[0].mxu0
    %v1969 = vadd.f32 %v1702, %v1968
    %v1970 = vpop.f32.mrb[0].mxu0
    %v1971 = vadd.f32 %v1706, %v1970
    %1972 = vmatprep.mubr.bf16.mxu0 %v1446
    %1973 = vmatmul.mubr.bf16.gmra.mrb[0].mxu0 %v1246
    %v1974 = vpop.f32.mrb[0].mxu0
    %v1975 = vadd.f32 %v1702, %v1974
    %v1976 = vpop.f32.mrb[0].mxu0
    %v1977 = vadd.f32 %v1706, %v1976
    %v1978 = vpop.f32.mrb[0].mxu0
    %v1979 = vadd.f32 %v1702, %v1978
    %v1980 = vpop.f32.mrb[0].mxu0
    %v1981 = vadd.f32 %v1706, %v1980
    %1982 = vmatprep.mubr.bf16.mxu0 %v1449
    %1983 = vmatmul.mubr.bf16.gmra.mrb[0].mxu0 %v1248
    %v1984 = vpop.f32.mrb[0].mxu0
    %v1985 = vadd.f32 %v1702, %v1984
    %v1986 = vpop.f32.mrb[0].mxu0
    %v1987 = vadd.f32 %v1706, %v1986
    %v1988 = vpop.f32.mrb[0].mxu0
    %v1989 = vadd.f32 %v1702, %v1988
    %v1990 = vpop.f32.mrb[0].mxu0
    %v1991 = vadd.f32 %v1706, %v1990
    %1992 = vmatprep.mubr.bf16.mxu0 %v1452
    %1993 = vmatmul.mubr.bf16.gmra.mrb[0].mxu0 %v1250
    %v1994 = vpop.f32.mrb[0].mxu0
    %v1995 = vadd.f32 %v1702, %v1994
    %v1996 = vpop.f32.mrb[0].mxu0
    %v1997 = vadd.f32 %v1706, %v1996
    %v1998 = vpop.f32.mrb[0].mxu0
    %v1999 = vpop.f32.mrb[0].mxu0
    %2000 = vdwg.mxu0
    %2001 = vst [vmem:[#allocation3] sm:$0xff] %v1875
    %2002 = vst.msk [vmem:[#allocation3 + $0x8] sm:$0xff] %vm1414, %v1877
    %2003 = vst [vmem:[#allocation3 + $0x10] sm:$0xff] %v1879
    %2004 = vst.msk [vmem:[#allocation3 + $0x18] sm:$0xff] %vm1414, %v1881
    %2005 = vst [vmem:[#allocation3 + $0x20] sm:$0xff] %v1885
    %2006 = vst.msk [vmem:[#allocation3 + $0x28] sm:$0xff] %vm1414, %v1887
    %2007 = vst [vmem:[#allocation3 + $0x30] sm:$0xff] %v1889
    %2008 = vst.msk [vmem:[#allocation3 + $0x38] sm:$0xff] %vm1414, %v1891
    %2009 = vst [vmem:[#allocation3 + $0x40] sm:$0xff] %v1895
    %2010 = vst.msk [vmem:[#allocation3 + $0x48] sm:$0xff] %vm1414, %v1897
    %2011 = vst [vmem:[#allocation3 + $0x50] sm:$0xff] %v1899
    %2012 = vst.msk [vmem:[#allocation3 + $0x58] sm:$0xff] %vm1414, %v1901
    %2013 = vst [vmem:[#allocation3 + $0x60] sm:$0xff] %v1905
    %2014 = vst.msk [vmem:[#allocation3 + $0x68] sm:$0xff] %vm1414, %v1907
    %2015 = vst [vmem:[#allocation3 + $0x70] sm:$0xff] %v1909
    %2016 = vst.msk [vmem:[#allocation3 + $0x78] sm:$0xff] %vm1414, %v1911
    %2017 = vst [vmem:[#allocation3 + $0x80] sm:$0xff] %v1915
    %2018 = vst.msk [vmem:[#allocation3 + $0x88] sm:$0xff] %vm1414, %v1917
    %2019 = vst [vmem:[#allocation3 + $0x90] sm:$0xff] %v1919
    %2020 = vst.msk [vmem:[#allocation3 + $0x98] sm:$0xff] %vm1414, %v1921
    %2021 = vst [vmem:[#allocation3 + $0xa0] sm:$0xff] %v1925
    %2022 = vst.msk [vmem:[#allocation3 + $0xa8] sm:$0xff] %vm1414, %v1927
    %2023 = vst [vmem:[#allocation3 + $0xb0] sm:$0xff] %v1929
    %2024 = vst.msk [vmem:[#allocation3 + $0xb8] sm:$0xff] %vm1414, %v1931
    %2025 = vst [vmem:[#allocation3 + $0xc0] sm:$0xff] %v1935
    %2026 = vst.msk [vmem:[#allocation3 + $0xc8] sm:$0xff] %vm1414, %v1937
    %2027 = vst [vmem:[#allocation3 + $0xd0] sm:$0xff] %v1939
    %2028 = vst.msk [vmem:[#allocation3 + $0xd8] sm:$0xff] %vm1414, %v1941
    %2029 = vst [vmem:[#allocation3 + $0xe0] sm:$0xff] %v1945
    %2030 = vst.msk [vmem:[#allocation3 + $0xe8] sm:$0xff] %vm1414, %v1947
    %2031 = vst [vmem:[#allocation3 + $0xf0] sm:$0xff] %v1949
    %2032 = vst.msk [vmem:[#allocation3 + $0xf8] sm:$0xff] %vm1414, %v1951
    %2033 = vst [vmem:[#allocation3 + $0x100] sm:$0xff] %v1955
    %2034 = vst.msk [vmem:[#allocation3 + $0x108] sm:$0xff] %vm1414, %v1957
    %2035 = vst [vmem:[#allocation3 + $0x110] sm:$0xff] %v1959
    %2036 = vst.msk [vmem:[#allocation3 + $0x118] sm:$0xff] %vm1414, %v1961
    %2037 = vst [vmem:[#allocation3 + $0x120] sm:$0xff] %v1965
    %2038 = vst.msk [vmem:[#allocation3 + $0x128] sm:$0xff] %vm1414, %v1967
    %2039 = vst [vmem:[#allocation3 + $0x130] sm:$0xff] %v1969
    %2040 = vst.msk [vmem:[#allocation3 + $0x138] sm:$0xff] %vm1414, %v1971
    %2041 = vst [vmem:[#allocation3 + $0x140] sm:$0xff] %v1975
    %2042 = vst.msk [vmem:[#allocation3 + $0x148] sm:$0xff] %vm1414, %v1977
    %2043 = vst [vmem:[#allocation3 + $0x150] sm:$0xff] %v1979
    %2044 = vst.msk [vmem:[#allocation3 + $0x158] sm:$0xff] %vm1414, %v1981
    %2045 = vst [vmem:[#allocation3 + $0x160] sm:$0xff] %v1985
    %2046 = vst.msk [vmem:[#allocation3 + $0x168] sm:$0xff] %vm1414, %v1987
    %2047 = vst [vmem:[#allocation3 + $0x170] sm:$0xff] %v1989
    %2048 = vst.msk [vmem:[#allocation3 + $0x178] sm:$0xff] %vm1414, %v1991
    %2049 = vst [vmem:[#allocation3 + $0x180] sm:$0xff] %v1995
    %2050 = vst.msk [vmem:[#allocation3 + $0x188] sm:$0xff] %vm1414, %v1997
    %v2051 = vld [vmem:[#allocation5] sm:$0xff]
    %v2052 = vld [vmem:[#allocation5 + $0x8] sm:$0xff]
    %v2053 = vld [vmem:[#allocation5 + $0x10] sm:$0xff]
    %v2054 = vld [vmem:[#allocation5 + $0x18] sm:$0xff]
    %v2055 = vld [vmem:[#allocation5 + $0x20] sm:$0xff]
    %v2056 = vld [vmem:[#allocation5 + $0x28] sm:$0xff]
    %v2057 = vld [vmem:[#allocation5 + $0x30] sm:$0xff]
    %v2058 = vld [vmem:[#allocation5 + $0x38] sm:$0xff]
    %v2059 = vld [vmem:[#allocation5 + $0x40] sm:$0xff]
    %v2060 = vld [vmem:[#allocation5 + $0x48] sm:$0xff]
    %v2061 = vld [vmem:[#allocation5 + $0x50] sm:$0xff]
    %v2062 = vld [vmem:[#allocation5 + $0x58] sm:$0xff]
    %v2063 = vld [vmem:[#allocation5 + $0x60] sm:$0xff]
    %v2064 = vld [vmem:[#allocation5 + $0x68] sm:$0xff]
    %v2065 = vld [vmem:[#allocation5 + $0x70] sm:$0xff]
    %v2066 = vld [vmem:[#allocation5 + $0x78] sm:$0xff]
    %v2067 = vld [vmem:[#allocation5 + $0x80] sm:$0xff]
    %v2068 = vld [vmem:[#allocation5 + $0x88] sm:$0xff]
    %v2069 = vld [vmem:[#allocation5 + $0x90] sm:$0xff]
    %v2070 = vld [vmem:[#allocation5 + $0x98] sm:$0xff]
    %v2071 = vld [vmem:[#allocation5 + $0xa0] sm:$0xff]
    %v2072 = vld [vmem:[#allocation5 + $0xa8] sm:$0xff]
    %v2073 = vld [vmem:[#allocation5 + $0xb0] sm:$0xff]
    %v2074 = vld [vmem:[#allocation5 + $0xb8] sm:$0xff]
    %v2075 = vld [vmem:[#allocation5 + $0xc0] sm:$0xff]
    %v2076 = vld [vmem:[%s9] sm:$0x3]
    %v2078 = vlaneseq
    %v2079 = vshrl.u32 %v2078, 7
    %v2080 = vsub.s32 0, %v2079
    %v2081 = vrot.slane %v2076, %v2080
    %v2082 = vlaneseq
    %v2083 = vshrl.u32 %v2082, 7
    %v2084 = vsub.s32 1, %v2083
    %v2085 = vrot.slane %v2076, %v2084
    %v2113 = vunpack.c.l.b16 %v2051
    %v2114 = vunpack.c.h.b16 %v2051
    %v2115 = vunpack.c.l.b16 %v2052
    %v2116 = vunpack.c.h.b16 %v2052
    %v2117 = vunpack.c.l.b16 %v2053
    %v2118 = vunpack.c.h.b16 %v2053
    %v2119 = vunpack.c.l.b16 %v2054
    %v2120 = vunpack.c.h.b16 %v2054
    %v2121 = vunpack.c.l.b16 %v2055
    %v2122 = vunpack.c.h.b16 %v2055
    %v2123 = vunpack.c.l.b16 %v2056
    %v2124 = vunpack.c.h.b16 %v2056
    %v2125 = vunpack.c.l.b16 %v2057
    %v2126 = vunpack.c.h.b16 %v2057
    %v2127 = vunpack.c.l.b16 %v2058
    %v2128 = vunpack.c.h.b16 %v2058
    %v2129 = vunpack.c.l.b16 %v2059
    %v2130 = vunpack.c.h.b16 %v2059
    %v2131 = vunpack.c.l.b16 %v2060
    %v2132 = vunpack.c.h.b16 %v2060
    %v2133 = vunpack.c.l.b16 %v2061
    %v2134 = vunpack.c.h.b16 %v2061
    %v2135 = vunpack.c.l.b16 %v2062
    %v2136 = vunpack.c.h.b16 %v2062
    %v2137 = vunpack.c.l.b16 %v2063
    %v2138 = vunpack.c.h.b16 %v2063
    %v2139 = vunpack.c.l.b16 %v2064
    %v2140 = vunpack.c.h.b16 %v2064
    %v2141 = vunpack.c.l.b16 %v2065
    %v2142 = vunpack.c.h.b16 %v2065
    %v2143 = vunpack.c.l.b16 %v2066
    %v2144 = vunpack.c.h.b16 %v2066
    %v2145 = vunpack.c.l.b16 %v2067
    %v2146 = vunpack.c.h.b16 %v2067
    %v2147 = vunpack.c.l.b16 %v2068
    %v2148 = vunpack.c.h.b16 %v2068
    %v2149 = vunpack.c.l.b16 %v2069
    %v2150 = vunpack.c.h.b16 %v2069
    %v2151 = vunpack.c.l.b16 %v2070
    %v2152 = vunpack.c.h.b16 %v2070
    %v2153 = vunpack.c.l.b16 %v2071
    %v2154 = vunpack.c.h.b16 %v2071
    %v2155 = vunpack.c.l.b16 %v2072
    %v2156 = vunpack.c.h.b16 %v2072
    %v2157 = vunpack.c.l.b16 %v2073
    %v2158 = vunpack.c.h.b16 %v2073
    %v2159 = vunpack.c.l.b16 %v2074
    %v2160 = vunpack.c.h.b16 %v2074
    %v2161 = vunpack.c.l.b16 %v2075
    %v2162 = vunpack.c.h.b16 %v2075
    %v2163 = vpack.c.b16 %v2115, %v2113
    %v2164 = vpack.c.b16 %v2116, %v2114
    %v2165 = vpack.c.b16 %v2119, %v2117
    %v2166 = vpack.c.b16 %v2120, %v2118
    %v2167 = vpack.c.b16 %v2123, %v2121
    %v2168 = vpack.c.b16 %v2124, %v2122
    %v2169 = vpack.c.b16 %v2127, %v2125
    %v2170 = vpack.c.b16 %v2128, %v2126
    %v2171 = vpack.c.b16 %v2131, %v2129
    %v2172 = vpack.c.b16 %v2132, %v2130
    %v2173 = vpack.c.b16 %v2135, %v2133
    %v2174 = vpack.c.b16 %v2136, %v2134
    %v2175 = vpack.c.b16 %v2139, %v2137
    %v2176 = vpack.c.b16 %v2140, %v2138
    %v2177 = vpack.c.b16 %v2143, %v2141
    %v2178 = vpack.c.b16 %v2144, %v2142
    %v2179 = vpack.c.b16 %v2147, %v2145
    %v2180 = vpack.c.b16 %v2148, %v2146
    %v2181 = vpack.c.b16 %v2151, %v2149
    %v2182 = vpack.c.b16 %v2152, %v2150
    %v2183 = vpack.c.b16 %v2155, %v2153
    %v2184 = vpack.c.b16 %v2156, %v2154
    %v2185 = vpack.c.b16 %v2159, %v2157
    %v2186 = vpack.c.b16 %v2160, %v2158
    %v2187 = vpack.c.b16 %v2161, %v2161
    %v2188 = vpack.c.b16 %v2162, %v2162
    %v2214 = vsel %vm1454, %v2187, 0
    %v2217 = vsel %vm1454, %v2188, 0
    %2219 = vmatprep.subr.bf16.mxu0 %v2164
    %2220 = vmatpush1.bf16.msra.mxu0 %v2163
    %2221 = vmatprep.subr.bf16.mxu0 %v2166
    %2222 = vmatpush1.bf16.msra.mxu0 %v2165
    %2223 = vmatprep.subr.bf16.mxu0 %v2168
    %2224 = vmatpush1.bf16.msra.mxu0 %v2167
    %2225 = vmatprep.subr.bf16.mxu0 %v2170
    %2226 = vmatpush1.bf16.msra.mxu0 %v2169
    %2227 = vmatprep.subr.bf16.mxu0 %v2172
    %2228 = vmatpush1.bf16.msra.mxu0 %v2171
    %2229 = vmatprep.subr.bf16.mxu0 %v2174
    %2230 = vmatpush1.bf16.msra.mxu0 %v2173
    %2231 = vmatprep.subr.bf16.mxu0 %v2176
    %2232 = vmatpush1.bf16.msra.mxu0 %v2175
    %2233 = vmatprep.subr.bf16.mxu0 %v2178
    %2234 = vmatpush1.bf16.msra.mxu0 %v2177
    %2235 = vmatprep.subr.bf16.mxu0 %v2180
    %2236 = vmatpush1.bf16.msra.mxu0 %v2179
    %2237 = vmatprep.subr.bf16.mxu0 %v2182
    %2238 = vmatpush1.bf16.msra.mxu0 %v2181
    %2239 = vmatprep.subr.bf16.mxu0 %v2184
    %2240 = vmatpush1.bf16.msra.mxu0 %v2183
    %2241 = vmatprep.subr.bf16.mxu0 %v2186
    %2242 = vmatpush1.bf16.msra.mxu0 %v2185
    %2243 = vmatprep.subr.bf16.mxu0 %v2217
    %2244 = vmatpush1.bf16.msra.mxu0 %v2214
    %2245 = vmatprep.subr.bf16.mxu0 0
    %2246 = vmatpush1.bf16.msra.mxu0 0
    %2247 = vmatprep.subr.bf16.mxu0 0
    %2248 = vmatpush1.bf16.msra.mxu0 0
    %2249 = vmatprep.subr.bf16.mxu0 0
    %2250 = vmatpush1.bf16.msra.mxu0 0
    %2251 = vmatprep.mubr.bf16.mxu0 %v1416
    %2252 = vmatmul.mubr.bf16.gmra.mrb[0].mxu0 %v1226
    %v2253 = vpop.f32.mrb[0].mxu0
    %v2254 = vadd.f32 %v2081, %v2253
    %v2255 = vpop.f32.mrb[0].mxu0
    %v2256 = vadd.f32 %v2085, %v2255
    %v2257 = vpop.f32.mrb[0].mxu0
    %v2258 = vadd.f32 %v2081, %v2257
    %v2259 = vpop.f32.mrb[0].mxu0
    %v2260 = vadd.f32 %v2085, %v2259
    %2261 = vmatprep.mubr.bf16.mxu0 %v1419
    %2262 = vmatmul.mubr.bf16.gmra.mrb[0].mxu0 %v1228
    %v2263 = vpop.f32.mrb[0].mxu0
    %v2264 = vadd.f32 %v2081, %v2263
    %v2265 = vpop.f32.mrb[0].mxu0
    %v2266 = vadd.f32 %v2085, %v2265
    %v2267 = vpop.f32.mrb[0].mxu0
    %v2268 = vadd.f32 %v2081, %v2267
    %v2269 = vpop.f32.mrb[0].mxu0
    %v2270 = vadd.f32 %v2085, %v2269
    %2271 = vmatprep.mubr.bf16.mxu0 %v1422
    %2272 = vmatmul.mubr.bf16.gmra.mrb[0].mxu0 %v1230
    %v2273 = vpop.f32.mrb[0].mxu0
    %v2274 = vadd.f32 %v2081, %v2273
    %v2275 = vpop.f32.mrb[0].mxu0
    %v2276 = vadd.f32 %v2085, %v2275
    %v2277 = vpop.f32.mrb[0].mxu0
    %v2278 = vadd.f32 %v2081, %v2277
    %v2279 = vpop.f32.mrb[0].mxu0
    %v2280 = vadd.f32 %v2085, %v2279
    %2281 = vmatprep.mubr.bf16.mxu0 %v1425
    %2282 = vmatmul.mubr.bf16.gmra.mrb[0].mxu0 %v1232
    %v2283 = vpop.f32.mrb[0].mxu0
    %v2284 = vadd.f32 %v2081, %v2283
    %v2285 = vpop.f32.mrb[0].mxu0
    %v2286 = vadd.f32 %v2085, %v2285
    %v2287 = vpop.f32.mrb[0].mxu0
    %v2288 = vadd.f32 %v2081, %v2287
    %v2289 = vpop.f32.mrb[0].mxu0
    %v2290 = vadd.f32 %v2085, %v2289
    %2291 = vmatprep.mubr.bf16.mxu0 %v1428
    %2292 = vmatmul.mubr.bf16.gmra.mrb[0].mxu0 %v1234
    %v2293 = vpop.f32.mrb[0].mxu0
    %v2294 = vadd.f32 %v2081, %v2293
    %v2295 = vpop.f32.mrb[0].mxu0
    %v2296 = vadd.f32 %v2085, %v2295
    %v2297 = vpop.f32.mrb[0].mxu0
    %v2298 = vadd.f32 %v2081, %v2297
    %v2299 = vpop.f32.mrb[0].mxu0
    %v2300 = vadd.f32 %v2085, %v2299
    %2301 = vmatprep.mubr.bf16.mxu0 %v1431
    %2302 = vmatmul.mubr.bf16.gmra.mrb[0].mxu0 %v1236
    %v2303 = vpop.f32.mrb[0].mxu0
    %v2304 = vadd.f32 %v2081, %v2303
    %v2305 = vpop.f32.mrb[0].mxu0
    %v2306 = vadd.f32 %v2085, %v2305
    %v2307 = vpop.f32.mrb[0].mxu0
    %v2308 = vadd.f32 %v2081, %v2307
    %v2309 = vpop.f32.mrb[0].mxu0
    %v2310 = vadd.f32 %v2085, %v2309
    %2311 = vmatprep.mubr.bf16.mxu0 %v1434
    %2312 = vmatmul.mubr.bf16.gmra.mrb[0].mxu0 %v1238
    %v2313 = vpop.f32.mrb[0].mxu0
    %v2314 = vadd.f32 %v2081, %v2313
    %v2315 = vpop.f32.mrb[0].mxu0
    %v2316 = vadd.f32 %v2085, %v2315
    %v2317 = vpop.f32.mrb[0].mxu0
    %v2318 = vadd.f32 %v2081, %v2317
    %v2319 = vpop.f32.mrb[0].mxu0
    %v2320 = vadd.f32 %v2085, %v2319
    %2321 = vmatprep.mubr.bf16.mxu0 %v1437
    %2322 = vmatmul.mubr.bf16.gmra.mrb[0].mxu0 %v1240
    %v2323 = vpop.f32.mrb[0].mxu0
    %v2324 = vadd.f32 %v2081, %v2323
    %v2325 = vpop.f32.mrb[0].mxu0
    %v2326 = vadd.f32 %v2085, %v2325
    %v2327 = vpop.f32.mrb[0].mxu0
    %v2328 = vadd.f32 %v2081, %v2327
    %v2329 = vpop.f32.mrb[0].mxu0
    %v2330 = vadd.f32 %v2085, %v2329
    %2331 = vmatprep.mubr.bf16.mxu0 %v1440
    %2332 = vmatmul.mubr.bf16.gmra.mrb[0].mxu0 %v1242
    %v2333 = vpop.f32.mrb[0].mxu0
    %v2334 = vadd.f32 %v2081, %v2333
    %v2335 = vpop.f32.mrb[0].mxu0
    %v2336 = vadd.f32 %v2085, %v2335
    %v2337 = vpop.f32.mrb[0].mxu0
    %v2338 = vadd.f32 %v2081, %v2337
    %v2339 = vpop.f32.mrb[0].mxu0
    %v2340 = vadd.f32 %v2085, %v2339
    %2341 = vmatprep.mubr.bf16.mxu0 %v1443
    %2342 = vmatmul.mubr.bf16.gmra.mrb[0].mxu0 %v1244
    %v2343 = vpop.f32.mrb[0].mxu0
    %v2344 = vadd.f32 %v2081, %v2343
    %v2345 = vpop.f32.mrb[0].mxu0
    %v2346 = vadd.f32 %v2085, %v2345
    %v2347 = vpop.f32.mrb[0].mxu0
    %v2348 = vadd.f32 %v2081, %v2347
    %v2349 = vpop.f32.mrb[0].mxu0
    %v2350 = vadd.f32 %v2085, %v2349
    %2351 = vmatprep.mubr.bf16.mxu0 %v1446
    %2352 = vmatmul.mubr.bf16.gmra.mrb[0].mxu0 %v1246
    %v2353 = vpop.f32.mrb[0].mxu0
    %v2354 = vadd.f32 %v2081, %v2353
    %v2355 = vpop.f32.mrb[0].mxu0
    %v2356 = vadd.f32 %v2085, %v2355
    %v2357 = vpop.f32.mrb[0].mxu0
    %v2358 = vadd.f32 %v2081, %v2357
    %v2359 = vpop.f32.mrb[0].mxu0
    %v2360 = vadd.f32 %v2085, %v2359
    %2361 = vmatprep.mubr.bf16.mxu0 %v1449
    %2362 = vmatmul.mubr.bf16.gmra.mrb[0].mxu0 %v1248
    %v2363 = vpop.f32.mrb[0].mxu0
    %v2364 = vadd.f32 %v2081, %v2363
    %v2365 = vpop.f32.mrb[0].mxu0
    %v2366 = vadd.f32 %v2085, %v2365
    %v2367 = vpop.f32.mrb[0].mxu0
    %v2368 = vadd.f32 %v2081, %v2367
    %v2369 = vpop.f32.mrb[0].mxu0
    %v2370 = vadd.f32 %v2085, %v2369
    %2371 = vmatprep.mubr.bf16.mxu0 %v1452
    %2372 = vmatmul.mubr.bf16.gmra.mrb[0].mxu0 %v1250
    %v2373 = vpop.f32.mrb[0].mxu0
    %v2374 = vadd.f32 %v2081, %v2373
    %v2375 = vpop.f32.mrb[0].mxu0
    %v2376 = vadd.f32 %v2085, %v2375
    %v2377 = vpop.f32.mrb[0].mxu0
    %v2378 = vpop.f32.mrb[0].mxu0
    %2379 = vdwg.mxu0
    %2380 = vst [vmem:[#allocation4] sm:$0xff] %v2254
    %2381 = vst.msk [vmem:[#allocation4 + $0x8] sm:$0xff] %vm1414, %v2256
    %2382 = vst [vmem:[#allocation4 + $0x10] sm:$0xff] %v2258
    %2383 = vst.msk [vmem:[#allocation4 + $0x18] sm:$0xff] %vm1414, %v2260
    %2384 = vst [vmem:[#allocation4 + $0x20] sm:$0xff] %v2264
    %2385 = vst.msk [vmem:[#allocation4 + $0x28] sm:$0xff] %vm1414, %v2266
    %2386 = vst [vmem:[#allocation4 + $0x30] sm:$0xff] %v2268
    %2387 = vst.msk [vmem:[#allocation4 + $0x38] sm:$0xff] %vm1414, %v2270
    %2388 = vst [vmem:[#allocation4 + $0x40] sm:$0xff] %v2274
    %2389 = vst.msk [vmem:[#allocation4 + $0x48] sm:$0xff] %vm1414, %v2276
    %2390 = vst [vmem:[#allocation4 + $0x50] sm:$0xff] %v2278
    %2391 = vst.msk [vmem:[#allocation4 + $0x58] sm:$0xff] %vm1414, %v2280
    %2392 = vst [vmem:[#allocation4 + $0x60] sm:$0xff] %v2284
    %2393 = vst.msk [vmem:[#allocation4 + $0x68] sm:$0xff] %vm1414, %v2286
    %2394 = vst [vmem:[#allocation4 + $0x70] sm:$0xff] %v2288
    %2395 = vst.msk [vmem:[#allocation4 + $0x78] sm:$0xff] %vm1414, %v2290
    %2396 = vst [vmem:[#allocation4 + $0x80] sm:$0xff] %v2294
    %2397 = vst.msk [vmem:[#allocation4 + $0x88] sm:$0xff] %vm1414, %v2296
    %2398 = vst [vmem:[#allocation4 + $0x90] sm:$0xff] %v2298
    %2399 = vst.msk [vmem:[#allocation4 + $0x98] sm:$0xff] %vm1414, %v2300
    %2400 = vst [vmem:[#allocation4 + $0xa0] sm:$0xff] %v2304
    %2401 = vst.msk [vmem:[#allocation4 + $0xa8] sm:$0xff] %vm1414, %v2306
    %2402 = vst [vmem:[#allocation4 + $0xb0] sm:$0xff] %v2308
    %2403 = vst.msk [vmem:[#allocation4 + $0xb8] sm:$0xff] %vm1414, %v2310
    %2404 = vst [vmem:[#allocation4 + $0xc0] sm:$0xff] %v2314
    %2405 = vst.msk [vmem:[#allocation4 + $0xc8] sm:$0xff] %vm1414, %v2316
    %2406 = vst [vmem:[#allocation4 + $0xd0] sm:$0xff] %v2318
    %2407 = vst.msk [vmem:[#allocation4 + $0xd8] sm:$0xff] %vm1414, %v2320
    %2408 = vst [vmem:[#allocation4 + $0xe0] sm:$0xff] %v2324
    %2409 = vst.msk [vmem:[#allocation4 + $0xe8] sm:$0xff] %vm1414, %v2326
    %2410 = vst [vmem:[#allocation4 + $0xf0] sm:$0xff] %v2328
    %2411 = vst.msk [vmem:[#allocation4 + $0xf8] sm:$0xff] %vm1414, %v2330
    %2412 = vst [vmem:[#allocation4 + $0x100] sm:$0xff] %v2334
    %2413 = vst.msk [vmem:[#allocation4 + $0x108] sm:$0xff] %vm1414, %v2336
    %2414 = vst [vmem:[#allocation4 + $0x110] sm:$0xff] %v2338
    %2415 = vst.msk [vmem:[#allocation4 + $0x118] sm:$0xff] %vm1414, %v2340
    %2416 = vst [vmem:[#allocation4 + $0x120] sm:$0xff] %v2344
    %2417 = vst.msk [vmem:[#allocation4 + $0x128] sm:$0xff] %vm1414, %v2346
    %2418 = vst [vmem:[#allocation4 + $0x130] sm:$0xff] %v2348
    %2419 = vst.msk [vmem:[#allocation4 + $0x138] sm:$0xff] %vm1414, %v2350
    %2420 = vst [vmem:[#allocation4 + $0x140] sm:$0xff] %v2354
    %2421 = vst.msk [vmem:[#allocation4 + $0x148] sm:$0xff] %vm1414, %v2356
    %2422 = vst [vmem:[#allocation4 + $0x150] sm:$0xff] %v2358
    %2423 = vst.msk [vmem:[#allocation4 + $0x158] sm:$0xff] %vm1414, %v2360
    %2424 = vst [vmem:[#allocation4 + $0x160] sm:$0xff] %v2364
    %2425 = vst.msk [vmem:[#allocation4 + $0x168] sm:$0xff] %vm1414, %v2366
    %2426 = vst [vmem:[#allocation4 + $0x170] sm:$0xff] %v2368
    %2427 = vst.msk [vmem:[#allocation4 + $0x178] sm:$0xff] %vm1414, %v2370
    %2428 = vst [vmem:[#allocation4 + $0x180] sm:$0xff] %v2374
    %2429 = vst.msk [vmem:[#allocation4 + $0x188] sm:$0xff] %vm1414, %v2376
    %v2430 = vld [vmem:[#allocation7] sm:$0xff]
    %v2431 = vld [vmem:[#allocation7 + $0x8] sm:$0xff]
    %v2432 = vld [vmem:[#allocation7 + $0x10] sm:$0xff]
    %v2433 = vld [vmem:[#allocation7 + $0x18] sm:$0xff]
    %v2434 = vld [vmem:[#allocation7 + $0x20] sm:$0xff]
    %v2435 = vld [vmem:[#allocation7 + $0x28] sm:$0xff]
    %v2436 = vld [vmem:[#allocation7 + $0x30] sm:$0xff]
    %v2437 = vld [vmem:[#allocation7 + $0x38] sm:$0xff]
    %v2438 = vld [vmem:[#allocation7 + $0x40] sm:$0xff]
    %v2439 = vld [vmem:[#allocation7 + $0x48] sm:$0xff]
    %v2440 = vld [vmem:[#allocation7 + $0x50] sm:$0xff]
    %v2441 = vld [vmem:[#allocation7 + $0x58] sm:$0xff]
    %v2442 = vld [vmem:[#allocation7 + $0x60] sm:$0xff]
    %v2443 = vld [vmem:[#allocation7 + $0x68] sm:$0xff]
    %v2444 = vld [vmem:[#allocation7 + $0x70] sm:$0xff]
    %v2445 = vld [vmem:[#allocation7 + $0x78] sm:$0xff]
    %v2446 = vld [vmem:[#allocation7 + $0x80] sm:$0xff]
    %v2447 = vld [vmem:[#allocation7 + $0x88] sm:$0xff]
    %v2448 = vld [vmem:[#allocation7 + $0x90] sm:$0xff]
    %v2449 = vld [vmem:[#allocation7 + $0x98] sm:$0xff]
    %v2450 = vld [vmem:[#allocation7 + $0xa0] sm:$0xff]
    %v2451 = vld [vmem:[#allocation7 + $0xa8] sm:$0xff]
    %v2452 = vld [vmem:[#allocation7 + $0xb0] sm:$0xff]
    %v2453 = vld [vmem:[#allocation7 + $0xb8] sm:$0xff]
    %v2454 = vld [vmem:[#allocation7 + $0xc0] sm:$0xff]
    %v2455 = vld [vmem:[#allocation9] sm:$0xff]
    %v2456 = vld [vmem:[#allocation9 + $0x8] sm:$0xff]
    %v2457 = vld [vmem:[#allocation9 + $0x10] sm:$0xff]
    %v2458 = vld [vmem:[#allocation9 + $0x18] sm:$0xff]
    %v2459 = vld [vmem:[#allocation9 + $0x20] sm:$0xff]
    %v2460 = vld [vmem:[#allocation9 + $0x28] sm:$0xff]
    %v2461 = vld [vmem:[#allocation9 + $0x30] sm:$0xff]
    %v2462 = vld [vmem:[#allocation9 + $0x38] sm:$0xff]
    %v2463 = vld [vmem:[#allocation9 + $0x40] sm:$0xff]
    %v2464 = vld [vmem:[#allocation9 + $0x48] sm:$0xff]
    %v2465 = vld [vmem:[#allocation9 + $0x50] sm:$0xff]
    %v2466 = vld [vmem:[#allocation9 + $0x58] sm:$0xff]
    %v2467 = vld [vmem:[#allocation9 + $0x60] sm:$0xff]
    %v2468 = vld [vmem:[#allocation9 + $0x68] sm:$0xff]
    %v2469 = vld [vmem:[#allocation9 + $0x70] sm:$0xff]
    %v2470 = vld [vmem:[#allocation9 + $0x78] sm:$0xff]
    %v2471 = vld [vmem:[#allocation9 + $0x80] sm:$0xff]
    %v2472 = vld [vmem:[#allocation9 + $0x88] sm:$0xff]
    %v2473 = vld [vmem:[#allocation9 + $0x90] sm:$0xff]
    %v2474 = vld [vmem:[#allocation9 + $0x98] sm:$0xff]
    %v2475 = vld [vmem:[#allocation9 + $0xa0] sm:$0xff]
    %v2476 = vld [vmem:[#allocation9 + $0xa8] sm:$0xff]
    %v2477 = vld [vmem:[#allocation9 + $0xb0] sm:$0xff]
    %v2478 = vld [vmem:[#allocation9 + $0xb8] sm:$0xff]
    %v2479 = vld [vmem:[#allocation9 + $0xc0] sm:$0xff]
    %v2480 = vld [vmem:[#allocation10] sm:$0xff]
    %v2481 = vld [vmem:[#allocation10 + $0x8] sm:$0xff]
    %v2482 = vld [vmem:[#allocation10 + $0x10] sm:$0xff]
    %v2483 = vld [vmem:[#allocation10 + $0x18] sm:$0xff]
    %v2484 = vld [vmem:[#allocation10 + $0x20] sm:$0xff]
    %v2485 = vld [vmem:[#allocation10 + $0x28] sm:$0xff]
    %v2486 = vld [vmem:[#allocation10 + $0x30] sm:$0xff]
    %v2487 = vld [vmem:[#allocation10 + $0x38] sm:$0xff]
    %v2488 = vld [vmem:[#allocation10 + $0x40] sm:$0xff]
    %v2489 = vld [vmem:[#allocation10 + $0x48] sm:$0xff]
    %v2490 = vld [vmem:[#allocation10 + $0x50] sm:$0xff]
    %v2491 = vld [vmem:[#allocation10 + $0x58] sm:$0xff]
    %v2492 = vld [vmem:[#allocation10 + $0x60] sm:$0xff]
    %v2493 = vld [vmem:[#allocation10 + $0x68] sm:$0xff]
    %v2494 = vld [vmem:[#allocation10 + $0x70] sm:$0xff]
    %v2495 = vld [vmem:[#allocation10 + $0x78] sm:$0xff]
    %v2496 = vld [vmem:[#allocation10 + $0x80] sm:$0xff]
    %v2497 = vld [vmem:[#allocation10 + $0x88] sm:$0xff]
    %v2498 = vld [vmem:[#allocation10 + $0x90] sm:$0xff]
    %v2499 = vld [vmem:[#allocation10 + $0x98] sm:$0xff]
    %v2500 = vld [vmem:[#allocation10 + $0xa0] sm:$0xff]
    %v2501 = vld [vmem:[#allocation10 + $0xa8] sm:$0xff]
    %v2502 = vld [vmem:[#allocation10 + $0xb0] sm:$0xff]
    %v2503 = vld [vmem:[#allocation10 + $0xb8] sm:$0xff]
    %v2504 = vld [vmem:[#allocation10 + $0xc0] sm:$0xff]
    %v2505 = vld [vmem:[%s13] sm:$0x3]
    %v2507 = vlaneseq
    %v2508 = vshrl.u32 %v2507, 7
    %v2509 = vsub.s32 0, %v2508
    %v2510 = vrot.slane %v2505, %v2509
    %v2511 = vlaneseq
    %v2512 = vshrl.u32 %v2511, 7
    %v2513 = vsub.s32 1, %v2512
    %v2514 = vrot.slane %v2505, %v2513
    %v2542 = vunpack.c.l.b16 %v2430
    %v2543 = vunpack.c.h.b16 %v2430
    %v2544 = vunpack.c.l.b16 %v2431
    %v2545 = vunpack.c.h.b16 %v2431
    %v2546 = vunpack.c.l.b16 %v2432
    %v2547 = vunpack.c.h.b16 %v2432
    %v2548 = vunpack.c.l.b16 %v2433
    %v2549 = vunpack.c.h.b16 %v2433
    %v2550 = vunpack.c.l.b16 %v2434
    %v2551 = vunpack.c.h.b16 %v2434
    %v2552 = vunpack.c.l.b16 %v2435
    %v2553 = vunpack.c.h.b16 %v2435
    %v2554 = vunpack.c.l.b16 %v2436
    %v2555 = vunpack.c.h.b16 %v2436
    %v2556 = vunpack.c.l.b16 %v2437
    %v2557 = vunpack.c.h.b16 %v2437
    %v2558 = vunpack.c.l.b16 %v2438
    %v2559 = vunpack.c.h.b16 %v2438
    %v2560 = vunpack.c.l.b16 %v2439
    %v2561 = vunpack.c.h.b16 %v2439
    %v2562 = vunpack.c.l.b16 %v2440
    %v2563 = vunpack.c.h.b16 %v2440
    %v2564 = vunpack.c.l.b16 %v2441
    %v2565 = vunpack.c.h.b16 %v2441
    %v2566 = vunpack.c.l.b16 %v2442
    %v2567 = vunpack.c.h.b16 %v2442
    %v2568 = vunpack.c.l.b16 %v2443
    %v2569 = vunpack.c.h.b16 %v2443
    %v2570 = vunpack.c.l.b16 %v2444
    %v2571 = vunpack.c.h.b16 %v2444
    %v2572 = vunpack.c.l.b16 %v2445
    %v2573 = vunpack.c.h.b16 %v2445
    %v2574 = vunpack.c.l.b16 %v2446
    %v2575 = vunpack.c.h.b16 %v2446
    %v2576 = vunpack.c.l.b16 %v2447
    %v2577 = vunpack.c.h.b16 %v2447
    %v2578 = vunpack.c.l.b16 %v2448
    %v2579 = vunpack.c.h.b16 %v2448
    %v2580 = vunpack.c.l.b16 %v2449
    %v2581 = vunpack.c.h.b16 %v2449
    %v2582 = vunpack.c.l.b16 %v2450
    %v2583 = vunpack.c.h.b16 %v2450
    %v2584 = vunpack.c.l.b16 %v2451
    %v2585 = vunpack.c.h.b16 %v2451
    %v2586 = vunpack.c.l.b16 %v2452
    %v2587 = vunpack.c.h.b16 %v2452
    %v2588 = vunpack.c.l.b16 %v2453
    %v2589 = vunpack.c.h.b16 %v2453
    %v2590 = vunpack.c.l.b16 %v2454
    %v2591 = vunpack.c.h.b16 %v2454
    %v2592 = vpack.c.b16 %v2544, %v2542
    %v2593 = vpack.c.b16 %v2545, %v2543
    %v2594 = vpack.c.b16 %v2548, %v2546
    %v2595 = vpack.c.b16 %v2549, %v2547
    %v2596 = vpack.c.b16 %v2552, %v2550
    %v2597 = vpack.c.b16 %v2553, %v2551
    %v2598 = vpack.c.b16 %v2556, %v2554
    %v2599 = vpack.c.b16 %v2557, %v2555
    %v2600 = vpack.c.b16 %v2560, %v2558
    %v2601 = vpack.c.b16 %v2561, %v2559
    %v2602 = vpack.c.b16 %v2564, %v2562
    %v2603 = vpack.c.b16 %v2565, %v2563
    %v2604 = vpack.c.b16 %v2568, %v2566
    %v2605 = vpack.c.b16 %v2569, %v2567
    %v2606 = vpack.c.b16 %v2572, %v2570
    %v2607 = vpack.c.b16 %v2573, %v2571
    %v2608 = vpack.c.b16 %v2576, %v2574
    %v2609 = vpack.c.b16 %v2577, %v2575
    %v2610 = vpack.c.b16 %v2580, %v2578
    %v2611 = vpack.c.b16 %v2581, %v2579
    %v2612 = vpack.c.b16 %v2584, %v2582
    %v2613 = vpack.c.b16 %v2585, %v2583
    %v2614 = vpack.c.b16 %v2588, %v2586
    %v2615 = vpack.c.b16 %v2589, %v2587
    %v2616 = vpack.c.b16 %v2590, %v2590
    %v2617 = vpack.c.b16 %v2591, %v2591
    %v2643 = vsel %vm1414, 0, 0
    %v2646 = vsel %vm1454, %v2616, 0
    %v2649 = vsel %vm1454, %v2617, 0
    %2651 = vmatprep.subr.bf16.mxu0 %v2593
    %2652 = vmatpush1.bf16.msra.mxu0 %v2592
    %2653 = vmatprep.subr.bf16.mxu0 %v2595
    %2654 = vmatpush1.bf16.msra.mxu0 %v2594
    %2655 = vmatprep.subr.bf16.mxu0 %v2597
    %2656 = vmatpush1.bf16.msra.mxu0 %v2596
    %2657 = vmatprep.subr.bf16.mxu0 %v2599
    %2658 = vmatpush1.bf16.msra.mxu0 %v2598
    %2659 = vmatprep.subr.bf16.mxu0 %v2601
    %2660 = vmatpush1.bf16.msra.mxu0 %v2600
    %2661 = vmatprep.subr.bf16.mxu0 %v2603
    %2662 = vmatpush1.bf16.msra.mxu0 %v2602
    %2663 = vmatprep.subr.bf16.mxu0 %v2605
    %2664 = vmatpush1.bf16.msra.mxu0 %v2604
    %2665 = vmatprep.subr.bf16.mxu0 %v2607
    %2666 = vmatpush1.bf16.msra.mxu0 %v2606
    %2667 = vmatprep.subr.bf16.mxu0 %v2609
    %2668 = vmatpush1.bf16.msra.mxu0 %v2608
    %2669 = vmatprep.subr.bf16.mxu0 %v2611
    %2670 = vmatpush1.bf16.msra.mxu0 %v2610
    %2671 = vmatprep.subr.bf16.mxu0 %v2613
    %2672 = vmatpush1.bf16.msra.mxu0 %v2612
    %2673 = vmatprep.subr.bf16.mxu0 %v2615
    %2674 = vmatpush1.bf16.msra.mxu0 %v2614
    %2675 = vmatprep.subr.bf16.mxu0 %v2649
    %2676 = vmatpush1.bf16.msra.mxu0 %v2646
    %2677 = vmatprep.subr.bf16.mxu0 0
    %2678 = vmatpush1.bf16.msra.mxu0 0
    %2679 = vmatprep.subr.bf16.mxu0 0
    %2680 = vmatpush1.bf16.msra.mxu0 0
    %2681 = vmatprep.subr.bf16.mxu0 0
    %2682 = vmatpush1.bf16.msra.mxu0 0
    %2683 = vmatprep.mubr.bf16.mxu0 %v2643
    %2684 = vmatmul.mubr.bf16.gmra.mrb[0].mxu0 0
    %v2685 = vpop.f32.mrb[0].mxu0
    %v2686 = vadd.f32 0.0, %v2685
    %v2687 = vpop.f32.mrb[0].mxu0
    %v2688 = vadd.f32 0.0, %v2687
    %v2689 = vpop.f32.mrb[0].mxu0
    %v2690 = vpop.f32.mrb[0].mxu0
    %2691 = vdwg.mxu0
    %v2717 = vunpack.c.l.b16 %v2455
    %v2718 = vunpack.c.h.b16 %v2455
    %v2719 = vunpack.c.l.b16 %v2456
    %v2720 = vunpack.c.h.b16 %v2456
    %v2721 = vunpack.c.l.b16 %v2457
    %v2722 = vunpack.c.h.b16 %v2457
    %v2723 = vunpack.c.l.b16 %v2458
    %v2724 = vunpack.c.h.b16 %v2458
    %v2725 = vunpack.c.l.b16 %v2459
    %v2726 = vunpack.c.h.b16 %v2459
    %v2727 = vunpack.c.l.b16 %v2460
    %v2728 = vunpack.c.h.b16 %v2460
    %v2729 = vunpack.c.l.b16 %v2461
    %v2730 = vunpack.c.h.b16 %v2461
    %v2731 = vunpack.c.l.b16 %v2462
    %v2732 = vunpack.c.h.b16 %v2462
    %v2733 = vunpack.c.l.b16 %v2463
    %v2734 = vunpack.c.h.b16 %v2463
    %v2735 = vunpack.c.l.b16 %v2464
    %v2736 = vunpack.c.h.b16 %v2464
    %v2737 = vunpack.c.l.b16 %v2465
    %v2738 = vunpack.c.h.b16 %v2465
    %v2739 = vunpack.c.l.b16 %v2466
    %v2740 = vunpack.c.h.b16 %v2466
    %v2741 = vunpack.c.l.b16 %v2467
    %v2742 = vunpack.c.h.b16 %v2467
    %v2743 = vunpack.c.l.b16 %v2468
    %v2744 = vunpack.c.h.b16 %v2468
    %v2745 = vunpack.c.l.b16 %v2469
    %v2746 = vunpack.c.h.b16 %v2469
    %v2747 = vunpack.c.l.b16 %v2470
    %v2748 = vunpack.c.h.b16 %v2470
    %v2749 = vunpack.c.l.b16 %v2471
    %v2750 = vunpack.c.h.b16 %v2471
    %v2751 = vunpack.c.l.b16 %v2472
    %v2752 = vunpack.c.h.b16 %v2472
    %v2753 = vunpack.c.l.b16 %v2473
    %v2754 = vunpack.c.h.b16 %v2473
    %v2755 = vunpack.c.l.b16 %v2474
    %v2756 = vunpack.c.h.b16 %v2474
    %v2757 = vunpack.c.l.b16 %v2475
    %v2758 = vunpack.c.h.b16 %v2475
    %v2759 = vunpack.c.l.b16 %v2476
    %v2760 = vunpack.c.h.b16 %v2476
    %v2761 = vunpack.c.l.b16 %v2477
    %v2762 = vunpack.c.h.b16 %v2477
    %v2763 = vunpack.c.l.b16 %v2478
    %v2764 = vunpack.c.h.b16 %v2478
    %v2765 = vunpack.c.l.b16 %v2479
    %v2766 = vunpack.c.h.b16 %v2479
    %v2767 = vpack.c.b16 %v2719, %v2717
    %v2768 = vpack.c.b16 %v2720, %v2718
    %v2769 = vpack.c.b16 %v2723, %v2721
    %v2770 = vpack.c.b16 %v2724, %v2722
    %v2771 = vpack.c.b16 %v2727, %v2725
    %v2772 = vpack.c.b16 %v2728, %v2726
    %v2773 = vpack.c.b16 %v2731, %v2729
    %v2774 = vpack.c.b16 %v2732, %v2730
    %v2775 = vpack.c.b16 %v2735, %v2733
    %v2776 = vpack.c.b16 %v2736, %v2734
    %v2777 = vpack.c.b16 %v2739, %v2737
    %v2778 = vpack.c.b16 %v2740, %v2738
    %v2779 = vpack.c.b16 %v2743, %v2741
    %v2780 = vpack.c.b16 %v2744, %v2742
    %v2781 = vpack.c.b16 %v2747, %v2745
    %v2782 = vpack.c.b16 %v2748, %v2746
    %v2783 = vpack.c.b16 %v2751, %v2749
    %v2784 = vpack.c.b16 %v2752, %v2750
    %v2785 = vpack.c.b16 %v2755, %v2753
    %v2786 = vpack.c.b16 %v2756, %v2754
    %v2787 = vpack.c.b16 %v2759, %v2757
    %v2788 = vpack.c.b16 %v2760, %v2758
    %v2789 = vpack.c.b16 %v2763, %v2761
    %v2790 = vpack.c.b16 %v2764, %v2762
    %v2791 = vpack.c.b16 %v2765, %v2765
    %v2792 = vpack.c.b16 %v2766, %v2766
    %v2818 = vsel %vm1454, %v2791, 0
    %v2821 = vsel %vm1454, %v2792, 0
    %2823 = vmatprep.subr.bf16.mxu0 %v2768
    %2824 = vmatpush1.bf16.msra.mxu0 %v2767
    %2825 = vmatprep.subr.bf16.mxu0 %v2770
    %2826 = vmatpush1.bf16.msra.mxu0 %v2769
    %2827 = vmatprep.subr.bf16.mxu0 %v2772
    %2828 = vmatpush1.bf16.msra.mxu0 %v2771
    %2829 = vmatprep.subr.bf16.mxu0 %v2774
    %2830 = vmatpush1.bf16.msra.mxu0 %v2773
    %2831 = vmatprep.subr.bf16.mxu0 %v2776
    %2832 = vmatpush1.bf16.msra.mxu0 %v2775
    %2833 = vmatprep.subr.bf16.mxu0 %v2778
    %2834 = vmatpush1.bf16.msra.mxu0 %v2777
    %2835 = vmatprep.subr.bf16.mxu0 %v2780
    %2836 = vmatpush1.bf16.msra.mxu0 %v2779
    %2837 = vmatprep.subr.bf16.mxu0 %v2782
    %2838 = vmatpush1.bf16.msra.mxu0 %v2781
    %2839 = vmatprep.subr.bf16.mxu0 %v2784
    %2840 = vmatpush1.bf16.msra.mxu0 %v2783
    %2841 = vmatprep.subr.bf16.mxu0 %v2786
    %2842 = vmatpush1.bf16.msra.mxu0 %v2785
    %2843 = vmatprep.subr.bf16.mxu0 %v2788
    %2844 = vmatpush1.bf16.msra.mxu0 %v2787
    %2845 = vmatprep.subr.bf16.mxu0 %v2790
    %2846 = vmatpush1.bf16.msra.mxu0 %v2789
    %2847 = vmatprep.subr.bf16.mxu0 %v2821
    %2848 = vmatpush1.bf16.msra.mxu0 %v2818
    %2849 = vmatprep.subr.bf16.mxu0 0
    %2850 = vmatpush1.bf16.msra.mxu0 0
    %2851 = vmatprep.subr.bf16.mxu0 0
    %2852 = vmatpush1.bf16.msra.mxu0 0
    %2853 = vmatprep.subr.bf16.mxu0 0
    %2854 = vmatpush1.bf16.msra.mxu0 0
    %2855 = vmatprep.mubr.bf16.mxu0 %v2643
    %2856 = vmatmul.mubr.bf16.gmra.mrb[0].mxu0 0
    %v2857 = vpop.f32.mrb[0].mxu0
    %v2858 = vadd.f32 0.0, %v2857
    %v2859 = vpop.f32.mrb[0].mxu0
    %v2860 = vadd.f32 0.0, %v2859
    %v2861 = vpop.f32.mrb[0].mxu0
    %v2862 = vpop.f32.mrb[0].mxu0
    %2863 = vdwg.mxu0
    %v2889 = vunpack.c.l.b16 %v2480
    %v2890 = vunpack.c.h.b16 %v2480
    %v2891 = vunpack.c.l.b16 %v2481
    %v2892 = vunpack.c.h.b16 %v2481
    %v2893 = vunpack.c.l.b16 %v2482
    %v2894 = vunpack.c.h.b16 %v2482
    %v2895 = vunpack.c.l.b16 %v2483
    %v2896 = vunpack.c.h.b16 %v2483
    %v2897 = vunpack.c.l.b16 %v2484
    %v2898 = vunpack.c.h.b16 %v2484
    %v2899 = vunpack.c.l.b16 %v2485
    %v2900 = vunpack.c.h.b16 %v2485
    %v2901 = vunpack.c.l.b16 %v2486
    %v2902 = vunpack.c.h.b16 %v2486
    %v2903 = vunpack.c.l.b16 %v2487
    %v2904 = vunpack.c.h.b16 %v2487
    %v2905 = vunpack.c.l.b16 %v2488
    %v2906 = vunpack.c.h.b16 %v2488
    %v2907 = vunpack.c.l.b16 %v2489
    %v2908 = vunpack.c.h.b16 %v2489
    %v2909 = vunpack.c.l.b16 %v2490
    %v2910 = vunpack.c.h.b16 %v2490
    %v2911 = vunpack.c.l.b16 %v2491
    %v2912 = vunpack.c.h.b16 %v2491
    %v2913 = vunpack.c.l.b16 %v2492
    %v2914 = vunpack.c.h.b16 %v2492
    %v2915 = vunpack.c.l.b16 %v2493
    %v2916 = vunpack.c.h.b16 %v2493
    %v2917 = vunpack.c.l.b16 %v2494
    %v2918 = vunpack.c.h.b16 %v2494
    %v2919 = vunpack.c.l.b16 %v2495
    %v2920 = vunpack.c.h.b16 %v2495
    %v2921 = vunpack.c.l.b16 %v2496
    %v2922 = vunpack.c.h.b16 %v2496
    %v2923 = vunpack.c.l.b16 %v2497
    %v2924 = vunpack.c.h.b16 %v2497
    %v2925 = vunpack.c.l.b16 %v2498
    %v2926 = vunpack.c.h.b16 %v2498
    %v2927 = vunpack.c.l.b16 %v2499
    %v2928 = vunpack.c.h.b16 %v2499
    %v2929 = vunpack.c.l.b16 %v2500
    %v2930 = vunpack.c.h.b16 %v2500
    %v2931 = vunpack.c.l.b16 %v2501
    %v2932 = vunpack.c.h.b16 %v2501
    %v2933 = vunpack.c.l.b16 %v2502
    %v2934 = vunpack.c.h.b16 %v2502
    %v2935 = vunpack.c.l.b16 %v2503
    %v2936 = vunpack.c.h.b16 %v2503
    %v2937 = vunpack.c.l.b16 %v2504
    %v2938 = vunpack.c.h.b16 %v2504
    %v2939 = vpack.c.b16 %v2891, %v2889
    %v2940 = vpack.c.b16 %v2892, %v2890
    %v2941 = vpack.c.b16 %v2895, %v2893
    %v2942 = vpack.c.b16 %v2896, %v2894
    %v2943 = vpack.c.b16 %v2899, %v2897
    %v2944 = vpack.c.b16 %v2900, %v2898
    %v2945 = vpack.c.b16 %v2903, %v2901
    %v2946 = vpack.c.b16 %v2904, %v2902
    %v2947 = vpack.c.b16 %v2907, %v2905
    %v2948 = vpack.c.b16 %v2908, %v2906
    %v2949 = vpack.c.b16 %v2911, %v2909
    %v2950 = vpack.c.b16 %v2912, %v2910
    %v2951 = vpack.c.b16 %v2915, %v2913
    %v2952 = vpack.c.b16 %v2916, %v2914
    %v2953 = vpack.c.b16 %v2919, %v2917
    %v2954 = vpack.c.b16 %v2920, %v2918
    %v2955 = vpack.c.b16 %v2923, %v2921
    %v2956 = vpack.c.b16 %v2924, %v2922
    %v2957 = vpack.c.b16 %v2927, %v2925
    %v2958 = vpack.c.b16 %v2928, %v2926
    %v2959 = vpack.c.b16 %v2931, %v2929
    %v2960 = vpack.c.b16 %v2932, %v2930
    %v2961 = vpack.c.b16 %v2935, %v2933
    %v2962 = vpack.c.b16 %v2936, %v2934
    %v2963 = vpack.c.b16 %v2937, %v2937
    %v2964 = vpack.c.b16 %v2938, %v2938
    %v2990 = vsel %vm1454, %v2963, 0
    %v2993 = vsel %vm1454, %v2964, 0
    %2995 = vmatprep.subr.bf16.mxu0 %v2940
    %2996 = vmatpush1.bf16.msra.mxu0 %v2939
    %2997 = vmatprep.subr.bf16.mxu0 %v2942
    %2998 = vmatpush1.bf16.msra.mxu0 %v2941
    %2999 = vmatprep.subr.bf16.mxu0 %v2944
    %3000 = vmatpush1.bf16.msra.mxu0 %v2943
    %3001 = vmatprep.subr.bf16.mxu0 %v2946
    %3002 = vmatpush1.bf16.msra.mxu0 %v2945
    %3003 = vmatprep.subr.bf16.mxu0 %v2948
    %3004 = vmatpush1.bf16.msra.mxu0 %v2947
    %3005 = vmatprep.subr.bf16.mxu0 %v2950
    %3006 = vmatpush1.bf16.msra.mxu0 %v2949
    %3007 = vmatprep.subr.bf16.mxu0 %v2952
    %3008 = vmatpush1.bf16.msra.mxu0 %v2951
    %3009 = vmatprep.subr.bf16.mxu0 %v2954
    %3010 = vmatpush1.bf16.msra.mxu0 %v2953
    %3011 = vmatprep.subr.bf16.mxu0 %v2956
    %3012 = vmatpush1.bf16.msra.mxu0 %v2955
    %3013 = vmatprep.subr.bf16.mxu0 %v2958
    %3014 = vmatpush1.bf16.msra.mxu0 %v2957
    %3015 = vmatprep.subr.bf16.mxu0 %v2960
    %3016 = vmatpush1.bf16.msra.mxu0 %v2959
    %3017 = vmatprep.subr.bf16.mxu0 %v2962
    %3018 = vmatpush1.bf16.msra.mxu0 %v2961
    %3019 = vmatprep.subr.bf16.mxu0 %v2993
    %3020 = vmatpush1.bf16.msra.mxu0 %v2990
    %3021 = vmatprep.subr.bf16.mxu0 0
    %3022 = vmatpush1.bf16.msra.mxu0 0
    %3023 = vmatprep.subr.bf16.mxu0 0
    %3024 = vmatpush1.bf16.msra.mxu0 0
    %3025 = vmatprep.subr.bf16.mxu0 0
    %3026 = vmatpush1.bf16.msra.mxu0 0
    %3027 = vmatprep.mubr.bf16.mxu0 %v2643
    %3028 = vmatmul.mubr.bf16.gmra.mrb[0].mxu0 0
    %v3029 = vpop.f32.mrb[0].mxu0
    %v3030 = vadd.f32 %v2510, %v3029
    %v3031 = vpop.f32.mrb[0].mxu0
    %v3032 = vadd.f32 %v2514, %v3031
    %v3033 = vpop.f32.mrb[0].mxu0
    %v3034 = vpop.f32.mrb[0].mxu0
    %3035 = vdwg.mxu0
    %v3036 = vld [vmem:[#allocation2] sm:$0xff]
    %v3037 = vld [vmem:[#allocation2 + $0x8] sm:$0xff]
    %v3038 = vadd.f32 %v3036, %v2686
    %v3039 = vadd.f32 %v3037, %v2688
    %v3040 = vxor.u32 %v3038, 2147483648
    %v3041 = vxor.u32 %v3039, 2147483648
    %v3042 = vmul.f32 %v3040, 1.442695
    %v3043 = vpow.pop %v3042
    %v3044 = vmul.f32 %v3041, 1.442695
    %v3045 = vpow.pop %v3044
    %v3046 = vadd.f32 %v3043, 1.0
    %v3047 = vadd.f32 %v3045, 1.0
    %v3048 = vrcp.pop %v3046
    %v3049 = vmul.f32 1.0, %v3048
    %v3050 = vrcp.pop %v3047
    %v3051 = vmul.f32 1.0, %v3050
    %v3052 = vld [vmem:[#allocation3] sm:$0xff]
    %v3053 = vld [vmem:[#allocation3 + $0x8] sm:$0xff]
    %v3054 = vadd.f32 %v3052, %v2858
    %v3055 = vadd.f32 %v3053, %v2860
    %v3056 = vxor.u32 %v3054, 2147483648
    %v3057 = vxor.u32 %v3055, 2147483648
    %v3058 = vmul.f32 %v3056, 1.442695
    %v3059 = vpow.pop %v3058
    %v3060 = vmul.f32 %v3057, 1.442695
    %v3061 = vpow.pop %v3060
    %v3062 = vadd.f32 %v3059, 1.0
    %v3063 = vadd.f32 %v3061, 1.0
    %v3064 = vrcp.pop %v3062
    %v3065 = vmul.f32 1.0, %v3064
    %v3066 = vrcp.pop %v3063
    %v3067 = vmul.f32 1.0, %v3066
    %v3068 = vld [vmem:[#allocation4] sm:$0xff]
    %v3069 = vld [vmem:[#allocation4 + $0x8] sm:$0xff]
    %v3070 = vmul.f32 %v3049, %v3030
    %v3071 = vmul.f32 %v3051, %v3032
    %v3072 = vadd.f32 %v3068, %v3070
    %v3073 = vadd.f32 %v3069, %v3071
    %v3074 = vtanh.pop %v3072
    %v3075 = vtanh.pop %v3073
    %v3076 = vsub.f32 1.0, %v3065
    %v3077 = vsub.f32 1.0, %v3067
    %v3078 = vmul.f32 %v3076, %v3074
    %v3079 = vmul.f32 %v3077, %v3075
    %v3080 = vmul.f32 %v3065, 0.0
    %v3081 = vmul.f32 %v3067, 0.0
    %v3082 = vadd.f32 %v3078, %v3080
    %v3083 = vadd.f32 %v3079, %v3081
    %v3084 = vadd.f32 %v3082, 0.0
    %v3085 = vadd.f32 %v3083, 0.0
    %v3086 = vpack.c.bf16 %v3082, %v3082
    %v3087 = vpack.c.bf16 %v3083, %v3083
    %v3089 = vsel %vm1414, %v3087, 0
    %3091 = vmatprep.subr.bf16.mxu0 %v2593
    %3092 = vmatpush1.bf16.msra.mxu0 %v2592
    %3093 = vmatprep.subr.bf16.mxu0 %v2595
    %3094 = vmatpush1.bf16.msra.mxu0 %v2594
    %3095 = vmatprep.subr.bf16.mxu0 %v2597
    %3096 = vmatpush1.bf16.msra.mxu0 %v2596
    %3097 = vmatprep.subr.bf16.mxu0 %v2599
    %3098 = vmatpush1.bf16.msra.mxu0 %v2598
    %3099 = vmatprep.subr.bf16.mxu0 %v2601
    %3100 = vmatpush1.bf16.msra.mxu0 %v2600
    %3101 = vmatprep.subr.bf16.mxu0 %v2603
    %3102 = vmatpush1.bf16.msra.mxu0 %v2602
    %3103 = vmatprep.subr.bf16.mxu0 %v2605
    %3104 = vmatpush1.bf16.msra.mxu0 %v2604
    %3105 = vmatprep.subr.bf16.mxu0 %v2607
    %3106 = vmatpush1.bf16.msra.mxu0 %v2606
    %3107 = vmatprep.subr.bf16.mxu0 %v2609
    %3108 = vmatpush1.bf16.msra.mxu0 %v2608
    %3109 = vmatprep.subr.bf16.mxu0 %v2611
    %3110 = vmatpush1.bf16.msra.mxu0 %v2610
    %3111 = vmatprep.subr.bf16.mxu0 %v2613
    %3112 = vmatpush1.bf16.msra.mxu0 %v2612
    %3113 = vmatprep.subr.bf16.mxu0 %v2615
    %3114 = vmatpush1.bf16.msra.mxu0 %v2614
    %3115 = vmatprep.subr.bf16.mxu0 %v2649
    %3116 = vmatpush1.bf16.msra.mxu0 %v2646
    %3117 = vmatprep.subr.bf16.mxu0 0
    %3118 = vmatpush1.bf16.msra.mxu0 0
    %3119 = vmatprep.subr.bf16.mxu0 0
    %3120 = vmatpush1.bf16.msra.mxu0 0
    %3121 = vmatprep.subr.bf16.mxu0 0
    %3122 = vmatpush1.bf16.msra.mxu0 0
    %3123 = vmatprep.mubr.bf16.mxu0 %v3089
    %3124 = vmatmul.mubr.bf16.gmra.mrb[0].mxu0 %v3086
    %v3125 = vpop.f32.mrb[0].mxu0
    %v3126 = vadd.f32 0.0, %v3125
    %v3127 = vpop.f32.mrb[0].mxu0
    %v3128 = vadd.f32 0.0, %v3127
    %v3129 = vpop.f32.mrb[0].mxu0
    %v3130 = vpop.f32.mrb[0].mxu0
    %3131 = vdwg.mxu0
    %3132 = vmatprep.subr.bf16.mxu0 %v2768
    %3133 = vmatpush1.bf16.msra.mxu0 %v2767
    %3134 = vmatprep.subr.bf16.mxu0 %v2770
    %3135 = vmatpush1.bf16.msra.mxu0 %v2769
    %3136 = vmatprep.subr.bf16.mxu0 %v2772
    %3137 = vmatpush1.bf16.msra.mxu0 %v2771
    %3138 = vmatprep.subr.bf16.mxu0 %v2774
    %3139 = vmatpush1.bf16.msra.mxu0 %v2773
    %3140 = vmatprep.subr.bf16.mxu0 %v2776
    %3141 = vmatpush1.bf16.msra.mxu0 %v2775
    %3142 = vmatprep.subr.bf16.mxu0 %v2778
    %3143 = vmatpush1.bf16.msra.mxu0 %v2777
    %3144 = vmatprep.subr.bf16.mxu0 %v2780
    %3145 = vmatpush1.bf16.msra.mxu0 %v2779
    %3146 = vmatprep.subr.bf16.mxu0 %v2782
    %3147 = vmatpush1.bf16.msra.mxu0 %v2781
    %3148 = vmatprep.subr.bf16.mxu0 %v2784
    %3149 = vmatpush1.bf16.msra.mxu0 %v2783
    %3150 = vmatprep.subr.bf16.mxu0 %v2786
    %3151 = vmatpush1.bf16.msra.mxu0 %v2785
    %3152 = vmatprep.subr.bf16.mxu0 %v2788
    %3153 = vmatpush1.bf16.msra.mxu0 %v2787
    %3154 = vmatprep.subr.bf16.mxu0 %v2790
    %3155 = vmatpush1.bf16.msra.mxu0 %v2789
    %3156 = vmatprep.subr.bf16.mxu0 %v2821
    %3157 = vmatpush1.bf16.msra.mxu0 %v2818
    %3158 = vmatprep.subr.bf16.mxu0 0
    %3159 = vmatpush1.bf16.msra.mxu0 0
    %3160 = vmatprep.subr.bf16.mxu0 0
    %3161 = vmatpush1.bf16.msra.mxu0 0
    %3162 = vmatprep.subr.bf16.mxu0 0
    %3163 = vmatpush1.bf16.msra.mxu0 0
    %3164 = vmatprep.mubr.bf16.mxu0 %v3089
    %3165 = vmatmul.mubr.bf16.gmra.mrb[0].mxu0 %v3086
    %v3166 = vpop.f32.mrb[0].mxu0
    %v3167 = vadd.f32 0.0, %v3166
    %v3168 = vpop.f32.mrb[0].mxu0
    %v3169 = vadd.f32 0.0, %v3168
    %v3170 = vpop.f32.mrb[0].mxu0
    %v3171 = vpop.f32.mrb[0].mxu0
    %3172 = vdwg.mxu0
    %3173 = vmatprep.subr.bf16.mxu0 %v2940
    %3174 = vmatpush1.bf16.msra.mxu0 %v2939
    %3175 = vmatprep.subr.bf16.mxu0 %v2942
    %3176 = vmatpush1.bf16.msra.mxu0 %v2941
    %3177 = vmatprep.subr.bf16.mxu0 %v2944
    %3178 = vmatpush1.bf16.msra.mxu0 %v2943
    %3179 = vmatprep.subr.bf16.mxu0 %v2946
    %3180 = vmatpush1.bf16.msra.mxu0 %v2945
    %3181 = vmatprep.subr.bf16.mxu0 %v2948
    %3182 = vmatpush1.bf16.msra.mxu0 %v2947
    %3183 = vmatprep.subr.bf16.mxu0 %v2950
    %3184 = vmatpush1.bf16.msra.mxu0 %v2949
    %3185 = vmatprep.subr.bf16.mxu0 %v2952
    %3186 = vmatpush1.bf16.msra.mxu0 %v2951
    %3187 = vmatprep.subr.bf16.mxu0 %v2954
    %3188 = vmatpush1.bf16.msra.mxu0 %v2953
    %3189 = vmatprep.subr.bf16.mxu0 %v2956
    %3190 = vmatpush1.bf16.msra.mxu0 %v2955
    %3191 = vmatprep.subr.bf16.mxu0 %v2958
    %3192 = vmatpush1.bf16.msra.mxu0 %v2957
    %3193 = vmatprep.subr.bf16.mxu0 %v2960
    %3194 = vmatpush1.bf16.msra.mxu0 %v2959
    %3195 = vmatprep.subr.bf16.mxu0 %v2962
    %3196 = vmatpush1.bf16.msra.mxu0 %v2961
    %3197 = vmatprep.subr.bf16.mxu0 %v2993
    %3198 = vmatpush1.bf16.msra.mxu0 %v2990
    %3199 = vmatprep.subr.bf16.mxu0 0
    %3200 = vmatpush1.bf16.msra.mxu0 0
    %3201 = vmatprep.subr.bf16.mxu0 0
    %3202 = vmatpush1.bf16.msra.mxu0 0
    %3203 = vmatprep.subr.bf16.mxu0 0
    %3204 = vmatpush1.bf16.msra.mxu0 0
    %3205 = vmatprep.mubr.bf16.mxu0 %v3089
    %3206 = vmatmul.mubr.bf16.gmra.mrb[0].mxu0 %v3086
    %v3207 = vpop.f32.mrb[0].mxu0
    %v3208 = vadd.f32 %v2510, %v3207
    %v3209 = vpop.f32.mrb[0].mxu0
    %v3210 = vadd.f32 %v2514, %v3209
    %v3211 = vpop.f32.mrb[0].mxu0
    %v3212 = vpop.f32.mrb[0].mxu0
    %3213 = vdwg.mxu0
    %s3214 = scalar_lea.vmem [#allocation2], 16
    %v3215 = vld [vmem:[%s3214] sm:$0xff]
    %v3216 = vld [vmem:[%s3214 + $0x8] sm:$0xff]
    %v3217 = vadd.f32 %v3215, %v3126
    %v3218 = vadd.f32 %v3216, %v3128
    %v3219 = vxor.u32 %v3217, 2147483648
    %v3220 = vxor.u32 %v3218, 2147483648
    %v3221 = vmul.f32 %v3219, 1.442695
    %v3222 = vpow.pop %v3221
    %v3223 = vmul.f32 %v3220, 1.442695
    %v3224 = vpow.pop %v3223
    %v3225 = vadd.f32 %v3222, 1.0
    %v3226 = vadd.f32 %v3224, 1.0
    %v3227 = vrcp.pop %v3225
    %v3228 = vmul.f32 1.0, %v3227
    %v3229 = vrcp.pop %v3226
    %v3230 = vmul.f32 1.0, %v3229
    %s3231 = scalar_lea.vmem [#allocation3], 16
    %v3232 = vld [vmem:[%s3231] sm:$0xff]
    %v3233 = vld [vmem:[%s3231 + $0x8] sm:$0xff]
    %v3234 = vadd.f32 %v3232, %v3167
    %v3235 = vadd.f32 %v3233, %v3169
    %v3236 = vxor.u32 %v3234, 2147483648
    %v3237 = vxor.u32 %v3235, 2147483648
    %v3238 = vmul.f32 %v3236, 1.442695
    %v3239 = vpow.pop %v3238
    %v3240 = vmul.f32 %v3237, 1.442695
    %v3241 = vpow.pop %v3240
    %v3242 = vadd.f32 %v3239, 1.0
    %v3243 = vadd.f32 %v3241, 1.0
    %v3244 = vrcp.pop %v3242
    %v3245 = vmul.f32 1.0, %v3244
    %v3246 = vrcp.pop %v3243
    %v3247 = vmul.f32 1.0, %v3246
    %s3248 = scalar_lea.vmem [#allocation4], 16
    %v3249 = vld [vmem:[%s3248] sm:$0xff]
    %v3250 = vld [vmem:[%s3248 + $0x8] sm:$0xff]
    %v3251 = vmul.f32 %v3228, %v3208
    %v3252 = vmul.f32 %v3230, %v3210
    %v3253 = vadd.f32 %v3249, %v3251
    %v3254 = vadd.f32 %v3250, %v3252
    %v3255 = vtanh.pop %v3253
    %v3256 = vtanh.pop %v3254
    %v3257 = vsub.f32 1.0, %v3245
    %v3258 = vsub.f32 1.0, %v3247
    %v3259 = vmul.f32 %v3257, %v3255
    %v3260 = vmul.f32 %v3258, %v3256
    %v3261 = vmul.f32 %v3245, %v3082
    %v3262 = vmul.f32 %v3247, %v3083
    %v3263 = vadd.f32 %v3259, %v3261
    %v3264 = vadd.f32 %v3260, %v3262
    %v3265 = vadd.f32 %v3084, %v3263
    %v3266 = vadd.f32 %v3085, %v3264
    %v3267 = vpack.c.bf16 %v3263, %v3263
    %v3268 = vpack.c.bf16 %v3264, %v3264
    %v3270 = vsel %vm1414, %v3268, 0
    %3272 = vmatprep.subr.bf16.mxu0 %v2593
    %3273 = vmatpush1.bf16.msra.mxu0 %v2592
    %3274 = vmatprep.subr.bf16.mxu0 %v2595
    %3275 = vmatpush1.bf16.msra.mxu0 %v2594
    %3276 = vmatprep.subr.bf16.mxu0 %v2597
    %3277 = vmatpush1.bf16.msra.mxu0 %v2596
    %3278 = vmatprep.subr.bf16.mxu0 %v2599
    %3279 = vmatpush1.bf16.msra.mxu0 %v2598
    %3280 = vmatprep.subr.bf16.mxu0 %v2601
    %3281 = vmatpush1.bf16.msra.mxu0 %v2600
    %3282 = vmatprep.subr.bf16.mxu0 %v2603
    %3283 = vmatpush1.bf16.msra.mxu0 %v2602
    %3284 = vmatprep.subr.bf16.mxu0 %v2605
    %3285 = vmatpush1.bf16.msra.mxu0 %v2604
    %3286 = vmatprep.subr.bf16.mxu0 %v2607
    %3287 = vmatpush1.bf16.msra.mxu0 %v2606
    %3288 = vmatprep.subr.bf16.mxu0 %v2609
    %3289 = vmatpush1.bf16.msra.mxu0 %v2608
    %3290 = vmatprep.subr.bf16.mxu0 %v2611
    %3291 = vmatpush1.bf16.msra.mxu0 %v2610
    %3292 = vmatprep.subr.bf16.mxu0 %v2613
    %3293 = vmatpush1.bf16.msra.mxu0 %v2612
    %3294 = vmatprep.subr.bf16.mxu0 %v2615
    %3295 = vmatpush1.bf16.msra.mxu0 %v2614
    %3296 = vmatprep.subr.bf16.mxu0 %v2649
    %3297 = vmatpush1.bf16.msra.mxu0 %v2646
    %3298 = vmatprep.subr.bf16.mxu0 0
    %3299 = vmatpush1.bf16.msra.mxu0 0
    %3300 = vmatprep.subr.bf16.mxu0 0
    %3301 = vmatpush1.bf16.msra.mxu0 0
    %3302 = vmatprep.subr.bf16.mxu0 0
    %3303 = vmatpush1.bf16.msra.mxu0 0
    %3304 = vmatprep.mubr.bf16.mxu0 %v3270
    %3305 = vmatmul.mubr.bf16.gmra.mrb[0].mxu0 %v3267
    %v3306 = vpop.f32.mrb[0].mxu0
    %v3307 = vadd.f32 0.0, %v3306
    %v3308 = vpop.f32.mrb[0].mxu0
    %v3309 = vadd.f32 0.0, %v3308
    %v3310 = vpop.f32.mrb[0].mxu0
    %v3311 = vpop.f32.mrb[0].mxu0
    %3312 = vdwg.mxu0
    %3313 = vmatprep.subr.bf16.mxu0 %v2768
    %3314 = vmatpush1.bf16.msra.mxu0 %v2767
    %3315 = vmatprep.subr.bf16.mxu0 %v2770
    %3316 = vmatpush1.bf16.msra.mxu0 %v2769
    %3317 = vmatprep.subr.bf16.mxu0 %v2772
    %3318 = vmatpush1.bf16.msra.mxu0 %v2771
    %3319 = vmatprep.subr.bf16.mxu0 %v2774
    %3320 = vmatpush1.bf16.msra.mxu0 %v2773
    %3321 = vmatprep.subr.bf16.mxu0 %v2776
    %3322 = vmatpush1.bf16.msra.mxu0 %v2775
    %3323 = vmatprep.subr.bf16.mxu0 %v2778
    %3324 = vmatpush1.bf16.msra.mxu0 %v2777
    %3325 = vmatprep.subr.bf16.mxu0 %v2780
    %3326 = vmatpush1.bf16.msra.mxu0 %v2779
    %3327 = vmatprep.subr.bf16.mxu0 %v2782
    %3328 = vmatpush1.bf16.msra.mxu0 %v2781
    %3329 = vmatprep.subr.bf16.mxu0 %v2784
    %3330 = vmatpush1.bf16.msra.mxu0 %v2783
    %3331 = vmatprep.subr.bf16.mxu0 %v2786
    %3332 = vmatpush1.bf16.msra.mxu0 %v2785
    %3333 = vmatprep.subr.bf16.mxu0 %v2788
    %3334 = vmatpush1.bf16.msra.mxu0 %v2787
    %3335 = vmatprep.subr.bf16.mxu0 %v2790
    %3336 = vmatpush1.bf16.msra.mxu0 %v2789
    %3337 = vmatprep.subr.bf16.mxu0 %v2821
    %3338 = vmatpush1.bf16.msra.mxu0 %v2818
    %3339 = vmatprep.subr.bf16.mxu0 0
    %3340 = vmatpush1.bf16.msra.mxu0 0
    %3341 = vmatprep.subr.bf16.mxu0 0
    %3342 = vmatpush1.bf16.msra.mxu0 0
    %3343 = vmatprep.subr.bf16.mxu0 0
    %3344 = vmatpush1.bf16.msra.mxu0 0
    %3345 = vmatprep.mubr.bf16.mxu0 %v3270
    %3346 = vmatmul.mubr.bf16.gmra.mrb[0].mxu0 %v3267
    %v3347 = vpop.f32.mrb[0].mxu0
    %v3348 = vadd.f32 0.0, %v3347
    %v3349 = vpop.f32.mrb[0].mxu0
    %v3350 = vadd.f32 0.0, %v3349
    %v3351 = vpop.f32.mrb[0].mxu0
    %v3352 = vpop.f32.mrb[0].mxu0
    %3353 = vdwg.mxu0
    %3354 = vmatprep.subr.bf16.mxu0 %v2940
    %3355 = vmatpush1.bf16.msra.mxu0 %v2939
    %3356 = vmatprep.subr.bf16.mxu0 %v2942
    %3357 = vmatpush1.bf16.msra.mxu0 %v2941
    %3358 = vmatprep.subr.bf16.mxu0 %v2944
    %3359 = vmatpush1.bf16.msra.mxu0 %v2943
    %3360 = vmatprep.subr.bf16.mxu0 %v2946
    %3361 = vmatpush1.bf16.msra.mxu0 %v2945
    %3362 = vmatprep.subr.bf16.mxu0 %v2948
    %3363 = vmatpush1.bf16.msra.mxu0 %v2947
    %3364 = vmatprep.subr.bf16.mxu0 %v2950
    %3365 = vmatpush1.bf16.msra.mxu0 %v2949
    %3366 = vmatprep.subr.bf16.mxu0 %v2952
    %3367 = vmatpush1.bf16.msra.mxu0 %v2951
    %3368 = vmatprep.subr.bf16.mxu0 %v2954
    %3369 = vmatpush1.bf16.msra.mxu0 %v2953
    %3370 = vmatprep.subr.bf16.mxu0 %v2956
    %3371 = vmatpush1.bf16.msra.mxu0 %v2955
    %3372 = vmatprep.subr.bf16.mxu0 %v2958
    %3373 = vmatpush1.bf16.msra.mxu0 %v2957
    %3374 = vmatprep.subr.bf16.mxu0 %v2960
    %3375 = vmatpush1.bf16.msra.mxu0 %v2959
    %3376 = vmatprep.subr.bf16.mxu0 %v2962
    %3377 = vmatpush1.bf16.msra.mxu0 %v2961
    %3378 = vmatprep.subr.bf16.mxu0 %v2993
    %3379 = vmatpush1.bf16.msra.mxu0 %v2990
    %3380 = vmatprep.subr.bf16.mxu0 0
    %3381 = vmatpush1.bf16.msra.mxu0 0
    %3382 = vmatprep.subr.bf16.mxu0 0
    %3383 = vmatpush1.bf16.msra.mxu0 0
    %3384 = vmatprep.subr.bf16.mxu0 0
    %3385 = vmatpush1.bf16.msra.mxu0 0
    %3386 = vmatprep.mubr.bf16.mxu0 %v3270
    %3387 = vmatmul.mubr.bf16.gmra.mrb[0].mxu0 %v3267
    %v3388 = vpop.f32.mrb[0].mxu0
    %v3389 = vadd.f32 %v2510, %v3388
    %v3390 = vpop.f32.mrb[0].mxu0
    %v3391 = vadd.f32 %v2514, %v3390
    %v3392 = vpop.f32.mrb[0].mxu0
    %v3393 = vpop.f32.mrb[0].mxu0
    %3394 = vdwg.mxu0
    %s3395 = scalar_lea.vmem [#allocation2], 32
    %v3396 = vld [vmem:[%s3395] sm:$0xff]
    %v3397 = vld [vmem:[%s3395 + $0x8] sm:$0xff]
    %v3398 = vadd.f32 %v3396, %v3307
    %v3399 = vadd.f32 %v3397, %v3309
    %v3400 = vxor.u32 %v3398, 2147483648
    %v3401 = vxor.u32 %v3399, 2147483648
    %v3402 = vmul.f32 %v3400, 1.442695
    %v3403 = vpow.pop %v3402
    %v3404 = vmul.f32 %v3401, 1.442695
    %v3405 = vpow.pop %v3404
    %v3406 = vadd.f32 %v3403, 1.0
    %v3407 = vadd.f32 %v3405, 1.0
    %v3408 = vrcp.pop %v3406
    %v3409 = vmul.f32 1.0, %v3408
    %v3410 = vrcp.pop %v3407
    %v3411 = vmul.f32 1.0, %v3410
    %s3412 = scalar_lea.vmem [#allocation3], 32
    %v3413 = vld [vmem:[%s3412] sm:$0xff]
    %v3414 = vld [vmem:[%s3412 + $0x8] sm:$0xff]
    %v3415 = vadd.f32 %v3413, %v3348
    %v3416 = vadd.f32 %v3414, %v3350
    %v3417 = vxor.u32 %v3415, 2147483648
    %v3418 = vxor.u32 %v3416, 2147483648
    %v3419 = vmul.f32 %v3417, 1.442695
    %v3420 = vpow.pop %v3419
    %v3421 = vmul.f32 %v3418, 1.442695
    %v3422 = vpow.pop %v3421
    %v3423 = vadd.f32 %v3420, 1.0
    %v3424 = vadd.f32 %v3422, 1.0
    %v3425 = vrcp.pop %v3423
    %v3426 = vmul.f32 1.0, %v3425
    %v3427 = vrcp.pop %v3424
    %v3428 = vmul.f32 1.0, %v3427
    %s3429 = scalar_lea.vmem [#allocation4], 32
    %v3430 = vld [vmem:[%s3429] sm:$0xff]
    %v3431 = vld [vmem:[%s3429 + $0x8] sm:$0xff]
    %v3432 = vmul.f32 %v3409, %v3389
    %v3433 = vmul.f32 %v3411, %v3391
    %v3434 = vadd.f32 %v3430, %v3432
    %v3435 = vadd.f32 %v3431, %v3433
    %v3436 = vtanh.pop %v3434
    %v3437 = vtanh.pop %v3435
    %v3438 = vsub.f32 1.0, %v3426
    %v3439 = vsub.f32 1.0, %v3428
    %v3440 = vmul.f32 %v3438, %v3436
    %v3441 = vmul.f32 %v3439, %v3437
    %v3442 = vmul.f32 %v3426, %v3263
    %v3443 = vmul.f32 %v3428, %v3264
    %v3444 = vadd.f32 %v3440, %v3442
    %v3445 = vadd.f32 %v3441, %v3443
    %v3446 = vadd.f32 %v3265, %v3444
    %v3447 = vadd.f32 %v3266, %v3445
    %v3448 = vpack.c.bf16 %v3444, %v3444
    %v3449 = vpack.c.bf16 %v3445, %v3445
    %v3451 = vsel %vm1414, %v3449, 0
    %3453 = vmatprep.subr.bf16.mxu0 %v2593
    %3454 = vmatpush1.bf16.msra.mxu0 %v2592
    %3455 = vmatprep.subr.bf16.mxu0 %v2595
    %3456 = vmatpush1.bf16.msra.mxu0 %v2594
    %3457 = vmatprep.subr.bf16.mxu0 %v2597
    %3458 = vmatpush1.bf16.msra.mxu0 %v2596
    %3459 = vmatprep.subr.bf16.mxu0 %v2599
    %3460 = vmatpush1.bf16.msra.mxu0 %v2598
    %3461 = vmatprep.subr.bf16.mxu0 %v2601
    %3462 = vmatpush1.bf16.msra.mxu0 %v2600
    %3463 = vmatprep.subr.bf16.mxu0 %v2603
    %3464 = vmatpush1.bf16.msra.mxu0 %v2602
    %3465 = vmatprep.subr.bf16.mxu0 %v2605
    %3466 = vmatpush1.bf16.msra.mxu0 %v2604
    %3467 = vmatprep.subr.bf16.mxu0 %v2607
    %3468 = vmatpush1.bf16.msra.mxu0 %v2606
    %3469 = vmatprep.subr.bf16.mxu0 %v2609
    %3470 = vmatpush1.bf16.msra.mxu0 %v2608
    %3471 = vmatprep.subr.bf16.mxu0 %v2611
    %3472 = vmatpush1.bf16.msra.mxu0 %v2610
    %3473 = vmatprep.subr.bf16.mxu0 %v2613
    %3474 = vmatpush1.bf16.msra.mxu0 %v2612
    %3475 = vmatprep.subr.bf16.mxu0 %v2615
    %3476 = vmatpush1.bf16.msra.mxu0 %v2614
    %3477 = vmatprep.subr.bf16.mxu0 %v2649
    %3478 = vmatpush1.bf16.msra.mxu0 %v2646
    %3479 = vmatprep.subr.bf16.mxu0 0
    %3480 = vmatpush1.bf16.msra.mxu0 0
    %3481 = vmatprep.subr.bf16.mxu0 0
    %3482 = vmatpush1.bf16.msra.mxu0 0
    %3483 = vmatprep.subr.bf16.mxu0 0
    %3484 = vmatpush1.bf16.msra.mxu0 0
    %3485 = vmatprep.mubr.bf16.mxu0 %v3451
    %3486 = vmatmul.mubr.bf16.gmra.mrb[0].mxu0 %v3448
    %v3487 = vpop.f32.mrb[0].mxu0
    %v3488 = vadd.f32 0.0, %v3487
    %v3489 = vpop.f32.mrb[0].mxu0
    %v3490 = vadd.f32 0.0, %v3489
    %v3491 = vpop.f32.mrb[0].mxu0
    %v3492 = vpop.f32.mrb[0].mxu0
    %3493 = vdwg.mxu0
    %3494 = vmatprep.subr.bf16.mxu0 %v2768
    %3495 = vmatpush1.bf16.msra.mxu0 %v2767
    %3496 = vmatprep.subr.bf16.mxu0 %v2770
    %3497 = vmatpush1.bf16.msra.mxu0 %v2769
    %3498 = vmatprep.subr.bf16.mxu0 %v2772
    %3499 = vmatpush1.bf16.msra.mxu0 %v2771
    %3500 = vmatprep.subr.bf16.mxu0 %v2774
    %3501 = vmatpush1.bf16.msra.mxu0 %v2773
    %3502 = vmatprep.subr.bf16.mxu0 %v2776
    %3503 = vmatpush1.bf16.msra.mxu0 %v2775
    %3504 = vmatprep.subr.bf16.mxu0 %v2778
    %3505 = vmatpush1.bf16.msra.mxu0 %v2777
    %3506 = vmatprep.subr.bf16.mxu0 %v2780
    %3507 = vmatpush1.bf16.msra.mxu0 %v2779
    %3508 = vmatprep.subr.bf16.mxu0 %v2782
    %3509 = vmatpush1.bf16.msra.mxu0 %v2781
    %3510 = vmatprep.subr.bf16.mxu0 %v2784
    %3511 = vmatpush1.bf16.msra.mxu0 %v2783
    %3512 = vmatprep.subr.bf16.mxu0 %v2786
    %3513 = vmatpush1.bf16.msra.mxu0 %v2785
    %3514 = vmatprep.subr.bf16.mxu0 %v2788
    %3515 = vmatpush1.bf16.msra.mxu0 %v2787
    %3516 = vmatprep.subr.bf16.mxu0 %v2790
    %3517 = vmatpush1.bf16.msra.mxu0 %v2789
    %3518 = vmatprep.subr.bf16.mxu0 %v2821
    %3519 = vmatpush1.bf16.msra.mxu0 %v2818
    %3520 = vmatprep.subr.bf16.mxu0 0
    %3521 = vmatpush1.bf16.msra.mxu0 0
    %3522 = vmatprep.subr.bf16.mxu0 0
    %3523 = vmatpush1.bf16.msra.mxu0 0
    %3524 = vmatprep.subr.bf16.mxu0 0
    %3525 = vmatpush1.bf16.msra.mxu0 0
    %3526 = vmatprep.mubr.bf16.mxu0 %v3451
    %3527 = vmatmul.mubr.bf16.gmra.mrb[0].mxu0 %v3448
    %v3528 = vpop.f32.mrb[0].mxu0
    %v3529 = vadd.f32 0.0, %v3528
    %v3530 = vpop.f32.mrb[0].mxu0
    %v3531 = vadd.f32 0.0, %v3530
    %v3532 = vpop.f32.mrb[0].mxu0
    %v3533 = vpop.f32.mrb[0].mxu0
    %3534 = vdwg.mxu0
    %3535 = vmatprep.subr.bf16.mxu0 %v2940
    %3536 = vmatpush1.bf16.msra.mxu0 %v2939
    %3537 = vmatprep.subr.bf16.mxu0 %v2942
    %3538 = vmatpush1.bf16.msra.mxu0 %v2941
    %3539 = vmatprep.subr.bf16.mxu0 %v2944
    %3540 = vmatpush1.bf16.msra.mxu0 %v2943
    %3541 = vmatprep.subr.bf16.mxu0 %v2946
    %3542 = vmatpush1.bf16.msra.mxu0 %v2945
    %3543 = vmatprep.subr.bf16.mxu0 %v2948
    %3544 = vmatpush1.bf16.msra.mxu0 %v2947
    %3545 = vmatprep.subr.bf16.mxu0 %v2950
    %3546 = vmatpush1.bf16.msra.mxu0 %v2949
    %3547 = vmatprep.subr.bf16.mxu0 %v2952
    %3548 = vmatpush1.bf16.msra.mxu0 %v2951
    %3549 = vmatprep.subr.bf16.mxu0 %v2954
    %3550 = vmatpush1.bf16.msra.mxu0 %v2953
    %3551 = vmatprep.subr.bf16.mxu0 %v2956
    %3552 = vmatpush1.bf16.msra.mxu0 %v2955
    %3553 = vmatprep.subr.bf16.mxu0 %v2958
    %3554 = vmatpush1.bf16.msra.mxu0 %v2957
    %3555 = vmatprep.subr.bf16.mxu0 %v2960
    %3556 = vmatpush1.bf16.msra.mxu0 %v2959
    %3557 = vmatprep.subr.bf16.mxu0 %v2962
    %3558 = vmatpush1.bf16.msra.mxu0 %v2961
    %3559 = vmatprep.subr.bf16.mxu0 %v2993
    %3560 = vmatpush1.bf16.msra.mxu0 %v2990
    %3561 = vmatprep.subr.bf16.mxu0 0
    %3562 = vmatpush1.bf16.msra.mxu0 0
    %3563 = vmatprep.subr.bf16.mxu0 0
    %3564 = vmatpush1.bf16.msra.mxu0 0
    %3565 = vmatprep.subr.bf16.mxu0 0
    %3566 = vmatpush1.bf16.msra.mxu0 0
    %3567 = vmatprep.mubr.bf16.mxu0 %v3451
    %3568 = vmatmul.mubr.bf16.gmra.mrb[0].mxu0 %v3448
    %v3569 = vpop.f32.mrb[0].mxu0
    %v3570 = vadd.f32 %v2510, %v3569
    %v3571 = vpop.f32.mrb[0].mxu0
    %v3572 = vadd.f32 %v2514, %v3571
    %v3573 = vpop.f32.mrb[0].mxu0
    %v3574 = vpop.f32.mrb[0].mxu0
    %3575 = vdwg.mxu0
    %s3576 = scalar_lea.vmem [#allocation2], 48
    %v3577 = vld [vmem:[%s3576] sm:$0xff]
    %v3578 = vld [vmem:[%s3576 + $0x8] sm:$0xff]
    %v3579 = vadd.f32 %v3577, %v3488
    %v3580 = vadd.f32 %v3578, %v3490
    %v3581 = vxor.u32 %v3579, 2147483648
    %v3582 = vxor.u32 %v3580, 2147483648
    %v3583 = vmul.f32 %v3581, 1.442695
    %v3584 = vpow.pop %v3583
    %v3585 = vmul.f32 %v3582, 1.442695
    %v3586 = vpow.pop %v3585
    %v3587 = vadd.f32 %v3584, 1.0
    %v3588 = vadd.f32 %v3586, 1.0
    %v3589 = vrcp.pop %v3587
    %v3590 = vmul.f32 1.0, %v3589
    %v3591 = vrcp.pop %v3588
    %v3592 = vmul.f32 1.0, %v3591
    %s3593 = scalar_lea.vmem [#allocation3], 48
    %v3594 = vld [vmem:[%s3593] sm:$0xff]
    %v3595 = vld [vmem:[%s3593 + $0x8] sm:$0xff]
    %v3596 = vadd.f32 %v3594, %v3529
    %v3597 = vadd.f32 %v3595, %v3531
    %v3598 = vxor.u32 %v3596, 2147483648
    %v3599 = vxor.u32 %v3597, 2147483648
    %v3600 = vmul.f32 %v3598, 1.442695
    %v3601 = vpow.pop %v3600
    %v3602 = vmul.f32 %v3599, 1.442695
    %v3603 = vpow.pop %v3602
    %v3604 = vadd.f32 %v3601, 1.0
    %v3605 = vadd.f32 %v3603, 1.0
    %v3606 = vrcp.pop %v3604
    %v3607 = vmul.f32 1.0, %v3606
    %v3608 = vrcp.pop %v3605
    %v3609 = vmul.f32 1.0, %v3608
    %s3610 = scalar_lea.vmem [#allocation4], 48
    %v3611 = vld [vmem:[%s3610] sm:$0xff]
    %v3612 = vld [vmem:[%s3610 + $0x8] sm:$0xff]
    %v3613 = vmul.f32 %v3590, %v3570
    %v3614 = vmul.f32 %v3592, %v3572
    %v3615 = vadd.f32 %v3611, %v3613
    %v3616 = vadd.f32 %v3612, %v3614
    %v3617 = vtanh.pop %v3615
    %v3618 = vtanh.pop %v3616
    %v3619 = vsub.f32 1.0, %v3607
    %v3620 = vsub.f32 1.0, %v3609
    %v3621 = vmul.f32 %v3619, %v3617
    %v3622 = vmul.f32 %v3620, %v3618
    %v3623 = vmul.f32 %v3607, %v3444
    %v3624 = vmul.f32 %v3609, %v3445
    %v3625 = vadd.f32 %v3621, %v3623
    %v3626 = vadd.f32 %v3622, %v3624
    %v3627 = vadd.f32 %v3446, %v3625
    %v3628 = vadd.f32 %v3447, %v3626
    %v3629 = vpack.c.bf16 %v3625, %v3625
    %v3630 = vpack.c.bf16 %v3626, %v3626
    %v3632 = vsel %vm1414, %v3630, 0
    %3634 = vmatprep.subr.bf16.mxu0 %v2593
    %3635 = vmatpush1.bf16.msra.mxu0 %v2592
    %3636 = vmatprep.subr.bf16.mxu0 %v2595
    %3637 = vmatpush1.bf16.msra.mxu0 %v2594
    %3638 = vmatprep.subr.bf16.mxu0 %v2597
    %3639 = vmatpush1.bf16.msra.mxu0 %v2596
    %3640 = vmatprep.subr.bf16.mxu0 %v2599
    %3641 = vmatpush1.bf16.msra.mxu0 %v2598
    %3642 = vmatprep.subr.bf16.mxu0 %v2601
    %3643 = vmatpush1.bf16.msra.mxu0 %v2600
    %3644 = vmatprep.subr.bf16.mxu0 %v2603
    %3645 = vmatpush1.bf16.msra.mxu0 %v2602
    %3646 = vmatprep.subr.bf16.mxu0 %v2605
    %3647 = vmatpush1.bf16.msra.mxu0 %v2604
    %3648 = vmatprep.subr.bf16.mxu0 %v2607
    %3649 = vmatpush1.bf16.msra.mxu0 %v2606
    %3650 = vmatprep.subr.bf16.mxu0 %v2609
    %3651 = vmatpush1.bf16.msra.mxu0 %v2608
    %3652 = vmatprep.subr.bf16.mxu0 %v2611
    %3653 = vmatpush1.bf16.msra.mxu0 %v2610
    %3654 = vmatprep.subr.bf16.mxu0 %v2613
    %3655 = vmatpush1.bf16.msra.mxu0 %v2612
    %3656 = vmatprep.subr.bf16.mxu0 %v2615
    %3657 = vmatpush1.bf16.msra.mxu0 %v2614
    %3658 = vmatprep.subr.bf16.mxu0 %v2649
    %3659 = vmatpush1.bf16.msra.mxu0 %v2646
    %3660 = vmatprep.subr.bf16.mxu0 0
    %3661 = vmatpush1.bf16.msra.mxu0 0
    %3662 = vmatprep.subr.bf16.mxu0 0
    %3663 = vmatpush1.bf16.msra.mxu0 0
    %3664 = vmatprep.subr.bf16.mxu0 0
    %3665 = vmatpush1.bf16.msra.mxu0 0
    %3666 = vmatprep.mubr.bf16.mxu0 %v3632
    %3667 = vmatmul.mubr.bf16.gmra.mrb[0].mxu0 %v3629
    %v3668 = vpop.f32.mrb[0].mxu0
    %v3669 = vadd.f32 0.0, %v3668
    %v3670 = vpop.f32.mrb[0].mxu0
    %v3671 = vadd.f32 0.0, %v3670
    %v3672 = vpop.f32.mrb[0].mxu0
    %v3673 = vpop.f32.mrb[0].mxu0
    %3674 = vdwg.mxu0
    %3675 = vmatprep.subr.bf16.mxu0 %v2768
    %3676 = vmatpush1.bf16.msra.mxu0 %v2767
    %3677 = vmatprep.subr.bf16.mxu0 %v2770
    %3678 = vmatpush1.bf16.msra.mxu0 %v2769
    %3679 = vmatprep.subr.bf16.mxu0 %v2772
    %3680 = vmatpush1.bf16.msra.mxu0 %v2771
    %3681 = vmatprep.subr.bf16.mxu0 %v2774
    %3682 = vmatpush1.bf16.msra.mxu0 %v2773
    %3683 = vmatprep.subr.bf16.mxu0 %v2776
    %3684 = vmatpush1.bf16.msra.mxu0 %v2775
    %3685 = vmatprep.subr.bf16.mxu0 %v2778
    %3686 = vmatpush1.bf16.msra.mxu0 %v2777
    %3687 = vmatprep.subr.bf16.mxu0 %v2780
    %3688 = vmatpush1.bf16.msra.mxu0 %v2779
    %3689 = vmatprep.subr.bf16.mxu0 %v2782
    %3690 = vmatpush1.bf16.msra.mxu0 %v2781
    %3691 = vmatprep.subr.bf16.mxu0 %v2784
    %3692 = vmatpush1.bf16.msra.mxu0 %v2783
    %3693 = vmatprep.subr.bf16.mxu0 %v2786
    %3694 = vmatpush1.bf16.msra.mxu0 %v2785
    %3695 = vmatprep.subr.bf16.mxu0 %v2788
    %3696 = vmatpush1.bf16.msra.mxu0 %v2787
    %3697 = vmatprep.subr.bf16.mxu0 %v2790
    %3698 = vmatpush1.bf16.msra.mxu0 %v2789
    %3699 = vmatprep.subr.bf16.mxu0 %v2821
    %3700 = vmatpush1.bf16.msra.mxu0 %v2818
    %3701 = vmatprep.subr.bf16.mxu0 0
    %3702 = vmatpush1.bf16.msra.mxu0 0
    %3703 = vmatprep.subr.bf16.mxu0 0
    %3704 = vmatpush1.bf16.msra.mxu0 0
    %3705 = vmatprep.subr.bf16.mxu0 0
    %3706 = vmatpush1.bf16.msra.mxu0 0
    %3707 = vmatprep.mubr.bf16.mxu0 %v3632
    %3708 = vmatmul.mubr.bf16.gmra.mrb[0].mxu0 %v3629
    %v3709 = vpop.f32.mrb[0].mxu0
    %v3710 = vadd.f32 0.0, %v3709
    %v3711 = vpop.f32.mrb[0].mxu0
    %v3712 = vadd.f32 0.0, %v3711
    %v3713 = vpop.f32.mrb[0].mxu0
    %v3714 = vpop.f32.mrb[0].mxu0
    %3715 = vdwg.mxu0
    %3716 = vmatprep.subr.bf16.mxu0 %v2940
    %3717 = vmatpush1.bf16.msra.mxu0 %v2939
    %3718 = vmatprep.subr.bf16.mxu0 %v2942
    %3719 = vmatpush1.bf16.msra.mxu0 %v2941
    %3720 = vmatprep.subr.bf16.mxu0 %v2944
    %3721 = vmatpush1.bf16.msra.mxu0 %v2943
    %3722 = vmatprep.subr.bf16.mxu0 %v2946
    %3723 = vmatpush1.bf16.msra.mxu0 %v2945
    %3724 = vmatprep.subr.bf16.mxu0 %v2948
    %3725 = vmatpush1.bf16.msra.mxu0 %v2947
    %3726 = vmatprep.subr.bf16.mxu0 %v2950
    %3727 = vmatpush1.bf16.msra.mxu0 %v2949
    %3728 = vmatprep.subr.bf16.mxu0 %v2952
    %3729 = vmatpush1.bf16.msra.mxu0 %v2951
    %3730 = vmatprep.subr.bf16.mxu0 %v2954
    %3731 = vmatpush1.bf16.msra.mxu0 %v2953
    %3732 = vmatprep.subr.bf16.mxu0 %v2956
    %3733 = vmatpush1.bf16.msra.mxu0 %v2955
    %3734 = vmatprep.subr.bf16.mxu0 %v2958
    %3735 = vmatpush1.bf16.msra.mxu0 %v2957
    %3736 = vmatprep.subr.bf16.mxu0 %v2960
    %3737 = vmatpush1.bf16.msra.mxu0 %v2959
    %3738 = vmatprep.subr.bf16.mxu0 %v2962
    %3739 = vmatpush1.bf16.msra.mxu0 %v2961
    %3740 = vmatprep.subr.bf16.mxu0 %v2993
    %3741 = vmatpush1.bf16.msra.mxu0 %v2990
    %3742 = vmatprep.subr.bf16.mxu0 0
    %3743 = vmatpush1.bf16.msra.mxu0 0
    %3744 = vmatprep.subr.bf16.mxu0 0
    %3745 = vmatpush1.bf16.msra.mxu0 0
    %3746 = vmatprep.subr.bf16.mxu0 0
    %3747 = vmatpush1.bf16.msra.mxu0 0
    %3748 = vmatprep.mubr.bf16.mxu0 %v3632
    %3749 = vmatmul.mubr.bf16.gmra.mrb[0].mxu0 %v3629
    %v3750 = vpop.f32.mrb[0].mxu0
    %v3751 = vadd.f32 %v2510, %v3750
    %v3752 = vpop.f32.mrb[0].mxu0
    %v3753 = vadd.f32 %v2514, %v3752
    %v3754 = vpop.f32.mrb[0].mxu0
    %v3755 = vpop.f32.mrb[0].mxu0
    %3756 = vdwg.mxu0
    %s3757 = scalar_lea.vmem [#allocation2], 64
    %v3758 = vld [vmem:[%s3757] sm:$0xff]
    %v3759 = vld [vmem:[%s3757 + $0x8] sm:$0xff]
    %v3760 = vadd.f32 %v3758, %v3669
    %v3761 = vadd.f32 %v3759, %v3671
    %v3762 = vxor.u32 %v3760, 2147483648
    %v3763 = vxor.u32 %v3761, 2147483648
    %v3764 = vmul.f32 %v3762, 1.442695
    %v3765 = vpow.pop %v3764
    %v3766 = vmul.f32 %v3763, 1.442695
    %v3767 = vpow.pop %v3766
    %v3768 = vadd.f32 %v3765, 1.0
    %v3769 = vadd.f32 %v3767, 1.0
    %v3770 = vrcp.pop %v3768
    %v3771 = vmul.f32 1.0, %v3770
    %v3772 = vrcp.pop %v3769
    %v3773 = vmul.f32 1.0, %v3772
    %s3774 = scalar_lea.vmem [#allocation3], 64
    %v3775 = vld [vmem:[%s3774] sm:$0xff]
    %v3776 = vld [vmem:[%s3774 + $0x8] sm:$0xff]
    %v3777 = vadd.f32 %v3775, %v3710
    %v3778 = vadd.f32 %v3776, %v3712
    %v3779 = vxor.u32 %v3777, 2147483648
    %v3780 = vxor.u32 %v3778, 2147483648
    %v3781 = vmul.f32 %v3779, 1.442695
    %v3782 = vpow.pop %v3781
    %v3783 = vmul.f32 %v3780, 1.442695
    %v3784 = vpow.pop %v3783
    %v3785 = vadd.f32 %v3782, 1.0
    %v3786 = vadd.f32 %v3784, 1.0
    %v3787 = vrcp.pop %v3785
    %v3788 = vmul.f32 1.0, %v3787
    %v3789 = vrcp.pop %v3786
    %v3790 = vmul.f32 1.0, %v3789
    %s3791 = scalar_lea.vmem [#allocation4], 64
    %v3792 = vld [vmem:[%s3791] sm:$0xff]
    %v3793 = vld [vmem:[%s3791 + $0x8] sm:$0xff]
    %v3794 = vmul.f32 %v3771, %v3751
    %v3795 = vmul.f32 %v3773, %v3753
    %v3796 = vadd.f32 %v3792, %v3794
    %v3797 = vadd.f32 %v3793, %v3795
    %v3798 = vtanh.pop %v3796
    %v3799 = vtanh.pop %v3797
    %v3800 = vsub.f32 1.0, %v3788
    %v3801 = vsub.f32 1.0, %v3790
    %v3802 = vmul.f32 %v3800, %v3798
    %v3803 = vmul.f32 %v3801, %v3799
    %v3804 = vmul.f32 %v3788, %v3625
    %v3805 = vmul.f32 %v3790, %v3626
    %v3806 = vadd.f32 %v3802, %v3804
    %v3807 = vadd.f32 %v3803, %v3805
    %v3808 = vadd.f32 %v3627, %v3806
    %v3809 = vadd.f32 %v3628, %v3807
    %v3810 = vpack.c.bf16 %v3806, %v3806
    %v3811 = vpack.c.bf16 %v3807, %v3807
    %v3813 = vsel %vm1414, %v3811, 0
    %3815 = vmatprep.subr.bf16.mxu0 %v2593
    %3816 = vmatpush1.bf16.msra.mxu0 %v2592
    %3817 = vmatprep.subr.bf16.mxu0 %v2595
    %3818 = vmatpush1.bf16.msra.mxu0 %v2594
    %3819 = vmatprep.subr.bf16.mxu0 %v2597
    %3820 = vmatpush1.bf16.msra.mxu0 %v2596
    %3821 = vmatprep.subr.bf16.mxu0 %v2599
    %3822 = vmatpush1.bf16.msra.mxu0 %v2598
    %3823 = vmatprep.subr.bf16.mxu0 %v2601
    %3824 = vmatpush1.bf16.msra.mxu0 %v2600
    %3825 = vmatprep.subr.bf16.mxu0 %v2603
    %3826 = vmatpush1.bf16.msra.mxu0 %v2602
    %3827 = vmatprep.subr.bf16.mxu0 %v2605
    %3828 = vmatpush1.bf16.msra.mxu0 %v2604
    %3829 = vmatprep.subr.bf16.mxu0 %v2607
    %3830 = vmatpush1.bf16.msra.mxu0 %v2606
    %3831 = vmatprep.subr.bf16.mxu0 %v2609
    %3832 = vmatpush1.bf16.msra.mxu0 %v2608
    %3833 = vmatprep.subr.bf16.mxu0 %v2611
    %3834 = vmatpush1.bf16.msra.mxu0 %v2610
    %3835 = vmatprep.subr.bf16.mxu0 %v2613
    %3836 = vmatpush1.bf16.msra.mxu0 %v2612
    %3837 = vmatprep.subr.bf16.mxu0 %v2615
    %3838 = vmatpush1.bf16.msra.mxu0 %v2614
    %3839 = vmatprep.subr.bf16.mxu0 %v2649
    %3840 = vmatpush1.bf16.msra.mxu0 %v2646
    %3841 = vmatprep.subr.bf16.mxu0 0
    %3842 = vmatpush1.bf16.msra.mxu0 0
    %3843 = vmatprep.subr.bf16.mxu0 0
    %3844 = vmatpush1.bf16.msra.mxu0 0
    %3845 = vmatprep.subr.bf16.mxu0 0
    %3846 = vmatpush1.bf16.msra.mxu0 0
    %3847 = vmatprep.mubr.bf16.mxu0 %v3813
    %3848 = vmatmul.mubr.bf16.gmra.mrb[0].mxu0 %v3810
    %v3849 = vpop.f32.mrb[0].mxu0
    %v3850 = vadd.f32 0.0, %v3849
    %v3851 = vpop.f32.mrb[0].mxu0
    %v3852 = vadd.f32 0.0, %v3851
    %v3853 = vpop.f32.mrb[0].mxu0
    %v3854 = vpop.f32.mrb[0].mxu0
    %3855 = vdwg.mxu0
    %3856 = vmatprep.subr.bf16.mxu0 %v2768
    %3857 = vmatpush1.bf16.msra.mxu0 %v2767
    %3858 = vmatprep.subr.bf16.mxu0 %v2770
    %3859 = vmatpush1.bf16.msra.mxu0 %v2769
    %3860 = vmatprep.subr.bf16.mxu0 %v2772
    %3861 = vmatpush1.bf16.msra.mxu0 %v2771
    %3862 = vmatprep.subr.bf16.mxu0 %v2774
    %3863 = vmatpush1.bf16.msra.mxu0 %v2773
    %3864 = vmatprep.subr.bf16.mxu0 %v2776
    %3865 = vmatpush1.bf16.msra.mxu0 %v2775
    %3866 = vmatprep.subr.bf16.mxu0 %v2778
    %3867 = vmatpush1.bf16.msra.mxu0 %v2777
    %3868 = vmatprep.subr.bf16.mxu0 %v2780
    %3869 = vmatpush1.bf16.msra.mxu0 %v2779
    %3870 = vmatprep.subr.bf16.mxu0 %v2782
    %3871 = vmatpush1.bf16.msra.mxu0 %v2781
    %3872 = vmatprep.subr.bf16.mxu0 %v2784
    %3873 = vmatpush1.bf16.msra.mxu0 %v2783
    %3874 = vmatprep.subr.bf16.mxu0 %v2786
    %3875 = vmatpush1.bf16.msra.mxu0 %v2785
    %3876 = vmatprep.subr.bf16.mxu0 %v2788
    %3877 = vmatpush1.bf16.msra.mxu0 %v2787
    %3878 = vmatprep.subr.bf16.mxu0 %v2790
    %3879 = vmatpush1.bf16.msra.mxu0 %v2789
    %3880 = vmatprep.subr.bf16.mxu0 %v2821
    %3881 = vmatpush1.bf16.msra.mxu0 %v2818
    %3882 = vmatprep.subr.bf16.mxu0 0
    %3883 = vmatpush1.bf16.msra.mxu0 0
    %3884 = vmatprep.subr.bf16.mxu0 0
    %3885 = vmatpush1.bf16.msra.mxu0 0
    %3886 = vmatprep.subr.bf16.mxu0 0
    %3887 = vmatpush1.bf16.msra.mxu0 0
    %3888 = vmatprep.mubr.bf16.mxu0 %v3813
    %3889 = vmatmul.mubr.bf16.gmra.mrb[0].mxu0 %v3810
    %v3890 = vpop.f32.mrb[0].mxu0
    %v3891 = vadd.f32 0.0, %v3890
    %v3892 = vpop.f32.mrb[0].mxu0
    %v3893 = vadd.f32 0.0, %v3892
    %v3894 = vpop.f32.mrb[0].mxu0
    %v3895 = vpop.f32.mrb[0].mxu0
    %3896 = vdwg.mxu0
    %3897 = vmatprep.subr.bf16.mxu0 %v2940
    %3898 = vmatpush1.bf16.msra.mxu0 %v2939
    %3899 = vmatprep.subr.bf16.mxu0 %v2942
    %3900 = vmatpush1.bf16.msra.mxu0 %v2941
    %3901 = vmatprep.subr.bf16.mxu0 %v2944
    %3902 = vmatpush1.bf16.msra.mxu0 %v2943
    %3903 = vmatprep.subr.bf16.mxu0 %v2946
    %3904 = vmatpush1.bf16.msra.mxu0 %v2945
    %3905 = vmatprep.subr.bf16.mxu0 %v2948
    %3906 = vmatpush1.bf16.msra.mxu0 %v2947
    %3907 = vmatprep.subr.bf16.mxu0 %v2950
    %3908 = vmatpush1.bf16.msra.mxu0 %v2949
    %3909 = vmatprep.subr.bf16.mxu0 %v2952
    %3910 = vmatpush1.bf16.msra.mxu0 %v2951
    %3911 = vmatprep.subr.bf16.mxu0 %v2954
    %3912 = vmatpush1.bf16.msra.mxu0 %v2953
    %3913 = vmatprep.subr.bf16.mxu0 %v2956
    %3914 = vmatpush1.bf16.msra.mxu0 %v2955
    %3915 = vmatprep.subr.bf16.mxu0 %v2958
    %3916 = vmatpush1.bf16.msra.mxu0 %v2957
    %3917 = vmatprep.subr.bf16.mxu0 %v2960
    %3918 = vmatpush1.bf16.msra.mxu0 %v2959
    %3919 = vmatprep.subr.bf16.mxu0 %v2962
    %3920 = vmatpush1.bf16.msra.mxu0 %v2961
    %3921 = vmatprep.subr.bf16.mxu0 %v2993
    %3922 = vmatpush1.bf16.msra.mxu0 %v2990
    %3923 = vmatprep.subr.bf16.mxu0 0
    %3924 = vmatpush1.bf16.msra.mxu0 0
    %3925 = vmatprep.subr.bf16.mxu0 0
    %3926 = vmatpush1.bf16.msra.mxu0 0
    %3927 = vmatprep.subr.bf16.mxu0 0
    %3928 = vmatpush1.bf16.msra.mxu0 0
    %3929 = vmatprep.mubr.bf16.mxu0 %v3813
    %3930 = vmatmul.mubr.bf16.gmra.mrb[0].mxu0 %v3810
    %v3931 = vpop.f32.mrb[0].mxu0
    %v3932 = vadd.f32 %v2510, %v3931
    %v3933 = vpop.f32.mrb[0].mxu0
    %v3934 = vadd.f32 %v2514, %v3933
    %v3935 = vpop.f32.mrb[0].mxu0
    %v3936 = vpop.f32.mrb[0].mxu0
    %3937 = vdwg.mxu0
    %s3938 = scalar_lea.vmem [#allocation2], 80
    %v3939 = vld [vmem:[%s3938] sm:$0xff]
    %v3940 = vld [vmem:[%s3938 + $0x8] sm:$0xff]
    %v3941 = vadd.f32 %v3939, %v3850
    %v3942 = vadd.f32 %v3940, %v3852
    %v3943 = vxor.u32 %v3941, 2147483648
    %v3944 = vxor.u32 %v3942, 2147483648
    %v3945 = vmul.f32 %v3943, 1.442695
    %v3946 = vpow.pop %v3945
    %v3947 = vmul.f32 %v3944, 1.442695
    %v3948 = vpow.pop %v3947
    %v3949 = vadd.f32 %v3946, 1.0
    %v3950 = vadd.f32 %v3948, 1.0
    %v3951 = vrcp.pop %v3949
    %v3952 = vmul.f32 1.0, %v3951
    %v3953 = vrcp.pop %v3950
    %v3954 = vmul.f32 1.0, %v3953
    %s3955 = scalar_lea.vmem [#allocation3], 80
    %v3956 = vld [vmem:[%s3955] sm:$0xff]
    %v3957 = vld [vmem:[%s3955 + $0x8] sm:$0xff]
    %v3958 = vadd.f32 %v3956, %v3891
    %v3959 = vadd.f32 %v3957, %v3893
    %v3960 = vxor.u32 %v3958, 2147483648
    %v3961 = vxor.u32 %v3959, 2147483648
    %v3962 = vmul.f32 %v3960, 1.442695
    %v3963 = vpow.pop %v3962
    %v3964 = vmul.f32 %v3961, 1.442695
    %v3965 = vpow.pop %v3964
    %v3966 = vadd.f32 %v3963, 1.0
    %v3967 = vadd.f32 %v3965, 1.0
    %v3968 = vrcp.pop %v3966
    %v3969 = vmul.f32 1.0, %v3968
    %v3970 = vrcp.pop %v3967
    %v3971 = vmul.f32 1.0, %v3970
    %s3972 = scalar_lea.vmem [#allocation4], 80
    %v3973 = vld [vmem:[%s3972] sm:$0xff]
    %v3974 = vld [vmem:[%s3972 + $0x8] sm:$0xff]
    %v3975 = vmul.f32 %v3952, %v3932
    %v3976 = vmul.f32 %v3954, %v3934
    %v3977 = vadd.f32 %v3973, %v3975
    %v3978 = vadd.f32 %v3974, %v3976
    %v3979 = vtanh.pop %v3977
    %v3980 = vtanh.pop %v3978
    %v3981 = vsub.f32 1.0, %v3969
    %v3982 = vsub.f32 1.0, %v3971
    %v3983 = vmul.f32 %v3981, %v3979
    %v3984 = vmul.f32 %v3982, %v3980
    %v3985 = vmul.f32 %v3969, %v3806
    %v3986 = vmul.f32 %v3971, %v3807
    %v3987 = vadd.f32 %v3983, %v3985
    %v3988 = vadd.f32 %v3984, %v3986
    %v3989 = vadd.f32 %v3808, %v3987
    %v3990 = vadd.f32 %v3809, %v3988
    %v3991 = vpack.c.bf16 %v3987, %v3987
    %v3992 = vpack.c.bf16 %v3988, %v3988
    %v3994 = vsel %vm1414, %v3992, 0
    %3996 = vmatprep.subr.bf16.mxu0 %v2593
    %3997 = vmatpush1.bf16.msra.mxu0 %v2592
    %3998 = vmatprep.subr.bf16.mxu0 %v2595
    %3999 = vmatpush1.bf16.msra.mxu0 %v2594
    %4000 = vmatprep.subr.bf16.mxu0 %v2597
    %4001 = vmatpush1.bf16.msra.mxu0 %v2596
    %4002 = vmatprep.subr.bf16.mxu0 %v2599
    %4003 = vmatpush1.bf16.msra.mxu0 %v2598
    %4004 = vmatprep.subr.bf16.mxu0 %v2601
    %4005 = vmatpush1.bf16.msra.mxu0 %v2600
    %4006 = vmatprep.subr.bf16.mxu0 %v2603
    %4007 = vmatpush1.bf16.msra.mxu0 %v2602
    %4008 = vmatprep.subr.bf16.mxu0 %v2605
    %4009 = vmatpush1.bf16.msra.mxu0 %v2604
    %4010 = vmatprep.subr.bf16.mxu0 %v2607
    %4011 = vmatpush1.bf16.msra.mxu0 %v2606
    %4012 = vmatprep.subr.bf16.mxu0 %v2609
    %4013 = vmatpush1.bf16.msra.mxu0 %v2608
    %4014 = vmatprep.subr.bf16.mxu0 %v2611
    %4015 = vmatpush1.bf16.msra.mxu0 %v2610
    %4016 = vmatprep.subr.bf16.mxu0 %v2613
    %4017 = vmatpush1.bf16.msra.mxu0 %v2612
    %4018 = vmatprep.subr.bf16.mxu0 %v2615
    %4019 = vmatpush1.bf16.msra.mxu0 %v2614
    %4020 = vmatprep.subr.bf16.mxu0 %v2649
    %4021 = vmatpush1.bf16.msra.mxu0 %v2646
    %4022 = vmatprep.subr.bf16.mxu0 0
    %4023 = vmatpush1.bf16.msra.mxu0 0
    %4024 = vmatprep.subr.bf16.mxu0 0
    %4025 = vmatpush1.bf16.msra.mxu0 0
    %4026 = vmatprep.subr.bf16.mxu0 0
    %4027 = vmatpush1.bf16.msra.mxu0 0
    %4028 = vmatprep.mubr.bf16.mxu0 %v3994
    %4029 = vmatmul.mubr.bf16.gmra.mrb[0].mxu0 %v3991
    %v4030 = vpop.f32.mrb[0].mxu0
    %v4031 = vadd.f32 0.0, %v4030
    %v4032 = vpop.f32.mrb[0].mxu0
    %v4033 = vadd.f32 0.0, %v4032
    %v4034 = vpop.f32.mrb[0].mxu0
    %v4035 = vpop.f32.mrb[0].mxu0
    %4036 = vdwg.mxu0
    %4037 = vmatprep.subr.bf16.mxu0 %v2768
    %4038 = vmatpush1.bf16.msra.mxu0 %v2767
    %4039 = vmatprep.subr.bf16.mxu0 %v2770
    %4040 = vmatpush1.bf16.msra.mxu0 %v2769
    %4041 = vmatprep.subr.bf16.mxu0 %v2772
    %4042 = vmatpush1.bf16.msra.mxu0 %v2771
    %4043 = vmatprep.subr.bf16.mxu0 %v2774
    %4044 = vmatpush1.bf16.msra.mxu0 %v2773
    %4045 = vmatprep.subr.bf16.mxu0 %v2776
    %4046 = vmatpush1.bf16.msra.mxu0 %v2775
    %4047 = vmatprep.subr.bf16.mxu0 %v2778
    %4048 = vmatpush1.bf16.msra.mxu0 %v2777
    %4049 = vmatprep.subr.bf16.mxu0 %v2780
    %4050 = vmatpush1.bf16.msra.mxu0 %v2779
    %4051 = vmatprep.subr.bf16.mxu0 %v2782
    %4052 = vmatpush1.bf16.msra.mxu0 %v2781
    %4053 = vmatprep.subr.bf16.mxu0 %v2784
    %4054 = vmatpush1.bf16.msra.mxu0 %v2783
    %4055 = vmatprep.subr.bf16.mxu0 %v2786
    %4056 = vmatpush1.bf16.msra.mxu0 %v2785
    %4057 = vmatprep.subr.bf16.mxu0 %v2788
    %4058 = vmatpush1.bf16.msra.mxu0 %v2787
    %4059 = vmatprep.subr.bf16.mxu0 %v2790
    %4060 = vmatpush1.bf16.msra.mxu0 %v2789
    %4061 = vmatprep.subr.bf16.mxu0 %v2821
    %4062 = vmatpush1.bf16.msra.mxu0 %v2818
    %4063 = vmatprep.subr.bf16.mxu0 0
    %4064 = vmatpush1.bf16.msra.mxu0 0
    %4065 = vmatprep.subr.bf16.mxu0 0
    %4066 = vmatpush1.bf16.msra.mxu0 0
    %4067 = vmatprep.subr.bf16.mxu0 0
    %4068 = vmatpush1.bf16.msra.mxu0 0
    %4069 = vmatprep.mubr.bf16.mxu0 %v3994
    %4070 = vmatmul.mubr.bf16.gmra.mrb[0].mxu0 %v3991
    %v4071 = vpop.f32.mrb[0].mxu0
    %v4072 = vadd.f32 0.0, %v4071
    %v4073 = vpop.f32.mrb[0].mxu0
    %v4074 = vadd.f32 0.0, %v4073
    %v4075 = vpop.f32.mrb[0].mxu0
    %v4076 = vpop.f32.mrb[0].mxu0
    %4077 = vdwg.mxu0
    %4078 = vmatprep.subr.bf16.mxu0 %v2940
    %4079 = vmatpush1.bf16.msra.mxu0 %v2939
    %4080 = vmatprep.subr.bf16.mxu0 %v2942
    %4081 = vmatpush1.bf16.msra.mxu0 %v2941
    %4082 = vmatprep.subr.bf16.mxu0 %v2944
    %4083 = vmatpush1.bf16.msra.mxu0 %v2943
    %4084 = vmatprep.subr.bf16.mxu0 %v2946
    %4085 = vmatpush1.bf16.msra.mxu0 %v2945
    %4086 = vmatprep.subr.bf16.mxu0 %v2948
    %4087 = vmatpush1.bf16.msra.mxu0 %v2947
    %4088 = vmatprep.subr.bf16.mxu0 %v2950
    %4089 = vmatpush1.bf16.msra.mxu0 %v2949
    %4090 = vmatprep.subr.bf16.mxu0 %v2952
    %4091 = vmatpush1.bf16.msra.mxu0 %v2951
    %4092 = vmatprep.subr.bf16.mxu0 %v2954
    %4093 = vmatpush1.bf16.msra.mxu0 %v2953
    %4094 = vmatprep.subr.bf16.mxu0 %v2956
    %4095 = vmatpush1.bf16.msra.mxu0 %v2955
    %4096 = vmatprep.subr.bf16.mxu0 %v2958
    %4097 = vmatpush1.bf16.msra.mxu0 %v2957
    %4098 = vmatprep.subr.bf16.mxu0 %v2960
    %4099 = vmatpush1.bf16.msra.mxu0 %v2959
    %4100 = vmatprep.subr.bf16.mxu0 %v2962
    %4101 = vmatpush1.bf16.msra.mxu0 %v2961
    %4102 = vmatprep.subr.bf16.mxu0 %v2993
    %4103 = vmatpush1.bf16.msra.mxu0 %v2990
    %4104 = vmatprep.subr.bf16.mxu0 0
    %4105 = vmatpush1.bf16.msra.mxu0 0
    %4106 = vmatprep.subr.bf16.mxu0 0
    %4107 = vmatpush1.bf16.msra.mxu0 0
    %4108 = vmatprep.subr.bf16.mxu0 0
    %4109 = vmatpush1.bf16.msra.mxu0 0
    %4110 = vmatprep.mubr.bf16.mxu0 %v3994
    %4111 = vmatmul.mubr.bf16.gmra.mrb[0].mxu0 %v3991
    %v4112 = vpop.f32.mrb[0].mxu0
    %v4113 = vadd.f32 %v2510, %v4112
    %v4114 = vpop.f32.mrb[0].mxu0
    %v4115 = vadd.f32 %v2514, %v4114
    %v4116 = vpop.f32.mrb[0].mxu0
    %v4117 = vpop.f32.mrb[0].mxu0
    %4118 = vdwg.mxu0
    %s4119 = scalar_lea.vmem [#allocation2], 96
    %v4120 = vld [vmem:[%s4119] sm:$0xff]
    %v4121 = vld [vmem:[%s4119 + $0x8] sm:$0xff]
    %v4122 = vadd.f32 %v4120, %v4031
    %v4123 = vadd.f32 %v4121, %v4033
    %v4124 = vxor.u32 %v4122, 2147483648
    %v4125 = vxor.u32 %v4123, 2147483648
    %v4126 = vmul.f32 %v4124, 1.442695
    %v4127 = vpow.pop %v4126
    %v4128 = vmul.f32 %v4125, 1.442695
    %v4129 = vpow.pop %v4128
    %v4130 = vadd.f32 %v4127, 1.0
    %v4131 = vadd.f32 %v4129, 1.0
    %v4132 = vrcp.pop %v4130
    %v4133 = vmul.f32 1.0, %v4132
    %v4134 = vrcp.pop %v4131
    %v4135 = vmul.f32 1.0, %v4134
    %s4136 = scalar_lea.vmem [#allocation3], 96
    %v4137 = vld [vmem:[%s4136] sm:$0xff]
    %v4138 = vld [vmem:[%s4136 + $0x8] sm:$0xff]
    %v4139 = vadd.f32 %v4137, %v4072
    %v4140 = vadd.f32 %v4138, %v4074
    %v4141 = vxor.u32 %v4139, 2147483648
    %v4142 = vxor.u32 %v4140, 2147483648
    %v4143 = vmul.f32 %v4141, 1.442695
    %v4144 = vpow.pop %v4143
    %v4145 = vmul.f32 %v4142, 1.442695
    %v4146 = vpow.pop %v4145
    %v4147 = vadd.f32 %v4144, 1.0
    %v4148 = vadd.f32 %v4146, 1.0
    %v4149 = vrcp.pop %v4147
    %v4150 = vmul.f32 1.0, %v4149
    %v4151 = vrcp.pop %v4148
    %v4152 = vmul.f32 1.0, %v4151
    %s4153 = scalar_lea.vmem [#allocation4], 96
    %v4154 = vld [vmem:[%s4153] sm:$0xff]
    %v4155 = vld [vmem:[%s4153 + $0x8] sm:$0xff]
    %v4156 = vmul.f32 %v4133, %v4113
    %v4157 = vmul.f32 %v4135, %v4115
    %v4158 = vadd.f32 %v4154, %v4156
    %v4159 = vadd.f32 %v4155, %v4157
    %v4160 = vtanh.pop %v4158
    %v4161 = vtanh.pop %v4159
    %v4162 = vsub.f32 1.0, %v4150
    %v4163 = vsub.f32 1.0, %v4152
    %v4164 = vmul.f32 %v4162, %v4160
    %v4165 = vmul.f32 %v4163, %v4161
    %v4166 = vmul.f32 %v4150, %v3987
    %v4167 = vmul.f32 %v4152, %v3988
    %v4168 = vadd.f32 %v4164, %v4166
    %v4169 = vadd.f32 %v4165, %v4167
    %v4170 = vadd.f32 %v3989, %v4168
    %v4171 = vadd.f32 %v3990, %v4169
    %v4172 = vpack.c.bf16 %v4168, %v4168
    %v4173 = vpack.c.bf16 %v4169, %v4169
    %v4175 = vsel %vm1414, %v4173, 0
    %4177 = vmatprep.subr.bf16.mxu0 %v2593
    %4178 = vmatpush1.bf16.msra.mxu0 %v2592
    %4179 = vmatprep.subr.bf16.mxu0 %v2595
    %4180 = vmatpush1.bf16.msra.mxu0 %v2594
    %4181 = vmatprep.subr.bf16.mxu0 %v2597
    %4182 = vmatpush1.bf16.msra.mxu0 %v2596
    %4183 = vmatprep.subr.bf16.mxu0 %v2599
    %4184 = vmatpush1.bf16.msra.mxu0 %v2598
    %4185 = vmatprep.subr.bf16.mxu0 %v2601
    %4186 = vmatpush1.bf16.msra.mxu0 %v2600
    %4187 = vmatprep.subr.bf16.mxu0 %v2603
    %4188 = vmatpush1.bf16.msra.mxu0 %v2602
    %4189 = vmatprep.subr.bf16.mxu0 %v2605
    %4190 = vmatpush1.bf16.msra.mxu0 %v2604
    %4191 = vmatprep.subr.bf16.mxu0 %v2607
    %4192 = vmatpush1.bf16.msra.mxu0 %v2606
    %4193 = vmatprep.subr.bf16.mxu0 %v2609
    %4194 = vmatpush1.bf16.msra.mxu0 %v2608
    %4195 = vmatprep.subr.bf16.mxu0 %v2611
    %4196 = vmatpush1.bf16.msra.mxu0 %v2610
    %4197 = vmatprep.subr.bf16.mxu0 %v2613
    %4198 = vmatpush1.bf16.msra.mxu0 %v2612
    %4199 = vmatprep.subr.bf16.mxu0 %v2615
    %4200 = vmatpush1.bf16.msra.mxu0 %v2614
    %4201 = vmatprep.subr.bf16.mxu0 %v2649
    %4202 = vmatpush1.bf16.msra.mxu0 %v2646
    %4203 = vmatprep.subr.bf16.mxu0 0
    %4204 = vmatpush1.bf16.msra.mxu0 0
    %4205 = vmatprep.subr.bf16.mxu0 0
    %4206 = vmatpush1.bf16.msra.mxu0 0
    %4207 = vmatprep.subr.bf16.mxu0 0
    %4208 = vmatpush1.bf16.msra.mxu0 0
    %4209 = vmatprep.mubr.bf16.mxu0 %v4175
    %4210 = vmatmul.mubr.bf16.gmra.mrb[0].mxu0 %v4172
    %v4211 = vpop.f32.mrb[0].mxu0
    %v4212 = vadd.f32 0.0, %v4211
    %v4213 = vpop.f32.mrb[0].mxu0
    %v4214 = vadd.f32 0.0, %v4213
    %v4215 = vpop.f32.mrb[0].mxu0
    %v4216 = vpop.f32.mrb[0].mxu0
    %4217 = vdwg.mxu0
    %4218 = vmatprep.subr.bf16.mxu0 %v2768
    %4219 = vmatpush1.bf16.msra.mxu0 %v2767
    %4220 = vmatprep.subr.bf16.mxu0 %v2770
    %4221 = vmatpush1.bf16.msra.mxu0 %v2769
    %4222 = vmatprep.subr.bf16.mxu0 %v2772
    %4223 = vmatpush1.bf16.msra.mxu0 %v2771
    %4224 = vmatprep.subr.bf16.mxu0 %v2774
    %4225 = vmatpush1.bf16.msra.mxu0 %v2773
    %4226 = vmatprep.subr.bf16.mxu0 %v2776
    %4227 = vmatpush1.bf16.msra.mxu0 %v2775
    %4228 = vmatprep.subr.bf16.mxu0 %v2778
    %4229 = vmatpush1.bf16.msra.mxu0 %v2777
    %4230 = vmatprep.subr.bf16.mxu0 %v2780
    %4231 = vmatpush1.bf16.msra.mxu0 %v2779
    %4232 = vmatprep.subr.bf16.mxu0 %v2782
    %4233 = vmatpush1.bf16.msra.mxu0 %v2781
    %4234 = vmatprep.subr.bf16.mxu0 %v2784
    %4235 = vmatpush1.bf16.msra.mxu0 %v2783
    %4236 = vmatprep.subr.bf16.mxu0 %v2786
    %4237 = vmatpush1.bf16.msra.mxu0 %v2785
    %4238 = vmatprep.subr.bf16.mxu0 %v2788
    %4239 = vmatpush1.bf16.msra.mxu0 %v2787
    %4240 = vmatprep.subr.bf16.mxu0 %v2790
    %4241 = vmatpush1.bf16.msra.mxu0 %v2789
    %4242 = vmatprep.subr.bf16.mxu0 %v2821
    %4243 = vmatpush1.bf16.msra.mxu0 %v2818
    %4244 = vmatprep.subr.bf16.mxu0 0
    %4245 = vmatpush1.bf16.msra.mxu0 0
    %4246 = vmatprep.subr.bf16.mxu0 0
    %4247 = vmatpush1.bf16.msra.mxu0 0
    %4248 = vmatprep.subr.bf16.mxu0 0
    %4249 = vmatpush1.bf16.msra.mxu0 0
    %4250 = vmatprep.mubr.bf16.mxu0 %v4175
    %4251 = vmatmul.mubr.bf16.gmra.mrb[0].mxu0 %v4172
    %v4252 = vpop.f32.mrb[0].mxu0
    %v4253 = vadd.f32 0.0, %v4252
    %v4254 = vpop.f32.mrb[0].mxu0
    %v4255 = vadd.f32 0.0, %v4254
    %v4256 = vpop.f32.mrb[0].mxu0
    %v4257 = vpop.f32.mrb[0].mxu0
    %4258 = vdwg.mxu0
    %4259 = vmatprep.subr.bf16.mxu0 %v2940
    %4260 = vmatpush1.bf16.msra.mxu0 %v2939
    %4261 = vmatprep.subr.bf16.mxu0 %v2942
    %4262 = vmatpush1.bf16.msra.mxu0 %v2941
    %4263 = vmatprep.subr.bf16.mxu0 %v2944
    %4264 = vmatpush1.bf16.msra.mxu0 %v2943
    %4265 = vmatprep.subr.bf16.mxu0 %v2946
    %4266 = vmatpush1.bf16.msra.mxu0 %v2945
    %4267 = vmatprep.subr.bf16.mxu0 %v2948
    %4268 = vmatpush1.bf16.msra.mxu0 %v2947
    %4269 = vmatprep.subr.bf16.mxu0 %v2950
    %4270 = vmatpush1.bf16.msra.mxu0 %v2949
    %4271 = vmatprep.subr.bf16.mxu0 %v2952
    %4272 = vmatpush1.bf16.msra.mxu0 %v2951
    %4273 = vmatprep.subr.bf16.mxu0 %v2954
    %4274 = vmatpush1.bf16.msra.mxu0 %v2953
    %4275 = vmatprep.subr.bf16.mxu0 %v2956
    %4276 = vmatpush1.bf16.msra.mxu0 %v2955
    %4277 = vmatprep.subr.bf16.mxu0 %v2958
    %4278 = vmatpush1.bf16.msra.mxu0 %v2957
    %4279 = vmatprep.subr.bf16.mxu0 %v2960
    %4280 = vmatpush1.bf16.msra.mxu0 %v2959
    %4281 = vmatprep.subr.bf16.mxu0 %v2962
    %4282 = vmatpush1.bf16.msra.mxu0 %v2961
    %4283 = vmatprep.subr.bf16.mxu0 %v2993
    %4284 = vmatpush1.bf16.msra.mxu0 %v2990
    %4285 = vmatprep.subr.bf16.mxu0 0
    %4286 = vmatpush1.bf16.msra.mxu0 0
    %4287 = vmatprep.subr.bf16.mxu0 0
    %4288 = vmatpush1.bf16.msra.mxu0 0
    %4289 = vmatprep.subr.bf16.mxu0 0
    %4290 = vmatpush1.bf16.msra.mxu0 0
    %4291 = vmatprep.mubr.bf16.mxu0 %v4175
    %4292 = vmatmul.mubr.bf16.gmra.mrb[0].mxu0 %v4172
    %v4293 = vpop.f32.mrb[0].mxu0
    %v4294 = vadd.f32 %v2510, %v4293
    %v4295 = vpop.f32.mrb[0].mxu0
    %v4296 = vadd.f32 %v2514, %v4295
    %v4297 = vpop.f32.mrb[0].mxu0
    %v4298 = vpop.f32.mrb[0].mxu0
    %4299 = vdwg.mxu0
    %s4300 = scalar_lea.vmem [#allocation2], 112
    %v4301 = vld [vmem:[%s4300] sm:$0xff]
    %v4302 = vld [vmem:[%s4300 + $0x8] sm:$0xff]
    %v4303 = vadd.f32 %v4301, %v4212
    %v4304 = vadd.f32 %v4302, %v4214
    %v4305 = vxor.u32 %v4303, 2147483648
    %v4306 = vxor.u32 %v4304, 2147483648
    %v4307 = vmul.f32 %v4305, 1.442695
    %v4308 = vpow.pop %v4307
    %v4309 = vmul.f32 %v4306, 1.442695
    %v4310 = vpow.pop %v4309
    %v4311 = vadd.f32 %v4308, 1.0
    %v4312 = vadd.f32 %v4310, 1.0
    %v4313 = vrcp.pop %v4311
    %v4314 = vmul.f32 1.0, %v4313
    %v4315 = vrcp.pop %v4312
    %v4316 = vmul.f32 1.0, %v4315
    %s4317 = scalar_lea.vmem [#allocation3], 112
    %v4318 = vld [vmem:[%s4317] sm:$0xff]
    %v4319 = vld [vmem:[%s4317 + $0x8] sm:$0xff]
    %v4320 = vadd.f32 %v4318, %v4253
    %v4321 = vadd.f32 %v4319, %v4255
    %v4322 = vxor.u32 %v4320, 2147483648
    %v4323 = vxor.u32 %v4321, 2147483648
    %v4324 = vmul.f32 %v4322, 1.442695
    %v4325 = vpow.pop %v4324
    %v4326 = vmul.f32 %v4323, 1.442695
    %v4327 = vpow.pop %v4326
    %v4328 = vadd.f32 %v4325, 1.0
    %v4329 = vadd.f32 %v4327, 1.0
    %v4330 = vrcp.pop %v4328
    %v4331 = vmul.f32 1.0, %v4330
    %v4332 = vrcp.pop %v4329
    %v4333 = vmul.f32 1.0, %v4332
    %s4334 = scalar_lea.vmem [#allocation4], 112
    %v4335 = vld [vmem:[%s4334] sm:$0xff]
    %v4336 = vld [vmem:[%s4334 + $0x8] sm:$0xff]
    %v4337 = vmul.f32 %v4314, %v4294
    %v4338 = vmul.f32 %v4316, %v4296
    %v4339 = vadd.f32 %v4335, %v4337
    %v4340 = vadd.f32 %v4336, %v4338
    %v4341 = vtanh.pop %v4339
    %v4342 = vtanh.pop %v4340
    %v4343 = vsub.f32 1.0, %v4331
    %v4344 = vsub.f32 1.0, %v4333
    %v4345 = vmul.f32 %v4343, %v4341
    %v4346 = vmul.f32 %v4344, %v4342
    %v4347 = vmul.f32 %v4331, %v4168
    %v4348 = vmul.f32 %v4333, %v4169
    %v4349 = vadd.f32 %v4345, %v4347
    %v4350 = vadd.f32 %v4346, %v4348
    %v4351 = vadd.f32 %v4170, %v4349
    %v4352 = vadd.f32 %v4171, %v4350
    %v4353 = vpack.c.bf16 %v4349, %v4349
    %v4354 = vpack.c.bf16 %v4350, %v4350
    %v4356 = vsel %vm1414, %v4354, 0
    %4358 = vmatprep.subr.bf16.mxu0 %v2593
    %4359 = vmatpush1.bf16.msra.mxu0 %v2592
    %4360 = vmatprep.subr.bf16.mxu0 %v2595
    %4361 = vmatpush1.bf16.msra.mxu0 %v2594
    %4362 = vmatprep.subr.bf16.mxu0 %v2597
    %4363 = vmatpush1.bf16.msra.mxu0 %v2596
    %4364 = vmatprep.subr.bf16.mxu0 %v2599
    %4365 = vmatpush1.bf16.msra.mxu0 %v2598
    %4366 = vmatprep.subr.bf16.mxu0 %v2601
    %4367 = vmatpush1.bf16.msra.mxu0 %v2600
    %4368 = vmatprep.subr.bf16.mxu0 %v2603
    %4369 = vmatpush1.bf16.msra.mxu0 %v2602
    %4370 = vmatprep.subr.bf16.mxu0 %v2605
    %4371 = vmatpush1.bf16.msra.mxu0 %v2604
    %4372 = vmatprep.subr.bf16.mxu0 %v2607
    %4373 = vmatpush1.bf16.msra.mxu0 %v2606
    %4374 = vmatprep.subr.bf16.mxu0 %v2609
    %4375 = vmatpush1.bf16.msra.mxu0 %v2608
    %4376 = vmatprep.subr.bf16.mxu0 %v2611
    %4377 = vmatpush1.bf16.msra.mxu0 %v2610
    %4378 = vmatprep.subr.bf16.mxu0 %v2613
    %4379 = vmatpush1.bf16.msra.mxu0 %v2612
    %4380 = vmatprep.subr.bf16.mxu0 %v2615
    %4381 = vmatpush1.bf16.msra.mxu0 %v2614
    %4382 = vmatprep.subr.bf16.mxu0 %v2649
    %4383 = vmatpush1.bf16.msra.mxu0 %v2646
    %4384 = vmatprep.subr.bf16.mxu0 0
    %4385 = vmatpush1.bf16.msra.mxu0 0
    %4386 = vmatprep.subr.bf16.mxu0 0
    %4387 = vmatpush1.bf16.msra.mxu0 0
    %4388 = vmatprep.subr.bf16.mxu0 0
    %4389 = vmatpush1.bf16.msra.mxu0 0
    %4390 = vmatprep.mubr.bf16.mxu0 %v4356
    %4391 = vmatmul.mubr.bf16.gmra.mrb[0].mxu0 %v4353
    %v4392 = vpop.f32.mrb[0].mxu0
    %v4393 = vadd.f32 0.0, %v4392
    %v4394 = vpop.f32.mrb[0].mxu0
    %v4395 = vadd.f32 0.0, %v4394
    %v4396 = vpop.f32.mrb[0].mxu0
    %v4397 = vpop.f32.mrb[0].mxu0
    %4398 = vdwg.mxu0
    %4399 = vmatprep.subr.bf16.mxu0 %v2768
    %4400 = vmatpush1.bf16.msra.mxu0 %v2767
    %4401 = vmatprep.subr.bf16.mxu0 %v2770
    %4402 = vmatpush1.bf16.msra.mxu0 %v2769
    %4403 = vmatprep.subr.bf16.mxu0 %v2772
    %4404 = vmatpush1.bf16.msra.mxu0 %v2771
    %4405 = vmatprep.subr.bf16.mxu0 %v2774
    %4406 = vmatpush1.bf16.msra.mxu0 %v2773
    %4407 = vmatprep.subr.bf16.mxu0 %v2776
    %4408 = vmatpush1.bf16.msra.mxu0 %v2775
    %4409 = vmatprep.subr.bf16.mxu0 %v2778
    %4410 = vmatpush1.bf16.msra.mxu0 %v2777
    %4411 = vmatprep.subr.bf16.mxu0 %v2780
    %4412 = vmatpush1.bf16.msra.mxu0 %v2779
    %4413 = vmatprep.subr.bf16.mxu0 %v2782
    %4414 = vmatpush1.bf16.msra.mxu0 %v2781
    %4415 = vmatprep.subr.bf16.mxu0 %v2784
    %4416 = vmatpush1.bf16.msra.mxu0 %v2783
    %4417 = vmatprep.subr.bf16.mxu0 %v2786
    %4418 = vmatpush1.bf16.msra.mxu0 %v2785
    %4419 = vmatprep.subr.bf16.mxu0 %v2788
    %4420 = vmatpush1.bf16.msra.mxu0 %v2787
    %4421 = vmatprep.subr.bf16.mxu0 %v2790
    %4422 = vmatpush1.bf16.msra.mxu0 %v2789
    %4423 = vmatprep.subr.bf16.mxu0 %v2821
    %4424 = vmatpush1.bf16.msra.mxu0 %v2818
    %4425 = vmatprep.subr.bf16.mxu0 0
    %4426 = vmatpush1.bf16.msra.mxu0 0
    %4427 = vmatprep.subr.bf16.mxu0 0
    %4428 = vmatpush1.bf16.msra.mxu0 0
    %4429 = vmatprep.subr.bf16.mxu0 0
    %4430 = vmatpush1.bf16.msra.mxu0 0
    %4431 = vmatprep.mubr.bf16.mxu0 %v4356
    %4432 = vmatmul.mubr.bf16.gmra.mrb[0].mxu0 %v4353
    %v4433 = vpop.f32.mrb[0].mxu0
    %v4434 = vadd.f32 0.0, %v4433
    %v4435 = vpop.f32.mrb[0].mxu0
    %v4436 = vadd.f32 0.0, %v4435
    %v4437 = vpop.f32.mrb[0].mxu0
    %v4438 = vpop.f32.mrb[0].mxu0
    %4439 = vdwg.mxu0
    %4440 = vmatprep.subr.bf16.mxu0 %v2940
    %4441 = vmatpush1.bf16.msra.mxu0 %v2939
    %4442 = vmatprep.subr.bf16.mxu0 %v2942
    %4443 = vmatpush1.bf16.msra.mxu0 %v2941
    %4444 = vmatprep.subr.bf16.mxu0 %v2944
    %4445 = vmatpush1.bf16.msra.mxu0 %v2943
    %4446 = vmatprep.subr.bf16.mxu0 %v2946
    %4447 = vmatpush1.bf16.msra.mxu0 %v2945
    %4448 = vmatprep.subr.bf16.mxu0 %v2948
    %4449 = vmatpush1.bf16.msra.mxu0 %v2947
    %4450 = vmatprep.subr.bf16.mxu0 %v2950
    %4451 = vmatpush1.bf16.msra.mxu0 %v2949
    %4452 = vmatprep.subr.bf16.mxu0 %v2952
    %4453 = vmatpush1.bf16.msra.mxu0 %v2951
    %4454 = vmatprep.subr.bf16.mxu0 %v2954
    %4455 = vmatpush1.bf16.msra.mxu0 %v2953
    %4456 = vmatprep.subr.bf16.mxu0 %v2956
    %4457 = vmatpush1.bf16.msra.mxu0 %v2955
    %4458 = vmatprep.subr.bf16.mxu0 %v2958
    %4459 = vmatpush1.bf16.msra.mxu0 %v2957
    %4460 = vmatprep.subr.bf16.mxu0 %v2960
    %4461 = vmatpush1.bf16.msra.mxu0 %v2959
    %4462 = vmatprep.subr.bf16.mxu0 %v2962
    %4463 = vmatpush1.bf16.msra.mxu0 %v2961
    %4464 = vmatprep.subr.bf16.mxu0 %v2993
    %4465 = vmatpush1.bf16.msra.mxu0 %v2990
    %4466 = vmatprep.subr.bf16.mxu0 0
    %4467 = vmatpush1.bf16.msra.mxu0 0
    %4468 = vmatprep.subr.bf16.mxu0 0
    %4469 = vmatpush1.bf16.msra.mxu0 0
    %4470 = vmatprep.subr.bf16.mxu0 0
    %4471 = vmatpush1.bf16.msra.mxu0 0
    %4472 = vmatprep.mubr.bf16.mxu0 %v4356
    %4473 = vmatmul.mubr.bf16.gmra.mrb[0].mxu0 %v4353
    %v4474 = vpop.f32.mrb[0].mxu0
    %v4475 = vadd.f32 %v2510, %v4474
    %v4476 = vpop.f32.mrb[0].mxu0
    %v4477 = vadd.f32 %v2514, %v4476
    %v4478 = vpop.f32.mrb[0].mxu0
    %v4479 = vpop.f32.mrb[0].mxu0
    %4480 = vdwg.mxu0
    %s4481 = scalar_lea.vmem [#allocation2], 128
    %v4482 = vld [vmem:[%s4481] sm:$0xff]
    %v4483 = vld [vmem:[%s4481 + $0x8] sm:$0xff]
    %v4484 = vadd.f32 %v4482, %v4393
    %v4485 = vadd.f32 %v4483, %v4395
    %v4486 = vxor.u32 %v4484, 2147483648
    %v4487 = vxor.u32 %v4485, 2147483648
    %v4488 = vmul.f32 %v4486, 1.442695
    %v4489 = vpow.pop %v4488
    %v4490 = vmul.f32 %v4487, 1.442695
    %v4491 = vpow.pop %v4490
    %v4492 = vadd.f32 %v4489, 1.0
    %v4493 = vadd.f32 %v4491, 1.0
    %v4494 = vrcp.pop %v4492
    %v4495 = vmul.f32 1.0, %v4494
    %v4496 = vrcp.pop %v4493
    %v4497 = vmul.f32 1.0, %v4496
    %s4498 = scalar_lea.vmem [#allocation3], 128
    %v4499 = vld [vmem:[%s4498] sm:$0xff]
    %v4500 = vld [vmem:[%s4498 + $0x8] sm:$0xff]
    %v4501 = vadd.f32 %v4499, %v4434
    %v4502 = vadd.f32 %v4500, %v4436
    %v4503 = vxor.u32 %v4501, 2147483648
    %v4504 = vxor.u32 %v4502, 2147483648
    %v4505 = vmul.f32 %v4503, 1.442695
    %v4506 = vpow.pop %v4505
    %v4507 = vmul.f32 %v4504, 1.442695
    %v4508 = vpow.pop %v4507
    %v4509 = vadd.f32 %v4506, 1.0
    %v4510 = vadd.f32 %v4508, 1.0
    %v4511 = vrcp.pop %v4509
    %v4512 = vmul.f32 1.0, %v4511
    %v4513 = vrcp.pop %v4510
    %v4514 = vmul.f32 1.0, %v4513
    %s4515 = scalar_lea.vmem [#allocation4], 128
    %v4516 = vld [vmem:[%s4515] sm:$0xff]
    %v4517 = vld [vmem:[%s4515 + $0x8] sm:$0xff]
    %v4518 = vmul.f32 %v4495, %v4475
    %v4519 = vmul.f32 %v4497, %v4477
    %v4520 = vadd.f32 %v4516, %v4518
    %v4521 = vadd.f32 %v4517, %v4519
    %v4522 = vtanh.pop %v4520
    %v4523 = vtanh.pop %v4521
    %v4524 = vsub.f32 1.0, %v4512
    %v4525 = vsub.f32 1.0, %v4514
    %v4526 = vmul.f32 %v4524, %v4522
    %v4527 = vmul.f32 %v4525, %v4523
    %v4528 = vmul.f32 %v4512, %v4349
    %v4529 = vmul.f32 %v4514, %v4350
    %v4530 = vadd.f32 %v4526, %v4528
    %v4531 = vadd.f32 %v4527, %v4529
    %v4532 = vadd.f32 %v4351, %v4530
    %v4533 = vadd.f32 %v4352, %v4531
    %v4534 = vpack.c.bf16 %v4530, %v4530
    %v4535 = vpack.c.bf16 %v4531, %v4531
    %v4537 = vsel %vm1414, %v4535, 0
    %4539 = vmatprep.subr.bf16.mxu0 %v2593
    %4540 = vmatpush1.bf16.msra.mxu0 %v2592
    %4541 = vmatprep.subr.bf16.mxu0 %v2595
    %4542 = vmatpush1.bf16.msra.mxu0 %v2594
    %4543 = vmatprep.subr.bf16.mxu0 %v2597
    %4544 = vmatpush1.bf16.msra.mxu0 %v2596
    %4545 = vmatprep.subr.bf16.mxu0 %v2599
    %4546 = vmatpush1.bf16.msra.mxu0 %v2598
    %4547 = vmatprep.subr.bf16.mxu0 %v2601
    %4548 = vmatpush1.bf16.msra.mxu0 %v2600
    %4549 = vmatprep.subr.bf16.mxu0 %v2603
    %4550 = vmatpush1.bf16.msra.mxu0 %v2602
    %4551 = vmatprep.subr.bf16.mxu0 %v2605
    %4552 = vmatpush1.bf16.msra.mxu0 %v2604
    %4553 = vmatprep.subr.bf16.mxu0 %v2607
    %4554 = vmatpush1.bf16.msra.mxu0 %v2606
    %4555 = vmatprep.subr.bf16.mxu0 %v2609
    %4556 = vmatpush1.bf16.msra.mxu0 %v2608
    %4557 = vmatprep.subr.bf16.mxu0 %v2611
    %4558 = vmatpush1.bf16.msra.mxu0 %v2610
    %4559 = vmatprep.subr.bf16.mxu0 %v2613
    %4560 = vmatpush1.bf16.msra.mxu0 %v2612
    %4561 = vmatprep.subr.bf16.mxu0 %v2615
    %4562 = vmatpush1.bf16.msra.mxu0 %v2614
    %4563 = vmatprep.subr.bf16.mxu0 %v2649
    %4564 = vmatpush1.bf16.msra.mxu0 %v2646
    %4565 = vmatprep.subr.bf16.mxu0 0
    %4566 = vmatpush1.bf16.msra.mxu0 0
    %4567 = vmatprep.subr.bf16.mxu0 0
    %4568 = vmatpush1.bf16.msra.mxu0 0
    %4569 = vmatprep.subr.bf16.mxu0 0
    %4570 = vmatpush1.bf16.msra.mxu0 0
    %4571 = vmatprep.mubr.bf16.mxu0 %v4537
    %4572 = vmatmul.mubr.bf16.gmra.mrb[0].mxu0 %v4534
    %v4573 = vpop.f32.mrb[0].mxu0
    %v4574 = vadd.f32 0.0, %v4573
    %v4575 = vpop.f32.mrb[0].mxu0
    %v4576 = vadd.f32 0.0, %v4575
    %v4577 = vpop.f32.mrb[0].mxu0
    %v4578 = vpop.f32.mrb[0].mxu0
    %4579 = vdwg.mxu0
    %4580 = vmatprep.subr.bf16.mxu0 %v2768
    %4581 = vmatpush1.bf16.msra.mxu0 %v2767
    %4582 = vmatprep.subr.bf16.mxu0 %v2770
    %4583 = vmatpush1.bf16.msra.mxu0 %v2769
    %4584 = vmatprep.subr.bf16.mxu0 %v2772
    %4585 = vmatpush1.bf16.msra.mxu0 %v2771
    %4586 = vmatprep.subr.bf16.mxu0 %v2774
    %4587 = vmatpush1.bf16.msra.mxu0 %v2773
    %4588 = vmatprep.subr.bf16.mxu0 %v2776
    %4589 = vmatpush1.bf16.msra.mxu0 %v2775
    %4590 = vmatprep.subr.bf16.mxu0 %v2778
    %4591 = vmatpush1.bf16.msra.mxu0 %v2777
    %4592 = vmatprep.subr.bf16.mxu0 %v2780
    %4593 = vmatpush1.bf16.msra.mxu0 %v2779
    %4594 = vmatprep.subr.bf16.mxu0 %v2782
    %4595 = vmatpush1.bf16.msra.mxu0 %v2781
    %4596 = vmatprep.subr.bf16.mxu0 %v2784
    %4597 = vmatpush1.bf16.msra.mxu0 %v2783
    %4598 = vmatprep.subr.bf16.mxu0 %v2786
    %4599 = vmatpush1.bf16.msra.mxu0 %v2785
    %4600 = vmatprep.subr.bf16.mxu0 %v2788
    %4601 = vmatpush1.bf16.msra.mxu0 %v2787
    %4602 = vmatprep.subr.bf16.mxu0 %v2790
    %4603 = vmatpush1.bf16.msra.mxu0 %v2789
    %4604 = vmatprep.subr.bf16.mxu0 %v2821
    %4605 = vmatpush1.bf16.msra.mxu0 %v2818
    %4606 = vmatprep.subr.bf16.mxu0 0
    %4607 = vmatpush1.bf16.msra.mxu0 0
    %4608 = vmatprep.subr.bf16.mxu0 0
    %4609 = vmatpush1.bf16.msra.mxu0 0
    %4610 = vmatprep.subr.bf16.mxu0 0
    %4611 = vmatpush1.bf16.msra.mxu0 0
    %4612 = vmatprep.mubr.bf16.mxu0 %v4537
    %4613 = vmatmul.mubr.bf16.gmra.mrb[0].mxu0 %v4534
    %v4614 = vpop.f32.mrb[0].mxu0
    %v4615 = vadd.f32 0.0, %v4614
    %v4616 = vpop.f32.mrb[0].mxu0
    %v4617 = vadd.f32 0.0, %v4616
    %v4618 = vpop.f32.mrb[0].mxu0
    %v4619 = vpop.f32.mrb[0].mxu0
    %4620 = vdwg.mxu0
    %4621 = vmatprep.subr.bf16.mxu0 %v2940
    %4622 = vmatpush1.bf16.msra.mxu0 %v2939
    %4623 = vmatprep.subr.bf16.mxu0 %v2942
    %4624 = vmatpush1.bf16.msra.mxu0 %v2941
    %4625 = vmatprep.subr.bf16.mxu0 %v2944
    %4626 = vmatpush1.bf16.msra.mxu0 %v2943
    %4627 = vmatprep.subr.bf16.mxu0 %v2946
    %4628 = vmatpush1.bf16.msra.mxu0 %v2945
    %4629 = vmatprep.subr.bf16.mxu0 %v2948
    %4630 = vmatpush1.bf16.msra.mxu0 %v2947
    %4631 = vmatprep.subr.bf16.mxu0 %v2950
    %4632 = vmatpush1.bf16.msra.mxu0 %v2949
    %4633 = vmatprep.subr.bf16.mxu0 %v2952
    %4634 = vmatpush1.bf16.msra.mxu0 %v2951
    %4635 = vmatprep.subr.bf16.mxu0 %v2954
    %4636 = vmatpush1.bf16.msra.mxu0 %v2953
    %4637 = vmatprep.subr.bf16.mxu0 %v2956
    %4638 = vmatpush1.bf16.msra.mxu0 %v2955
    %4639 = vmatprep.subr.bf16.mxu0 %v2958
    %4640 = vmatpush1.bf16.msra.mxu0 %v2957
    %4641 = vmatprep.subr.bf16.mxu0 %v2960
    %4642 = vmatpush1.bf16.msra.mxu0 %v2959
    %4643 = vmatprep.subr.bf16.mxu0 %v2962
    %4644 = vmatpush1.bf16.msra.mxu0 %v2961
    %4645 = vmatprep.subr.bf16.mxu0 %v2993
    %4646 = vmatpush1.bf16.msra.mxu0 %v2990
    %4647 = vmatprep.subr.bf16.mxu0 0
    %4648 = vmatpush1.bf16.msra.mxu0 0
    %4649 = vmatprep.subr.bf16.mxu0 0
    %4650 = vmatpush1.bf16.msra.mxu0 0
    %4651 = vmatprep.subr.bf16.mxu0 0
    %4652 = vmatpush1.bf16.msra.mxu0 0
    %4653 = vmatprep.mubr.bf16.mxu0 %v4537
    %4654 = vmatmul.mubr.bf16.gmra.mrb[0].mxu0 %v4534
    %v4655 = vpop.f32.mrb[0].mxu0
    %v4656 = vadd.f32 %v2510, %v4655
    %v4657 = vpop.f32.mrb[0].mxu0
    %v4658 = vadd.f32 %v2514, %v4657
    %v4659 = vpop.f32.mrb[0].mxu0
    %v4660 = vpop.f32.mrb[0].mxu0
    %4661 = vdwg.mxu0
    %s4662 = scalar_lea.vmem [#allocation2], 144
    %v4663 = vld [vmem:[%s4662] sm:$0xff]
    %v4664 = vld [vmem:[%s4662 + $0x8] sm:$0xff]
    %v4665 = vadd.f32 %v4663, %v4574
    %v4666 = vadd.f32 %v4664, %v4576
    %v4667 = vxor.u32 %v4665, 2147483648
    %v4668 = vxor.u32 %v4666, 2147483648
    %v4669 = vmul.f32 %v4667, 1.442695
    %v4670 = vpow.pop %v4669
    %v4671 = vmul.f32 %v4668, 1.442695
    %v4672 = vpow.pop %v4671
    %v4673 = vadd.f32 %v4670, 1.0
    %v4674 = vadd.f32 %v4672, 1.0
    %v4675 = vrcp.pop %v4673
    %v4676 = vmul.f32 1.0, %v4675
    %v4677 = vrcp.pop %v4674
    %v4678 = vmul.f32 1.0, %v4677
    %s4679 = scalar_lea.vmem [#allocation3], 144
    %v4680 = vld [vmem:[%s4679] sm:$0xff]
    %v4681 = vld [vmem:[%s4679 + $0x8] sm:$0xff]
    %v4682 = vadd.f32 %v4680, %v4615
    %v4683 = vadd.f32 %v4681, %v4617
    %v4684 = vxor.u32 %v4682, 2147483648
    %v4685 = vxor.u32 %v4683, 2147483648
    %v4686 = vmul.f32 %v4684, 1.442695
    %v4687 = vpow.pop %v4686
    %v4688 = vmul.f32 %v4685, 1.442695
    %v4689 = vpow.pop %v4688
    %v4690 = vadd.f32 %v4687, 1.0
    %v4691 = vadd.f32 %v4689, 1.0
    %v4692 = vrcp.pop %v4690
    %v4693 = vmul.f32 1.0, %v4692
    %v4694 = vrcp.pop %v4691
    %v4695 = vmul.f32 1.0, %v4694
    %s4696 = scalar_lea.vmem [#allocation4], 144
    %v4697 = vld [vmem:[%s4696] sm:$0xff]
    %v4698 = vld [vmem:[%s4696 + $0x8] sm:$0xff]
    %v4699 = vmul.f32 %v4676, %v4656
    %v4700 = vmul.f32 %v4678, %v4658
    %v4701 = vadd.f32 %v4697, %v4699
    %v4702 = vadd.f32 %v4698, %v4700
    %v4703 = vtanh.pop %v4701
    %v4704 = vtanh.pop %v4702
    %v4705 = vsub.f32 1.0, %v4693
    %v4706 = vsub.f32 1.0, %v4695
    %v4707 = vmul.f32 %v4705, %v4703
    %v4708 = vmul.f32 %v4706, %v4704
    %v4709 = vmul.f32 %v4693, %v4530
    %v4710 = vmul.f32 %v4695, %v4531
    %v4711 = vadd.f32 %v4707, %v4709
    %v4712 = vadd.f32 %v4708, %v4710
    %v4713 = vadd.f32 %v4532, %v4711
    %v4714 = vadd.f32 %v4533, %v4712
    %v4715 = vpack.c.bf16 %v4711, %v4711
    %v4716 = vpack.c.bf16 %v4712, %v4712
    %v4718 = vsel %vm1414, %v4716, 0
    %4720 = vmatprep.subr.bf16.mxu0 %v2593
    %4721 = vmatpush1.bf16.msra.mxu0 %v2592
    %4722 = vmatprep.subr.bf16.mxu0 %v2595
    %4723 = vmatpush1.bf16.msra.mxu0 %v2594
    %4724 = vmatprep.subr.bf16.mxu0 %v2597
    %4725 = vmatpush1.bf16.msra.mxu0 %v2596
    %4726 = vmatprep.subr.bf16.mxu0 %v2599
    %4727 = vmatpush1.bf16.msra.mxu0 %v2598
    %4728 = vmatprep.subr.bf16.mxu0 %v2601
    %4729 = vmatpush1.bf16.msra.mxu0 %v2600
    %4730 = vmatprep.subr.bf16.mxu0 %v2603
    %4731 = vmatpush1.bf16.msra.mxu0 %v2602
    %4732 = vmatprep.subr.bf16.mxu0 %v2605
    %4733 = vmatpush1.bf16.msra.mxu0 %v2604
    %4734 = vmatprep.subr.bf16.mxu0 %v2607
    %4735 = vmatpush1.bf16.msra.mxu0 %v2606
    %4736 = vmatprep.subr.bf16.mxu0 %v2609
    %4737 = vmatpush1.bf16.msra.mxu0 %v2608
    %4738 = vmatprep.subr.bf16.mxu0 %v2611
    %4739 = vmatpush1.bf16.msra.mxu0 %v2610
    %4740 = vmatprep.subr.bf16.mxu0 %v2613
    %4741 = vmatpush1.bf16.msra.mxu0 %v2612
    %4742 = vmatprep.subr.bf16.mxu0 %v2615
    %4743 = vmatpush1.bf16.msra.mxu0 %v2614
    %4744 = vmatprep.subr.bf16.mxu0 %v2649
    %4745 = vmatpush1.bf16.msra.mxu0 %v2646
    %4746 = vmatprep.subr.bf16.mxu0 0
    %4747 = vmatpush1.bf16.msra.mxu0 0
    %4748 = vmatprep.subr.bf16.mxu0 0
    %4749 = vmatpush1.bf16.msra.mxu0 0
    %4750 = vmatprep.subr.bf16.mxu0 0
    %4751 = vmatpush1.bf16.msra.mxu0 0
    %4752 = vmatprep.mubr.bf16.mxu0 %v4718
    %4753 = vmatmul.mubr.bf16.gmra.mrb[0].mxu0 %v4715
    %v4754 = vpop.f32.mrb[0].mxu0
    %v4755 = vadd.f32 0.0, %v4754
    %v4756 = vpop.f32.mrb[0].mxu0
    %v4757 = vadd.f32 0.0, %v4756
    %v4758 = vpop.f32.mrb[0].mxu0
    %v4759 = vpop.f32.mrb[0].mxu0
    %4760 = vdwg.mxu0
    %4761 = vmatprep.subr.bf16.mxu0 %v2768
    %4762 = vmatpush1.bf16.msra.mxu0 %v2767
    %4763 = vmatprep.subr.bf16.mxu0 %v2770
    %4764 = vmatpush1.bf16.msra.mxu0 %v2769
    %4765 = vmatprep.subr.bf16.mxu0 %v2772
    %4766 = vmatpush1.bf16.msra.mxu0 %v2771
    %4767 = vmatprep.subr.bf16.mxu0 %v2774
    %4768 = vmatpush1.bf16.msra.mxu0 %v2773
    %4769 = vmatprep.subr.bf16.mxu0 %v2776
    %4770 = vmatpush1.bf16.msra.mxu0 %v2775
    %4771 = vmatprep.subr.bf16.mxu0 %v2778
    %4772 = vmatpush1.bf16.msra.mxu0 %v2777
    %4773 = vmatprep.subr.bf16.mxu0 %v2780
    %4774 = vmatpush1.bf16.msra.mxu0 %v2779
    %4775 = vmatprep.subr.bf16.mxu0 %v2782
    %4776 = vmatpush1.bf16.msra.mxu0 %v2781
    %4777 = vmatprep.subr.bf16.mxu0 %v2784
    %4778 = vmatpush1.bf16.msra.mxu0 %v2783
    %4779 = vmatprep.subr.bf16.mxu0 %v2786
    %4780 = vmatpush1.bf16.msra.mxu0 %v2785
    %4781 = vmatprep.subr.bf16.mxu0 %v2788
    %4782 = vmatpush1.bf16.msra.mxu0 %v2787
    %4783 = vmatprep.subr.bf16.mxu0 %v2790
    %4784 = vmatpush1.bf16.msra.mxu0 %v2789
    %4785 = vmatprep.subr.bf16.mxu0 %v2821
    %4786 = vmatpush1.bf16.msra.mxu0 %v2818
    %4787 = vmatprep.subr.bf16.mxu0 0
    %4788 = vmatpush1.bf16.msra.mxu0 0
    %4789 = vmatprep.subr.bf16.mxu0 0
    %4790 = vmatpush1.bf16.msra.mxu0 0
    %4791 = vmatprep.subr.bf16.mxu0 0
    %4792 = vmatpush1.bf16.msra.mxu0 0
    %4793 = vmatprep.mubr.bf16.mxu0 %v4718
    %4794 = vmatmul.mubr.bf16.gmra.mrb[0].mxu0 %v4715
    %v4795 = vpop.f32.mrb[0].mxu0
    %v4796 = vadd.f32 0.0, %v4795
    %v4797 = vpop.f32.mrb[0].mxu0
    %v4798 = vadd.f32 0.0, %v4797
    %v4799 = vpop.f32.mrb[0].mxu0
    %v4800 = vpop.f32.mrb[0].mxu0
    %4801 = vdwg.mxu0
    %4802 = vmatprep.subr.bf16.mxu0 %v2940
    %4803 = vmatpush1.bf16.msra.mxu0 %v2939
    %4804 = vmatprep.subr.bf16.mxu0 %v2942
    %4805 = vmatpush1.bf16.msra.mxu0 %v2941
    %4806 = vmatprep.subr.bf16.mxu0 %v2944
    %4807 = vmatpush1.bf16.msra.mxu0 %v2943
    %4808 = vmatprep.subr.bf16.mxu0 %v2946
    %4809 = vmatpush1.bf16.msra.mxu0 %v2945
    %4810 = vmatprep.subr.bf16.mxu0 %v2948
    %4811 = vmatpush1.bf16.msra.mxu0 %v2947
    %4812 = vmatprep.subr.bf16.mxu0 %v2950
    %4813 = vmatpush1.bf16.msra.mxu0 %v2949
    %4814 = vmatprep.subr.bf16.mxu0 %v2952
    %4815 = vmatpush1.bf16.msra.mxu0 %v2951
    %4816 = vmatprep.subr.bf16.mxu0 %v2954
    %4817 = vmatpush1.bf16.msra.mxu0 %v2953
    %4818 = vmatprep.subr.bf16.mxu0 %v2956
    %4819 = vmatpush1.bf16.msra.mxu0 %v2955
    %4820 = vmatprep.subr.bf16.mxu0 %v2958
    %4821 = vmatpush1.bf16.msra.mxu0 %v2957
    %4822 = vmatprep.subr.bf16.mxu0 %v2960
    %4823 = vmatpush1.bf16.msra.mxu0 %v2959
    %4824 = vmatprep.subr.bf16.mxu0 %v2962
    %4825 = vmatpush1.bf16.msra.mxu0 %v2961
    %4826 = vmatprep.subr.bf16.mxu0 %v2993
    %4827 = vmatpush1.bf16.msra.mxu0 %v2990
    %4828 = vmatprep.subr.bf16.mxu0 0
    %4829 = vmatpush1.bf16.msra.mxu0 0
    %4830 = vmatprep.subr.bf16.mxu0 0
    %4831 = vmatpush1.bf16.msra.mxu0 0
    %4832 = vmatprep.subr.bf16.mxu0 0
    %4833 = vmatpush1.bf16.msra.mxu0 0
    %4834 = vmatprep.mubr.bf16.mxu0 %v4718
    %4835 = vmatmul.mubr.bf16.gmra.mrb[0].mxu0 %v4715
    %v4836 = vpop.f32.mrb[0].mxu0
    %v4837 = vadd.f32 %v2510, %v4836
    %v4838 = vpop.f32.mrb[0].mxu0
    %v4839 = vadd.f32 %v2514, %v4838
    %v4840 = vpop.f32.mrb[0].mxu0
    %v4841 = vpop.f32.mrb[0].mxu0
    %4842 = vdwg.mxu0
    %s4843 = scalar_lea.vmem [#allocation2], 160
    %v4844 = vld [vmem:[%s4843] sm:$0xff]
    %v4845 = vld [vmem:[%s4843 + $0x8] sm:$0xff]
    %v4846 = vadd.f32 %v4844, %v4755
    %v4847 = vadd.f32 %v4845, %v4757
    %v4848 = vxor.u32 %v4846, 2147483648
    %v4849 = vxor.u32 %v4847, 2147483648
    %v4850 = vmul.f32 %v4848, 1.442695
    %v4851 = vpow.pop %v4850
    %v4852 = vmul.f32 %v4849, 1.442695
    %v4853 = vpow.pop %v4852
    %v4854 = vadd.f32 %v4851, 1.0
    %v4855 = vadd.f32 %v4853, 1.0
    %v4856 = vrcp.pop %v4854
    %v4857 = vmul.f32 1.0, %v4856
    %v4858 = vrcp.pop %v4855
    %v4859 = vmul.f32 1.0, %v4858
    %s4860 = scalar_lea.vmem [#allocation3], 160
    %v4861 = vld [vmem:[%s4860] sm:$0xff]
    %v4862 = vld [vmem:[%s4860 + $0x8] sm:$0xff]
    %v4863 = vadd.f32 %v4861, %v4796
    %v4864 = vadd.f32 %v4862, %v4798
    %v4865 = vxor.u32 %v4863, 2147483648
    %v4866 = vxor.u32 %v4864, 2147483648
    %v4867 = vmul.f32 %v4865, 1.442695
    %v4868 = vpow.pop %v4867
    %v4869 = vmul.f32 %v4866, 1.442695
    %v4870 = vpow.pop %v4869
    %v4871 = vadd.f32 %v4868, 1.0
    %v4872 = vadd.f32 %v4870, 1.0
    %v4873 = vrcp.pop %v4871
    %v4874 = vmul.f32 1.0, %v4873
    %v4875 = vrcp.pop %v4872
    %v4876 = vmul.f32 1.0, %v4875
    %s4877 = scalar_lea.vmem [#allocation4], 160
    %v4878 = vld [vmem:[%s4877] sm:$0xff]
    %v4879 = vld [vmem:[%s4877 + $0x8] sm:$0xff]
    %v4880 = vmul.f32 %v4857, %v4837
    %v4881 = vmul.f32 %v4859, %v4839
    %v4882 = vadd.f32 %v4878, %v4880
    %v4883 = vadd.f32 %v4879, %v4881
    %v4884 = vtanh.pop %v4882
    %v4885 = vtanh.pop %v4883
    %v4886 = vsub.f32 1.0, %v4874
    %v4887 = vsub.f32 1.0, %v4876
    %v4888 = vmul.f32 %v4886, %v4884
    %v4889 = vmul.f32 %v4887, %v4885
    %v4890 = vmul.f32 %v4874, %v4711
    %v4891 = vmul.f32 %v4876, %v4712
    %v4892 = vadd.f32 %v4888, %v4890
    %v4893 = vadd.f32 %v4889, %v4891
    %v4894 = vadd.f32 %v4713, %v4892
    %v4895 = vadd.f32 %v4714, %v4893
    %v4896 = vpack.c.bf16 %v4892, %v4892
    %v4897 = vpack.c.bf16 %v4893, %v4893
    %v4899 = vsel %vm1414, %v4897, 0
    %4901 = vmatprep.subr.bf16.mxu0 %v2593
    %4902 = vmatpush1.bf16.msra.mxu0 %v2592
    %4903 = vmatprep.subr.bf16.mxu0 %v2595
    %4904 = vmatpush1.bf16.msra.mxu0 %v2594
    %4905 = vmatprep.subr.bf16.mxu0 %v2597
    %4906 = vmatpush1.bf16.msra.mxu0 %v2596
    %4907 = vmatprep.subr.bf16.mxu0 %v2599
    %4908 = vmatpush1.bf16.msra.mxu0 %v2598
    %4909 = vmatprep.subr.bf16.mxu0 %v2601
    %4910 = vmatpush1.bf16.msra.mxu0 %v2600
    %4911 = vmatprep.subr.bf16.mxu0 %v2603
    %4912 = vmatpush1.bf16.msra.mxu0 %v2602
    %4913 = vmatprep.subr.bf16.mxu0 %v2605
    %4914 = vmatpush1.bf16.msra.mxu0 %v2604
    %4915 = vmatprep.subr.bf16.mxu0 %v2607
    %4916 = vmatpush1.bf16.msra.mxu0 %v2606
    %4917 = vmatprep.subr.bf16.mxu0 %v2609
    %4918 = vmatpush1.bf16.msra.mxu0 %v2608
    %4919 = vmatprep.subr.bf16.mxu0 %v2611
    %4920 = vmatpush1.bf16.msra.mxu0 %v2610
    %4921 = vmatprep.subr.bf16.mxu0 %v2613
    %4922 = vmatpush1.bf16.msra.mxu0 %v2612
    %4923 = vmatprep.subr.bf16.mxu0 %v2615
    %4924 = vmatpush1.bf16.msra.mxu0 %v2614
    %4925 = vmatprep.subr.bf16.mxu0 %v2649
    %4926 = vmatpush1.bf16.msra.mxu0 %v2646
    %4927 = vmatprep.subr.bf16.mxu0 0
    %4928 = vmatpush1.bf16.msra.mxu0 0
    %4929 = vmatprep.subr.bf16.mxu0 0
    %4930 = vmatpush1.bf16.msra.mxu0 0
    %4931 = vmatprep.subr.bf16.mxu0 0
    %4932 = vmatpush1.bf16.msra.mxu0 0
    %4933 = vmatprep.mubr.bf16.mxu0 %v4899
    %4934 = vmatmul.mubr.bf16.gmra.mrb[0].mxu0 %v4896
    %v4935 = vpop.f32.mrb[0].mxu0
    %v4936 = vadd.f32 0.0, %v4935
    %v4937 = vpop.f32.mrb[0].mxu0
    %v4938 = vadd.f32 0.0, %v4937
    %v4939 = vpop.f32.mrb[0].mxu0
    %v4940 = vpop.f32.mrb[0].mxu0
    %4941 = vdwg.mxu0
    %4942 = vmatprep.subr.bf16.mxu0 %v2768
    %4943 = vmatpush1.bf16.msra.mxu0 %v2767
    %4944 = vmatprep.subr.bf16.mxu0 %v2770
    %4945 = vmatpush1.bf16.msra.mxu0 %v2769
    %4946 = vmatprep.subr.bf16.mxu0 %v2772
    %4947 = vmatpush1.bf16.msra.mxu0 %v2771
    %4948 = vmatprep.subr.bf16.mxu0 %v2774
    %4949 = vmatpush1.bf16.msra.mxu0 %v2773
    %4950 = vmatprep.subr.bf16.mxu0 %v2776
    %4951 = vmatpush1.bf16.msra.mxu0 %v2775
    %4952 = vmatprep.subr.bf16.mxu0 %v2778
    %4953 = vmatpush1.bf16.msra.mxu0 %v2777
    %4954 = vmatprep.subr.bf16.mxu0 %v2780
    %4955 = vmatpush1.bf16.msra.mxu0 %v2779
    %4956 = vmatprep.subr.bf16.mxu0 %v2782
    %4957 = vmatpush1.bf16.msra.mxu0 %v2781
    %4958 = vmatprep.subr.bf16.mxu0 %v2784
    %4959 = vmatpush1.bf16.msra.mxu0 %v2783
    %4960 = vmatprep.subr.bf16.mxu0 %v2786
    %4961 = vmatpush1.bf16.msra.mxu0 %v2785
    %4962 = vmatprep.subr.bf16.mxu0 %v2788
    %4963 = vmatpush1.bf16.msra.mxu0 %v2787
    %4964 = vmatprep.subr.bf16.mxu0 %v2790
    %4965 = vmatpush1.bf16.msra.mxu0 %v2789
    %4966 = vmatprep.subr.bf16.mxu0 %v2821
    %4967 = vmatpush1.bf16.msra.mxu0 %v2818
    %4968 = vmatprep.subr.bf16.mxu0 0
    %4969 = vmatpush1.bf16.msra.mxu0 0
    %4970 = vmatprep.subr.bf16.mxu0 0
    %4971 = vmatpush1.bf16.msra.mxu0 0
    %4972 = vmatprep.subr.bf16.mxu0 0
    %4973 = vmatpush1.bf16.msra.mxu0 0
    %4974 = vmatprep.mubr.bf16.mxu0 %v4899
    %4975 = vmatmul.mubr.bf16.gmra.mrb[0].mxu0 %v4896
    %v4976 = vpop.f32.mrb[0].mxu0
    %v4977 = vadd.f32 0.0, %v4976
    %v4978 = vpop.f32.mrb[0].mxu0
    %v4979 = vadd.f32 0.0, %v4978
    %v4980 = vpop.f32.mrb[0].mxu0
    %v4981 = vpop.f32.mrb[0].mxu0
    %4982 = vdwg.mxu0
    %4983 = vmatprep.subr.bf16.mxu0 %v2940
    %4984 = vmatpush1.bf16.msra.mxu0 %v2939
    %4985 = vmatprep.subr.bf16.mxu0 %v2942
    %4986 = vmatpush1.bf16.msra.mxu0 %v2941
    %4987 = vmatprep.subr.bf16.mxu0 %v2944
    %4988 = vmatpush1.bf16.msra.mxu0 %v2943
    %4989 = vmatprep.subr.bf16.mxu0 %v2946
    %4990 = vmatpush1.bf16.msra.mxu0 %v2945
    %4991 = vmatprep.subr.bf16.mxu0 %v2948
    %4992 = vmatpush1.bf16.msra.mxu0 %v2947
    %4993 = vmatprep.subr.bf16.mxu0 %v2950
    %4994 = vmatpush1.bf16.msra.mxu0 %v2949
    %4995 = vmatprep.subr.bf16.mxu0 %v2952
    %4996 = vmatpush1.bf16.msra.mxu0 %v2951
    %4997 = vmatprep.subr.bf16.mxu0 %v2954
    %4998 = vmatpush1.bf16.msra.mxu0 %v2953
    %4999 = vmatprep.subr.bf16.mxu0 %v2956
    %5000 = vmatpush1.bf16.msra.mxu0 %v2955
    %5001 = vmatprep.subr.bf16.mxu0 %v2958
    %5002 = vmatpush1.bf16.msra.mxu0 %v2957
    %5003 = vmatprep.subr.bf16.mxu0 %v2960
    %5004 = vmatpush1.bf16.msra.mxu0 %v2959
    %5005 = vmatprep.subr.bf16.mxu0 %v2962
    %5006 = vmatpush1.bf16.msra.mxu0 %v2961
    %5007 = vmatprep.subr.bf16.mxu0 %v2993
    %5008 = vmatpush1.bf16.msra.mxu0 %v2990
    %5009 = vmatprep.subr.bf16.mxu0 0
    %5010 = vmatpush1.bf16.msra.mxu0 0
    %5011 = vmatprep.subr.bf16.mxu0 0
    %5012 = vmatpush1.bf16.msra.mxu0 0
    %5013 = vmatprep.subr.bf16.mxu0 0
    %5014 = vmatpush1.bf16.msra.mxu0 0
    %5015 = vmatprep.mubr.bf16.mxu0 %v4899
    %5016 = vmatmul.mubr.bf16.gmra.mrb[0].mxu0 %v4896
    %v5017 = vpop.f32.mrb[0].mxu0
    %v5018 = vadd.f32 %v2510, %v5017
    %v5019 = vpop.f32.mrb[0].mxu0
    %v5020 = vadd.f32 %v2514, %v5019
    %v5021 = vpop.f32.mrb[0].mxu0
    %v5022 = vpop.f32.mrb[0].mxu0
    %5023 = vdwg.mxu0
    %s5024 = scalar_lea.vmem [#allocation2], 176
    %v5025 = vld [vmem:[%s5024] sm:$0xff]
    %v5026 = vld [vmem:[%s5024 + $0x8] sm:$0xff]
    %v5027 = vadd.f32 %v5025, %v4936
    %v5028 = vadd.f32 %v5026, %v4938
    %v5029 = vxor.u32 %v5027, 2147483648
    %v5030 = vxor.u32 %v5028, 2147483648
    %v5031 = vmul.f32 %v5029, 1.442695
    %v5032 = vpow.pop %v5031
    %v5033 = vmul.f32 %v5030, 1.442695
    %v5034 = vpow.pop %v5033
    %v5035 = vadd.f32 %v5032, 1.0
    %v5036 = vadd.f32 %v5034, 1.0
    %v5037 = vrcp.pop %v5035
    %v5038 = vmul.f32 1.0, %v5037
    %v5039 = vrcp.pop %v5036
    %v5040 = vmul.f32 1.0, %v5039
    %s5041 = scalar_lea.vmem [#allocation3], 176
    %v5042 = vld [vmem:[%s5041] sm:$0xff]
    %v5043 = vld [vmem:[%s5041 + $0x8] sm:$0xff]
    %v5044 = vadd.f32 %v5042, %v4977
    %v5045 = vadd.f32 %v5043, %v4979
    %v5046 = vxor.u32 %v5044, 2147483648
    %v5047 = vxor.u32 %v5045, 2147483648
    %v5048 = vmul.f32 %v5046, 1.442695
    %v5049 = vpow.pop %v5048
    %v5050 = vmul.f32 %v5047, 1.442695
    %v5051 = vpow.pop %v5050
    %v5052 = vadd.f32 %v5049, 1.0
    %v5053 = vadd.f32 %v5051, 1.0
    %v5054 = vrcp.pop %v5052
    %v5055 = vmul.f32 1.0, %v5054
    %v5056 = vrcp.pop %v5053
    %v5057 = vmul.f32 1.0, %v5056
    %s5058 = scalar_lea.vmem [#allocation4], 176
    %v5059 = vld [vmem:[%s5058] sm:$0xff]
    %v5060 = vld [vmem:[%s5058 + $0x8] sm:$0xff]
    %v5061 = vmul.f32 %v5038, %v5018
    %v5062 = vmul.f32 %v5040, %v5020
    %v5063 = vadd.f32 %v5059, %v5061
    %v5064 = vadd.f32 %v5060, %v5062
    %v5065 = vtanh.pop %v5063
    %v5066 = vtanh.pop %v5064
    %v5067 = vsub.f32 1.0, %v5055
    %v5068 = vsub.f32 1.0, %v5057
    %v5069 = vmul.f32 %v5067, %v5065
    %v5070 = vmul.f32 %v5068, %v5066
    %v5071 = vmul.f32 %v5055, %v4892
    %v5072 = vmul.f32 %v5057, %v4893
    %v5073 = vadd.f32 %v5069, %v5071
    %v5074 = vadd.f32 %v5070, %v5072
    %v5075 = vadd.f32 %v4894, %v5073
    %v5076 = vadd.f32 %v4895, %v5074
    %v5077 = vpack.c.bf16 %v5073, %v5073
    %v5078 = vpack.c.bf16 %v5074, %v5074
    %v5080 = vsel %vm1414, %v5078, 0
    %5082 = vmatprep.subr.bf16.mxu0 %v2593
    %5083 = vmatpush1.bf16.msra.mxu0 %v2592
    %5084 = vmatprep.subr.bf16.mxu0 %v2595
    %5085 = vmatpush1.bf16.msra.mxu0 %v2594
    %5086 = vmatprep.subr.bf16.mxu0 %v2597
    %5087 = vmatpush1.bf16.msra.mxu0 %v2596
    %5088 = vmatprep.subr.bf16.mxu0 %v2599
    %5089 = vmatpush1.bf16.msra.mxu0 %v2598
    %5090 = vmatprep.subr.bf16.mxu0 %v2601
    %5091 = vmatpush1.bf16.msra.mxu0 %v2600
    %5092 = vmatprep.subr.bf16.mxu0 %v2603
    %5093 = vmatpush1.bf16.msra.mxu0 %v2602
    %5094 = vmatprep.subr.bf16.mxu0 %v2605
    %5095 = vmatpush1.bf16.msra.mxu0 %v2604
    %5096 = vmatprep.subr.bf16.mxu0 %v2607
    %5097 = vmatpush1.bf16.msra.mxu0 %v2606
    %5098 = vmatprep.subr.bf16.mxu0 %v2609
    %5099 = vmatpush1.bf16.msra.mxu0 %v2608
    %5100 = vmatprep.subr.bf16.mxu0 %v2611
    %5101 = vmatpush1.bf16.msra.mxu0 %v2610
    %5102 = vmatprep.subr.bf16.mxu0 %v2613
    %5103 = vmatpush1.bf16.msra.mxu0 %v2612
    %5104 = vmatprep.subr.bf16.mxu0 %v2615
    %5105 = vmatpush1.bf16.msra.mxu0 %v2614
    %5106 = vmatprep.subr.bf16.mxu0 %v2649
    %5107 = vmatpush1.bf16.msra.mxu0 %v2646
    %5108 = vmatprep.subr.bf16.mxu0 0
    %5109 = vmatpush1.bf16.msra.mxu0 0
    %5110 = vmatprep.subr.bf16.mxu0 0
    %5111 = vmatpush1.bf16.msra.mxu0 0
    %5112 = vmatprep.subr.bf16.mxu0 0
    %5113 = vmatpush1.bf16.msra.mxu0 0
    %5114 = vmatprep.mubr.bf16.mxu0 %v5080
    %5115 = vmatmul.mubr.bf16.gmra.mrb[0].mxu0 %v5077
    %v5116 = vpop.f32.mrb[0].mxu0
    %v5117 = vadd.f32 0.0, %v5116
    %v5118 = vpop.f32.mrb[0].mxu0
    %v5119 = vadd.f32 0.0, %v5118
    %v5120 = vpop.f32.mrb[0].mxu0
    %v5121 = vpop.f32.mrb[0].mxu0
    %5122 = vdwg.mxu0
    %5123 = vmatprep.subr.bf16.mxu0 %v2768
    %5124 = vmatpush1.bf16.msra.mxu0 %v2767
    %5125 = vmatprep.subr.bf16.mxu0 %v2770
    %5126 = vmatpush1.bf16.msra.mxu0 %v2769
    %5127 = vmatprep.subr.bf16.mxu0 %v2772
    %5128 = vmatpush1.bf16.msra.mxu0 %v2771
    %5129 = vmatprep.subr.bf16.mxu0 %v2774
    %5130 = vmatpush1.bf16.msra.mxu0 %v2773
    %5131 = vmatprep.subr.bf16.mxu0 %v2776
    %5132 = vmatpush1.bf16.msra.mxu0 %v2775
    %5133 = vmatprep.subr.bf16.mxu0 %v2778
    %5134 = vmatpush1.bf16.msra.mxu0 %v2777
    %5135 = vmatprep.subr.bf16.mxu0 %v2780
    %5136 = vmatpush1.bf16.msra.mxu0 %v2779
    %5137 = vmatprep.subr.bf16.mxu0 %v2782
    %5138 = vmatpush1.bf16.msra.mxu0 %v2781
    %5139 = vmatprep.subr.bf16.mxu0 %v2784
    %5140 = vmatpush1.bf16.msra.mxu0 %v2783
    %5141 = vmatprep.subr.bf16.mxu0 %v2786
    %5142 = vmatpush1.bf16.msra.mxu0 %v2785
    %5143 = vmatprep.subr.bf16.mxu0 %v2788
    %5144 = vmatpush1.bf16.msra.mxu0 %v2787
    %5145 = vmatprep.subr.bf16.mxu0 %v2790
    %5146 = vmatpush1.bf16.msra.mxu0 %v2789
    %5147 = vmatprep.subr.bf16.mxu0 %v2821
    %5148 = vmatpush1.bf16.msra.mxu0 %v2818
    %5149 = vmatprep.subr.bf16.mxu0 0
    %5150 = vmatpush1.bf16.msra.mxu0 0
    %5151 = vmatprep.subr.bf16.mxu0 0
    %5152 = vmatpush1.bf16.msra.mxu0 0
    %5153 = vmatprep.subr.bf16.mxu0 0
    %5154 = vmatpush1.bf16.msra.mxu0 0
    %5155 = vmatprep.mubr.bf16.mxu0 %v5080
    %5156 = vmatmul.mubr.bf16.gmra.mrb[0].mxu0 %v5077
    %v5157 = vpop.f32.mrb[0].mxu0
    %v5158 = vadd.f32 0.0, %v5157
    %v5159 = vpop.f32.mrb[0].mxu0
    %v5160 = vadd.f32 0.0, %v5159
    %v5161 = vpop.f32.mrb[0].mxu0
    %v5162 = vpop.f32.mrb[0].mxu0
    %5163 = vdwg.mxu0
    %5164 = vmatprep.subr.bf16.mxu0 %v2940
    %5165 = vmatpush1.bf16.msra.mxu0 %v2939
    %5166 = vmatprep.subr.bf16.mxu0 %v2942
    %5167 = vmatpush1.bf16.msra.mxu0 %v2941
    %5168 = vmatprep.subr.bf16.mxu0 %v2944
    %5169 = vmatpush1.bf16.msra.mxu0 %v2943
    %5170 = vmatprep.subr.bf16.mxu0 %v2946
    %5171 = vmatpush1.bf16.msra.mxu0 %v2945
    %5172 = vmatprep.subr.bf16.mxu0 %v2948
    %5173 = vmatpush1.bf16.msra.mxu0 %v2947
    %5174 = vmatprep.subr.bf16.mxu0 %v2950
    %5175 = vmatpush1.bf16.msra.mxu0 %v2949
    %5176 = vmatprep.subr.bf16.mxu0 %v2952
    %5177 = vmatpush1.bf16.msra.mxu0 %v2951
    %5178 = vmatprep.subr.bf16.mxu0 %v2954
    %5179 = vmatpush1.bf16.msra.mxu0 %v2953
    %5180 = vmatprep.subr.bf16.mxu0 %v2956
    %5181 = vmatpush1.bf16.msra.mxu0 %v2955
    %5182 = vmatprep.subr.bf16.mxu0 %v2958
    %5183 = vmatpush1.bf16.msra.mxu0 %v2957
    %5184 = vmatprep.subr.bf16.mxu0 %v2960
    %5185 = vmatpush1.bf16.msra.mxu0 %v2959
    %5186 = vmatprep.subr.bf16.mxu0 %v2962
    %5187 = vmatpush1.bf16.msra.mxu0 %v2961
    %5188 = vmatprep.subr.bf16.mxu0 %v2993
    %5189 = vmatpush1.bf16.msra.mxu0 %v2990
    %5190 = vmatprep.subr.bf16.mxu0 0
    %5191 = vmatpush1.bf16.msra.mxu0 0
    %5192 = vmatprep.subr.bf16.mxu0 0
    %5193 = vmatpush1.bf16.msra.mxu0 0
    %5194 = vmatprep.subr.bf16.mxu0 0
    %5195 = vmatpush1.bf16.msra.mxu0 0
    %5196 = vmatprep.mubr.bf16.mxu0 %v5080
    %5197 = vmatmul.mubr.bf16.gmra.mrb[0].mxu0 %v5077
    %v5198 = vpop.f32.mrb[0].mxu0
    %v5199 = vadd.f32 %v2510, %v5198
    %v5200 = vpop.f32.mrb[0].mxu0
    %v5201 = vadd.f32 %v2514, %v5200
    %v5202 = vpop.f32.mrb[0].mxu0
    %v5203 = vpop.f32.mrb[0].mxu0
    %5204 = vdwg.mxu0
    %s5205 = scalar_lea.vmem [#allocation2], 192
    %v5206 = vld [vmem:[%s5205] sm:$0xff]
    %v5207 = vld [vmem:[%s5205 + $0x8] sm:$0xff]
    %v5208 = vadd.f32 %v5206, %v5117
    %v5209 = vadd.f32 %v5207, %v5119
    %v5210 = vxor.u32 %v5208, 2147483648
    %v5211 = vxor.u32 %v5209, 2147483648
    %v5212 = vmul.f32 %v5210, 1.442695
    %v5213 = vpow.pop %v5212
    %v5214 = vmul.f32 %v5211, 1.442695
    %v5215 = vpow.pop %v5214
    %v5216 = vadd.f32 %v5213, 1.0
    %v5217 = vadd.f32 %v5215, 1.0
    %v5218 = vrcp.pop %v5216
    %v5219 = vmul.f32 1.0, %v5218
    %v5220 = vrcp.pop %v5217
    %v5221 = vmul.f32 1.0, %v5220
    %s5222 = scalar_lea.vmem [#allocation3], 192
    %v5223 = vld [vmem:[%s5222] sm:$0xff]
    %v5224 = vld [vmem:[%s5222 + $0x8] sm:$0xff]
    %v5225 = vadd.f32 %v5223, %v5158
    %v5226 = vadd.f32 %v5224, %v5160
    %v5227 = vxor.u32 %v5225, 2147483648
    %v5228 = vxor.u32 %v5226, 2147483648
    %v5229 = vmul.f32 %v5227, 1.442695
    %v5230 = vpow.pop %v5229
    %v5231 = vmul.f32 %v5228, 1.442695
    %v5232 = vpow.pop %v5231
    %v5233 = vadd.f32 %v5230, 1.0
    %v5234 = vadd.f32 %v5232, 1.0
    %v5235 = vrcp.pop %v5233
    %v5236 = vmul.f32 1.0, %v5235
    %v5237 = vrcp.pop %v5234
    %v5238 = vmul.f32 1.0, %v5237
    %s5239 = scalar_lea.vmem [#allocation4], 192
    %v5240 = vld [vmem:[%s5239] sm:$0xff]
    %v5241 = vld [vmem:[%s5239 + $0x8] sm:$0xff]
    %v5242 = vmul.f32 %v5219, %v5199
    %v5243 = vmul.f32 %v5221, %v5201
    %v5244 = vadd.f32 %v5240, %v5242
    %v5245 = vadd.f32 %v5241, %v5243
    %v5246 = vtanh.pop %v5244
    %v5247 = vtanh.pop %v5245
    %v5248 = vsub.f32 1.0, %v5236
    %v5249 = vsub.f32 1.0, %v5238
    %v5250 = vmul.f32 %v5248, %v5246
    %v5251 = vmul.f32 %v5249, %v5247
    %v5252 = vmul.f32 %v5236, %v5073
    %v5253 = vmul.f32 %v5238, %v5074
    %v5254 = vadd.f32 %v5250, %v5252
    %v5255 = vadd.f32 %v5251, %v5253
    %v5256 = vadd.f32 %v5075, %v5254
    %v5257 = vadd.f32 %v5076, %v5255
    %v5258 = vpack.c.bf16 %v5254, %v5254
    %v5259 = vpack.c.bf16 %v5255, %v5255
    %v5261 = vsel %vm1414, %v5259, 0
    %5263 = vmatprep.subr.bf16.mxu0 %v2593
    %5264 = vmatpush1.bf16.msra.mxu0 %v2592
    %5265 = vmatprep.subr.bf16.mxu0 %v2595
    %5266 = vmatpush1.bf16.msra.mxu0 %v2594
    %5267 = vmatprep.subr.bf16.mxu0 %v2597
    %5268 = vmatpush1.bf16.msra.mxu0 %v2596
    %5269 = vmatprep.subr.bf16.mxu0 %v2599
    %5270 = vmatpush1.bf16.msra.mxu0 %v2598
    %5271 = vmatprep.subr.bf16.mxu0 %v2601
    %5272 = vmatpush1.bf16.msra.mxu0 %v2600
    %5273 = vmatprep.subr.bf16.mxu0 %v2603
    %5274 = vmatpush1.bf16.msra.mxu0 %v2602
    %5275 = vmatprep.subr.bf16.mxu0 %v2605
    %5276 = vmatpush1.bf16.msra.mxu0 %v2604
    %5277 = vmatprep.subr.bf16.mxu0 %v2607
    %5278 = vmatpush1.bf16.msra.mxu0 %v2606
    %5279 = vmatprep.subr.bf16.mxu0 %v2609
    %5280 = vmatpush1.bf16.msra.mxu0 %v2608
    %5281 = vmatprep.subr.bf16.mxu0 %v2611
    %5282 = vmatpush1.bf16.msra.mxu0 %v2610
    %5283 = vmatprep.subr.bf16.mxu0 %v2613
    %5284 = vmatpush1.bf16.msra.mxu0 %v2612
    %5285 = vmatprep.subr.bf16.mxu0 %v2615
    %5286 = vmatpush1.bf16.msra.mxu0 %v2614
    %5287 = vmatprep.subr.bf16.mxu0 %v2649
    %5288 = vmatpush1.bf16.msra.mxu0 %v2646
    %5289 = vmatprep.subr.bf16.mxu0 0
    %5290 = vmatpush1.bf16.msra.mxu0 0
    %5291 = vmatprep.subr.bf16.mxu0 0
    %5292 = vmatpush1.bf16.msra.mxu0 0
    %5293 = vmatprep.subr.bf16.mxu0 0
    %5294 = vmatpush1.bf16.msra.mxu0 0
    %5295 = vmatprep.mubr.bf16.mxu0 %v5261
    %5296 = vmatmul.mubr.bf16.gmra.mrb[0].mxu0 %v5258
    %v5297 = vpop.f32.mrb[0].mxu0
    %v5298 = vadd.f32 0.0, %v5297
    %v5299 = vpop.f32.mrb[0].mxu0
    %v5300 = vadd.f32 0.0, %v5299
    %v5301 = vpop.f32.mrb[0].mxu0
    %v5302 = vpop.f32.mrb[0].mxu0
    %5303 = vdwg.mxu0
    %5304 = vmatprep.subr.bf16.mxu0 %v2768
    %5305 = vmatpush1.bf16.msra.mxu0 %v2767
    %5306 = vmatprep.subr.bf16.mxu0 %v2770
    %5307 = vmatpush1.bf16.msra.mxu0 %v2769
    %5308 = vmatprep.subr.bf16.mxu0 %v2772
    %5309 = vmatpush1.bf16.msra.mxu0 %v2771
    %5310 = vmatprep.subr.bf16.mxu0 %v2774
    %5311 = vmatpush1.bf16.msra.mxu0 %v2773
    %5312 = vmatprep.subr.bf16.mxu0 %v2776
    %5313 = vmatpush1.bf16.msra.mxu0 %v2775
    %5314 = vmatprep.subr.bf16.mxu0 %v2778
    %5315 = vmatpush1.bf16.msra.mxu0 %v2777
    %5316 = vmatprep.subr.bf16.mxu0 %v2780
    %5317 = vmatpush1.bf16.msra.mxu0 %v2779
    %5318 = vmatprep.subr.bf16.mxu0 %v2782
    %5319 = vmatpush1.bf16.msra.mxu0 %v2781
    %5320 = vmatprep.subr.bf16.mxu0 %v2784
    %5321 = vmatpush1.bf16.msra.mxu0 %v2783
    %5322 = vmatprep.subr.bf16.mxu0 %v2786
    %5323 = vmatpush1.bf16.msra.mxu0 %v2785
    %5324 = vmatprep.subr.bf16.mxu0 %v2788
    %5325 = vmatpush1.bf16.msra.mxu0 %v2787
    %5326 = vmatprep.subr.bf16.mxu0 %v2790
    %5327 = vmatpush1.bf16.msra.mxu0 %v2789
    %5328 = vmatprep.subr.bf16.mxu0 %v2821
    %5329 = vmatpush1.bf16.msra.mxu0 %v2818
    %5330 = vmatprep.subr.bf16.mxu0 0
    %5331 = vmatpush1.bf16.msra.mxu0 0
    %5332 = vmatprep.subr.bf16.mxu0 0
    %5333 = vmatpush1.bf16.msra.mxu0 0
    %5334 = vmatprep.subr.bf16.mxu0 0
    %5335 = vmatpush1.bf16.msra.mxu0 0
    %5336 = vmatprep.mubr.bf16.mxu0 %v5261
    %5337 = vmatmul.mubr.bf16.gmra.mrb[0].mxu0 %v5258
    %v5338 = vpop.f32.mrb[0].mxu0
    %v5339 = vadd.f32 0.0, %v5338
    %v5340 = vpop.f32.mrb[0].mxu0
    %v5341 = vadd.f32 0.0, %v5340
    %v5342 = vpop.f32.mrb[0].mxu0
    %v5343 = vpop.f32.mrb[0].mxu0
    %5344 = vdwg.mxu0
    %5345 = vmatprep.subr.bf16.mxu0 %v2940
    %5346 = vmatpush1.bf16.msra.mxu0 %v2939
    %5347 = vmatprep.subr.bf16.mxu0 %v2942
    %5348 = vmatpush1.bf16.msra.mxu0 %v2941
    %5349 = vmatprep.subr.bf16.mxu0 %v2944
    %5350 = vmatpush1.bf16.msra.mxu0 %v2943
    %5351 = vmatprep.subr.bf16.mxu0 %v2946
    %5352 = vmatpush1.bf16.msra.mxu0 %v2945
    %5353 = vmatprep.subr.bf16.mxu0 %v2948
    %5354 = vmatpush1.bf16.msra.mxu0 %v2947
    %5355 = vmatprep.subr.bf16.mxu0 %v2950
    %5356 = vmatpush1.bf16.msra.mxu0 %v2949
    %5357 = vmatprep.subr.bf16.mxu0 %v2952
    %5358 = vmatpush1.bf16.msra.mxu0 %v2951
    %5359 = vmatprep.subr.bf16.mxu0 %v2954
    %5360 = vmatpush1.bf16.msra.mxu0 %v2953
    %5361 = vmatprep.subr.bf16.mxu0 %v2956
    %5362 = vmatpush1.bf16.msra.mxu0 %v2955
    %5363 = vmatprep.subr.bf16.mxu0 %v2958
    %5364 = vmatpush1.bf16.msra.mxu0 %v2957
    %5365 = vmatprep.subr.bf16.mxu0 %v2960
    %5366 = vmatpush1.bf16.msra.mxu0 %v2959
    %5367 = vmatprep.subr.bf16.mxu0 %v2962
    %5368 = vmatpush1.bf16.msra.mxu0 %v2961
    %5369 = vmatprep.subr.bf16.mxu0 %v2993
    %5370 = vmatpush1.bf16.msra.mxu0 %v2990
    %5371 = vmatprep.subr.bf16.mxu0 0
    %5372 = vmatpush1.bf16.msra.mxu0 0
    %5373 = vmatprep.subr.bf16.mxu0 0
    %5374 = vmatpush1.bf16.msra.mxu0 0
    %5375 = vmatprep.subr.bf16.mxu0 0
    %5376 = vmatpush1.bf16.msra.mxu0 0
    %5377 = vmatprep.mubr.bf16.mxu0 %v5261
    %5378 = vmatmul.mubr.bf16.gmra.mrb[0].mxu0 %v5258
    %v5379 = vpop.f32.mrb[0].mxu0
    %v5380 = vadd.f32 %v2510, %v5379
    %v5381 = vpop.f32.mrb[0].mxu0
    %v5382 = vadd.f32 %v2514, %v5381
    %v5383 = vpop.f32.mrb[0].mxu0
    %v5384 = vpop.f32.mrb[0].mxu0
    %5385 = vdwg.mxu0
    %s5386 = scalar_lea.vmem [#allocation2], 208
    %v5387 = vld [vmem:[%s5386] sm:$0xff]
    %v5388 = vld [vmem:[%s5386 + $0x8] sm:$0xff]
    %v5389 = vadd.f32 %v5387, %v5298
    %v5390 = vadd.f32 %v5388, %v5300
    %v5391 = vxor.u32 %v5389, 2147483648
    %v5392 = vxor.u32 %v5390, 2147483648
    %v5393 = vmul.f32 %v5391, 1.442695
    %v5394 = vpow.pop %v5393
    %v5395 = vmul.f32 %v5392, 1.442695
    %v5396 = vpow.pop %v5395
    %v5397 = vadd.f32 %v5394, 1.0
    %v5398 = vadd.f32 %v5396, 1.0
    %v5399 = vrcp.pop %v5397
    %v5400 = vmul.f32 1.0, %v5399
    %v5401 = vrcp.pop %v5398
    %v5402 = vmul.f32 1.0, %v5401
    %s5403 = scalar_lea.vmem [#allocation3], 208
    %v5404 = vld [vmem:[%s5403] sm:$0xff]
    %v5405 = vld [vmem:[%s5403 + $0x8] sm:$0xff]
    %v5406 = vadd.f32 %v5404, %v5339
    %v5407 = vadd.f32 %v5405, %v5341
    %v5408 = vxor.u32 %v5406, 2147483648
    %v5409 = vxor.u32 %v5407, 2147483648
    %v5410 = vmul.f32 %v5408, 1.442695
    %v5411 = vpow.pop %v5410
    %v5412 = vmul.f32 %v5409, 1.442695
    %v5413 = vpow.pop %v5412
    %v5414 = vadd.f32 %v5411, 1.0
    %v5415 = vadd.f32 %v5413, 1.0
    %v5416 = vrcp.pop %v5414
    %v5417 = vmul.f32 1.0, %v5416
    %v5418 = vrcp.pop %v5415
    %v5419 = vmul.f32 1.0, %v5418
    %s5420 = scalar_lea.vmem [#allocation4], 208
    %v5421 = vld [vmem:[%s5420] sm:$0xff]
    %v5422 = vld [vmem:[%s5420 + $0x8] sm:$0xff]
    %v5423 = vmul.f32 %v5400, %v5380
    %v5424 = vmul.f32 %v5402, %v5382
    %v5425 = vadd.f32 %v5421, %v5423
    %v5426 = vadd.f32 %v5422, %v5424
    %v5427 = vtanh.pop %v5425
    %v5428 = vtanh.pop %v5426
    %v5429 = vsub.f32 1.0, %v5417
    %v5430 = vsub.f32 1.0, %v5419
    %v5431 = vmul.f32 %v5429, %v5427
    %v5432 = vmul.f32 %v5430, %v5428
    %v5433 = vmul.f32 %v5417, %v5254
    %v5434 = vmul.f32 %v5419, %v5255
    %v5435 = vadd.f32 %v5431, %v5433
    %v5436 = vadd.f32 %v5432, %v5434
    %v5437 = vadd.f32 %v5256, %v5435
    %v5438 = vadd.f32 %v5257, %v5436
    %v5439 = vpack.c.bf16 %v5435, %v5435
    %v5440 = vpack.c.bf16 %v5436, %v5436
    %v5442 = vsel %vm1414, %v5440, 0
    %5444 = vmatprep.subr.bf16.mxu0 %v2593
    %5445 = vmatpush1.bf16.msra.mxu0 %v2592
    %5446 = vmatprep.subr.bf16.mxu0 %v2595
    %5447 = vmatpush1.bf16.msra.mxu0 %v2594
    %5448 = vmatprep.subr.bf16.mxu0 %v2597
    %5449 = vmatpush1.bf16.msra.mxu0 %v2596
    %5450 = vmatprep.subr.bf16.mxu0 %v2599
    %5451 = vmatpush1.bf16.msra.mxu0 %v2598
    %5452 = vmatprep.subr.bf16.mxu0 %v2601
    %5453 = vmatpush1.bf16.msra.mxu0 %v2600
    %5454 = vmatprep.subr.bf16.mxu0 %v2603
    %5455 = vmatpush1.bf16.msra.mxu0 %v2602
    %5456 = vmatprep.subr.bf16.mxu0 %v2605
    %5457 = vmatpush1.bf16.msra.mxu0 %v2604
    %5458 = vmatprep.subr.bf16.mxu0 %v2607
    %5459 = vmatpush1.bf16.msra.mxu0 %v2606
    %5460 = vmatprep.subr.bf16.mxu0 %v2609
    %5461 = vmatpush1.bf16.msra.mxu0 %v2608
    %5462 = vmatprep.subr.bf16.mxu0 %v2611
    %5463 = vmatpush1.bf16.msra.mxu0 %v2610
    %5464 = vmatprep.subr.bf16.mxu0 %v2613
    %5465 = vmatpush1.bf16.msra.mxu0 %v2612
    %5466 = vmatprep.subr.bf16.mxu0 %v2615
    %5467 = vmatpush1.bf16.msra.mxu0 %v2614
    %5468 = vmatprep.subr.bf16.mxu0 %v2649
    %5469 = vmatpush1.bf16.msra.mxu0 %v2646
    %5470 = vmatprep.subr.bf16.mxu0 0
    %5471 = vmatpush1.bf16.msra.mxu0 0
    %5472 = vmatprep.subr.bf16.mxu0 0
    %5473 = vmatpush1.bf16.msra.mxu0 0
    %5474 = vmatprep.subr.bf16.mxu0 0
    %5475 = vmatpush1.bf16.msra.mxu0 0
    %5476 = vmatprep.mubr.bf16.mxu0 %v5442
    %5477 = vmatmul.mubr.bf16.gmra.mrb[0].mxu0 %v5439
    %v5478 = vpop.f32.mrb[0].mxu0
    %v5479 = vadd.f32 0.0, %v5478
    %v5480 = vpop.f32.mrb[0].mxu0
    %v5481 = vadd.f32 0.0, %v5480
    %v5482 = vpop.f32.mrb[0].mxu0
    %v5483 = vpop.f32.mrb[0].mxu0
    %5484 = vdwg.mxu0
    %5485 = vmatprep.subr.bf16.mxu0 %v2768
    %5486 = vmatpush1.bf16.msra.mxu0 %v2767
    %5487 = vmatprep.subr.bf16.mxu0 %v2770
    %5488 = vmatpush1.bf16.msra.mxu0 %v2769
    %5489 = vmatprep.subr.bf16.mxu0 %v2772
    %5490 = vmatpush1.bf16.msra.mxu0 %v2771
    %5491 = vmatprep.subr.bf16.mxu0 %v2774
    %5492 = vmatpush1.bf16.msra.mxu0 %v2773
    %5493 = vmatprep.subr.bf16.mxu0 %v2776
    %5494 = vmatpush1.bf16.msra.mxu0 %v2775
    %5495 = vmatprep.subr.bf16.mxu0 %v2778
    %5496 = vmatpush1.bf16.msra.mxu0 %v2777
    %5497 = vmatprep.subr.bf16.mxu0 %v2780
    %5498 = vmatpush1.bf16.msra.mxu0 %v2779
    %5499 = vmatprep.subr.bf16.mxu0 %v2782
    %5500 = vmatpush1.bf16.msra.mxu0 %v2781
    %5501 = vmatprep.subr.bf16.mxu0 %v2784
    %5502 = vmatpush1.bf16.msra.mxu0 %v2783
    %5503 = vmatprep.subr.bf16.mxu0 %v2786
    %5504 = vmatpush1.bf16.msra.mxu0 %v2785
    %5505 = vmatprep.subr.bf16.mxu0 %v2788
    %5506 = vmatpush1.bf16.msra.mxu0 %v2787
    %5507 = vmatprep.subr.bf16.mxu0 %v2790
    %5508 = vmatpush1.bf16.msra.mxu0 %v2789
    %5509 = vmatprep.subr.bf16.mxu0 %v2821
    %5510 = vmatpush1.bf16.msra.mxu0 %v2818
    %5511 = vmatprep.subr.bf16.mxu0 0
    %5512 = vmatpush1.bf16.msra.mxu0 0
    %5513 = vmatprep.subr.bf16.mxu0 0
    %5514 = vmatpush1.bf16.msra.mxu0 0
    %5515 = vmatprep.subr.bf16.mxu0 0
    %5516 = vmatpush1.bf16.msra.mxu0 0
    %5517 = vmatprep.mubr.bf16.mxu0 %v5442
    %5518 = vmatmul.mubr.bf16.gmra.mrb[0].mxu0 %v5439
    %v5519 = vpop.f32.mrb[0].mxu0
    %v5520 = vadd.f32 0.0, %v5519
    %v5521 = vpop.f32.mrb[0].mxu0
    %v5522 = vadd.f32 0.0, %v5521
    %v5523 = vpop.f32.mrb[0].mxu0
    %v5524 = vpop.f32.mrb[0].mxu0
    %5525 = vdwg.mxu0
    %5526 = vmatprep.subr.bf16.mxu0 %v2940
    %5527 = vmatpush1.bf16.msra.mxu0 %v2939
    %5528 = vmatprep.subr.bf16.mxu0 %v2942
    %5529 = vmatpush1.bf16.msra.mxu0 %v2941
    %5530 = vmatprep.subr.bf16.mxu0 %v2944
    %5531 = vmatpush1.bf16.msra.mxu0 %v2943
    %5532 = vmatprep.subr.bf16.mxu0 %v2946
    %5533 = vmatpush1.bf16.msra.mxu0 %v2945
    %5534 = vmatprep.subr.bf16.mxu0 %v2948
    %5535 = vmatpush1.bf16.msra.mxu0 %v2947
    %5536 = vmatprep.subr.bf16.mxu0 %v2950
    %5537 = vmatpush1.bf16.msra.mxu0 %v2949
    %5538 = vmatprep.subr.bf16.mxu0 %v2952
    %5539 = vmatpush1.bf16.msra.mxu0 %v2951
    %5540 = vmatprep.subr.bf16.mxu0 %v2954
    %5541 = vmatpush1.bf16.msra.mxu0 %v2953
    %5542 = vmatprep.subr.bf16.mxu0 %v2956
    %5543 = vmatpush1.bf16.msra.mxu0 %v2955
    %5544 = vmatprep.subr.bf16.mxu0 %v2958
    %5545 = vmatpush1.bf16.msra.mxu0 %v2957
    %5546 = vmatprep.subr.bf16.mxu0 %v2960
    %5547 = vmatpush1.bf16.msra.mxu0 %v2959
    %5548 = vmatprep.subr.bf16.mxu0 %v2962
    %5549 = vmatpush1.bf16.msra.mxu0 %v2961
    %5550 = vmatprep.subr.bf16.mxu0 %v2993
    %5551 = vmatpush1.bf16.msra.mxu0 %v2990
    %5552 = vmatprep.subr.bf16.mxu0 0
    %5553 = vmatpush1.bf16.msra.mxu0 0
    %5554 = vmatprep.subr.bf16.mxu0 0
    %5555 = vmatpush1.bf16.msra.mxu0 0
    %5556 = vmatprep.subr.bf16.mxu0 0
    %5557 = vmatpush1.bf16.msra.mxu0 0
    %5558 = vmatprep.mubr.bf16.mxu0 %v5442
    %5559 = vmatmul.mubr.bf16.gmra.mrb[0].mxu0 %v5439
    %v5560 = vpop.f32.mrb[0].mxu0
    %v5561 = vadd.f32 %v2510, %v5560
    %v5562 = vpop.f32.mrb[0].mxu0
    %v5563 = vadd.f32 %v2514, %v5562
    %v5564 = vpop.f32.mrb[0].mxu0
    %v5565 = vpop.f32.mrb[0].mxu0
    %5566 = vdwg.mxu0
    %s5567 = scalar_lea.vmem [#allocation2], 224
    %v5568 = vld [vmem:[%s5567] sm:$0xff]
    %v5569 = vld [vmem:[%s5567 + $0x8] sm:$0xff]
    %v5570 = vadd.f32 %v5568, %v5479
    %v5571 = vadd.f32 %v5569, %v5481
    %v5572 = vxor.u32 %v5570, 2147483648
    %v5573 = vxor.u32 %v5571, 2147483648
    %v5574 = vmul.f32 %v5572, 1.442695
    %v5575 = vpow.pop %v5574
    %v5576 = vmul.f32 %v5573, 1.442695
    %v5577 = vpow.pop %v5576
    %v5578 = vadd.f32 %v5575, 1.0
    %v5579 = vadd.f32 %v5577, 1.0
    %v5580 = vrcp.pop %v5578
    %v5581 = vmul.f32 1.0, %v5580
    %v5582 = vrcp.pop %v5579
    %v5583 = vmul.f32 1.0, %v5582
    %s5584 = scalar_lea.vmem [#allocation3], 224
    %v5585 = vld [vmem:[%s5584] sm:$0xff]
    %v5586 = vld [vmem:[%s5584 + $0x8] sm:$0xff]
    %v5587 = vadd.f32 %v5585, %v5520
    %v5588 = vadd.f32 %v5586, %v5522
    %v5589 = vxor.u32 %v5587, 2147483648
    %v5590 = vxor.u32 %v5588, 2147483648
    %v5591 = vmul.f32 %v5589, 1.442695
    %v5592 = vpow.pop %v5591
    %v5593 = vmul.f32 %v5590, 1.442695
    %v5594 = vpow.pop %v5593
    %v5595 = vadd.f32 %v5592, 1.0
    %v5596 = vadd.f32 %v5594, 1.0
    %v5597 = vrcp.pop %v5595
    %v5598 = vmul.f32 1.0, %v5597
    %v5599 = vrcp.pop %v5596
    %v5600 = vmul.f32 1.0, %v5599
    %s5601 = scalar_lea.vmem [#allocation4], 224
    %v5602 = vld [vmem:[%s5601] sm:$0xff]
    %v5603 = vld [vmem:[%s5601 + $0x8] sm:$0xff]
    %v5604 = vmul.f32 %v5581, %v5561
    %v5605 = vmul.f32 %v5583, %v5563
    %v5606 = vadd.f32 %v5602, %v5604
    %v5607 = vadd.f32 %v5603, %v5605
    %v5608 = vtanh.pop %v5606
    %v5609 = vtanh.pop %v5607
    %v5610 = vsub.f32 1.0, %v5598
    %v5611 = vsub.f32 1.0, %v5600
    %v5612 = vmul.f32 %v5610, %v5608
    %v5613 = vmul.f32 %v5611, %v5609
    %v5614 = vmul.f32 %v5598, %v5435
    %v5615 = vmul.f32 %v5600, %v5436
    %v5616 = vadd.f32 %v5612, %v5614
    %v5617 = vadd.f32 %v5613, %v5615
    %v5618 = vadd.f32 %v5437, %v5616
    %v5619 = vadd.f32 %v5438, %v5617
    %v5620 = vpack.c.bf16 %v5616, %v5616
    %v5621 = vpack.c.bf16 %v5617, %v5617
    %v5623 = vsel %vm1414, %v5621, 0
    %5625 = vmatprep.subr.bf16.mxu0 %v2593
    %5626 = vmatpush1.bf16.msra.mxu0 %v2592
    %5627 = vmatprep.subr.bf16.mxu0 %v2595
    %5628 = vmatpush1.bf16.msra.mxu0 %v2594
    %5629 = vmatprep.subr.bf16.mxu0 %v2597
    %5630 = vmatpush1.bf16.msra.mxu0 %v2596
    %5631 = vmatprep.subr.bf16.mxu0 %v2599
    %5632 = vmatpush1.bf16.msra.mxu0 %v2598
    %5633 = vmatprep.subr.bf16.mxu0 %v2601
    %5634 = vmatpush1.bf16.msra.mxu0 %v2600
    %5635 = vmatprep.subr.bf16.mxu0 %v2603
    %5636 = vmatpush1.bf16.msra.mxu0 %v2602
    %5637 = vmatprep.subr.bf16.mxu0 %v2605
    %5638 = vmatpush1.bf16.msra.mxu0 %v2604
    %5639 = vmatprep.subr.bf16.mxu0 %v2607
    %5640 = vmatpush1.bf16.msra.mxu0 %v2606
    %5641 = vmatprep.subr.bf16.mxu0 %v2609
    %5642 = vmatpush1.bf16.msra.mxu0 %v2608
    %5643 = vmatprep.subr.bf16.mxu0 %v2611
    %5644 = vmatpush1.bf16.msra.mxu0 %v2610
    %5645 = vmatprep.subr.bf16.mxu0 %v2613
    %5646 = vmatpush1.bf16.msra.mxu0 %v2612
    %5647 = vmatprep.subr.bf16.mxu0 %v2615
    %5648 = vmatpush1.bf16.msra.mxu0 %v2614
    %5649 = vmatprep.subr.bf16.mxu0 %v2649
    %5650 = vmatpush1.bf16.msra.mxu0 %v2646
    %5651 = vmatprep.subr.bf16.mxu0 0
    %5652 = vmatpush1.bf16.msra.mxu0 0
    %5653 = vmatprep.subr.bf16.mxu0 0
    %5654 = vmatpush1.bf16.msra.mxu0 0
    %5655 = vmatprep.subr.bf16.mxu0 0
    %5656 = vmatpush1.bf16.msra.mxu0 0
    %5657 = vmatprep.mubr.bf16.mxu0 %v5623
    %5658 = vmatmul.mubr.bf16.gmra.mrb[0].mxu0 %v5620
    %v5659 = vpop.f32.mrb[0].mxu0
    %v5660 = vadd.f32 0.0, %v5659
    %v5661 = vpop.f32.mrb[0].mxu0
    %v5662 = vadd.f32 0.0, %v5661
    %v5663 = vpop.f32.mrb[0].mxu0
    %v5664 = vpop.f32.mrb[0].mxu0
    %5665 = vdwg.mxu0
    %5666 = vmatprep.subr.bf16.mxu0 %v2768
    %5667 = vmatpush1.bf16.msra.mxu0 %v2767
    %5668 = vmatprep.subr.bf16.mxu0 %v2770
    %5669 = vmatpush1.bf16.msra.mxu0 %v2769
    %5670 = vmatprep.subr.bf16.mxu0 %v2772
    %5671 = vmatpush1.bf16.msra.mxu0 %v2771
    %5672 = vmatprep.subr.bf16.mxu0 %v2774
    %5673 = vmatpush1.bf16.msra.mxu0 %v2773
    %5674 = vmatprep.subr.bf16.mxu0 %v2776
    %5675 = vmatpush1.bf16.msra.mxu0 %v2775
    %5676 = vmatprep.subr.bf16.mxu0 %v2778
    %5677 = vmatpush1.bf16.msra.mxu0 %v2777
    %5678 = vmatprep.subr.bf16.mxu0 %v2780
    %5679 = vmatpush1.bf16.msra.mxu0 %v2779
    %5680 = vmatprep.subr.bf16.mxu0 %v2782
    %5681 = vmatpush1.bf16.msra.mxu0 %v2781
    %5682 = vmatprep.subr.bf16.mxu0 %v2784
    %5683 = vmatpush1.bf16.msra.mxu0 %v2783
    %5684 = vmatprep.subr.bf16.mxu0 %v2786
    %5685 = vmatpush1.bf16.msra.mxu0 %v2785
    %5686 = vmatprep.subr.bf16.mxu0 %v2788
    %5687 = vmatpush1.bf16.msra.mxu0 %v2787
    %5688 = vmatprep.subr.bf16.mxu0 %v2790
    %5689 = vmatpush1.bf16.msra.mxu0 %v2789
    %5690 = vmatprep.subr.bf16.mxu0 %v2821
    %5691 = vmatpush1.bf16.msra.mxu0 %v2818
    %5692 = vmatprep.subr.bf16.mxu0 0
    %5693 = vmatpush1.bf16.msra.mxu0 0
    %5694 = vmatprep.subr.bf16.mxu0 0
    %5695 = vmatpush1.bf16.msra.mxu0 0
    %5696 = vmatprep.subr.bf16.mxu0 0
    %5697 = vmatpush1.bf16.msra.mxu0 0
    %5698 = vmatprep.mubr.bf16.mxu0 %v5623
    %5699 = vmatmul.mubr.bf16.gmra.mrb[0].mxu0 %v5620
    %v5700 = vpop.f32.mrb[0].mxu0
    %v5701 = vadd.f32 0.0, %v5700
    %v5702 = vpop.f32.mrb[0].mxu0
    %v5703 = vadd.f32 0.0, %v5702
    %v5704 = vpop.f32.mrb[0].mxu0
    %v5705 = vpop.f32.mrb[0].mxu0
    %5706 = vdwg.mxu0
    %5707 = vmatprep.subr.bf16.mxu0 %v2940
    %5708 = vmatpush1.bf16.msra.mxu0 %v2939
    %5709 = vmatprep.subr.bf16.mxu0 %v2942
    %5710 = vmatpush1.bf16.msra.mxu0 %v2941
    %5711 = vmatprep.subr.bf16.mxu0 %v2944
    %5712 = vmatpush1.bf16.msra.mxu0 %v2943
    %5713 = vmatprep.subr.bf16.mxu0 %v2946
    %5714 = vmatpush1.bf16.msra.mxu0 %v2945
    %5715 = vmatprep.subr.bf16.mxu0 %v2948
    %5716 = vmatpush1.bf16.msra.mxu0 %v2947
    %5717 = vmatprep.subr.bf16.mxu0 %v2950
    %5718 = vmatpush1.bf16.msra.mxu0 %v2949
    %5719 = vmatprep.subr.bf16.mxu0 %v2952
    %5720 = vmatpush1.bf16.msra.mxu0 %v2951
    %5721 = vmatprep.subr.bf16.mxu0 %v2954
    %5722 = vmatpush1.bf16.msra.mxu0 %v2953
    %5723 = vmatprep.subr.bf16.mxu0 %v2956
    %5724 = vmatpush1.bf16.msra.mxu0 %v2955
    %5725 = vmatprep.subr.bf16.mxu0 %v2958
    %5726 = vmatpush1.bf16.msra.mxu0 %v2957
    %5727 = vmatprep.subr.bf16.mxu0 %v2960
    %5728 = vmatpush1.bf16.msra.mxu0 %v2959
    %5729 = vmatprep.subr.bf16.mxu0 %v2962
    %5730 = vmatpush1.bf16.msra.mxu0 %v2961
    %5731 = vmatprep.subr.bf16.mxu0 %v2993
    %5732 = vmatpush1.bf16.msra.mxu0 %v2990
    %5733 = vmatprep.subr.bf16.mxu0 0
    %5734 = vmatpush1.bf16.msra.mxu0 0
    %5735 = vmatprep.subr.bf16.mxu0 0
    %5736 = vmatpush1.bf16.msra.mxu0 0
    %5737 = vmatprep.subr.bf16.mxu0 0
    %5738 = vmatpush1.bf16.msra.mxu0 0
    %5739 = vmatprep.mubr.bf16.mxu0 %v5623
    %5740 = vmatmul.mubr.bf16.gmra.mrb[0].mxu0 %v5620
    %v5741 = vpop.f32.mrb[0].mxu0
    %v5742 = vadd.f32 %v2510, %v5741
    %v5743 = vpop.f32.mrb[0].mxu0
    %v5744 = vadd.f32 %v2514, %v5743
    %v5745 = vpop.f32.mrb[0].mxu0
    %v5746 = vpop.f32.mrb[0].mxu0
    %5747 = vdwg.mxu0
    %s5748 = scalar_lea.vmem [#allocation2], 240
    %v5749 = vld [vmem:[%s5748] sm:$0xff]
    %v5750 = vld [vmem:[%s5748 + $0x8] sm:$0xff]
    %v5751 = vadd.f32 %v5749, %v5660
    %v5752 = vadd.f32 %v5750, %v5662
    %v5753 = vxor.u32 %v5751, 2147483648
    %v5754 = vxor.u32 %v5752, 2147483648
    %v5755 = vmul.f32 %v5753, 1.442695
    %v5756 = vpow.pop %v5755
    %v5757 = vmul.f32 %v5754, 1.442695
    %v5758 = vpow.pop %v5757
    %v5759 = vadd.f32 %v5756, 1.0
    %v5760 = vadd.f32 %v5758, 1.0
    %v5761 = vrcp.pop %v5759
    %v5762 = vmul.f32 1.0, %v5761
    %v5763 = vrcp.pop %v5760
    %v5764 = vmul.f32 1.0, %v5763
    %s5765 = scalar_lea.vmem [#allocation3], 240
    %v5766 = vld [vmem:[%s5765] sm:$0xff]
    %v5767 = vld [vmem:[%s5765 + $0x8] sm:$0xff]
    %v5768 = vadd.f32 %v5766, %v5701
    %v5769 = vadd.f32 %v5767, %v5703
    %v5770 = vxor.u32 %v5768, 2147483648
    %v5771 = vxor.u32 %v5769, 2147483648
    %v5772 = vmul.f32 %v5770, 1.442695
    %v5773 = vpow.pop %v5772
    %v5774 = vmul.f32 %v5771, 1.442695
    %v5775 = vpow.pop %v5774
    %v5776 = vadd.f32 %v5773, 1.0
    %v5777 = vadd.f32 %v5775, 1.0
    %v5778 = vrcp.pop %v5776
    %v5779 = vmul.f32 1.0, %v5778
    %v5780 = vrcp.pop %v5777
    %v5781 = vmul.f32 1.0, %v5780
    %s5782 = scalar_lea.vmem [#allocation4], 240
    %v5783 = vld [vmem:[%s5782] sm:$0xff]
    %v5784 = vld [vmem:[%s5782 + $0x8] sm:$0xff]
    %v5785 = vmul.f32 %v5762, %v5742
    %v5786 = vmul.f32 %v5764, %v5744
    %v5787 = vadd.f32 %v5783, %v5785
    %v5788 = vadd.f32 %v5784, %v5786
    %v5789 = vtanh.pop %v5787
    %v5790 = vtanh.pop %v5788
    %v5791 = vsub.f32 1.0, %v5779
    %v5792 = vsub.f32 1.0, %v5781
    %v5793 = vmul.f32 %v5791, %v5789
    %v5794 = vmul.f32 %v5792, %v5790
    %v5795 = vmul.f32 %v5779, %v5616
    %v5796 = vmul.f32 %v5781, %v5617
    %v5797 = vadd.f32 %v5793, %v5795
    %v5798 = vadd.f32 %v5794, %v5796
    %v5799 = vadd.f32 %v5618, %v5797
    %v5800 = vadd.f32 %v5619, %v5798
    %v5801 = vpack.c.bf16 %v5797, %v5797
    %v5802 = vpack.c.bf16 %v5798, %v5798
    %v5804 = vsel %vm1414, %v5802, 0
    %5806 = vmatprep.subr.bf16.mxu0 %v2593
    %5807 = vmatpush1.bf16.msra.mxu0 %v2592
    %5808 = vmatprep.subr.bf16.mxu0 %v2595
    %5809 = vmatpush1.bf16.msra.mxu0 %v2594
    %5810 = vmatprep.subr.bf16.mxu0 %v2597
    %5811 = vmatpush1.bf16.msra.mxu0 %v2596
    %5812 = vmatprep.subr.bf16.mxu0 %v2599
    %5813 = vmatpush1.bf16.msra.mxu0 %v2598
    %5814 = vmatprep.subr.bf16.mxu0 %v2601
    %5815 = vmatpush1.bf16.msra.mxu0 %v2600
    %5816 = vmatprep.subr.bf16.mxu0 %v2603
    %5817 = vmatpush1.bf16.msra.mxu0 %v2602
    %5818 = vmatprep.subr.bf16.mxu0 %v2605
    %5819 = vmatpush1.bf16.msra.mxu0 %v2604
    %5820 = vmatprep.subr.bf16.mxu0 %v2607
    %5821 = vmatpush1.bf16.msra.mxu0 %v2606
    %5822 = vmatprep.subr.bf16.mxu0 %v2609
    %5823 = vmatpush1.bf16.msra.mxu0 %v2608
    %5824 = vmatprep.subr.bf16.mxu0 %v2611
    %5825 = vmatpush1.bf16.msra.mxu0 %v2610
    %5826 = vmatprep.subr.bf16.mxu0 %v2613
    %5827 = vmatpush1.bf16.msra.mxu0 %v2612
    %5828 = vmatprep.subr.bf16.mxu0 %v2615
    %5829 = vmatpush1.bf16.msra.mxu0 %v2614
    %5830 = vmatprep.subr.bf16.mxu0 %v2649
    %5831 = vmatpush1.bf16.msra.mxu0 %v2646
    %5832 = vmatprep.subr.bf16.mxu0 0
    %5833 = vmatpush1.bf16.msra.mxu0 0
    %5834 = vmatprep.subr.bf16.mxu0 0
    %5835 = vmatpush1.bf16.msra.mxu0 0
    %5836 = vmatprep.subr.bf16.mxu0 0
    %5837 = vmatpush1.bf16.msra.mxu0 0
    %5838 = vmatprep.mubr.bf16.mxu0 %v5804
    %5839 = vmatmul.mubr.bf16.gmra.mrb[0].mxu0 %v5801
    %v5840 = vpop.f32.mrb[0].mxu0
    %v5841 = vadd.f32 0.0, %v5840
    %v5842 = vpop.f32.mrb[0].mxu0
    %v5843 = vadd.f32 0.0, %v5842
    %v5844 = vpop.f32.mrb[0].mxu0
    %v5845 = vpop.f32.mrb[0].mxu0
    %5846 = vdwg.mxu0
    %5847 = vmatprep.subr.bf16.mxu0 %v2768
    %5848 = vmatpush1.bf16.msra.mxu0 %v2767
    %5849 = vmatprep.subr.bf16.mxu0 %v2770
    %5850 = vmatpush1.bf16.msra.mxu0 %v2769
    %5851 = vmatprep.subr.bf16.mxu0 %v2772
    %5852 = vmatpush1.bf16.msra.mxu0 %v2771
    %5853 = vmatprep.subr.bf16.mxu0 %v2774
    %5854 = vmatpush1.bf16.msra.mxu0 %v2773
    %5855 = vmatprep.subr.bf16.mxu0 %v2776
    %5856 = vmatpush1.bf16.msra.mxu0 %v2775
    %5857 = vmatprep.subr.bf16.mxu0 %v2778
    %5858 = vmatpush1.bf16.msra.mxu0 %v2777
    %5859 = vmatprep.subr.bf16.mxu0 %v2780
    %5860 = vmatpush1.bf16.msra.mxu0 %v2779
    %5861 = vmatprep.subr.bf16.mxu0 %v2782
    %5862 = vmatpush1.bf16.msra.mxu0 %v2781
    %5863 = vmatprep.subr.bf16.mxu0 %v2784
    %5864 = vmatpush1.bf16.msra.mxu0 %v2783
    %5865 = vmatprep.subr.bf16.mxu0 %v2786
    %5866 = vmatpush1.bf16.msra.mxu0 %v2785
    %5867 = vmatprep.subr.bf16.mxu0 %v2788
    %5868 = vmatpush1.bf16.msra.mxu0 %v2787
    %5869 = vmatprep.subr.bf16.mxu0 %v2790
    %5870 = vmatpush1.bf16.msra.mxu0 %v2789
    %5871 = vmatprep.subr.bf16.mxu0 %v2821
    %5872 = vmatpush1.bf16.msra.mxu0 %v2818
    %5873 = vmatprep.subr.bf16.mxu0 0
    %5874 = vmatpush1.bf16.msra.mxu0 0
    %5875 = vmatprep.subr.bf16.mxu0 0
    %5876 = vmatpush1.bf16.msra.mxu0 0
    %5877 = vmatprep.subr.bf16.mxu0 0
    %5878 = vmatpush1.bf16.msra.mxu0 0
    %5879 = vmatprep.mubr.bf16.mxu0 %v5804
    %5880 = vmatmul.mubr.bf16.gmra.mrb[0].mxu0 %v5801
    %v5881 = vpop.f32.mrb[0].mxu0
    %v5882 = vadd.f32 0.0, %v5881
    %v5883 = vpop.f32.mrb[0].mxu0
    %v5884 = vadd.f32 0.0, %v5883
    %v5885 = vpop.f32.mrb[0].mxu0
    %v5886 = vpop.f32.mrb[0].mxu0
    %5887 = vdwg.mxu0
    %5888 = vmatprep.subr.bf16.mxu0 %v2940
    %5889 = vmatpush1.bf16.msra.mxu0 %v2939
    %5890 = vmatprep.subr.bf16.mxu0 %v2942
    %5891 = vmatpush1.bf16.msra.mxu0 %v2941
    %5892 = vmatprep.subr.bf16.mxu0 %v2944
    %5893 = vmatpush1.bf16.msra.mxu0 %v2943
    %5894 = vmatprep.subr.bf16.mxu0 %v2946
    %5895 = vmatpush1.bf16.msra.mxu0 %v2945
    %5896 = vmatprep.subr.bf16.mxu0 %v2948
    %5897 = vmatpush1.bf16.msra.mxu0 %v2947
    %5898 = vmatprep.subr.bf16.mxu0 %v2950
    %5899 = vmatpush1.bf16.msra.mxu0 %v2949
    %5900 = vmatprep.subr.bf16.mxu0 %v2952
    %5901 = vmatpush1.bf16.msra.mxu0 %v2951
    %5902 = vmatprep.subr.bf16.mxu0 %v2954
    %5903 = vmatpush1.bf16.msra.mxu0 %v2953
    %5904 = vmatprep.subr.bf16.mxu0 %v2956
    %5905 = vmatpush1.bf16.msra.mxu0 %v2955
    %5906 = vmatprep.subr.bf16.mxu0 %v2958
    %5907 = vmatpush1.bf16.msra.mxu0 %v2957
    %5908 = vmatprep.subr.bf16.mxu0 %v2960
    %5909 = vmatpush1.bf16.msra.mxu0 %v2959
    %5910 = vmatprep.subr.bf16.mxu0 %v2962
    %5911 = vmatpush1.bf16.msra.mxu0 %v2961
    %5912 = vmatprep.subr.bf16.mxu0 %v2993
    %5913 = vmatpush1.bf16.msra.mxu0 %v2990
    %5914 = vmatprep.subr.bf16.mxu0 0
    %5915 = vmatpush1.bf16.msra.mxu0 0
    %5916 = vmatprep.subr.bf16.mxu0 0
    %5917 = vmatpush1.bf16.msra.mxu0 0
    %5918 = vmatprep.subr.bf16.mxu0 0
    %5919 = vmatpush1.bf16.msra.mxu0 0
    %5920 = vmatprep.mubr.bf16.mxu0 %v5804
    %5921 = vmatmul.mubr.bf16.gmra.mrb[0].mxu0 %v5801
    %v5922 = vpop.f32.mrb[0].mxu0
    %v5923 = vadd.f32 %v2510, %v5922
    %v5924 = vpop.f32.mrb[0].mxu0
    %v5925 = vadd.f32 %v2514, %v5924
    %v5926 = vpop.f32.mrb[0].mxu0
    %v5927 = vpop.f32.mrb[0].mxu0
    %5928 = vdwg.mxu0
    %s5929 = scalar_lea.vmem [#allocation2], 256
    %v5930 = vld [vmem:[%s5929] sm:$0xff]
    %v5931 = vld [vmem:[%s5929 + $0x8] sm:$0xff]
    %v5932 = vadd.f32 %v5930, %v5841
    %v5933 = vadd.f32 %v5931, %v5843
    %v5934 = vxor.u32 %v5932, 2147483648
    %v5935 = vxor.u32 %v5933, 2147483648
    %v5936 = vmul.f32 %v5934, 1.442695
    %v5937 = vpow.pop %v5936
    %v5938 = vmul.f32 %v5935, 1.442695
    %v5939 = vpow.pop %v5938
    %v5940 = vadd.f32 %v5937, 1.0
    %v5941 = vadd.f32 %v5939, 1.0
    %v5942 = vrcp.pop %v5940
    %v5943 = vmul.f32 1.0, %v5942
    %v5944 = vrcp.pop %v5941
    %v5945 = vmul.f32 1.0, %v5944
    %s5946 = scalar_lea.vmem [#allocation3], 256
    %v5947 = vld [vmem:[%s5946] sm:$0xff]
    %v5948 = vld [vmem:[%s5946 + $0x8] sm:$0xff]
    %v5949 = vadd.f32 %v5947, %v5882
    %v5950 = vadd.f32 %v5948, %v5884
    %v5951 = vxor.u32 %v5949, 2147483648
    %v5952 = vxor.u32 %v5950, 2147483648
    %v5953 = vmul.f32 %v5951, 1.442695
    %v5954 = vpow.pop %v5953
    %v5955 = vmul.f32 %v5952, 1.442695
    %v5956 = vpow.pop %v5955
    %v5957 = vadd.f32 %v5954, 1.0
    %v5958 = vadd.f32 %v5956, 1.0
    %v5959 = vrcp.pop %v5957
    %v5960 = vmul.f32 1.0, %v5959
    %v5961 = vrcp.pop %v5958
    %v5962 = vmul.f32 1.0, %v5961
    %s5963 = scalar_lea.vmem [#allocation4], 256
    %v5964 = vld [vmem:[%s5963] sm:$0xff]
    %v5965 = vld [vmem:[%s5963 + $0x8] sm:$0xff]
    %v5966 = vmul.f32 %v5943, %v5923
    %v5967 = vmul.f32 %v5945, %v5925
    %v5968 = vadd.f32 %v5964, %v5966
    %v5969 = vadd.f32 %v5965, %v5967
    %v5970 = vtanh.pop %v5968
    %v5971 = vtanh.pop %v5969
    %v5972 = vsub.f32 1.0, %v5960
    %v5973 = vsub.f32 1.0, %v5962
    %v5974 = vmul.f32 %v5972, %v5970
    %v5975 = vmul.f32 %v5973, %v5971
    %v5976 = vmul.f32 %v5960, %v5797
    %v5977 = vmul.f32 %v5962, %v5798
    %v5978 = vadd.f32 %v5974, %v5976
    %v5979 = vadd.f32 %v5975, %v5977
    %v5980 = vadd.f32 %v5799, %v5978
    %v5981 = vadd.f32 %v5800, %v5979
    %v5982 = vpack.c.bf16 %v5978, %v5978
    %v5983 = vpack.c.bf16 %v5979, %v5979
    %v5985 = vsel %vm1414, %v5983, 0
    %5987 = vmatprep.subr.bf16.mxu0 %v2593
    %5988 = vmatpush1.bf16.msra.mxu0 %v2592
    %5989 = vmatprep.subr.bf16.mxu0 %v2595
    %5990 = vmatpush1.bf16.msra.mxu0 %v2594
    %5991 = vmatprep.subr.bf16.mxu0 %v2597
    %5992 = vmatpush1.bf16.msra.mxu0 %v2596
    %5993 = vmatprep.subr.bf16.mxu0 %v2599
    %5994 = vmatpush1.bf16.msra.mxu0 %v2598
    %5995 = vmatprep.subr.bf16.mxu0 %v2601
    %5996 = vmatpush1.bf16.msra.mxu0 %v2600
    %5997 = vmatprep.subr.bf16.mxu0 %v2603
    %5998 = vmatpush1.bf16.msra.mxu0 %v2602
    %5999 = vmatprep.subr.bf16.mxu0 %v2605
    %6000 = vmatpush1.bf16.msra.mxu0 %v2604
    %6001 = vmatprep.subr.bf16.mxu0 %v2607
    %6002 = vmatpush1.bf16.msra.mxu0 %v2606
    %6003 = vmatprep.subr.bf16.mxu0 %v2609
    %6004 = vmatpush1.bf16.msra.mxu0 %v2608
    %6005 = vmatprep.subr.bf16.mxu0 %v2611
    %6006 = vmatpush1.bf16.msra.mxu0 %v2610
    %6007 = vmatprep.subr.bf16.mxu0 %v2613
    %6008 = vmatpush1.bf16.msra.mxu0 %v2612
    %6009 = vmatprep.subr.bf16.mxu0 %v2615
    %6010 = vmatpush1.bf16.msra.mxu0 %v2614
    %6011 = vmatprep.subr.bf16.mxu0 %v2649
    %6012 = vmatpush1.bf16.msra.mxu0 %v2646
    %6013 = vmatprep.subr.bf16.mxu0 0
    %6014 = vmatpush1.bf16.msra.mxu0 0
    %6015 = vmatprep.subr.bf16.mxu0 0
    %6016 = vmatpush1.bf16.msra.mxu0 0
    %6017 = vmatprep.subr.bf16.mxu0 0
    %6018 = vmatpush1.bf16.msra.mxu0 0
    %6019 = vmatprep.mubr.bf16.mxu0 %v5985
    %6020 = vmatmul.mubr.bf16.gmra.mrb[0].mxu0 %v5982
    %v6021 = vpop.f32.mrb[0].mxu0
    %v6022 = vadd.f32 0.0, %v6021
    %v6023 = vpop.f32.mrb[0].mxu0
    %v6024 = vadd.f32 0.0, %v6023
    %v6025 = vpop.f32.mrb[0].mxu0
    %v6026 = vpop.f32.mrb[0].mxu0
    %6027 = vdwg.mxu0
    %6028 = vmatprep.subr.bf16.mxu0 %v2768
    %6029 = vmatpush1.bf16.msra.mxu0 %v2767
    %6030 = vmatprep.subr.bf16.mxu0 %v2770
    %6031 = vmatpush1.bf16.msra.mxu0 %v2769
    %6032 = vmatprep.subr.bf16.mxu0 %v2772
    %6033 = vmatpush1.bf16.msra.mxu0 %v2771
    %6034 = vmatprep.subr.bf16.mxu0 %v2774
    %6035 = vmatpush1.bf16.msra.mxu0 %v2773
    %6036 = vmatprep.subr.bf16.mxu0 %v2776
    %6037 = vmatpush1.bf16.msra.mxu0 %v2775
    %6038 = vmatprep.subr.bf16.mxu0 %v2778
    %6039 = vmatpush1.bf16.msra.mxu0 %v2777
    %6040 = vmatprep.subr.bf16.mxu0 %v2780
    %6041 = vmatpush1.bf16.msra.mxu0 %v2779
    %6042 = vmatprep.subr.bf16.mxu0 %v2782
    %6043 = vmatpush1.bf16.msra.mxu0 %v2781
    %6044 = vmatprep.subr.bf16.mxu0 %v2784
    %6045 = vmatpush1.bf16.msra.mxu0 %v2783
    %6046 = vmatprep.subr.bf16.mxu0 %v2786
    %6047 = vmatpush1.bf16.msra.mxu0 %v2785
    %6048 = vmatprep.subr.bf16.mxu0 %v2788
    %6049 = vmatpush1.bf16.msra.mxu0 %v2787
    %6050 = vmatprep.subr.bf16.mxu0 %v2790
    %6051 = vmatpush1.bf16.msra.mxu0 %v2789
    %6052 = vmatprep.subr.bf16.mxu0 %v2821
    %6053 = vmatpush1.bf16.msra.mxu0 %v2818
    %6054 = vmatprep.subr.bf16.mxu0 0
    %6055 = vmatpush1.bf16.msra.mxu0 0
    %6056 = vmatprep.subr.bf16.mxu0 0
    %6057 = vmatpush1.bf16.msra.mxu0 0
    %6058 = vmatprep.subr.bf16.mxu0 0
    %6059 = vmatpush1.bf16.msra.mxu0 0
    %6060 = vmatprep.mubr.bf16.mxu0 %v5985
    %6061 = vmatmul.mubr.bf16.gmra.mrb[0].mxu0 %v5982
    %v6062 = vpop.f32.mrb[0].mxu0
    %v6063 = vadd.f32 0.0, %v6062
    %v6064 = vpop.f32.mrb[0].mxu0
    %v6065 = vadd.f32 0.0, %v6064
    %v6066 = vpop.f32.mrb[0].mxu0
    %v6067 = vpop.f32.mrb[0].mxu0
    %6068 = vdwg.mxu0
    %6069 = vmatprep.subr.bf16.mxu0 %v2940
    %6070 = vmatpush1.bf16.msra.mxu0 %v2939
    %6071 = vmatprep.subr.bf16.mxu0 %v2942
    %6072 = vmatpush1.bf16.msra.mxu0 %v2941
    %6073 = vmatprep.subr.bf16.mxu0 %v2944
    %6074 = vmatpush1.bf16.msra.mxu0 %v2943
    %6075 = vmatprep.subr.bf16.mxu0 %v2946
    %6076 = vmatpush1.bf16.msra.mxu0 %v2945
    %6077 = vmatprep.subr.bf16.mxu0 %v2948
    %6078 = vmatpush1.bf16.msra.mxu0 %v2947
    %6079 = vmatprep.subr.bf16.mxu0 %v2950
    %6080 = vmatpush1.bf16.msra.mxu0 %v2949
    %6081 = vmatprep.subr.bf16.mxu0 %v2952
    %6082 = vmatpush1.bf16.msra.mxu0 %v2951
    %6083 = vmatprep.subr.bf16.mxu0 %v2954
    %6084 = vmatpush1.bf16.msra.mxu0 %v2953
    %6085 = vmatprep.subr.bf16.mxu0 %v2956
    %6086 = vmatpush1.bf16.msra.mxu0 %v2955
    %6087 = vmatprep.subr.bf16.mxu0 %v2958
    %6088 = vmatpush1.bf16.msra.mxu0 %v2957
    %6089 = vmatprep.subr.bf16.mxu0 %v2960
    %6090 = vmatpush1.bf16.msra.mxu0 %v2959
    %6091 = vmatprep.subr.bf16.mxu0 %v2962
    %6092 = vmatpush1.bf16.msra.mxu0 %v2961
    %6093 = vmatprep.subr.bf16.mxu0 %v2993
    %6094 = vmatpush1.bf16.msra.mxu0 %v2990
    %6095 = vmatprep.subr.bf16.mxu0 0
    %6096 = vmatpush1.bf16.msra.mxu0 0
    %6097 = vmatprep.subr.bf16.mxu0 0
    %6098 = vmatpush1.bf16.msra.mxu0 0
    %6099 = vmatprep.subr.bf16.mxu0 0
    %6100 = vmatpush1.bf16.msra.mxu0 0
    %6101 = vmatprep.mubr.bf16.mxu0 %v5985
    %6102 = vmatmul.mubr.bf16.gmra.mrb[0].mxu0 %v5982
    %v6103 = vpop.f32.mrb[0].mxu0
    %v6104 = vadd.f32 %v2510, %v6103
    %v6105 = vpop.f32.mrb[0].mxu0
    %v6106 = vadd.f32 %v2514, %v6105
    %v6107 = vpop.f32.mrb[0].mxu0
    %v6108 = vpop.f32.mrb[0].mxu0
    %6109 = vdwg.mxu0
    %s6110 = scalar_lea.vmem [#allocation2], 272
    %v6111 = vld [vmem:[%s6110] sm:$0xff]
    %v6112 = vld [vmem:[%s6110 + $0x8] sm:$0xff]
    %v6113 = vadd.f32 %v6111, %v6022
    %v6114 = vadd.f32 %v6112, %v6024
    %v6115 = vxor.u32 %v6113, 2147483648
    %v6116 = vxor.u32 %v6114, 2147483648
    %v6117 = vmul.f32 %v6115, 1.442695
    %v6118 = vpow.pop %v6117
    %v6119 = vmul.f32 %v6116, 1.442695
    %v6120 = vpow.pop %v6119
    %v6121 = vadd.f32 %v6118, 1.0
    %v6122 = vadd.f32 %v6120, 1.0
    %v6123 = vrcp.pop %v6121
    %v6124 = vmul.f32 1.0, %v6123
    %v6125 = vrcp.pop %v6122
    %v6126 = vmul.f32 1.0, %v6125
    %s6127 = scalar_lea.vmem [#allocation3], 272
    %v6128 = vld [vmem:[%s6127] sm:$0xff]
    %v6129 = vld [vmem:[%s6127 + $0x8] sm:$0xff]
    %v6130 = vadd.f32 %v6128, %v6063
    %v6131 = vadd.f32 %v6129, %v6065
    %v6132 = vxor.u32 %v6130, 2147483648
    %v6133 = vxor.u32 %v6131, 2147483648
    %v6134 = vmul.f32 %v6132, 1.442695
    %v6135 = vpow.pop %v6134
    %v6136 = vmul.f32 %v6133, 1.442695
    %v6137 = vpow.pop %v6136
    %v6138 = vadd.f32 %v6135, 1.0
    %v6139 = vadd.f32 %v6137, 1.0
    %v6140 = vrcp.pop %v6138
    %v6141 = vmul.f32 1.0, %v6140
    %v6142 = vrcp.pop %v6139
    %v6143 = vmul.f32 1.0, %v6142
    %s6144 = scalar_lea.vmem [#allocation4], 272
    %v6145 = vld [vmem:[%s6144] sm:$0xff]
    %v6146 = vld [vmem:[%s6144 + $0x8] sm:$0xff]
    %v6147 = vmul.f32 %v6124, %v6104
    %v6148 = vmul.f32 %v6126, %v6106
    %v6149 = vadd.f32 %v6145, %v6147
    %v6150 = vadd.f32 %v6146, %v6148
    %v6151 = vtanh.pop %v6149
    %v6152 = vtanh.pop %v6150
    %v6153 = vsub.f32 1.0, %v6141
    %v6154 = vsub.f32 1.0, %v6143
    %v6155 = vmul.f32 %v6153, %v6151
    %v6156 = vmul.f32 %v6154, %v6152
    %v6157 = vmul.f32 %v6141, %v5978
    %v6158 = vmul.f32 %v6143, %v5979
    %v6159 = vadd.f32 %v6155, %v6157
    %v6160 = vadd.f32 %v6156, %v6158
    %v6161 = vadd.f32 %v5980, %v6159
    %v6162 = vadd.f32 %v5981, %v6160
    %v6163 = vpack.c.bf16 %v6159, %v6159
    %v6164 = vpack.c.bf16 %v6160, %v6160
    %v6166 = vsel %vm1414, %v6164, 0
    %6168 = vmatprep.subr.bf16.mxu0 %v2593
    %6169 = vmatpush1.bf16.msra.mxu0 %v2592
    %6170 = vmatprep.subr.bf16.mxu0 %v2595
    %6171 = vmatpush1.bf16.msra.mxu0 %v2594
    %6172 = vmatprep.subr.bf16.mxu0 %v2597
    %6173 = vmatpush1.bf16.msra.mxu0 %v2596
    %6174 = vmatprep.subr.bf16.mxu0 %v2599
    %6175 = vmatpush1.bf16.msra.mxu0 %v2598
    %6176 = vmatprep.subr.bf16.mxu0 %v2601
    %6177 = vmatpush1.bf16.msra.mxu0 %v2600
    %6178 = vmatprep.subr.bf16.mxu0 %v2603
    %6179 = vmatpush1.bf16.msra.mxu0 %v2602
    %6180 = vmatprep.subr.bf16.mxu0 %v2605
    %6181 = vmatpush1.bf16.msra.mxu0 %v2604
    %6182 = vmatprep.subr.bf16.mxu0 %v2607
    %6183 = vmatpush1.bf16.msra.mxu0 %v2606
    %6184 = vmatprep.subr.bf16.mxu0 %v2609
    %6185 = vmatpush1.bf16.msra.mxu0 %v2608
    %6186 = vmatprep.subr.bf16.mxu0 %v2611
    %6187 = vmatpush1.bf16.msra.mxu0 %v2610
    %6188 = vmatprep.subr.bf16.mxu0 %v2613
    %6189 = vmatpush1.bf16.msra.mxu0 %v2612
    %6190 = vmatprep.subr.bf16.mxu0 %v2615
    %6191 = vmatpush1.bf16.msra.mxu0 %v2614
    %6192 = vmatprep.subr.bf16.mxu0 %v2649
    %6193 = vmatpush1.bf16.msra.mxu0 %v2646
    %6194 = vmatprep.subr.bf16.mxu0 0
    %6195 = vmatpush1.bf16.msra.mxu0 0
    %6196 = vmatprep.subr.bf16.mxu0 0
    %6197 = vmatpush1.bf16.msra.mxu0 0
    %6198 = vmatprep.subr.bf16.mxu0 0
    %6199 = vmatpush1.bf16.msra.mxu0 0
    %6200 = vmatprep.mubr.bf16.mxu0 %v6166
    %6201 = vmatmul.mubr.bf16.gmra.mrb[0].mxu0 %v6163
    %v6202 = vpop.f32.mrb[0].mxu0
    %v6203 = vadd.f32 0.0, %v6202
    %v6204 = vpop.f32.mrb[0].mxu0
    %v6205 = vadd.f32 0.0, %v6204
    %v6206 = vpop.f32.mrb[0].mxu0
    %v6207 = vpop.f32.mrb[0].mxu0
    %6208 = vdwg.mxu0
    %6209 = vmatprep.subr.bf16.mxu0 %v2768
    %6210 = vmatpush1.bf16.msra.mxu0 %v2767
    %6211 = vmatprep.subr.bf16.mxu0 %v2770
    %6212 = vmatpush1.bf16.msra.mxu0 %v2769
    %6213 = vmatprep.subr.bf16.mxu0 %v2772
    %6214 = vmatpush1.bf16.msra.mxu0 %v2771
    %6215 = vmatprep.subr.bf16.mxu0 %v2774
    %6216 = vmatpush1.bf16.msra.mxu0 %v2773
    %6217 = vmatprep.subr.bf16.mxu0 %v2776
    %6218 = vmatpush1.bf16.msra.mxu0 %v2775
    %6219 = vmatprep.subr.bf16.mxu0 %v2778
    %6220 = vmatpush1.bf16.msra.mxu0 %v2777
    %6221 = vmatprep.subr.bf16.mxu0 %v2780
    %6222 = vmatpush1.bf16.msra.mxu0 %v2779
    %6223 = vmatprep.subr.bf16.mxu0 %v2782
    %6224 = vmatpush1.bf16.msra.mxu0 %v2781
    %6225 = vmatprep.subr.bf16.mxu0 %v2784
    %6226 = vmatpush1.bf16.msra.mxu0 %v2783
    %6227 = vmatprep.subr.bf16.mxu0 %v2786
    %6228 = vmatpush1.bf16.msra.mxu0 %v2785
    %6229 = vmatprep.subr.bf16.mxu0 %v2788
    %6230 = vmatpush1.bf16.msra.mxu0 %v2787
    %6231 = vmatprep.subr.bf16.mxu0 %v2790
    %6232 = vmatpush1.bf16.msra.mxu0 %v2789
    %6233 = vmatprep.subr.bf16.mxu0 %v2821
    %6234 = vmatpush1.bf16.msra.mxu0 %v2818
    %6235 = vmatprep.subr.bf16.mxu0 0
    %6236 = vmatpush1.bf16.msra.mxu0 0
    %6237 = vmatprep.subr.bf16.mxu0 0
    %6238 = vmatpush1.bf16.msra.mxu0 0
    %6239 = vmatprep.subr.bf16.mxu0 0
    %6240 = vmatpush1.bf16.msra.mxu0 0
    %6241 = vmatprep.mubr.bf16.mxu0 %v6166
    %6242 = vmatmul.mubr.bf16.gmra.mrb[0].mxu0 %v6163
    %v6243 = vpop.f32.mrb[0].mxu0
    %v6244 = vadd.f32 0.0, %v6243
    %v6245 = vpop.f32.mrb[0].mxu0
    %v6246 = vadd.f32 0.0, %v6245
    %v6247 = vpop.f32.mrb[0].mxu0
    %v6248 = vpop.f32.mrb[0].mxu0
    %6249 = vdwg.mxu0
    %6250 = vmatprep.subr.bf16.mxu0 %v2940
    %6251 = vmatpush1.bf16.msra.mxu0 %v2939
    %6252 = vmatprep.subr.bf16.mxu0 %v2942
    %6253 = vmatpush1.bf16.msra.mxu0 %v2941
    %6254 = vmatprep.subr.bf16.mxu0 %v2944
    %6255 = vmatpush1.bf16.msra.mxu0 %v2943
    %6256 = vmatprep.subr.bf16.mxu0 %v2946
    %6257 = vmatpush1.bf16.msra.mxu0 %v2945
    %6258 = vmatprep.subr.bf16.mxu0 %v2948
    %6259 = vmatpush1.bf16.msra.mxu0 %v2947
    %6260 = vmatprep.subr.bf16.mxu0 %v2950
    %6261 = vmatpush1.bf16.msra.mxu0 %v2949
    %6262 = vmatprep.subr.bf16.mxu0 %v2952
    %6263 = vmatpush1.bf16.msra.mxu0 %v2951
    %6264 = vmatprep.subr.bf16.mxu0 %v2954
    %6265 = vmatpush1.bf16.msra.mxu0 %v2953
    %6266 = vmatprep.subr.bf16.mxu0 %v2956
    %6267 = vmatpush1.bf16.msra.mxu0 %v2955
    %6268 = vmatprep.subr.bf16.mxu0 %v2958
    %6269 = vmatpush1.bf16.msra.mxu0 %v2957
    %6270 = vmatprep.subr.bf16.mxu0 %v2960
    %6271 = vmatpush1.bf16.msra.mxu0 %v2959
    %6272 = vmatprep.subr.bf16.mxu0 %v2962
    %6273 = vmatpush1.bf16.msra.mxu0 %v2961
    %6274 = vmatprep.subr.bf16.mxu0 %v2993
    %6275 = vmatpush1.bf16.msra.mxu0 %v2990
    %6276 = vmatprep.subr.bf16.mxu0 0
    %6277 = vmatpush1.bf16.msra.mxu0 0
    %6278 = vmatprep.subr.bf16.mxu0 0
    %6279 = vmatpush1.bf16.msra.mxu0 0
    %6280 = vmatprep.subr.bf16.mxu0 0
    %6281 = vmatpush1.bf16.msra.mxu0 0
    %6282 = vmatprep.mubr.bf16.mxu0 %v6166
    %6283 = vmatmul.mubr.bf16.gmra.mrb[0].mxu0 %v6163
    %v6284 = vpop.f32.mrb[0].mxu0
    %v6285 = vadd.f32 %v2510, %v6284
    %v6286 = vpop.f32.mrb[0].mxu0
    %v6287 = vadd.f32 %v2514, %v6286
    %v6288 = vpop.f32.mrb[0].mxu0
    %v6289 = vpop.f32.mrb[0].mxu0
    %6290 = vdwg.mxu0
    %s6291 = scalar_lea.vmem [#allocation2], 288
    %v6292 = vld [vmem:[%s6291] sm:$0xff]
    %v6293 = vld [vmem:[%s6291 + $0x8] sm:$0xff]
    %v6294 = vadd.f32 %v6292, %v6203
    %v6295 = vadd.f32 %v6293, %v6205
    %v6296 = vxor.u32 %v6294, 2147483648
    %v6297 = vxor.u32 %v6295, 2147483648
    %v6298 = vmul.f32 %v6296, 1.442695
    %v6299 = vpow.pop %v6298
    %v6300 = vmul.f32 %v6297, 1.442695
    %v6301 = vpow.pop %v6300
    %v6302 = vadd.f32 %v6299, 1.0
    %v6303 = vadd.f32 %v6301, 1.0
    %v6304 = vrcp.pop %v6302
    %v6305 = vmul.f32 1.0, %v6304
    %v6306 = vrcp.pop %v6303
    %v6307 = vmul.f32 1.0, %v6306
    %s6308 = scalar_lea.vmem [#allocation3], 288
    %v6309 = vld [vmem:[%s6308] sm:$0xff]
    %v6310 = vld [vmem:[%s6308 + $0x8] sm:$0xff]
    %v6311 = vadd.f32 %v6309, %v6244
    %v6312 = vadd.f32 %v6310, %v6246
    %v6313 = vxor.u32 %v6311, 2147483648
    %v6314 = vxor.u32 %v6312, 2147483648
    %v6315 = vmul.f32 %v6313, 1.442695
    %v6316 = vpow.pop %v6315
    %v6317 = vmul.f32 %v6314, 1.442695
    %v6318 = vpow.pop %v6317
    %v6319 = vadd.f32 %v6316, 1.0
    %v6320 = vadd.f32 %v6318, 1.0
    %v6321 = vrcp.pop %v6319
    %v6322 = vmul.f32 1.0, %v6321
    %v6323 = vrcp.pop %v6320
    %v6324 = vmul.f32 1.0, %v6323
    %s6325 = scalar_lea.vmem [#allocation4], 288
    %v6326 = vld [vmem:[%s6325] sm:$0xff]
    %v6327 = vld [vmem:[%s6325 + $0x8] sm:$0xff]
    %v6328 = vmul.f32 %v6305, %v6285
    %v6329 = vmul.f32 %v6307, %v6287
    %v6330 = vadd.f32 %v6326, %v6328
    %v6331 = vadd.f32 %v6327, %v6329
    %v6332 = vtanh.pop %v6330
    %v6333 = vtanh.pop %v6331
    %v6334 = vsub.f32 1.0, %v6322
    %v6335 = vsub.f32 1.0, %v6324
    %v6336 = vmul.f32 %v6334, %v6332
    %v6337 = vmul.f32 %v6335, %v6333
    %v6338 = vmul.f32 %v6322, %v6159
    %v6339 = vmul.f32 %v6324, %v6160
    %v6340 = vadd.f32 %v6336, %v6338
    %v6341 = vadd.f32 %v6337, %v6339
    %v6342 = vadd.f32 %v6161, %v6340
    %v6343 = vadd.f32 %v6162, %v6341
    %v6344 = vpack.c.bf16 %v6340, %v6340
    %v6345 = vpack.c.bf16 %v6341, %v6341
    %v6347 = vsel %vm1414, %v6345, 0
    %6349 = vmatprep.subr.bf16.mxu0 %v2593
    %6350 = vmatpush1.bf16.msra.mxu0 %v2592
    %6351 = vmatprep.subr.bf16.mxu0 %v2595
    %6352 = vmatpush1.bf16.msra.mxu0 %v2594
    %6353 = vmatprep.subr.bf16.mxu0 %v2597
    %6354 = vmatpush1.bf16.msra.mxu0 %v2596
    %6355 = vmatprep.subr.bf16.mxu0 %v2599
    %6356 = vmatpush1.bf16.msra.mxu0 %v2598
    %6357 = vmatprep.subr.bf16.mxu0 %v2601
    %6358 = vmatpush1.bf16.msra.mxu0 %v2600
    %6359 = vmatprep.subr.bf16.mxu0 %v2603
    %6360 = vmatpush1.bf16.msra.mxu0 %v2602
    %6361 = vmatprep.subr.bf16.mxu0 %v2605
    %6362 = vmatpush1.bf16.msra.mxu0 %v2604
    %6363 = vmatprep.subr.bf16.mxu0 %v2607
    %6364 = vmatpush1.bf16.msra.mxu0 %v2606
    %6365 = vmatprep.subr.bf16.mxu0 %v2609
    %6366 = vmatpush1.bf16.msra.mxu0 %v2608
    %6367 = vmatprep.subr.bf16.mxu0 %v2611
    %6368 = vmatpush1.bf16.msra.mxu0 %v2610
    %6369 = vmatprep.subr.bf16.mxu0 %v2613
    %6370 = vmatpush1.bf16.msra.mxu0 %v2612
    %6371 = vmatprep.subr.bf16.mxu0 %v2615
    %6372 = vmatpush1.bf16.msra.mxu0 %v2614
    %6373 = vmatprep.subr.bf16.mxu0 %v2649
    %6374 = vmatpush1.bf16.msra.mxu0 %v2646
    %6375 = vmatprep.subr.bf16.mxu0 0
    %6376 = vmatpush1.bf16.msra.mxu0 0
    %6377 = vmatprep.subr.bf16.mxu0 0
    %6378 = vmatpush1.bf16.msra.mxu0 0
    %6379 = vmatprep.subr.bf16.mxu0 0
    %6380 = vmatpush1.bf16.msra.mxu0 0
    %6381 = vmatprep.mubr.bf16.mxu0 %v6347
    %6382 = vmatmul.mubr.bf16.gmra.mrb[0].mxu0 %v6344
    %v6383 = vpop.f32.mrb[0].mxu0
    %v6384 = vadd.f32 0.0, %v6383
    %v6385 = vpop.f32.mrb[0].mxu0
    %v6386 = vadd.f32 0.0, %v6385
    %v6387 = vpop.f32.mrb[0].mxu0
    %v6388 = vpop.f32.mrb[0].mxu0
    %6389 = vdwg.mxu0
    %6390 = vmatprep.subr.bf16.mxu0 %v2768
    %6391 = vmatpush1.bf16.msra.mxu0 %v2767
    %6392 = vmatprep.subr.bf16.mxu0 %v2770
    %6393 = vmatpush1.bf16.msra.mxu0 %v2769
    %6394 = vmatprep.subr.bf16.mxu0 %v2772
    %6395 = vmatpush1.bf16.msra.mxu0 %v2771
    %6396 = vmatprep.subr.bf16.mxu0 %v2774
    %6397 = vmatpush1.bf16.msra.mxu0 %v2773
    %6398 = vmatprep.subr.bf16.mxu0 %v2776
    %6399 = vmatpush1.bf16.msra.mxu0 %v2775
    %6400 = vmatprep.subr.bf16.mxu0 %v2778
    %6401 = vmatpush1.bf16.msra.mxu0 %v2777
    %6402 = vmatprep.subr.bf16.mxu0 %v2780
    %6403 = vmatpush1.bf16.msra.mxu0 %v2779
    %6404 = vmatprep.subr.bf16.mxu0 %v2782
    %6405 = vmatpush1.bf16.msra.mxu0 %v2781
    %6406 = vmatprep.subr.bf16.mxu0 %v2784
    %6407 = vmatpush1.bf16.msra.mxu0 %v2783
    %6408 = vmatprep.subr.bf16.mxu0 %v2786
    %6409 = vmatpush1.bf16.msra.mxu0 %v2785
    %6410 = vmatprep.subr.bf16.mxu0 %v2788
    %6411 = vmatpush1.bf16.msra.mxu0 %v2787
    %6412 = vmatprep.subr.bf16.mxu0 %v2790
    %6413 = vmatpush1.bf16.msra.mxu0 %v2789
    %6414 = vmatprep.subr.bf16.mxu0 %v2821
    %6415 = vmatpush1.bf16.msra.mxu0 %v2818
    %6416 = vmatprep.subr.bf16.mxu0 0
    %6417 = vmatpush1.bf16.msra.mxu0 0
    %6418 = vmatprep.subr.bf16.mxu0 0
    %6419 = vmatpush1.bf16.msra.mxu0 0
    %6420 = vmatprep.subr.bf16.mxu0 0
    %6421 = vmatpush1.bf16.msra.mxu0 0
    %6422 = vmatprep.mubr.bf16.mxu0 %v6347
    %6423 = vmatmul.mubr.bf16.gmra.mrb[0].mxu0 %v6344
    %v6424 = vpop.f32.mrb[0].mxu0
    %v6425 = vadd.f32 0.0, %v6424
    %v6426 = vpop.f32.mrb[0].mxu0
    %v6427 = vadd.f32 0.0, %v6426
    %v6428 = vpop.f32.mrb[0].mxu0
    %v6429 = vpop.f32.mrb[0].mxu0
    %6430 = vdwg.mxu0
    %6431 = vmatprep.subr.bf16.mxu0 %v2940
    %6432 = vmatpush1.bf16.msra.mxu0 %v2939
    %6433 = vmatprep.subr.bf16.mxu0 %v2942
    %6434 = vmatpush1.bf16.msra.mxu0 %v2941
    %6435 = vmatprep.subr.bf16.mxu0 %v2944
    %6436 = vmatpush1.bf16.msra.mxu0 %v2943
    %6437 = vmatprep.subr.bf16.mxu0 %v2946
    %6438 = vmatpush1.bf16.msra.mxu0 %v2945
    %6439 = vmatprep.subr.bf16.mxu0 %v2948
    %6440 = vmatpush1.bf16.msra.mxu0 %v2947
    %6441 = vmatprep.subr.bf16.mxu0 %v2950
    %6442 = vmatpush1.bf16.msra.mxu0 %v2949
    %6443 = vmatprep.subr.bf16.mxu0 %v2952
    %6444 = vmatpush1.bf16.msra.mxu0 %v2951
    %6445 = vmatprep.subr.bf16.mxu0 %v2954
    %6446 = vmatpush1.bf16.msra.mxu0 %v2953
    %6447 = vmatprep.subr.bf16.mxu0 %v2956
    %6448 = vmatpush1.bf16.msra.mxu0 %v2955
    %6449 = vmatprep.subr.bf16.mxu0 %v2958
    %6450 = vmatpush1.bf16.msra.mxu0 %v2957
    %6451 = vmatprep.subr.bf16.mxu0 %v2960
    %6452 = vmatpush1.bf16.msra.mxu0 %v2959
    %6453 = vmatprep.subr.bf16.mxu0 %v2962
    %6454 = vmatpush1.bf16.msra.mxu0 %v2961
    %6455 = vmatprep.subr.bf16.mxu0 %v2993
    %6456 = vmatpush1.bf16.msra.mxu0 %v2990
    %6457 = vmatprep.subr.bf16.mxu0 0
    %6458 = vmatpush1.bf16.msra.mxu0 0
    %6459 = vmatprep.subr.bf16.mxu0 0
    %6460 = vmatpush1.bf16.msra.mxu0 0
    %6461 = vmatprep.subr.bf16.mxu0 0
    %6462 = vmatpush1.bf16.msra.mxu0 0
    %6463 = vmatprep.mubr.bf16.mxu0 %v6347
    %6464 = vmatmul.mubr.bf16.gmra.mrb[0].mxu0 %v6344
    %v6465 = vpop.f32.mrb[0].mxu0
    %v6466 = vadd.f32 %v2510, %v6465
    %v6467 = vpop.f32.mrb[0].mxu0
    %v6468 = vadd.f32 %v2514, %v6467
    %v6469 = vpop.f32.mrb[0].mxu0
    %v6470 = vpop.f32.mrb[0].mxu0
    %6471 = vdwg.mxu0
    %s6472 = scalar_lea.vmem [#allocation2], 304
    %v6473 = vld [vmem:[%s6472] sm:$0xff]
    %v6474 = vld [vmem:[%s6472 + $0x8] sm:$0xff]
    %v6475 = vadd.f32 %v6473, %v6384
    %v6476 = vadd.f32 %v6474, %v6386
    %v6477 = vxor.u32 %v6475, 2147483648
    %v6478 = vxor.u32 %v6476, 2147483648
    %v6479 = vmul.f32 %v6477, 1.442695
    %v6480 = vpow.pop %v6479
    %v6481 = vmul.f32 %v6478, 1.442695
    %v6482 = vpow.pop %v6481
    %v6483 = vadd.f32 %v6480, 1.0
    %v6484 = vadd.f32 %v6482, 1.0
    %v6485 = vrcp.pop %v6483
    %v6486 = vmul.f32 1.0, %v6485
    %v6487 = vrcp.pop %v6484
    %v6488 = vmul.f32 1.0, %v6487
    %s6489 = scalar_lea.vmem [#allocation3], 304
    %v6490 = vld [vmem:[%s6489] sm:$0xff]
    %v6491 = vld [vmem:[%s6489 + $0x8] sm:$0xff]
    %v6492 = vadd.f32 %v6490, %v6425
    %v6493 = vadd.f32 %v6491, %v6427
    %v6494 = vxor.u32 %v6492, 2147483648
    %v6495 = vxor.u32 %v6493, 2147483648
    %v6496 = vmul.f32 %v6494, 1.442695
    %v6497 = vpow.pop %v6496
    %v6498 = vmul.f32 %v6495, 1.442695
    %v6499 = vpow.pop %v6498
    %v6500 = vadd.f32 %v6497, 1.0
    %v6501 = vadd.f32 %v6499, 1.0
    %v6502 = vrcp.pop %v6500
    %v6503 = vmul.f32 1.0, %v6502
    %v6504 = vrcp.pop %v6501
    %v6505 = vmul.f32 1.0, %v6504
    %s6506 = scalar_lea.vmem [#allocation4], 304
    %v6507 = vld [vmem:[%s6506] sm:$0xff]
    %v6508 = vld [vmem:[%s6506 + $0x8] sm:$0xff]
    %v6509 = vmul.f32 %v6486, %v6466
    %v6510 = vmul.f32 %v6488, %v6468
    %v6511 = vadd.f32 %v6507, %v6509
    %v6512 = vadd.f32 %v6508, %v6510
    %v6513 = vtanh.pop %v6511
    %v6514 = vtanh.pop %v6512
    %v6515 = vsub.f32 1.0, %v6503
    %v6516 = vsub.f32 1.0, %v6505
    %v6517 = vmul.f32 %v6515, %v6513
    %v6518 = vmul.f32 %v6516, %v6514
    %v6519 = vmul.f32 %v6503, %v6340
    %v6520 = vmul.f32 %v6505, %v6341
    %v6521 = vadd.f32 %v6517, %v6519
    %v6522 = vadd.f32 %v6518, %v6520
    %v6523 = vadd.f32 %v6342, %v6521
    %v6524 = vadd.f32 %v6343, %v6522
    %v6525 = vpack.c.bf16 %v6521, %v6521
    %v6526 = vpack.c.bf16 %v6522, %v6522
    %v6528 = vsel %vm1414, %v6526, 0
    %6530 = vmatprep.subr.bf16.mxu0 %v2593
    %6531 = vmatpush1.bf16.msra.mxu0 %v2592
    %6532 = vmatprep.subr.bf16.mxu0 %v2595
    %6533 = vmatpush1.bf16.msra.mxu0 %v2594
    %6534 = vmatprep.subr.bf16.mxu0 %v2597
    %6535 = vmatpush1.bf16.msra.mxu0 %v2596
    %6536 = vmatprep.subr.bf16.mxu0 %v2599
    %6537 = vmatpush1.bf16.msra.mxu0 %v2598
    %6538 = vmatprep.subr.bf16.mxu0 %v2601
    %6539 = vmatpush1.bf16.msra.mxu0 %v2600
    %6540 = vmatprep.subr.bf16.mxu0 %v2603
    %6541 = vmatpush1.bf16.msra.mxu0 %v2602
    %6542 = vmatprep.subr.bf16.mxu0 %v2605
    %6543 = vmatpush1.bf16.msra.mxu0 %v2604
    %6544 = vmatprep.subr.bf16.mxu0 %v2607
    %6545 = vmatpush1.bf16.msra.mxu0 %v2606
    %6546 = vmatprep.subr.bf16.mxu0 %v2609
    %6547 = vmatpush1.bf16.msra.mxu0 %v2608
    %6548 = vmatprep.subr.bf16.mxu0 %v2611
    %6549 = vmatpush1.bf16.msra.mxu0 %v2610
    %6550 = vmatprep.subr.bf16.mxu0 %v2613
    %6551 = vmatpush1.bf16.msra.mxu0 %v2612
    %6552 = vmatprep.subr.bf16.mxu0 %v2615
    %6553 = vmatpush1.bf16.msra.mxu0 %v2614
    %6554 = vmatprep.subr.bf16.mxu0 %v2649
    %6555 = vmatpush1.bf16.msra.mxu0 %v2646
    %6556 = vmatprep.subr.bf16.mxu0 0
    %6557 = vmatpush1.bf16.msra.mxu0 0
    %6558 = vmatprep.subr.bf16.mxu0 0
    %6559 = vmatpush1.bf16.msra.mxu0 0
    %6560 = vmatprep.subr.bf16.mxu0 0
    %6561 = vmatpush1.bf16.msra.mxu0 0
    %6562 = vmatprep.mubr.bf16.mxu0 %v6528
    %6563 = vmatmul.mubr.bf16.gmra.mrb[0].mxu0 %v6525
    %v6564 = vpop.f32.mrb[0].mxu0
    %v6565 = vadd.f32 0.0, %v6564
    %v6566 = vpop.f32.mrb[0].mxu0
    %v6567 = vadd.f32 0.0, %v6566
    %v6568 = vpop.f32.mrb[0].mxu0
    %v6569 = vpop.f32.mrb[0].mxu0
    %6570 = vdwg.mxu0
    %6571 = vmatprep.subr.bf16.mxu0 %v2768
    %6572 = vmatpush1.bf16.msra.mxu0 %v2767
    %6573 = vmatprep.subr.bf16.mxu0 %v2770
    %6574 = vmatpush1.bf16.msra.mxu0 %v2769
    %6575 = vmatprep.subr.bf16.mxu0 %v2772
    %6576 = vmatpush1.bf16.msra.mxu0 %v2771
    %6577 = vmatprep.subr.bf16.mxu0 %v2774
    %6578 = vmatpush1.bf16.msra.mxu0 %v2773
    %6579 = vmatprep.subr.bf16.mxu0 %v2776
    %6580 = vmatpush1.bf16.msra.mxu0 %v2775
    %6581 = vmatprep.subr.bf16.mxu0 %v2778
    %6582 = vmatpush1.bf16.msra.mxu0 %v2777
    %6583 = vmatprep.subr.bf16.mxu0 %v2780
    %6584 = vmatpush1.bf16.msra.mxu0 %v2779
    %6585 = vmatprep.subr.bf16.mxu0 %v2782
    %6586 = vmatpush1.bf16.msra.mxu0 %v2781
    %6587 = vmatprep.subr.bf16.mxu0 %v2784
    %6588 = vmatpush1.bf16.msra.mxu0 %v2783
    %6589 = vmatprep.subr.bf16.mxu0 %v2786
    %6590 = vmatpush1.bf16.msra.mxu0 %v2785
    %6591 = vmatprep.subr.bf16.mxu0 %v2788
    %6592 = vmatpush1.bf16.msra.mxu0 %v2787
    %6593 = vmatprep.subr.bf16.mxu0 %v2790
    %6594 = vmatpush1.bf16.msra.mxu0 %v2789
    %6595 = vmatprep.subr.bf16.mxu0 %v2821
    %6596 = vmatpush1.bf16.msra.mxu0 %v2818
    %6597 = vmatprep.subr.bf16.mxu0 0
    %6598 = vmatpush1.bf16.msra.mxu0 0
    %6599 = vmatprep.subr.bf16.mxu0 0
    %6600 = vmatpush1.bf16.msra.mxu0 0
    %6601 = vmatprep.subr.bf16.mxu0 0
    %6602 = vmatpush1.bf16.msra.mxu0 0
    %6603 = vmatprep.mubr.bf16.mxu0 %v6528
    %6604 = vmatmul.mubr.bf16.gmra.mrb[0].mxu0 %v6525
    %v6605 = vpop.f32.mrb[0].mxu0
    %v6606 = vadd.f32 0.0, %v6605
    %v6607 = vpop.f32.mrb[0].mxu0
    %v6608 = vadd.f32 0.0, %v6607
    %v6609 = vpop.f32.mrb[0].mxu0
    %v6610 = vpop.f32.mrb[0].mxu0
    %6611 = vdwg.mxu0
    %6612 = vmatprep.subr.bf16.mxu0 %v2940
    %6613 = vmatpush1.bf16.msra.mxu0 %v2939
    %6614 = vmatprep.subr.bf16.mxu0 %v2942
    %6615 = vmatpush1.bf16.msra.mxu0 %v2941
    %6616 = vmatprep.subr.bf16.mxu0 %v2944
    %6617 = vmatpush1.bf16.msra.mxu0 %v2943
    %6618 = vmatprep.subr.bf16.mxu0 %v2946
    %6619 = vmatpush1.bf16.msra.mxu0 %v2945
    %6620 = vmatprep.subr.bf16.mxu0 %v2948
    %6621 = vmatpush1.bf16.msra.mxu0 %v2947
    %6622 = vmatprep.subr.bf16.mxu0 %v2950
    %6623 = vmatpush1.bf16.msra.mxu0 %v2949
    %6624 = vmatprep.subr.bf16.mxu0 %v2952
    %6625 = vmatpush1.bf16.msra.mxu0 %v2951
    %6626 = vmatprep.subr.bf16.mxu0 %v2954
    %6627 = vmatpush1.bf16.msra.mxu0 %v2953
    %6628 = vmatprep.subr.bf16.mxu0 %v2956
    %6629 = vmatpush1.bf16.msra.mxu0 %v2955
    %6630 = vmatprep.subr.bf16.mxu0 %v2958
    %6631 = vmatpush1.bf16.msra.mxu0 %v2957
    %6632 = vmatprep.subr.bf16.mxu0 %v2960
    %6633 = vmatpush1.bf16.msra.mxu0 %v2959
    %6634 = vmatprep.subr.bf16.mxu0 %v2962
    %6635 = vmatpush1.bf16.msra.mxu0 %v2961
    %6636 = vmatprep.subr.bf16.mxu0 %v2993
    %6637 = vmatpush1.bf16.msra.mxu0 %v2990
    %6638 = vmatprep.subr.bf16.mxu0 0
    %6639 = vmatpush1.bf16.msra.mxu0 0
    %6640 = vmatprep.subr.bf16.mxu0 0
    %6641 = vmatpush1.bf16.msra.mxu0 0
    %6642 = vmatprep.subr.bf16.mxu0 0
    %6643 = vmatpush1.bf16.msra.mxu0 0
    %6644 = vmatprep.mubr.bf16.mxu0 %v6528
    %6645 = vmatmul.mubr.bf16.gmra.mrb[0].mxu0 %v6525
    %v6646 = vpop.f32.mrb[0].mxu0
    %v6647 = vadd.f32 %v2510, %v6646
    %v6648 = vpop.f32.mrb[0].mxu0
    %v6649 = vadd.f32 %v2514, %v6648
    %v6650 = vpop.f32.mrb[0].mxu0
    %v6651 = vpop.f32.mrb[0].mxu0
    %6652 = vdwg.mxu0
    %s6653 = scalar_lea.vmem [#allocation2], 320
    %v6654 = vld [vmem:[%s6653] sm:$0xff]
    %v6655 = vld [vmem:[%s6653 + $0x8] sm:$0xff]
    %v6656 = vadd.f32 %v6654, %v6565
    %v6657 = vadd.f32 %v6655, %v6567
    %v6658 = vxor.u32 %v6656, 2147483648
    %v6659 = vxor.u32 %v6657, 2147483648
    %v6660 = vmul.f32 %v6658, 1.442695
    %v6661 = vpow.pop %v6660
    %v6662 = vmul.f32 %v6659, 1.442695
    %v6663 = vpow.pop %v6662
    %v6664 = vadd.f32 %v6661, 1.0
    %v6665 = vadd.f32 %v6663, 1.0
    %v6666 = vrcp.pop %v6664
    %v6667 = vmul.f32 1.0, %v6666
    %v6668 = vrcp.pop %v6665
    %v6669 = vmul.f32 1.0, %v6668
    %s6670 = scalar_lea.vmem [#allocation3], 320
    %v6671 = vld [vmem:[%s6670] sm:$0xff]
    %v6672 = vld [vmem:[%s6670 + $0x8] sm:$0xff]
    %v6673 = vadd.f32 %v6671, %v6606
    %v6674 = vadd.f32 %v6672, %v6608
    %v6675 = vxor.u32 %v6673, 2147483648
    %v6676 = vxor.u32 %v6674, 2147483648
    %v6677 = vmul.f32 %v6675, 1.442695
    %v6678 = vpow.pop %v6677
    %v6679 = vmul.f32 %v6676, 1.442695
    %v6680 = vpow.pop %v6679
    %v6681 = vadd.f32 %v6678, 1.0
    %v6682 = vadd.f32 %v6680, 1.0
    %v6683 = vrcp.pop %v6681
    %v6684 = vmul.f32 1.0, %v6683
    %v6685 = vrcp.pop %v6682
    %v6686 = vmul.f32 1.0, %v6685
    %s6687 = scalar_lea.vmem [#allocation4], 320
    %v6688 = vld [vmem:[%s6687] sm:$0xff]
    %v6689 = vld [vmem:[%s6687 + $0x8] sm:$0xff]
    %v6690 = vmul.f32 %v6667, %v6647
    %v6691 = vmul.f32 %v6669, %v6649
    %v6692 = vadd.f32 %v6688, %v6690
    %v6693 = vadd.f32 %v6689, %v6691
    %v6694 = vtanh.pop %v6692
    %v6695 = vtanh.pop %v6693
    %v6696 = vsub.f32 1.0, %v6684
    %v6697 = vsub.f32 1.0, %v6686
    %v6698 = vmul.f32 %v6696, %v6694
    %v6699 = vmul.f32 %v6697, %v6695
    %v6700 = vmul.f32 %v6684, %v6521
    %v6701 = vmul.f32 %v6686, %v6522
    %v6702 = vadd.f32 %v6698, %v6700
    %v6703 = vadd.f32 %v6699, %v6701
    %v6704 = vadd.f32 %v6523, %v6702
    %v6705 = vadd.f32 %v6524, %v6703
    %v6706 = vpack.c.bf16 %v6702, %v6702
    %v6707 = vpack.c.bf16 %v6703, %v6703
    %v6709 = vsel %vm1414, %v6707, 0
    %6711 = vmatprep.subr.bf16.mxu0 %v2593
    %6712 = vmatpush1.bf16.msra.mxu0 %v2592
    %6713 = vmatprep.subr.bf16.mxu0 %v2595
    %6714 = vmatpush1.bf16.msra.mxu0 %v2594
    %6715 = vmatprep.subr.bf16.mxu0 %v2597
    %6716 = vmatpush1.bf16.msra.mxu0 %v2596
    %6717 = vmatprep.subr.bf16.mxu0 %v2599
    %6718 = vmatpush1.bf16.msra.mxu0 %v2598
    %6719 = vmatprep.subr.bf16.mxu0 %v2601
    %6720 = vmatpush1.bf16.msra.mxu0 %v2600
    %6721 = vmatprep.subr.bf16.mxu0 %v2603
    %6722 = vmatpush1.bf16.msra.mxu0 %v2602
    %6723 = vmatprep.subr.bf16.mxu0 %v2605
    %6724 = vmatpush1.bf16.msra.mxu0 %v2604
    %6725 = vmatprep.subr.bf16.mxu0 %v2607
    %6726 = vmatpush1.bf16.msra.mxu0 %v2606
    %6727 = vmatprep.subr.bf16.mxu0 %v2609
    %6728 = vmatpush1.bf16.msra.mxu0 %v2608
    %6729 = vmatprep.subr.bf16.mxu0 %v2611
    %6730 = vmatpush1.bf16.msra.mxu0 %v2610
    %6731 = vmatprep.subr.bf16.mxu0 %v2613
    %6732 = vmatpush1.bf16.msra.mxu0 %v2612
    %6733 = vmatprep.subr.bf16.mxu0 %v2615
    %6734 = vmatpush1.bf16.msra.mxu0 %v2614
    %6735 = vmatprep.subr.bf16.mxu0 %v2649
    %6736 = vmatpush1.bf16.msra.mxu0 %v2646
    %6737 = vmatprep.subr.bf16.mxu0 0
    %6738 = vmatpush1.bf16.msra.mxu0 0
    %6739 = vmatprep.subr.bf16.mxu0 0
    %6740 = vmatpush1.bf16.msra.mxu0 0
    %6741 = vmatprep.subr.bf16.mxu0 0
    %6742 = vmatpush1.bf16.msra.mxu0 0
    %6743 = vmatprep.mubr.bf16.mxu0 %v6709
    %6744 = vmatmul.mubr.bf16.gmra.mrb[0].mxu0 %v6706
    %v6745 = vpop.f32.mrb[0].mxu0
    %v6746 = vadd.f32 0.0, %v6745
    %v6747 = vpop.f32.mrb[0].mxu0
    %v6748 = vadd.f32 0.0, %v6747
    %v6749 = vpop.f32.mrb[0].mxu0
    %v6750 = vpop.f32.mrb[0].mxu0
    %6751 = vdwg.mxu0
    %6752 = vmatprep.subr.bf16.mxu0 %v2768
    %6753 = vmatpush1.bf16.msra.mxu0 %v2767
    %6754 = vmatprep.subr.bf16.mxu0 %v2770
    %6755 = vmatpush1.bf16.msra.mxu0 %v2769
    %6756 = vmatprep.subr.bf16.mxu0 %v2772
    %6757 = vmatpush1.bf16.msra.mxu0 %v2771
    %6758 = vmatprep.subr.bf16.mxu0 %v2774
    %6759 = vmatpush1.bf16.msra.mxu0 %v2773
    %6760 = vmatprep.subr.bf16.mxu0 %v2776
    %6761 = vmatpush1.bf16.msra.mxu0 %v2775
    %6762 = vmatprep.subr.bf16.mxu0 %v2778
    %6763 = vmatpush1.bf16.msra.mxu0 %v2777
    %6764 = vmatprep.subr.bf16.mxu0 %v2780
    %6765 = vmatpush1.bf16.msra.mxu0 %v2779
    %6766 = vmatprep.subr.bf16.mxu0 %v2782
    %6767 = vmatpush1.bf16.msra.mxu0 %v2781
    %6768 = vmatprep.subr.bf16.mxu0 %v2784
    %6769 = vmatpush1.bf16.msra.mxu0 %v2783
    %6770 = vmatprep.subr.bf16.mxu0 %v2786
    %6771 = vmatpush1.bf16.msra.mxu0 %v2785
    %6772 = vmatprep.subr.bf16.mxu0 %v2788
    %6773 = vmatpush1.bf16.msra.mxu0 %v2787
    %6774 = vmatprep.subr.bf16.mxu0 %v2790
    %6775 = vmatpush1.bf16.msra.mxu0 %v2789
    %6776 = vmatprep.subr.bf16.mxu0 %v2821
    %6777 = vmatpush1.bf16.msra.mxu0 %v2818
    %6778 = vmatprep.subr.bf16.mxu0 0
    %6779 = vmatpush1.bf16.msra.mxu0 0
    %6780 = vmatprep.subr.bf16.mxu0 0
    %6781 = vmatpush1.bf16.msra.mxu0 0
    %6782 = vmatprep.subr.bf16.mxu0 0
    %6783 = vmatpush1.bf16.msra.mxu0 0
    %6784 = vmatprep.mubr.bf16.mxu0 %v6709
    %6785 = vmatmul.mubr.bf16.gmra.mrb[0].mxu0 %v6706
    %v6786 = vpop.f32.mrb[0].mxu0
    %v6787 = vadd.f32 0.0, %v6786
    %v6788 = vpop.f32.mrb[0].mxu0
    %v6789 = vadd.f32 0.0, %v6788
    %v6790 = vpop.f32.mrb[0].mxu0
    %v6791 = vpop.f32.mrb[0].mxu0
    %6792 = vdwg.mxu0
    %6793 = vmatprep.subr.bf16.mxu0 %v2940
    %6794 = vmatpush1.bf16.msra.mxu0 %v2939
    %6795 = vmatprep.subr.bf16.mxu0 %v2942
    %6796 = vmatpush1.bf16.msra.mxu0 %v2941
    %6797 = vmatprep.subr.bf16.mxu0 %v2944
    %6798 = vmatpush1.bf16.msra.mxu0 %v2943
    %6799 = vmatprep.subr.bf16.mxu0 %v2946
    %6800 = vmatpush1.bf16.msra.mxu0 %v2945
    %6801 = vmatprep.subr.bf16.mxu0 %v2948
    %6802 = vmatpush1.bf16.msra.mxu0 %v2947
    %6803 = vmatprep.subr.bf16.mxu0 %v2950
    %6804 = vmatpush1.bf16.msra.mxu0 %v2949
    %6805 = vmatprep.subr.bf16.mxu0 %v2952
    %6806 = vmatpush1.bf16.msra.mxu0 %v2951
    %6807 = vmatprep.subr.bf16.mxu0 %v2954
    %6808 = vmatpush1.bf16.msra.mxu0 %v2953
    %6809 = vmatprep.subr.bf16.mxu0 %v2956
    %6810 = vmatpush1.bf16.msra.mxu0 %v2955
    %6811 = vmatprep.subr.bf16.mxu0 %v2958
    %6812 = vmatpush1.bf16.msra.mxu0 %v2957
    %6813 = vmatprep.subr.bf16.mxu0 %v2960
    %6814 = vmatpush1.bf16.msra.mxu0 %v2959
    %6815 = vmatprep.subr.bf16.mxu0 %v2962
    %6816 = vmatpush1.bf16.msra.mxu0 %v2961
    %6817 = vmatprep.subr.bf16.mxu0 %v2993
    %6818 = vmatpush1.bf16.msra.mxu0 %v2990
    %6819 = vmatprep.subr.bf16.mxu0 0
    %6820 = vmatpush1.bf16.msra.mxu0 0
    %6821 = vmatprep.subr.bf16.mxu0 0
    %6822 = vmatpush1.bf16.msra.mxu0 0
    %6823 = vmatprep.subr.bf16.mxu0 0
    %6824 = vmatpush1.bf16.msra.mxu0 0
    %6825 = vmatprep.mubr.bf16.mxu0 %v6709
    %6826 = vmatmul.mubr.bf16.gmra.mrb[0].mxu0 %v6706
    %v6827 = vpop.f32.mrb[0].mxu0
    %v6828 = vadd.f32 %v2510, %v6827
    %v6829 = vpop.f32.mrb[0].mxu0
    %v6830 = vadd.f32 %v2514, %v6829
    %v6831 = vpop.f32.mrb[0].mxu0
    %v6832 = vpop.f32.mrb[0].mxu0
    %6833 = vdwg.mxu0
    %s6834 = scalar_lea.vmem [#allocation2], 336
    %v6835 = vld [vmem:[%s6834] sm:$0xff]
    %v6836 = vld [vmem:[%s6834 + $0x8] sm:$0xff]
    %v6837 = vadd.f32 %v6835, %v6746
    %v6838 = vadd.f32 %v6836, %v6748
    %v6839 = vxor.u32 %v6837, 2147483648
    %v6840 = vxor.u32 %v6838, 2147483648
    %v6841 = vmul.f32 %v6839, 1.442695
    %v6842 = vpow.pop %v6841
    %v6843 = vmul.f32 %v6840, 1.442695
    %v6844 = vpow.pop %v6843
    %v6845 = vadd.f32 %v6842, 1.0
    %v6846 = vadd.f32 %v6844, 1.0
    %v6847 = vrcp.pop %v6845
    %v6848 = vmul.f32 1.0, %v6847
    %v6849 = vrcp.pop %v6846
    %v6850 = vmul.f32 1.0, %v6849
    %s6851 = scalar_lea.vmem [#allocation3], 336
    %v6852 = vld [vmem:[%s6851] sm:$0xff]
    %v6853 = vld [vmem:[%s6851 + $0x8] sm:$0xff]
    %v6854 = vadd.f32 %v6852, %v6787
    %v6855 = vadd.f32 %v6853, %v6789
    %v6856 = vxor.u32 %v6854, 2147483648
    %v6857 = vxor.u32 %v6855, 2147483648
    %v6858 = vmul.f32 %v6856, 1.442695
    %v6859 = vpow.pop %v6858
    %v6860 = vmul.f32 %v6857, 1.442695
    %v6861 = vpow.pop %v6860
    %v6862 = vadd.f32 %v6859, 1.0
    %v6863 = vadd.f32 %v6861, 1.0
    %v6864 = vrcp.pop %v6862
    %v6865 = vmul.f32 1.0, %v6864
    %v6866 = vrcp.pop %v6863
    %v6867 = vmul.f32 1.0, %v6866
    %s6868 = scalar_lea.vmem [#allocation4], 336
    %v6869 = vld [vmem:[%s6868] sm:$0xff]
    %v6870 = vld [vmem:[%s6868 + $0x8] sm:$0xff]
    %v6871 = vmul.f32 %v6848, %v6828
    %v6872 = vmul.f32 %v6850, %v6830
    %v6873 = vadd.f32 %v6869, %v6871
    %v6874 = vadd.f32 %v6870, %v6872
    %v6875 = vtanh.pop %v6873
    %v6876 = vtanh.pop %v6874
    %v6877 = vsub.f32 1.0, %v6865
    %v6878 = vsub.f32 1.0, %v6867
    %v6879 = vmul.f32 %v6877, %v6875
    %v6880 = vmul.f32 %v6878, %v6876
    %v6881 = vmul.f32 %v6865, %v6702
    %v6882 = vmul.f32 %v6867, %v6703
    %v6883 = vadd.f32 %v6879, %v6881
    %v6884 = vadd.f32 %v6880, %v6882
    %v6885 = vadd.f32 %v6704, %v6883
    %v6886 = vadd.f32 %v6705, %v6884
    %v6887 = vpack.c.bf16 %v6883, %v6883
    %v6888 = vpack.c.bf16 %v6884, %v6884
    %v6890 = vsel %vm1414, %v6888, 0
    %6892 = vmatprep.subr.bf16.mxu0 %v2593
    %6893 = vmatpush1.bf16.msra.mxu0 %v2592
    %6894 = vmatprep.subr.bf16.mxu0 %v2595
    %6895 = vmatpush1.bf16.msra.mxu0 %v2594
    %6896 = vmatprep.subr.bf16.mxu0 %v2597
    %6897 = vmatpush1.bf16.msra.mxu0 %v2596
    %6898 = vmatprep.subr.bf16.mxu0 %v2599
    %6899 = vmatpush1.bf16.msra.mxu0 %v2598
    %6900 = vmatprep.subr.bf16.mxu0 %v2601
    %6901 = vmatpush1.bf16.msra.mxu0 %v2600
    %6902 = vmatprep.subr.bf16.mxu0 %v2603
    %6903 = vmatpush1.bf16.msra.mxu0 %v2602
    %6904 = vmatprep.subr.bf16.mxu0 %v2605
    %6905 = vmatpush1.bf16.msra.mxu0 %v2604
    %6906 = vmatprep.subr.bf16.mxu0 %v2607
    %6907 = vmatpush1.bf16.msra.mxu0 %v2606
    %6908 = vmatprep.subr.bf16.mxu0 %v2609
    %6909 = vmatpush1.bf16.msra.mxu0 %v2608
    %6910 = vmatprep.subr.bf16.mxu0 %v2611
    %6911 = vmatpush1.bf16.msra.mxu0 %v2610
    %6912 = vmatprep.subr.bf16.mxu0 %v2613
    %6913 = vmatpush1.bf16.msra.mxu0 %v2612
    %6914 = vmatprep.subr.bf16.mxu0 %v2615
    %6915 = vmatpush1.bf16.msra.mxu0 %v2614
    %6916 = vmatprep.subr.bf16.mxu0 %v2649
    %6917 = vmatpush1.bf16.msra.mxu0 %v2646
    %6918 = vmatprep.subr.bf16.mxu0 0
    %6919 = vmatpush1.bf16.msra.mxu0 0
    %6920 = vmatprep.subr.bf16.mxu0 0
    %6921 = vmatpush1.bf16.msra.mxu0 0
    %6922 = vmatprep.subr.bf16.mxu0 0
    %6923 = vmatpush1.bf16.msra.mxu0 0
    %6924 = vmatprep.mubr.bf16.mxu0 %v6890
    %6925 = vmatmul.mubr.bf16.gmra.mrb[0].mxu0 %v6887
    %v6926 = vpop.f32.mrb[0].mxu0
    %v6927 = vadd.f32 0.0, %v6926
    %v6928 = vpop.f32.mrb[0].mxu0
    %v6929 = vadd.f32 0.0, %v6928
    %v6930 = vpop.f32.mrb[0].mxu0
    %v6931 = vpop.f32.mrb[0].mxu0
    %6932 = vdwg.mxu0
    %6933 = vmatprep.subr.bf16.mxu0 %v2768
    %6934 = vmatpush1.bf16.msra.mxu0 %v2767
    %6935 = vmatprep.subr.bf16.mxu0 %v2770
    %6936 = vmatpush1.bf16.msra.mxu0 %v2769
    %6937 = vmatprep.subr.bf16.mxu0 %v2772
    %6938 = vmatpush1.bf16.msra.mxu0 %v2771
    %6939 = vmatprep.subr.bf16.mxu0 %v2774
    %6940 = vmatpush1.bf16.msra.mxu0 %v2773
    %6941 = vmatprep.subr.bf16.mxu0 %v2776
    %6942 = vmatpush1.bf16.msra.mxu0 %v2775
    %6943 = vmatprep.subr.bf16.mxu0 %v2778
    %6944 = vmatpush1.bf16.msra.mxu0 %v2777
    %6945 = vmatprep.subr.bf16.mxu0 %v2780
    %6946 = vmatpush1.bf16.msra.mxu0 %v2779
    %6947 = vmatprep.subr.bf16.mxu0 %v2782
    %6948 = vmatpush1.bf16.msra.mxu0 %v2781
    %6949 = vmatprep.subr.bf16.mxu0 %v2784
    %6950 = vmatpush1.bf16.msra.mxu0 %v2783
    %6951 = vmatprep.subr.bf16.mxu0 %v2786
    %6952 = vmatpush1.bf16.msra.mxu0 %v2785
    %6953 = vmatprep.subr.bf16.mxu0 %v2788
    %6954 = vmatpush1.bf16.msra.mxu0 %v2787
    %6955 = vmatprep.subr.bf16.mxu0 %v2790
    %6956 = vmatpush1.bf16.msra.mxu0 %v2789
    %6957 = vmatprep.subr.bf16.mxu0 %v2821
    %6958 = vmatpush1.bf16.msra.mxu0 %v2818
    %6959 = vmatprep.subr.bf16.mxu0 0
    %6960 = vmatpush1.bf16.msra.mxu0 0
    %6961 = vmatprep.subr.bf16.mxu0 0
    %6962 = vmatpush1.bf16.msra.mxu0 0
    %6963 = vmatprep.subr.bf16.mxu0 0
    %6964 = vmatpush1.bf16.msra.mxu0 0
    %6965 = vmatprep.mubr.bf16.mxu0 %v6890
    %6966 = vmatmul.mubr.bf16.gmra.mrb[0].mxu0 %v6887
    %v6967 = vpop.f32.mrb[0].mxu0
    %v6968 = vadd.f32 0.0, %v6967
    %v6969 = vpop.f32.mrb[0].mxu0
    %v6970 = vadd.f32 0.0, %v6969
    %v6971 = vpop.f32.mrb[0].mxu0
    %v6972 = vpop.f32.mrb[0].mxu0
    %6973 = vdwg.mxu0
    %6974 = vmatprep.subr.bf16.mxu0 %v2940
    %6975 = vmatpush1.bf16.msra.mxu0 %v2939
    %6976 = vmatprep.subr.bf16.mxu0 %v2942
    %6977 = vmatpush1.bf16.msra.mxu0 %v2941
    %6978 = vmatprep.subr.bf16.mxu0 %v2944
    %6979 = vmatpush1.bf16.msra.mxu0 %v2943
    %6980 = vmatprep.subr.bf16.mxu0 %v2946
    %6981 = vmatpush1.bf16.msra.mxu0 %v2945
    %6982 = vmatprep.subr.bf16.mxu0 %v2948
    %6983 = vmatpush1.bf16.msra.mxu0 %v2947
    %6984 = vmatprep.subr.bf16.mxu0 %v2950
    %6985 = vmatpush1.bf16.msra.mxu0 %v2949
    %6986 = vmatprep.subr.bf16.mxu0 %v2952
    %6987 = vmatpush1.bf16.msra.mxu0 %v2951
    %6988 = vmatprep.subr.bf16.mxu0 %v2954
    %6989 = vmatpush1.bf16.msra.mxu0 %v2953
    %6990 = vmatprep.subr.bf16.mxu0 %v2956
    %6991 = vmatpush1.bf16.msra.mxu0 %v2955
    %6992 = vmatprep.subr.bf16.mxu0 %v2958
    %6993 = vmatpush1.bf16.msra.mxu0 %v2957
    %6994 = vmatprep.subr.bf16.mxu0 %v2960
    %6995 = vmatpush1.bf16.msra.mxu0 %v2959
    %6996 = vmatprep.subr.bf16.mxu0 %v2962
    %6997 = vmatpush1.bf16.msra.mxu0 %v2961
    %6998 = vmatprep.subr.bf16.mxu0 %v2993
    %6999 = vmatpush1.bf16.msra.mxu0 %v2990
    %7000 = vmatprep.subr.bf16.mxu0 0
    %7001 = vmatpush1.bf16.msra.mxu0 0
    %7002 = vmatprep.subr.bf16.mxu0 0
    %7003 = vmatpush1.bf16.msra.mxu0 0
    %7004 = vmatprep.subr.bf16.mxu0 0
    %7005 = vmatpush1.bf16.msra.mxu0 0
    %7006 = vmatprep.mubr.bf16.mxu0 %v6890
    %7007 = vmatmul.mubr.bf16.gmra.mrb[0].mxu0 %v6887
    %v7008 = vpop.f32.mrb[0].mxu0
    %v7009 = vadd.f32 %v2510, %v7008
    %v7010 = vpop.f32.mrb[0].mxu0
    %v7011 = vadd.f32 %v2514, %v7010
    %v7012 = vpop.f32.mrb[0].mxu0
    %v7013 = vpop.f32.mrb[0].mxu0
    %7014 = vdwg.mxu0
    %s7015 = scalar_lea.vmem [#allocation2], 352
    %v7016 = vld [vmem:[%s7015] sm:$0xff]
    %v7017 = vld [vmem:[%s7015 + $0x8] sm:$0xff]
    %v7018 = vadd.f32 %v7016, %v6927
    %v7019 = vadd.f32 %v7017, %v6929
    %v7020 = vxor.u32 %v7018, 2147483648
    %v7021 = vxor.u32 %v7019, 2147483648
    %v7022 = vmul.f32 %v7020, 1.442695
    %v7023 = vpow.pop %v7022
    %v7024 = vmul.f32 %v7021, 1.442695
    %v7025 = vpow.pop %v7024
    %v7026 = vadd.f32 %v7023, 1.0
    %v7027 = vadd.f32 %v7025, 1.0
    %v7028 = vrcp.pop %v7026
    %v7029 = vmul.f32 1.0, %v7028
    %v7030 = vrcp.pop %v7027
    %v7031 = vmul.f32 1.0, %v7030
    %s7032 = scalar_lea.vmem [#allocation3], 352
    %v7033 = vld [vmem:[%s7032] sm:$0xff]
    %v7034 = vld [vmem:[%s7032 + $0x8] sm:$0xff]
    %v7035 = vadd.f32 %v7033, %v6968
    %v7036 = vadd.f32 %v7034, %v6970
    %v7037 = vxor.u32 %v7035, 2147483648
    %v7038 = vxor.u32 %v7036, 2147483648
    %v7039 = vmul.f32 %v7037, 1.442695
    %v7040 = vpow.pop %v7039
    %v7041 = vmul.f32 %v7038, 1.442695
    %v7042 = vpow.pop %v7041
    %v7043 = vadd.f32 %v7040, 1.0
    %v7044 = vadd.f32 %v7042, 1.0
    %v7045 = vrcp.pop %v7043
    %v7046 = vmul.f32 1.0, %v7045
    %v7047 = vrcp.pop %v7044
    %v7048 = vmul.f32 1.0, %v7047
    %s7049 = scalar_lea.vmem [#allocation4], 352
    %v7050 = vld [vmem:[%s7049] sm:$0xff]
    %v7051 = vld [vmem:[%s7049 + $0x8] sm:$0xff]
    %v7052 = vmul.f32 %v7029, %v7009
    %v7053 = vmul.f32 %v7031, %v7011
    %v7054 = vadd.f32 %v7050, %v7052
    %v7055 = vadd.f32 %v7051, %v7053
    %v7056 = vtanh.pop %v7054
    %v7057 = vtanh.pop %v7055
    %v7058 = vsub.f32 1.0, %v7046
    %v7059 = vsub.f32 1.0, %v7048
    %v7060 = vmul.f32 %v7058, %v7056
    %v7061 = vmul.f32 %v7059, %v7057
    %v7062 = vmul.f32 %v7046, %v6883
    %v7063 = vmul.f32 %v7048, %v6884
    %v7064 = vadd.f32 %v7060, %v7062
    %v7065 = vadd.f32 %v7061, %v7063
    %v7066 = vadd.f32 %v6885, %v7064
    %v7067 = vadd.f32 %v6886, %v7065
    %v7068 = vpack.c.bf16 %v7064, %v7064
    %v7069 = vpack.c.bf16 %v7065, %v7065
    %v7071 = vsel %vm1414, %v7069, 0
    %7073 = vmatprep.subr.bf16.mxu0 %v2593
    %7074 = vmatpush1.bf16.msra.mxu0 %v2592
    %7075 = vmatprep.subr.bf16.mxu0 %v2595
    %7076 = vmatpush1.bf16.msra.mxu0 %v2594
    %7077 = vmatprep.subr.bf16.mxu0 %v2597
    %7078 = vmatpush1.bf16.msra.mxu0 %v2596
    %7079 = vmatprep.subr.bf16.mxu0 %v2599
    %7080 = vmatpush1.bf16.msra.mxu0 %v2598
    %7081 = vmatprep.subr.bf16.mxu0 %v2601
    %7082 = vmatpush1.bf16.msra.mxu0 %v2600
    %7083 = vmatprep.subr.bf16.mxu0 %v2603
    %7084 = vmatpush1.bf16.msra.mxu0 %v2602
    %7085 = vmatprep.subr.bf16.mxu0 %v2605
    %7086 = vmatpush1.bf16.msra.mxu0 %v2604
    %7087 = vmatprep.subr.bf16.mxu0 %v2607
    %7088 = vmatpush1.bf16.msra.mxu0 %v2606
    %7089 = vmatprep.subr.bf16.mxu0 %v2609
    %7090 = vmatpush1.bf16.msra.mxu0 %v2608
    %7091 = vmatprep.subr.bf16.mxu0 %v2611
    %7092 = vmatpush1.bf16.msra.mxu0 %v2610
    %7093 = vmatprep.subr.bf16.mxu0 %v2613
    %7094 = vmatpush1.bf16.msra.mxu0 %v2612
    %7095 = vmatprep.subr.bf16.mxu0 %v2615
    %7096 = vmatpush1.bf16.msra.mxu0 %v2614
    %7097 = vmatprep.subr.bf16.mxu0 %v2649
    %7098 = vmatpush1.bf16.msra.mxu0 %v2646
    %7099 = vmatprep.subr.bf16.mxu0 0
    %7100 = vmatpush1.bf16.msra.mxu0 0
    %7101 = vmatprep.subr.bf16.mxu0 0
    %7102 = vmatpush1.bf16.msra.mxu0 0
    %7103 = vmatprep.subr.bf16.mxu0 0
    %7104 = vmatpush1.bf16.msra.mxu0 0
    %7105 = vmatprep.mubr.bf16.mxu0 %v7071
    %7106 = vmatmul.mubr.bf16.gmra.mrb[0].mxu0 %v7068
    %v7107 = vpop.f32.mrb[0].mxu0
    %v7108 = vadd.f32 0.0, %v7107
    %v7109 = vpop.f32.mrb[0].mxu0
    %v7110 = vadd.f32 0.0, %v7109
    %v7111 = vpop.f32.mrb[0].mxu0
    %v7112 = vpop.f32.mrb[0].mxu0
    %7113 = vdwg.mxu0
    %7114 = vmatprep.subr.bf16.mxu0 %v2768
    %7115 = vmatpush1.bf16.msra.mxu0 %v2767
    %7116 = vmatprep.subr.bf16.mxu0 %v2770
    %7117 = vmatpush1.bf16.msra.mxu0 %v2769
    %7118 = vmatprep.subr.bf16.mxu0 %v2772
    %7119 = vmatpush1.bf16.msra.mxu0 %v2771
    %7120 = vmatprep.subr.bf16.mxu0 %v2774
    %7121 = vmatpush1.bf16.msra.mxu0 %v2773
    %7122 = vmatprep.subr.bf16.mxu0 %v2776
    %7123 = vmatpush1.bf16.msra.mxu0 %v2775
    %7124 = vmatprep.subr.bf16.mxu0 %v2778
    %7125 = vmatpush1.bf16.msra.mxu0 %v2777
    %7126 = vmatprep.subr.bf16.mxu0 %v2780
    %7127 = vmatpush1.bf16.msra.mxu0 %v2779
    %7128 = vmatprep.subr.bf16.mxu0 %v2782
    %7129 = vmatpush1.bf16.msra.mxu0 %v2781
    %7130 = vmatprep.subr.bf16.mxu0 %v2784
    %7131 = vmatpush1.bf16.msra.mxu0 %v2783
    %7132 = vmatprep.subr.bf16.mxu0 %v2786
    %7133 = vmatpush1.bf16.msra.mxu0 %v2785
    %7134 = vmatprep.subr.bf16.mxu0 %v2788
    %7135 = vmatpush1.bf16.msra.mxu0 %v2787
    %7136 = vmatprep.subr.bf16.mxu0 %v2790
    %7137 = vmatpush1.bf16.msra.mxu0 %v2789
    %7138 = vmatprep.subr.bf16.mxu0 %v2821
    %7139 = vmatpush1.bf16.msra.mxu0 %v2818
    %7140 = vmatprep.subr.bf16.mxu0 0
    %7141 = vmatpush1.bf16.msra.mxu0 0
    %7142 = vmatprep.subr.bf16.mxu0 0
    %7143 = vmatpush1.bf16.msra.mxu0 0
    %7144 = vmatprep.subr.bf16.mxu0 0
    %7145 = vmatpush1.bf16.msra.mxu0 0
    %7146 = vmatprep.mubr.bf16.mxu0 %v7071
    %7147 = vmatmul.mubr.bf16.gmra.mrb[0].mxu0 %v7068
    %v7148 = vpop.f32.mrb[0].mxu0
    %v7149 = vadd.f32 0.0, %v7148
    %v7150 = vpop.f32.mrb[0].mxu0
    %v7151 = vadd.f32 0.0, %v7150
    %v7152 = vpop.f32.mrb[0].mxu0
    %v7153 = vpop.f32.mrb[0].mxu0
    %7154 = vdwg.mxu0
    %7155 = vmatprep.subr.bf16.mxu0 %v2940
    %7156 = vmatpush1.bf16.msra.mxu0 %v2939
    %7157 = vmatprep.subr.bf16.mxu0 %v2942
    %7158 = vmatpush1.bf16.msra.mxu0 %v2941
    %7159 = vmatprep.subr.bf16.mxu0 %v2944
    %7160 = vmatpush1.bf16.msra.mxu0 %v2943
    %7161 = vmatprep.subr.bf16.mxu0 %v2946
    %7162 = vmatpush1.bf16.msra.mxu0 %v2945
    %7163 = vmatprep.subr.bf16.mxu0 %v2948
    %7164 = vmatpush1.bf16.msra.mxu0 %v2947
    %7165 = vmatprep.subr.bf16.mxu0 %v2950
    %7166 = vmatpush1.bf16.msra.mxu0 %v2949
    %7167 = vmatprep.subr.bf16.mxu0 %v2952
    %7168 = vmatpush1.bf16.msra.mxu0 %v2951
    %7169 = vmatprep.subr.bf16.mxu0 %v2954
    %7170 = vmatpush1.bf16.msra.mxu0 %v2953
    %7171 = vmatprep.subr.bf16.mxu0 %v2956
    %7172 = vmatpush1.bf16.msra.mxu0 %v2955
    %7173 = vmatprep.subr.bf16.mxu0 %v2958
    %7174 = vmatpush1.bf16.msra.mxu0 %v2957
    %7175 = vmatprep.subr.bf16.mxu0 %v2960
    %7176 = vmatpush1.bf16.msra.mxu0 %v2959
    %7177 = vmatprep.subr.bf16.mxu0 %v2962
    %7178 = vmatpush1.bf16.msra.mxu0 %v2961
    %7179 = vmatprep.subr.bf16.mxu0 %v2993
    %7180 = vmatpush1.bf16.msra.mxu0 %v2990
    %7181 = vmatprep.subr.bf16.mxu0 0
    %7182 = vmatpush1.bf16.msra.mxu0 0
    %7183 = vmatprep.subr.bf16.mxu0 0
    %7184 = vmatpush1.bf16.msra.mxu0 0
    %7185 = vmatprep.subr.bf16.mxu0 0
    %7186 = vmatpush1.bf16.msra.mxu0 0
    %7187 = vmatprep.mubr.bf16.mxu0 %v7071
    %7188 = vmatmul.mubr.bf16.gmra.mrb[0].mxu0 %v7068
    %v7189 = vpop.f32.mrb[0].mxu0
    %v7190 = vadd.f32 %v2510, %v7189
    %v7191 = vpop.f32.mrb[0].mxu0
    %v7192 = vadd.f32 %v2514, %v7191
    %v7193 = vpop.f32.mrb[0].mxu0
    %v7194 = vpop.f32.mrb[0].mxu0
    %7195 = vdwg.mxu0
    %s7196 = scalar_lea.vmem [#allocation2], 368
    %v7197 = vld [vmem:[%s7196] sm:$0xff]
    %v7198 = vld [vmem:[%s7196 + $0x8] sm:$0xff]
    %v7199 = vadd.f32 %v7197, %v7108
    %v7200 = vadd.f32 %v7198, %v7110
    %v7201 = vxor.u32 %v7199, 2147483648
    %v7202 = vxor.u32 %v7200, 2147483648
    %v7203 = vmul.f32 %v7201, 1.442695
    %v7204 = vpow.pop %v7203
    %v7205 = vmul.f32 %v7202, 1.442695
    %v7206 = vpow.pop %v7205
    %v7207 = vadd.f32 %v7204, 1.0
    %v7208 = vadd.f32 %v7206, 1.0
    %v7209 = vrcp.pop %v7207
    %v7210 = vmul.f32 1.0, %v7209
    %v7211 = vrcp.pop %v7208
    %v7212 = vmul.f32 1.0, %v7211
    %s7213 = scalar_lea.vmem [#allocation3], 368
    %v7214 = vld [vmem:[%s7213] sm:$0xff]
    %v7215 = vld [vmem:[%s7213 + $0x8] sm:$0xff]
    %v7216 = vadd.f32 %v7214, %v7149
    %v7217 = vadd.f32 %v7215, %v7151
    %v7218 = vxor.u32 %v7216, 2147483648
    %v7219 = vxor.u32 %v7217, 2147483648
    %v7220 = vmul.f32 %v7218, 1.442695
    %v7221 = vpow.pop %v7220
    %v7222 = vmul.f32 %v7219, 1.442695
    %v7223 = vpow.pop %v7222
    %v7224 = vadd.f32 %v7221, 1.0
    %v7225 = vadd.f32 %v7223, 1.0
    %v7226 = vrcp.pop %v7224
    %v7227 = vmul.f32 1.0, %v7226
    %v7228 = vrcp.pop %v7225
    %v7229 = vmul.f32 1.0, %v7228
    %s7230 = scalar_lea.vmem [#allocation4], 368
    %v7231 = vld [vmem:[%s7230] sm:$0xff]
    %v7232 = vld [vmem:[%s7230 + $0x8] sm:$0xff]
    %v7233 = vmul.f32 %v7210, %v7190
    %v7234 = vmul.f32 %v7212, %v7192
    %v7235 = vadd.f32 %v7231, %v7233
    %v7236 = vadd.f32 %v7232, %v7234
    %v7237 = vtanh.pop %v7235
    %v7238 = vtanh.pop %v7236
    %v7239 = vsub.f32 1.0, %v7227
    %v7240 = vsub.f32 1.0, %v7229
    %v7241 = vmul.f32 %v7239, %v7237
    %v7242 = vmul.f32 %v7240, %v7238
    %v7243 = vmul.f32 %v7227, %v7064
    %v7244 = vmul.f32 %v7229, %v7065
    %v7245 = vadd.f32 %v7241, %v7243
    %v7246 = vadd.f32 %v7242, %v7244
    %v7247 = vadd.f32 %v7066, %v7245
    %v7248 = vadd.f32 %v7067, %v7246
    %v7249 = vpack.c.bf16 %v7245, %v7245
    %v7250 = vpack.c.bf16 %v7246, %v7246
    %v7252 = vsel %vm1414, %v7250, 0
    %7254 = vmatprep.subr.bf16.mxu0 %v2593
    %7255 = vmatpush1.bf16.msra.mxu0 %v2592
    %7256 = vmatprep.subr.bf16.mxu0 %v2595
    %7257 = vmatpush1.bf16.msra.mxu0 %v2594
    %7258 = vmatprep.subr.bf16.mxu0 %v2597
    %7259 = vmatpush1.bf16.msra.mxu0 %v2596
    %7260 = vmatprep.subr.bf16.mxu0 %v2599
    %7261 = vmatpush1.bf16.msra.mxu0 %v2598
    %7262 = vmatprep.subr.bf16.mxu0 %v2601
    %7263 = vmatpush1.bf16.msra.mxu0 %v2600
    %7264 = vmatprep.subr.bf16.mxu0 %v2603
    %7265 = vmatpush1.bf16.msra.mxu0 %v2602
    %7266 = vmatprep.subr.bf16.mxu0 %v2605
    %7267 = vmatpush1.bf16.msra.mxu0 %v2604
    %7268 = vmatprep.subr.bf16.mxu0 %v2607
    %7269 = vmatpush1.bf16.msra.mxu0 %v2606
    %7270 = vmatprep.subr.bf16.mxu0 %v2609
    %7271 = vmatpush1.bf16.msra.mxu0 %v2608
    %7272 = vmatprep.subr.bf16.mxu0 %v2611
    %7273 = vmatpush1.bf16.msra.mxu0 %v2610
    %7274 = vmatprep.subr.bf16.mxu0 %v2613
    %7275 = vmatpush1.bf16.msra.mxu0 %v2612
    %7276 = vmatprep.subr.bf16.mxu0 %v2615
    %7277 = vmatpush1.bf16.msra.mxu0 %v2614
    %7278 = vmatprep.subr.bf16.mxu0 %v2649
    %7279 = vmatpush1.bf16.msra.mxu0 %v2646
    %7280 = vmatprep.subr.bf16.mxu0 0
    %7281 = vmatpush1.bf16.msra.mxu0 0
    %7282 = vmatprep.subr.bf16.mxu0 0
    %7283 = vmatpush1.bf16.msra.mxu0 0
    %7284 = vmatprep.subr.bf16.mxu0 0
    %7285 = vmatpush1.bf16.msra.mxu0 0
    %7286 = vmatprep.mubr.bf16.mxu0 %v7252
    %7287 = vmatmul.mubr.bf16.gmra.mrb[0].mxu0 %v7249
    %v7288 = vpop.f32.mrb[0].mxu0
    %v7289 = vadd.f32 0.0, %v7288
    %v7290 = vpop.f32.mrb[0].mxu0
    %v7291 = vadd.f32 0.0, %v7290
    %v7292 = vpop.f32.mrb[0].mxu0
    %v7293 = vpop.f32.mrb[0].mxu0
    %7294 = vdwg.mxu0
    %7295 = vmatprep.subr.bf16.mxu0 %v2768
    %7296 = vmatpush1.bf16.msra.mxu0 %v2767
    %7297 = vmatprep.subr.bf16.mxu0 %v2770
    %7298 = vmatpush1.bf16.msra.mxu0 %v2769
    %7299 = vmatprep.subr.bf16.mxu0 %v2772
    %7300 = vmatpush1.bf16.msra.mxu0 %v2771
    %7301 = vmatprep.subr.bf16.mxu0 %v2774
    %7302 = vmatpush1.bf16.msra.mxu0 %v2773
    %7303 = vmatprep.subr.bf16.mxu0 %v2776
    %7304 = vmatpush1.bf16.msra.mxu0 %v2775
    %7305 = vmatprep.subr.bf16.mxu0 %v2778
    %7306 = vmatpush1.bf16.msra.mxu0 %v2777
    %7307 = vmatprep.subr.bf16.mxu0 %v2780
    %7308 = vmatpush1.bf16.msra.mxu0 %v2779
    %7309 = vmatprep.subr.bf16.mxu0 %v2782
    %7310 = vmatpush1.bf16.msra.mxu0 %v2781
    %7311 = vmatprep.subr.bf16.mxu0 %v2784
    %7312 = vmatpush1.bf16.msra.mxu0 %v2783
    %7313 = vmatprep.subr.bf16.mxu0 %v2786
    %7314 = vmatpush1.bf16.msra.mxu0 %v2785
    %7315 = vmatprep.subr.bf16.mxu0 %v2788
    %7316 = vmatpush1.bf16.msra.mxu0 %v2787
    %7317 = vmatprep.subr.bf16.mxu0 %v2790
    %7318 = vmatpush1.bf16.msra.mxu0 %v2789
    %7319 = vmatprep.subr.bf16.mxu0 %v2821
    %7320 = vmatpush1.bf16.msra.mxu0 %v2818
    %7321 = vmatprep.subr.bf16.mxu0 0
    %7322 = vmatpush1.bf16.msra.mxu0 0
    %7323 = vmatprep.subr.bf16.mxu0 0
    %7324 = vmatpush1.bf16.msra.mxu0 0
    %7325 = vmatprep.subr.bf16.mxu0 0
    %7326 = vmatpush1.bf16.msra.mxu0 0
    %7327 = vmatprep.mubr.bf16.mxu0 %v7252
    %7328 = vmatmul.mubr.bf16.gmra.mrb[0].mxu0 %v7249
    %v7329 = vpop.f32.mrb[0].mxu0
    %v7330 = vadd.f32 0.0, %v7329
    %v7331 = vpop.f32.mrb[0].mxu0
    %v7332 = vadd.f32 0.0, %v7331
    %v7333 = vpop.f32.mrb[0].mxu0
    %v7334 = vpop.f32.mrb[0].mxu0
    %7335 = vdwg.mxu0
    %7336 = vmatprep.subr.bf16.mxu0 %v2940
    %7337 = vmatpush1.bf16.msra.mxu0 %v2939
    %7338 = vmatprep.subr.bf16.mxu0 %v2942
    %7339 = vmatpush1.bf16.msra.mxu0 %v2941
    %7340 = vmatprep.subr.bf16.mxu0 %v2944
    %7341 = vmatpush1.bf16.msra.mxu0 %v2943
    %7342 = vmatprep.subr.bf16.mxu0 %v2946
    %7343 = vmatpush1.bf16.msra.mxu0 %v2945
    %7344 = vmatprep.subr.bf16.mxu0 %v2948
    %7345 = vmatpush1.bf16.msra.mxu0 %v2947
    %7346 = vmatprep.subr.bf16.mxu0 %v2950
    %7347 = vmatpush1.bf16.msra.mxu0 %v2949
    %7348 = vmatprep.subr.bf16.mxu0 %v2952
    %7349 = vmatpush1.bf16.msra.mxu0 %v2951
    %7350 = vmatprep.subr.bf16.mxu0 %v2954
    %7351 = vmatpush1.bf16.msra.mxu0 %v2953
    %7352 = vmatprep.subr.bf16.mxu0 %v2956
    %7353 = vmatpush1.bf16.msra.mxu0 %v2955
    %7354 = vmatprep.subr.bf16.mxu0 %v2958
    %7355 = vmatpush1.bf16.msra.mxu0 %v2957
    %7356 = vmatprep.subr.bf16.mxu0 %v2960
    %7357 = vmatpush1.bf16.msra.mxu0 %v2959
    %7358 = vmatprep.subr.bf16.mxu0 %v2962
    %7359 = vmatpush1.bf16.msra.mxu0 %v2961
    %7360 = vmatprep.subr.bf16.mxu0 %v2993
    %7361 = vmatpush1.bf16.msra.mxu0 %v2990
    %7362 = vmatprep.subr.bf16.mxu0 0
    %7363 = vmatpush1.bf16.msra.mxu0 0
    %7364 = vmatprep.subr.bf16.mxu0 0
    %7365 = vmatpush1.bf16.msra.mxu0 0
    %7366 = vmatprep.subr.bf16.mxu0 0
    %7367 = vmatpush1.bf16.msra.mxu0 0
    %7368 = vmatprep.mubr.bf16.mxu0 %v7252
    %7369 = vmatmul.mubr.bf16.gmra.mrb[0].mxu0 %v7249
    %v7370 = vpop.f32.mrb[0].mxu0
    %v7371 = vadd.f32 %v2510, %v7370
    %v7372 = vpop.f32.mrb[0].mxu0
    %v7373 = vadd.f32 %v2514, %v7372
    %v7374 = vpop.f32.mrb[0].mxu0
    %v7375 = vpop.f32.mrb[0].mxu0
    %7376 = vdwg.mxu0
    %s7377 = scalar_lea.vmem [#allocation2], 384
    %v7378 = vld [vmem:[%s7377] sm:$0xff]
    %v7379 = vld [vmem:[%s7377 + $0x8] sm:$0xff]
    %v7380 = vadd.f32 %v7378, %v7289
    %v7381 = vadd.f32 %v7379, %v7291
    %v7382 = vxor.u32 %v7380, 2147483648
    %v7383 = vxor.u32 %v7381, 2147483648
    %v7384 = vmul.f32 %v7382, 1.442695
    %v7385 = vpow.pop %v7384
    %v7386 = vmul.f32 %v7383, 1.442695
    %v7387 = vpow.pop %v7386
    %v7388 = vadd.f32 %v7385, 1.0
    %v7389 = vadd.f32 %v7387, 1.0
    %v7390 = vrcp.pop %v7388
    %v7391 = vmul.f32 1.0, %v7390
    %v7392 = vrcp.pop %v7389
    %v7393 = vmul.f32 1.0, %v7392
    %s7394 = scalar_lea.vmem [#allocation3], 384
    %v7395 = vld [vmem:[%s7394] sm:$0xff]
    %v7396 = vld [vmem:[%s7394 + $0x8] sm:$0xff]
    %v7397 = vadd.f32 %v7395, %v7330
    %v7398 = vadd.f32 %v7396, %v7332
    %v7399 = vxor.u32 %v7397, 2147483648
    %v7400 = vxor.u32 %v7398, 2147483648
    %v7401 = vmul.f32 %v7399, 1.442695
    %v7402 = vpow.pop %v7401
    %v7403 = vmul.f32 %v7400, 1.442695
    %v7404 = vpow.pop %v7403
    %v7405 = vadd.f32 %v7402, 1.0
    %v7406 = vadd.f32 %v7404, 1.0
    %v7407 = vrcp.pop %v7405
    %v7408 = vmul.f32 1.0, %v7407
    %v7409 = vrcp.pop %v7406
    %v7410 = vmul.f32 1.0, %v7409
    %s7411 = scalar_lea.vmem [#allocation4], 384
    %v7412 = vld [vmem:[%s7411] sm:$0xff]
    %v7413 = vld [vmem:[%s7411 + $0x8] sm:$0xff]
    %v7414 = vmul.f32 %v7391, %v7371
    %v7415 = vmul.f32 %v7393, %v7373
    %v7416 = vadd.f32 %v7412, %v7414
    %v7417 = vadd.f32 %v7413, %v7415
    %v7418 = vtanh.pop %v7416
    %v7419 = vtanh.pop %v7417
    %v7420 = vsub.f32 1.0, %v7408
    %v7421 = vsub.f32 1.0, %v7410
    %v7422 = vmul.f32 %v7420, %v7418
    %v7423 = vmul.f32 %v7421, %v7419
    %v7424 = vmul.f32 %v7408, %v7245
    %v7425 = vmul.f32 %v7410, %v7246
    %v7426 = vadd.f32 %v7422, %v7424
    %v7427 = vadd.f32 %v7423, %v7425
    %v7428 = vadd.f32 %v7247, %v7426
    %v7429 = vadd.f32 %v7248, %v7427
    %v7430 = vsel %vm1414, %v7429, 0.0
    %v7431 = vadd.f32 %v7428, %v7430
    %7432 = vadd.xlane.f32.xlu0 %v7431
    %v7433 = vpop.xlane.xlu0 %7432
    %v7434 = vsel %vm1414, %v7427, 0.0
    %v7435 = vadd.f32 %v7426, %v7434
    %7436 = vadd.xlane.f32.xlu0 %v7435
    %v7437 = vpop.xlane.xlu0 %7436
    %v7438 = vadd.f32 %v7433, %v7437
    %v7439 = vmul.f32 %v7438, 0.0025
    %v7440 = vsub.f32 %v7428, %v7439
    %v7441 = vsub.f32 %v7429, %v7439
    %v7442 = vsub.f32 %v7426, %v7439
    %v7443 = vsub.f32 %v7427, %v7439
    %v7444 = vmul.f32 %v7440, %v7440
    %v7445 = vmul.f32 %v7441, %v7441
    %v7446 = vsel %vm1414, %v7445, 0.0
    %v7447 = vadd.f32 %v7444, %v7446
    %7448 = vadd.xlane.f32.xlu0 %v7447
    %v7449 = vpop.xlane.xlu0 %7448
    %v7450 = vmul.f32 %v7442, %v7442
    %v7451 = vmul.f32 %v7443, %v7443
    %v7452 = vsel %vm1414, %v7451, 0.0
    %v7453 = vadd.f32 %v7450, %v7452
    %7454 = vadd.xlane.f32.xlu0 %v7453
    %v7455 = vpop.xlane.xlu0 %7454
    %v7456 = vadd.f32 %v7449, %v7455
    %v7457 = vmul.f32 %v7456, 0.0025
    %v7458 = vadd.f32 %v7457, 1e-12
    %v7459 = vrsqrt.pop %v7458
    %v7460 = vmul.f32 %v7440, %v7459
    %v7461 = vmul.f32 %v7441, %v7459
    %v7462 = vld [vmem:[%s14] sm:$0x3]
    %v7464 = vlaneseq
    %v7465 = vshrl.u32 %v7464, 7
    %v7466 = vsub.s32 0, %v7465
    %v7467 = vrot.slane %v7462, %v7466
    %v7468 = vlaneseq
    %v7469 = vshrl.u32 %v7468, 7
    %v7470 = vsub.s32 1, %v7469
    %v7471 = vrot.slane %v7462, %v7470
    %v7474 = vmul.f32 %v7460, %v7467
    %v7475 = vmul.f32 %v7461, %v7471
    %v7476 = vld [vmem:[%s16] sm:$0x3]
    %v7478 = vlaneseq
    %v7479 = vshrl.u32 %v7478, 7
    %v7480 = vsub.s32 0, %v7479
    %v7481 = vrot.slane %v7476, %v7480
    %v7482 = vlaneseq
    %v7483 = vshrl.u32 %v7482, 7
    %v7484 = vsub.s32 1, %v7483
    %v7485 = vrot.slane %v7476, %v7484
    %v7488 = vadd.f32 %v7474, %v7481
    %v7489 = vadd.f32 %v7475, %v7485
    %v7490 = vmul.f32 %v7442, %v7459
    %v7491 = vmul.f32 %v7443, %v7459
    %v7492 = vld [vmem:[%s15] sm:$0x3]
    %v7494 = vlaneseq
    %v7495 = vshrl.u32 %v7494, 7
    %v7496 = vsub.s32 0, %v7495
    %v7497 = vrot.slane %v7492, %v7496
    %v7498 = vlaneseq
    %v7499 = vshrl.u32 %v7498, 7
    %v7500 = vsub.s32 1, %v7499
    %v7501 = vrot.slane %v7492, %v7500
    %v7504 = vmul.f32 %v7490, %v7497
    %v7505 = vmul.f32 %v7491, %v7501
    %v7506 = vld [vmem:[%s17] sm:$0x3]
    %v7508 = vlaneseq
    %v7509 = vshrl.u32 %v7508, 7
    %v7510 = vsub.s32 0, %v7509
    %v7511 = vrot.slane %v7506, %v7510
    %v7512 = vlaneseq
    %v7513 = vshrl.u32 %v7512, 7
    %v7514 = vsub.s32 1, %v7513
    %v7515 = vrot.slane %v7506, %v7514
    %v7518 = vadd.f32 %v7504, %v7511
    %v7519 = vadd.f32 %v7505, %v7515
    %v7520 = vld [vmem:[%s1] sm:$0xff]
    %v7521 = vld [vmem:[%s1 + $0x8] sm:$0xff]
    %v7522 = vld [vmem:[%s1 + $0x10] sm:$0xff]
    %v7523 = vld [vmem:[%s1 + $0x18] sm:$0xff]
    %v7528 = vunpack.c.l.b16 %v7520
    %v7529 = vunpack.c.h.b16 %v7520
    %v7530 = vunpack.c.l.b16 %v7521
    %v7531 = vunpack.c.h.b16 %v7521
    %v7532 = vunpack.c.l.b16 %v7522
    %v7533 = vunpack.c.h.b16 %v7522
    %v7534 = vunpack.c.l.b16 %v7523
    %v7535 = vunpack.c.h.b16 %v7523
    %v7536 = vpack.c.b16 %v7532, %v7528
    %v7537 = vpack.c.b16 %v7533, %v7529
    %v7538 = vpack.c.b16 %v7534, %v7530
    %v7539 = vpack.c.b16 %v7535, %v7531
    %7544 = vmatprep.subr.bf16.mxu0 %v727
    %7545 = vmatpush1.bf16.msra.mxu0 %v726
    %7546 = vmatprep.subr.bf16.mxu0 %v729
    %7547 = vmatpush1.bf16.msra.mxu0 %v728
    %7548 = vmatprep.subr.bf16.mxu0 %v731
    %7549 = vmatpush1.bf16.msra.mxu0 %v730
    %7550 = vmatprep.subr.bf16.mxu0 %v733
    %7551 = vmatpush1.bf16.msra.mxu0 %v732
    %7552 = vmatprep.subr.bf16.mxu0 %v735
    %7553 = vmatpush1.bf16.msra.mxu0 %v734
    %7554 = vmatprep.subr.bf16.mxu0 %v737
    %7555 = vmatpush1.bf16.msra.mxu0 %v736
    %7556 = vmatprep.subr.bf16.mxu0 %v739
    %7557 = vmatpush1.bf16.msra.mxu0 %v738
    %7558 = vmatprep.subr.bf16.mxu0 %v741
    %7559 = vmatpush1.bf16.msra.mxu0 %v740
    %7560 = vmatprep.subr.bf16.mxu0 %v743
    %7561 = vmatpush1.bf16.msra.mxu0 %v742
    %7562 = vmatprep.subr.bf16.mxu0 %v745
    %7563 = vmatpush1.bf16.msra.mxu0 %v744
    %7564 = vmatprep.subr.bf16.mxu0 %v747
    %7565 = vmatpush1.bf16.msra.mxu0 %v746
    %7566 = vmatprep.subr.bf16.mxu0 %v749
    %7567 = vmatpush1.bf16.msra.mxu0 %v748
    %7568 = vmatprep.subr.bf16.mxu0 %v751
    %7569 = vmatpush1.bf16.msra.mxu0 %v750
    %7570 = vmatprep.subr.bf16.mxu0 %v753
    %7571 = vmatpush1.bf16.msra.mxu0 %v752
    %7572 = vmatprep.subr.bf16.mxu0 %v755
    %7573 = vmatpush1.bf16.msra.mxu0 %v754
    %7574 = vmatprep.subr.bf16.mxu0 %v757
    %7575 = vmatpush1.bf16.msra.mxu0 %v756
    %7576 = vmatprep.mubr.bf16.mxu0 %v7537
    %7577 = vmatmul.mubr.bf16.gmra.mrb[0].mxu0 %v7536
    %v7578 = vpop.f32.mrb[0].mxu0
    %v7579 = vadd.f32 %v273, %v7578
    %v7580 = vpop.f32.mrb[0].mxu0
    %v7581 = vadd.f32 %v277, %v7580
    %v7582 = vpop.f32.mrb[0].mxu0
    %v7583 = vadd.f32 %v273, %v7582
    %v7584 = vpop.f32.mrb[0].mxu0
    %v7585 = vadd.f32 %v277, %v7584
    %7586 = vdwg.mxu0
    %7587 = vmatprep.subr.bf16.mxu0 %v759
    %7588 = vmatpush1.bf16.msra.mxu0 %v758
    %7589 = vmatprep.subr.bf16.mxu0 %v761
    %7590 = vmatpush1.bf16.msra.mxu0 %v760
    %7591 = vmatprep.subr.bf16.mxu0 %v763
    %7592 = vmatpush1.bf16.msra.mxu0 %v762
    %7593 = vmatprep.subr.bf16.mxu0 %v765
    %7594 = vmatpush1.bf16.msra.mxu0 %v764
    %7595 = vmatprep.subr.bf16.mxu0 %v767
    %7596 = vmatpush1.bf16.msra.mxu0 %v766
    %7597 = vmatprep.subr.bf16.mxu0 %v769
    %7598 = vmatpush1.bf16.msra.mxu0 %v768
    %7599 = vmatprep.subr.bf16.mxu0 %v771
    %7600 = vmatpush1.bf16.msra.mxu0 %v770
    %7601 = vmatprep.subr.bf16.mxu0 %v773
    %7602 = vmatpush1.bf16.msra.mxu0 %v772
    %7603 = vmatprep.subr.bf16.mxu0 %v775
    %7604 = vmatpush1.bf16.msra.mxu0 %v774
    %7605 = vmatprep.subr.bf16.mxu0 %v777
    %7606 = vmatpush1.bf16.msra.mxu0 %v776
    %7607 = vmatprep.subr.bf16.mxu0 %v779
    %7608 = vmatpush1.bf16.msra.mxu0 %v778
    %7609 = vmatprep.subr.bf16.mxu0 %v781
    %7610 = vmatpush1.bf16.msra.mxu0 %v780
    %7611 = vmatprep.subr.bf16.mxu0 %v783
    %7612 = vmatpush1.bf16.msra.mxu0 %v782
    %7613 = vmatprep.subr.bf16.mxu0 %v785
    %7614 = vmatpush1.bf16.msra.mxu0 %v784
    %7615 = vmatprep.subr.bf16.mxu0 %v787
    %7616 = vmatpush1.bf16.msra.mxu0 %v786
    %7617 = vmatprep.subr.bf16.mxu0 %v789
    %7618 = vmatpush1.bf16.msra.mxu0 %v788
    %7619 = vmatprep.mubr.bf16.mxu0 %v7539
    %7620 = vmatmul.mubr.bf16.gmra.mrb[0].mxu0 %v7538
    %v7621 = vpop.f32.mrb[0].mxu0
    %v7622 = vadd.f32 %v7579, %v7621
    %v7623 = vpop.f32.mrb[0].mxu0
    %v7624 = vadd.f32 %v7581, %v7623
    %v7625 = vpop.f32.mrb[0].mxu0
    %v7626 = vadd.f32 %v7583, %v7625
    %v7627 = vpop.f32.mrb[0].mxu0
    %v7628 = vadd.f32 %v7585, %v7627
    %7629 = vdwg.mxu0
    %v7630 = vmax.f32 %v7622, 0.0
    %v7631 = vmax.f32 %v7624, 0.0
    %v7632 = vmax.f32 %v7626, 0.0
    %v7633 = vmax.f32 %v7628, 0.0
    %v7634 = vld [vmem:[%s18] sm:$0x3]
    %v7635 = vld [vmem:[%s19] sm:$0x3]
    %v7636 = vsel %vm1414, %v7631, 0.0
    %v7637 = vadd.f32 %v7630, %v7636
    %7638 = vadd.xlane.f32.xlu0 %v7637
    %v7639 = vpop.xlane.xlu0 %7638
    %v7640 = vsel %vm1414, %v7633, 0.0
    %v7641 = vadd.f32 %v7632, %v7640
    %7642 = vadd.xlane.f32.xlu0 %v7641
    %v7643 = vpop.xlane.xlu0 %7642
    %v7644 = vrcp.pop 200.0
    %v7645 = vmul.f32 %v7639, %v7644
    %v7646 = vmul.f32 %v7643, %v7644
    %v7647 = vsub.f32 %v7630, %v7645
    %v7648 = vsub.f32 %v7631, %v7645
    %v7649 = vsub.f32 %v7632, %v7646
    %v7650 = vsub.f32 %v7633, %v7646
    %v7651 = vmul.f32 %v7647, %v7647
    %v7652 = vmul.f32 %v7648, %v7648
    %v7653 = vmul.f32 %v7649, %v7649
    %v7654 = vmul.f32 %v7650, %v7650
    %v7655 = vsel %vm1414, %v7652, 0.0
    %v7656 = vadd.f32 %v7651, %v7655
    %7657 = vadd.xlane.f32.xlu0 %v7656
    %v7658 = vpop.xlane.xlu0 %7657
    %v7659 = vsel %vm1414, %v7654, 0.0
    %v7660 = vadd.f32 %v7653, %v7659
    %7661 = vadd.xlane.f32.xlu0 %v7660
    %v7662 = vpop.xlane.xlu0 %7661
    %v7663 = vmul.f32 %v7658, %v7644
    %v7664 = vmul.f32 %v7662, %v7644
    %v7665 = vadd.f32 %v7663, 1e-12
    %v7666 = vadd.f32 %v7664, 1e-12
    %v7667 = vrsqrt.pop %v7665
    %v7668 = vrsqrt.pop %v7666
    %v7669 = vmul.f32 %v7647, %v7667
    %v7670 = vmul.f32 %v7648, %v7667
    %v7671 = vmul.f32 %v7649, %v7668
    %v7672 = vmul.f32 %v7650, %v7668
    %v7674 = vlaneseq
    %v7675 = vshrl.u32 %v7674, 7
    %v7676 = vsub.s32 0, %v7675
    %v7677 = vrot.slane %v7634, %v7676
    %v7678 = vlaneseq
    %v7679 = vshrl.u32 %v7678, 7
    %v7680 = vsub.s32 1, %v7679
    %v7681 = vrot.slane %v7634, %v7680
    %v7684 = vmul.f32 %v7669, %v7677
    %v7685 = vmul.f32 %v7670, %v7681
    %v7686 = vmul.f32 %v7671, %v7677
    %v7687 = vmul.f32 %v7672, %v7681
    %v7689 = vlaneseq
    %v7690 = vshrl.u32 %v7689, 7
    %v7691 = vsub.s32 0, %v7690
    %v7692 = vrot.slane %v7635, %v7691
    %v7693 = vlaneseq
    %v7694 = vshrl.u32 %v7693, 7
    %v7695 = vsub.s32 1, %v7694
    %v7696 = vrot.slane %v7635, %v7695
    %v7699 = vadd.f32 %v7684, %v7692
    %v7700 = vadd.f32 %v7685, %v7696
    %v7701 = vadd.f32 %v7686, %v7692
    %v7702 = vadd.f32 %v7687, %v7696
    %v7703 = vpack.c.bf16 %v7701, %v7699
    %v7704 = vpack.c.bf16 %v7702, %v7700
    %v7705 = vld [vmem:[#allocation12] sm:$0xff]
    %v7706 = vld [vmem:[#allocation12 + $0x8] sm:$0xff]
    %v7707 = vld [vmem:[#allocation12 + $0x10] sm:$0xff]
    %v7708 = vld [vmem:[#allocation12 + $0x18] sm:$0xff]
    %v7709 = vld [vmem:[#allocation12 + $0x20] sm:$0xff]
    %v7710 = vld [vmem:[#allocation12 + $0x28] sm:$0xff]
    %v7711 = vld [vmem:[#allocation12 + $0x30] sm:$0xff]
    %v7712 = vld [vmem:[#allocation12 + $0x38] sm:$0xff]
    %v7713 = vld [vmem:[#allocation12 + $0x40] sm:$0xff]
    %v7714 = vld [vmem:[#allocation12 + $0x48] sm:$0xff]
    %v7715 = vld [vmem:[#allocation12 + $0x50] sm:$0xff]
    %v7716 = vld [vmem:[#allocation12 + $0x58] sm:$0xff]
    %v7717 = vld [vmem:[#allocation12 + $0x60] sm:$0xff]
    %v7718 = vld [vmem:[#allocation12 + $0x68] sm:$0xff]
    %v7719 = vld [vmem:[#allocation12 + $0x70] sm:$0xff]
    %v7720 = vld [vmem:[#allocation12 + $0x78] sm:$0xff]
    %v7721 = vld [vmem:[#allocation12 + $0x80] sm:$0xff]
    %v7722 = vld [vmem:[#allocation12 + $0x88] sm:$0xff]
    %v7723 = vld [vmem:[#allocation12 + $0x90] sm:$0xff]
    %v7724 = vld [vmem:[#allocation12 + $0x98] sm:$0xff]
    %v7725 = vld [vmem:[#allocation12 + $0xa0] sm:$0xff]
    %v7726 = vld [vmem:[#allocation12 + $0xa8] sm:$0xff]
    %v7727 = vld [vmem:[#allocation12 + $0xb0] sm:$0xff]
    %v7728 = vld [vmem:[#allocation12 + $0xb8] sm:$0xff]
    %v7729 = vld [vmem:[#allocation12 + $0xc0] sm:$0xff]
    %v7755 = vunpack.c.l.b16 %v7705
    %v7756 = vunpack.c.h.b16 %v7705
    %v7757 = vunpack.c.l.b16 %v7706
    %v7758 = vunpack.c.h.b16 %v7706
    %v7759 = vunpack.c.l.b16 %v7707
    %v7760 = vunpack.c.h.b16 %v7707
    %v7761 = vunpack.c.l.b16 %v7708
    %v7762 = vunpack.c.h.b16 %v7708
    %v7763 = vunpack.c.l.b16 %v7709
    %v7764 = vunpack.c.h.b16 %v7709
    %v7765 = vunpack.c.l.b16 %v7710
    %v7766 = vunpack.c.h.b16 %v7710
    %v7767 = vunpack.c.l.b16 %v7711
    %v7768 = vunpack.c.h.b16 %v7711
    %v7769 = vunpack.c.l.b16 %v7712
    %v7770 = vunpack.c.h.b16 %v7712
    %v7771 = vunpack.c.l.b16 %v7713
    %v7772 = vunpack.c.h.b16 %v7713
    %v7773 = vunpack.c.l.b16 %v7714
    %v7774 = vunpack.c.h.b16 %v7714
    %v7775 = vunpack.c.l.b16 %v7715
    %v7776 = vunpack.c.h.b16 %v7715
    %v7777 = vunpack.c.l.b16 %v7716
    %v7778 = vunpack.c.h.b16 %v7716
    %v7779 = vunpack.c.l.b16 %v7717
    %v7780 = vunpack.c.h.b16 %v7717
    %v7781 = vunpack.c.l.b16 %v7718
    %v7782 = vunpack.c.h.b16 %v7718
    %v7783 = vunpack.c.l.b16 %v7719
    %v7784 = vunpack.c.h.b16 %v7719
    %v7785 = vunpack.c.l.b16 %v7720
    %v7786 = vunpack.c.h.b16 %v7720
    %v7787 = vunpack.c.l.b16 %v7721
    %v7788 = vunpack.c.h.b16 %v7721
    %v7789 = vunpack.c.l.b16 %v7722
    %v7790 = vunpack.c.h.b16 %v7722
    %v7791 = vunpack.c.l.b16 %v7723
    %v7792 = vunpack.c.h.b16 %v7723
    %v7793 = vunpack.c.l.b16 %v7724
    %v7794 = vunpack.c.h.b16 %v7724
    %v7795 = vunpack.c.l.b16 %v7725
    %v7796 = vunpack.c.h.b16 %v7725
    %v7797 = vunpack.c.l.b16 %v7726
    %v7798 = vunpack.c.h.b16 %v7726
    %v7799 = vunpack.c.l.b16 %v7727
    %v7800 = vunpack.c.h.b16 %v7727
    %v7801 = vunpack.c.l.b16 %v7728
    %v7802 = vunpack.c.h.b16 %v7728
    %v7803 = vunpack.c.l.b16 %v7729
    %v7804 = vunpack.c.h.b16 %v7729
    %v7805 = vpack.c.b16 %v7757, %v7755
    %v7806 = vpack.c.b16 %v7758, %v7756
    %v7807 = vpack.c.b16 %v7761, %v7759
    %v7808 = vpack.c.b16 %v7762, %v7760
    %v7809 = vpack.c.b16 %v7765, %v7763
    %v7810 = vpack.c.b16 %v7766, %v7764
    %v7811 = vpack.c.b16 %v7769, %v7767
    %v7812 = vpack.c.b16 %v7770, %v7768
    %v7813 = vpack.c.b16 %v7773, %v7771
    %v7814 = vpack.c.b16 %v7774, %v7772
    %v7815 = vpack.c.b16 %v7777, %v7775
    %v7816 = vpack.c.b16 %v7778, %v7776
    %v7817 = vpack.c.b16 %v7781, %v7779
    %v7818 = vpack.c.b16 %v7782, %v7780
    %v7819 = vpack.c.b16 %v7785, %v7783
    %v7820 = vpack.c.b16 %v7786, %v7784
    %v7821 = vpack.c.b16 %v7789, %v7787
    %v7822 = vpack.c.b16 %v7790, %v7788
    %v7823 = vpack.c.b16 %v7793, %v7791
    %v7824 = vpack.c.b16 %v7794, %v7792
    %v7825 = vpack.c.b16 %v7797, %v7795
    %v7826 = vpack.c.b16 %v7798, %v7796
    %v7827 = vpack.c.b16 %v7801, %v7799
    %v7828 = vpack.c.b16 %v7802, %v7800
    %v7829 = vpack.c.b16 %v7803, %v7803
    %v7830 = vpack.c.b16 %v7804, %v7804
    %v7856 = vsel %vm1414, %v7704, 0
    %v7859 = vsel %vm1454, %v7829, 0
    %v7862 = vsel %vm1454, %v7830, 0
    %7864 = vmatprep.subr.bf16.mxu0 %v7806
    %7865 = vmatpush1.bf16.msra.mxu0 %v7805
    %7866 = vmatprep.subr.bf16.mxu0 %v7808
    %7867 = vmatpush1.bf16.msra.mxu0 %v7807
    %7868 = vmatprep.subr.bf16.mxu0 %v7810
    %7869 = vmatpush1.bf16.msra.mxu0 %v7809
    %7870 = vmatprep.subr.bf16.mxu0 %v7812
    %7871 = vmatpush1.bf16.msra.mxu0 %v7811
    %7872 = vmatprep.subr.bf16.mxu0 %v7814
    %7873 = vmatpush1.bf16.msra.mxu0 %v7813
    %7874 = vmatprep.subr.bf16.mxu0 %v7816
    %7875 = vmatpush1.bf16.msra.mxu0 %v7815
    %7876 = vmatprep.subr.bf16.mxu0 %v7818
    %7877 = vmatpush1.bf16.msra.mxu0 %v7817
    %7878 = vmatprep.subr.bf16.mxu0 %v7820
    %7879 = vmatpush1.bf16.msra.mxu0 %v7819
    %7880 = vmatprep.subr.bf16.mxu0 %v7822
    %7881 = vmatpush1.bf16.msra.mxu0 %v7821
    %7882 = vmatprep.subr.bf16.mxu0 %v7824
    %7883 = vmatpush1.bf16.msra.mxu0 %v7823
    %7884 = vmatprep.subr.bf16.mxu0 %v7826
    %7885 = vmatpush1.bf16.msra.mxu0 %v7825
    %7886 = vmatprep.subr.bf16.mxu0 %v7828
    %7887 = vmatpush1.bf16.msra.mxu0 %v7827
    %7888 = vmatprep.subr.bf16.mxu0 %v7862
    %7889 = vmatpush1.bf16.msra.mxu0 %v7859
    %7890 = vmatprep.subr.bf16.mxu0 0
    %7891 = vmatpush1.bf16.msra.mxu0 0
    %7892 = vmatprep.subr.bf16.mxu0 0
    %7893 = vmatpush1.bf16.msra.mxu0 0
    %7894 = vmatprep.subr.bf16.mxu0 0
    %7895 = vmatpush1.bf16.msra.mxu0 0
    %7896 = vmatprep.mubr.bf16.mxu0 %v7856
    %7897 = vmatmul.mubr.bf16.gmra.mrb[0].mxu0 %v7703
    %v7898 = vpop.f32.mrb[0].mxu0
    %v7899 = vadd.f32 0.0, %v7898
    %v7900 = vpop.f32.mrb[0].mxu0
    %v7901 = vadd.f32 0.0, %v7900
    %v7902 = vpop.f32.mrb[0].mxu0
    %v7903 = vadd.f32 0.0, %v7902
    %v7904 = vpop.f32.mrb[0].mxu0
    %v7905 = vadd.f32 0.0, %v7904
    %7906 = vdwg.mxu0
    %v7907 = vld [vmem:[#allocation13] sm:$0xff]
    %v7908 = vld [vmem:[#allocation13 + $0x8] sm:$0xff]
    %v7909 = vld [vmem:[#allocation13 + $0x10] sm:$0xff]
    %v7910 = vld [vmem:[#allocation13 + $0x18] sm:$0xff]
    %v7911 = vld [vmem:[#allocation13 + $0x20] sm:$0xff]
    %v7912 = vld [vmem:[#allocation13 + $0x28] sm:$0xff]
    %v7913 = vld [vmem:[#allocation13 + $0x30] sm:$0xff]
    %v7914 = vld [vmem:[#allocation13 + $0x38] sm:$0xff]
    %v7915 = vld [vmem:[#allocation13 + $0x40] sm:$0xff]
    %v7916 = vld [vmem:[#allocation13 + $0x48] sm:$0xff]
    %v7917 = vld [vmem:[#allocation13 + $0x50] sm:$0xff]
    %v7918 = vld [vmem:[#allocation13 + $0x58] sm:$0xff]
    %v7919 = vld [vmem:[#allocation13 + $0x60] sm:$0xff]
    %v7920 = vld [vmem:[#allocation13 + $0x68] sm:$0xff]
    %v7921 = vld [vmem:[#allocation13 + $0x70] sm:$0xff]
    %v7922 = vld [vmem:[#allocation13 + $0x78] sm:$0xff]
    %v7923 = vld [vmem:[#allocation13 + $0x80] sm:$0xff]
    %v7924 = vld [vmem:[#allocation13 + $0x88] sm:$0xff]
    %v7925 = vld [vmem:[#allocation13 + $0x90] sm:$0xff]
    %v7926 = vld [vmem:[#allocation13 + $0x98] sm:$0xff]
    %v7927 = vld [vmem:[#allocation13 + $0xa0] sm:$0xff]
    %v7928 = vld [vmem:[#allocation13 + $0xa8] sm:$0xff]
    %v7929 = vld [vmem:[#allocation13 + $0xb0] sm:$0xff]
    %v7930 = vld [vmem:[#allocation13 + $0xb8] sm:$0xff]
    %v7931 = vld [vmem:[#allocation13 + $0xc0] sm:$0xff]
    %v7957 = vunpack.c.l.b16 %v7907
    %v7958 = vunpack.c.h.b16 %v7907
    %v7959 = vunpack.c.l.b16 %v7908
    %v7960 = vunpack.c.h.b16 %v7908
    %v7961 = vunpack.c.l.b16 %v7909
    %v7962 = vunpack.c.h.b16 %v7909
    %v7963 = vunpack.c.l.b16 %v7910
    %v7964 = vunpack.c.h.b16 %v7910
    %v7965 = vunpack.c.l.b16 %v7911
    %v7966 = vunpack.c.h.b16 %v7911
    %v7967 = vunpack.c.l.b16 %v7912
    %v7968 = vunpack.c.h.b16 %v7912
    %v7969 = vunpack.c.l.b16 %v7913
    %v7970 = vunpack.c.h.b16 %v7913
    %v7971 = vunpack.c.l.b16 %v7914
    %v7972 = vunpack.c.h.b16 %v7914
    %v7973 = vunpack.c.l.b16 %v7915
    %v7974 = vunpack.c.h.b16 %v7915
    %v7975 = vunpack.c.l.b16 %v7916
    %v7976 = vunpack.c.h.b16 %v7916
    %v7977 = vunpack.c.l.b16 %v7917
    %v7978 = vunpack.c.h.b16 %v7917
    %v7979 = vunpack.c.l.b16 %v7918
    %v7980 = vunpack.c.h.b16 %v7918
    %v7981 = vunpack.c.l.b16 %v7919
    %v7982 = vunpack.c.h.b16 %v7919
    %v7983 = vunpack.c.l.b16 %v7920
    %v7984 = vunpack.c.h.b16 %v7920
    %v7985 = vunpack.c.l.b16 %v7921
    %v7986 = vunpack.c.h.b16 %v7921
    %v7987 = vunpack.c.l.b16 %v7922
    %v7988 = vunpack.c.h.b16 %v7922
    %v7989 = vunpack.c.l.b16 %v7923
    %v7990 = vunpack.c.h.b16 %v7923
    %v7991 = vunpack.c.l.b16 %v7924
    %v7992 = vunpack.c.h.b16 %v7924
    %v7993 = vunpack.c.l.b16 %v7925
    %v7994 = vunpack.c.h.b16 %v7925
    %v7995 = vunpack.c.l.b16 %v7926
    %v7996 = vunpack.c.h.b16 %v7926
    %v7997 = vunpack.c.l.b16 %v7927
    %v7998 = vunpack.c.h.b16 %v7927
    %v7999 = vunpack.c.l.b16 %v7928
    %v8000 = vunpack.c.h.b16 %v7928
    %v8001 = vunpack.c.l.b16 %v7929
    %v8002 = vunpack.c.h.b16 %v7929
    %v8003 = vunpack.c.l.b16 %v7930
    %v8004 = vunpack.c.h.b16 %v7930
    %v8005 = vunpack.c.l.b16 %v7931
    %v8006 = vunpack.c.h.b16 %v7931
    %v8007 = vpack.c.b16 %v7959, %v7957
    %v8008 = vpack.c.b16 %v7960, %v7958
    %v8009 = vpack.c.b16 %v7963, %v7961
    %v8010 = vpack.c.b16 %v7964, %v7962
    %v8011 = vpack.c.b16 %v7967, %v7965
    %v8012 = vpack.c.b16 %v7968, %v7966
    %v8013 = vpack.c.b16 %v7971, %v7969
    %v8014 = vpack.c.b16 %v7972, %v7970
    %v8015 = vpack.c.b16 %v7975, %v7973
    %v8016 = vpack.c.b16 %v7976, %v7974
    %v8017 = vpack.c.b16 %v7979, %v7977
    %v8018 = vpack.c.b16 %v7980, %v7978
    %v8019 = vpack.c.b16 %v7983, %v7981
    %v8020 = vpack.c.b16 %v7984, %v7982
    %v8021 = vpack.c.b16 %v7987, %v7985
    %v8022 = vpack.c.b16 %v7988, %v7986
    %v8023 = vpack.c.b16 %v7991, %v7989
    %v8024 = vpack.c.b16 %v7992, %v7990
    %v8025 = vpack.c.b16 %v7995, %v7993
    %v8026 = vpack.c.b16 %v7996, %v7994
    %v8027 = vpack.c.b16 %v7999, %v7997
    %v8028 = vpack.c.b16 %v8000, %v7998
    %v8029 = vpack.c.b16 %v8003, %v8001
    %v8030 = vpack.c.b16 %v8004, %v8002
    %v8031 = vpack.c.b16 %v8005, %v8005
    %v8032 = vpack.c.b16 %v8006, %v8006
    %v8058 = vsel %vm1454, %v8031, 0
    %v8061 = vsel %vm1454, %v8032, 0
    %8063 = vmatprep.subr.bf16.mxu0 %v8008
    %8064 = vmatpush1.bf16.msra.mxu0 %v8007
    %8065 = vmatprep.subr.bf16.mxu0 %v8010
    %8066 = vmatpush1.bf16.msra.mxu0 %v8009
    %8067 = vmatprep.subr.bf16.mxu0 %v8012
    %8068 = vmatpush1.bf16.msra.mxu0 %v8011
    %8069 = vmatprep.subr.bf16.mxu0 %v8014
    %8070 = vmatpush1.bf16.msra.mxu0 %v8013
    %8071 = vmatprep.subr.bf16.mxu0 %v8016
    %8072 = vmatpush1.bf16.msra.mxu0 %v8015
    %8073 = vmatprep.subr.bf16.mxu0 %v8018
    %8074 = vmatpush1.bf16.msra.mxu0 %v8017
    %8075 = vmatprep.subr.bf16.mxu0 %v8020
    %8076 = vmatpush1.bf16.msra.mxu0 %v8019
    %8077 = vmatprep.subr.bf16.mxu0 %v8022
    %8078 = vmatpush1.bf16.msra.mxu0 %v8021
    %8079 = vmatprep.subr.bf16.mxu0 %v8024
    %8080 = vmatpush1.bf16.msra.mxu0 %v8023
    %8081 = vmatprep.subr.bf16.mxu0 %v8026
    %8082 = vmatpush1.bf16.msra.mxu0 %v8025
    %8083 = vmatprep.subr.bf16.mxu0 %v8028
    %8084 = vmatpush1.bf16.msra.mxu0 %v8027
    %8085 = vmatprep.subr.bf16.mxu0 %v8030
    %8086 = vmatpush1.bf16.msra.mxu0 %v8029
    %8087 = vmatprep.subr.bf16.mxu0 %v8061
    %8088 = vmatpush1.bf16.msra.mxu0 %v8058
    %8089 = vmatprep.subr.bf16.mxu0 0
    %8090 = vmatpush1.bf16.msra.mxu0 0
    %8091 = vmatprep.subr.bf16.mxu0 0
    %8092 = vmatpush1.bf16.msra.mxu0 0
    %8093 = vmatprep.subr.bf16.mxu0 0
    %8094 = vmatpush1.bf16.msra.mxu0 0
    %8095 = vmatprep.mubr.bf16.mxu0 %v7856
    %8096 = vmatmul.mubr.bf16.gmra.mrb[0].mxu0 %v7703
    %v8097 = vpop.f32.mrb[0].mxu0
    %v8098 = vadd.f32 0.0, %v8097
    %v8099 = vpop.f32.mrb[0].mxu0
    %v8100 = vadd.f32 0.0, %v8099
    %v8101 = vpop.f32.mrb[0].mxu0
    %v8102 = vadd.f32 0.0, %v8101
    %v8103 = vpop.f32.mrb[0].mxu0
    %v8104 = vadd.f32 0.0, %v8103
    %8105 = vdwg.mxu0
    %v8106 = vmul.f32 %v7899, %v7488
    %v8107 = vmul.f32 %v7901, %v7489
    %v8108 = vmul.f32 %v8098, %v7518
    %v8109 = vmul.f32 %v8100, %v7519
    %v8110 = vadd.f32 %v8106, %v8108
    %v8111 = vadd.f32 %v8107, %v8109
    %v8112 = vsel %vm1414, %v8111, 0.0
    %v8113 = vadd.f32 %v8110, %v8112
    %8114 = vadd.xlane.f32.xlu0 %v8113
    %v8115 = vpop.xlane.xlu0 %8114
    %v8116 = vmul.f32 %v7903, %v7488
    %v8117 = vmul.f32 %v7905, %v7489
    %v8118 = vmul.f32 %v8102, %v7518
    %v8119 = vmul.f32 %v8104, %v7519
    %v8120 = vadd.f32 %v8116, %v8118
    %v8121 = vadd.f32 %v8117, %v8119
    %v8122 = vsel %vm1414, %v8121, 0.0
    %v8123 = vadd.f32 %v8120, %v8122
    %8124 = vadd.xlane.f32.xlu0 %v8123
    %v8125 = vpop.xlane.xlu0 %8124
    %vm8126 = vcmask 7168
    %v8127 = vsel %vm8126, %v8115, %v8125
    %v8128 = vtanh.pop %v8127
    %vm8129 = vcmask 15360
    %8130 = vst.msk [vmem:[%s22] sm:$0xff] %vm8129, %v8128
    // Predicated region
    $region114: #{tpu_custom_call.1} parent=1 // pred_check
      _
    $region115: #{tpu_custom_call.1} parent=1 // pred_check_branch
      %8132 = sbr.rel (0) target = $region117
    $region116: #{tpu_custom_call.1} parent=1 // pred_region
      _
    $region117: #{tpu_custom_call.1} parent=1 // pred_fallthru
      _
    // Predicated region
    $region118: #{tpu_custom_call.1} parent=1 // pred_check
      _
    $region119: #{tpu_custom_call.1} parent=1 // pred_check_branch
      %8134 = sbr.rel (0) target = $region121
    $region120: #{tpu_custom_call.1} parent=1 // pred_region
      _
    $region121: #{tpu_custom_call.1} parent=1 // pred_fallthru
      _
    %8135 = vsyncpa [#allocation6], 1
    %8136 = vsyncpa [#allocation8], 1
    %8137 = vsyncpa [#allocation11], 1
    %8138 = vsyncpa [#allocation14], 1

</llo_original>
